<compile_context>
chip_gen: v6e
topology: v6e:2x2x1
jax: 0.10.0
libtpu: 0.0.40
codegen_flags: <defaults>
</compile_context>

<pallas_src>
import functools

import jax
import jax.numpy as jnp
import numpy as np
from jax.experimental import pallas as pl
from jax.experimental.pallas import tpu as pltpu


# ---------------------------------------------------------------------------
# Fused kernel: whole DownSample2 forward for one batch element.
# ---------------------------------------------------------------------------
def _mish_f32(y):
    # y * tanh(softplus(y)), stable softplus = max(y,0) + log1p(exp(-|y|)).
    sp = jnp.maximum(y, 0.0) + jnp.log1p(jnp.exp(-jnp.abs(y)))
    return y * jnp.tanh(sp)


def _downsample2_kernel(x_ref, t1_ref, w1_ref, b1_ref,
                        w2_ref, b2_ref, w3_ref, b3_ref,
                        s_ref, wra_ref, bra_ref, wrb_ref, brb_ref,
                        w4_ref, b4_ref, w5_ref, b5_ref, o_ref):
    f32 = jnp.float32
    bf16 = jnp.bfloat16
    m = t1_ref.shape[1]                      # Ho*Wo output positions

    x = x_ref[0]                             # (H*W, 64) bf16

    # conv1: 3x3 stride-2 64->128.  9 taps: (select @ x) @ W_t, f32 accumulate.
    acc = jnp.zeros((m, 128), f32)
    for t in range(9):
        tap = jnp.dot(t1_ref[t], x, preferred_element_type=f32).astype(bf16)
        acc = acc + jnp.dot(tap, w1_ref[t], preferred_element_type=f32)
    x1 = _mish_f32(acc + b1_ref[...]).astype(bf16)                  # (M, 128)

    # conv2 / conv3: 1x1 128->64 (stay in VMEM, never stored to HBM).
    x2 = _mish_f32(jnp.dot(x1, w2_ref[...], preferred_element_type=f32)
                   + b2_ref[...])                                   # (M, 64) f32
    x3 = _mish_f32(jnp.dot(x1, w3_ref[...], preferred_element_type=f32)
                   + b3_ref[...])                                   # (M, 64) f32

    # ResBlock(64, nblocks=2): h = 1x1(r); r = r + 3x3(h)  (mish after each).
    r = x3
    for i in range(2):
        h = _mish_f32(jnp.dot(r.astype(bf16), wra_ref[i],
                              preferred_element_type=f32) + bra_ref[i])
        hb = h.astype(bf16)
        acc = jnp.zeros((m, 64), f32)
        for t in range(9):
            tap = jnp.dot(s_ref[t], hb, preferred_element_type=f32).astype(bf16)
            acc = acc + jnp.dot(tap, wrb_ref[i, t], preferred_element_type=f32)
        r = r + _mish_f32(acc + brb_ref[i])

    # conv4: 1x1 64->64.
    x4 = _mish_f32(jnp.dot(r.astype(bf16), w4_ref[...],
                           preferred_element_type=f32) + b4_ref[...])

    # conv5: 1x1 128->128 on concat([x4, x2]) expressed as a K-split accumulate.
    acc = jnp.dot(x4.astype(bf16), w5_ref[0], preferred_element_type=f32)
    acc = acc + jnp.dot(x2.astype(bf16), w5_ref[1], preferred_element_type=f32)
    x5 = _mish_f32(acc + b5_ref[...])

    o_ref[0] = x5.astype(o_ref.dtype)


# ---------------------------------------------------------------------------
# Host-side glue: selection matrices, folded params, wrapper.
# ---------------------------------------------------------------------------
def _build_shift_matrices(h, w):
    """0/1 spatial selection matrices (bf16) for the 3x3 convs.

    t1[t]: (Ho*Wo, H*W)  -- conv1, stride 2, pad 1.
    s[t] : (Ho*Wo, Ho*Wo) -- ResBlock 3x3, stride 1, pad 1.
    Tap index t = dh*3 + dw, spatial offsets (dh-1, dw-1); out-of-bounds = 0.
    """
    ho, wo = h // 2, w // 2
    t1 = np.zeros((9, ho * wo, h * w), np.float32)
    s = np.zeros((9, ho * wo, ho * wo), np.float32)
    for dh in range(3):
        for dw in range(3):
            t = dh * 3 + dw
            for i in range(ho):
                for j in range(wo):
                    r, c = 2 * i + dh - 1, 2 * j + dw - 1
                    if 0 <= r < h and 0 <= c < w:
                        t1[t, i * wo + j, r * w + c] = 1.0
                    r, c = i + dh - 1, j + dw - 1
                    if 0 <= r < ho and 0 <= c < wo:
                        s[t, i * wo + j, r * wo + c] = 1.0
    return jnp.asarray(t1, jnp.bfloat16), jnp.asarray(s, jnp.bfloat16)


def _fold_bn(key, cin, cout, ksize):
    """Random Conv+BN params, BN folded into a bf16 weight and f32 bias."""
    kw, kg, kb, km, kv = jax.random.split(key, 5)
    fan_in = cin * ksize * ksize
    w = jax.random.normal(kw, (cout, cin, ksize, ksize), jnp.float32)
    w = w * (1.0 / np.sqrt(fan_in))
    gamma = 1.0 + 0.1 * jax.random.normal(kg, (cout,), jnp.float32)
    beta = 0.1 * jax.random.normal(kb, (cout,), jnp.float32)
    r_mean = 0.1 * jax.random.normal(km, (cout,), jnp.float32)
    r_var = jnp.abs(1.0 + 0.1 * jax.random.normal(kv, (cout,), jnp.float32))
    eps = 1e-5
    scale = gamma / jnp.sqrt(r_var + eps)               # folded BN
    bias = (beta - r_mean * scale).reshape(1, cout).astype(jnp.float32)
    w_s = w * scale[:, None, None, None]
    if ksize == 1:
        wk = jnp.transpose(w_s[:, :, 0, 0], (1, 0))                 # (cin, cout)
    else:
        # OIHW -> (kh*kw, cin, cout), tap order t = dh*3 + dw.
        wk = jnp.transpose(w_s, (2, 3, 1, 0)).reshape(9, cin, cout)
    return wk.astype(jnp.bfloat16), bias


def make_downsample2_params(key):
    keys = jax.random.split(key, 9)
    w1, b1 = _fold_bn(keys[0], 64, 128, 3)
    w2, b2 = _fold_bn(keys[1], 128, 64, 1)
    w3, b3 = _fold_bn(keys[2], 128, 64, 1)
    w4, b4 = _fold_bn(keys[3], 64, 64, 1)
    w5, b5 = _fold_bn(keys[4], 128, 128, 1)
    ra, rb = [], []
    for i in range(2):                                  # ResBlock(64, nblocks=2)
        ra.append(_fold_bn(keys[5 + 2 * i], 64, 64, 1))
        rb.append(_fold_bn(keys[6 + 2 * i], 64, 64, 3))
    return dict(
        w1=w1, b1=b1, w2=w2, b2=b2, w3=w3, b3=b3,
        wra=jnp.stack([ra[0][0], ra[1][0]]),            # (2, 64, 64)
        bra=jnp.stack([ra[0][1], ra[1][1]]),            # (2, 1, 64)
        wrb=jnp.stack([rb[0][0], rb[1][0]]),            # (2, 9, 64, 64)
        brb=jnp.stack([rb[0][1], rb[1][1]]),            # (2, 1, 64)
        w4=w4, b4=b4,
        # conv5 weight split along K: rows 0:64 multiply x4, rows 64:128 multiply x2
        # (matches torch.cat([x4, x2], dim=1)).
        w5=jnp.stack([w5[:64, :], w5[64:, :]]),         # (2, 64, 128)
        b5=b5,
    )


def _const_spec(arr):
    zeros = (0,) * arr.ndim
    return pl.BlockSpec(arr.shape, lambda b, z=zeros: z)


def downsample2_forward(x_nchw, params):
    n, cin, h, w = x_nchw.shape
    assert cin == 64 and h % 2 == 0 and w % 2 == 0
    ho, wo = h // 2, w // 2
    m, hw = ho * wo, h * w
    assert m % 8 == 0, "Ho*Wo must be a multiple of 8 (sublane tiling)"

    t1, s = _build_shift_matrices(h, w)
    x = jnp.transpose(x_nchw, (0, 2, 3, 1)).reshape(n, hw, 64).astype(jnp.bfloat16)

    consts = (t1, params["w1"], params["b1"], params["w2"], params["b2"],
              params["w3"], params["b3"], s, params["wra"], params["bra"],
              params["wrb"], params["brb"], params["w4"], params["b4"],
              params["w5"], params["b5"])

    x_spec = pl.BlockSpec((1, hw, 64), lambda b: (b, 0, 0))
    o_spec = pl.BlockSpec((1, m, 128), lambda b: (b, 0, 0))
    in_specs = [x_spec] + [_const_spec(a) for a in consts]

    macs_per_item = (9 * m * hw * 64 + 9 * m * 64 * 128        # conv1 taps
                     + 2 * m * 128 * 64                        # conv2 + conv3
                     + 2 * (m * 64 * 64 + 18 * m * 64 * 64)    # resblock x2
                     + m * 64 * 64                             # conv4
                     + 2 * m * 64 * 128)                       # conv5 K-split
    mish_elems = n * m * 704                                   # 7 mish layers
    in_bytes = sum(int(a.size) * a.dtype.itemsize for a in (x,) + consts)
    cost = pl.CostEstimate(flops=2 * n * macs_per_item,
                           transcendentals=3 * mish_elems,
                           bytes_accessed=in_bytes + n * m * 128 * 2)

    out2d = pl.pallas_call(
        _downsample2_kernel,
        out_shape=jax.ShapeDtypeStruct((n, m, 128), jnp.bfloat16),
        grid_spec=pltpu.PrefetchScalarGridSpec(
            num_scalar_prefetch=0, grid=(n,),
            in_specs=in_specs, out_specs=o_spec),
        compiler_params=pltpu.CompilerParams(
            dimension_semantics=("parallel",)),
        cost_estimate=cost,
    )(x, *consts)

    out = out2d.reshape(n, ho, wo, 128)
    return jnp.transpose(out, (0, 3, 1, 2)).astype(jnp.float32)   # NHWC -> NCHW


if __name__ == "__main__":
    key = jax.random.PRNGKey(0)
    kx, kp = jax.random.split(key)
    # Channel count (64) is fixed by the module; small spatial size.
    x = jax.random.normal(kx, (2, 64, 16, 16), jnp.float32)
    params = make_downsample2_params(kp)

    fwd = jax.jit(functools.partial(downsample2_forward, params=params))
    out = fwd(x)
    jax.block_until_ready(out)
    assert out.shape == (2, 128, 8, 8), out.shape
    assert bool(jnp.all(jnp.isfinite(out)))
    print("KERNEL_OK")
</pallas_src>

<mosaic_0001>
module attributes {stable_mosaic.version = 11 : i64} {
  func.func @_downsample2_kernel(%arg0: i32, %arg1: memref<1x256x64xbf16, #tpu.memory_space<vmem>>, %arg2: memref<9x64x256xbf16, #tpu.memory_space<vmem>>, %arg3: memref<9x64x128xbf16, #tpu.memory_space<vmem>>, %arg4: memref<1x128xf32, #tpu.memory_space<vmem>>, %arg5: memref<128x64xbf16, #tpu.memory_space<vmem>>, %arg6: memref<1x64xf32, #tpu.memory_space<vmem>>, %arg7: memref<128x64xbf16, #tpu.memory_space<vmem>>, %arg8: memref<1x64xf32, #tpu.memory_space<vmem>>, %arg9: memref<9x64x64xbf16, #tpu.memory_space<vmem>>, %arg10: memref<2x64x64xbf16, #tpu.memory_space<vmem>>, %arg11: memref<2x1x64xf32, #tpu.memory_space<vmem>>, %arg12: memref<2x9x64x64xbf16, #tpu.memory_space<vmem>>, %arg13: memref<2x1x64xf32, #tpu.memory_space<vmem>>, %arg14: memref<64x64xbf16, #tpu.memory_space<vmem>>, %arg15: memref<1x64xf32, #tpu.memory_space<vmem>>, %arg16: memref<2x64x128xbf16, #tpu.memory_space<vmem>>, %arg17: memref<1x128xf32, #tpu.memory_space<vmem>>, %arg18: memref<1x64x128xbf16, #tpu.memory_space<vmem>>) attributes {dimension_semantics = [#tpu.dimension_semantics<parallel>], iteration_bounds = array<i64: 2>, scalar_prefetch = 0 : i64, scratch_operands = 0 : i64, tpu.core_type = #tpu.core_type<tc>, window_params = [{transform_indices = @transform_0, window_bounds = array<i64: 1, 256, 64>}, {pipeline_mode = #tpu.pipeline_mode<synchronous>, transform_indices = @transform_1, window_bounds = array<i64: 9, 64, 256>}, {pipeline_mode = #tpu.pipeline_mode<synchronous>, transform_indices = @transform_2, window_bounds = array<i64: 9, 64, 128>}, {pipeline_mode = #tpu.pipeline_mode<synchronous>, transform_indices = @transform_3, window_bounds = array<i64: 1, 128>}, {pipeline_mode = #tpu.pipeline_mode<synchronous>, transform_indices = @transform_4, window_bounds = array<i64: 128, 64>}, {pipeline_mode = #tpu.pipeline_mode<synchronous>, transform_indices = @transform_5, window_bounds = array<i64: 1, 64>}, {pipeline_mode = #tpu.pipeline_mode<synchronous>, transform_indices = @transform_6, window_bounds = array<i64: 128, 64>}, {pipeline_mode = #tpu.pipeline_mode<synchronous>, transform_indices = @transform_7, window_bounds = array<i64: 1, 64>}, {pipeline_mode = #tpu.pipeline_mode<synchronous>, transform_indices = @transform_8, window_bounds = array<i64: 9, 64, 64>}, {pipeline_mode = #tpu.pipeline_mode<synchronous>, transform_indices = @transform_9, window_bounds = array<i64: 2, 64, 64>}, {pipeline_mode = #tpu.pipeline_mode<synchronous>, transform_indices = @transform_10, window_bounds = array<i64: 2, 1, 64>}, {pipeline_mode = #tpu.pipeline_mode<synchronous>, transform_indices = @transform_11, window_bounds = array<i64: 2, 9, 64, 64>}, {pipeline_mode = #tpu.pipeline_mode<synchronous>, transform_indices = @transform_12, window_bounds = array<i64: 2, 1, 64>}, {pipeline_mode = #tpu.pipeline_mode<synchronous>, transform_indices = @transform_13, window_bounds = array<i64: 64, 64>}, {pipeline_mode = #tpu.pipeline_mode<synchronous>, transform_indices = @transform_14, window_bounds = array<i64: 1, 64>}, {pipeline_mode = #tpu.pipeline_mode<synchronous>, transform_indices = @transform_15, window_bounds = array<i64: 2, 64, 128>}, {pipeline_mode = #tpu.pipeline_mode<synchronous>, transform_indices = @transform_16, window_bounds = array<i64: 1, 128>}, {transform_indices = @transform_17, window_bounds = array<i64: 1, 64, 128>}]} {
    %c0 = arith.constant 0 : index
    %c0_0 = arith.constant 0 : index
    %c0_1 = arith.constant 0 : index
    %0 = vector.load %arg1[%c0, %c0_0, %c0_1] : memref<1x256x64xbf16, #tpu.memory_space<vmem>>, vector<1x256x64xbf16>
    %1 = vector.shape_cast %0 : vector<1x256x64xbf16> to vector<256x64xbf16>
    %cst = arith.constant 0.000000e+00 : f32
    %2 = vector.broadcast %cst : f32 to vector<64x128xf32>
    %c0_2 = arith.constant 0 : index
    %c0_3 = arith.constant 0 : index
    %c0_4 = arith.constant 0 : index
    %3 = vector.load %arg2[%c0_2, %c0_3, %c0_4] : memref<9x64x256xbf16, #tpu.memory_space<vmem>>, vector<1x64x256xbf16>
    %4 = vector.shape_cast %3 : vector<1x64x256xbf16> to vector<64x256xbf16>
    %cst_5 = arith.constant dense<0.000000e+00> : vector<64x64xf32>
    %5 = tpu.matmul %4, %1, %cst_5 {dimension_numbers = #tpu.dot_dimension_numbers<[1], [0], [0], [1], [0, 0, 1, 1], [], []>} : vector<64x256xbf16>, vector<256x64xbf16>, vector<64x64xf32> -> vector<64x64xf32>
    %6 = arith.truncf %5 : vector<64x64xf32> to vector<64x64xbf16>
    %c0_6 = arith.constant 0 : index
    %c0_7 = arith.constant 0 : index
    %c0_8 = arith.constant 0 : index
    %7 = vector.load %arg3[%c0_6, %c0_7, %c0_8] : memref<9x64x128xbf16, #tpu.memory_space<vmem>>, vector<1x64x128xbf16>
    %8 = vector.shape_cast %7 : vector<1x64x128xbf16> to vector<64x128xbf16>
    %cst_9 = arith.constant dense<0.000000e+00> : vector<64x128xf32>
    %9 = tpu.matmul %6, %8, %cst_9 {dimension_numbers = #tpu.dot_dimension_numbers<[1], [0], [0], [1], [0, 0, 1, 1], [], []>} : vector<64x64xbf16>, vector<64x128xbf16>, vector<64x128xf32> -> vector<64x128xf32>
    %10 = arith.addf %2, %9 : vector<64x128xf32>
    %c1 = arith.constant 1 : index
    %c0_10 = arith.constant 0 : index
    %c0_11 = arith.constant 0 : index
    %11 = vector.load %arg2[%c1, %c0_10, %c0_11] : memref<9x64x256xbf16, #tpu.memory_space<vmem>>, vector<1x64x256xbf16>
    %12 = vector.shape_cast %11 : vector<1x64x256xbf16> to vector<64x256xbf16>
    %cst_12 = arith.constant dense<0.000000e+00> : vector<64x64xf32>
    %13 = tpu.matmul %12, %1, %cst_12 {dimension_numbers = #tpu.dot_dimension_numbers<[1], [0], [0], [1], [0, 0, 1, 1], [], []>} : vector<64x256xbf16>, vector<256x64xbf16>, vector<64x64xf32> -> vector<64x64xf32>
    %14 = arith.truncf %13 : vector<64x64xf32> to vector<64x64xbf16>
    %c1_13 = arith.constant 1 : index
    %c0_14 = arith.constant 0 : index
    %c0_15 = arith.constant 0 : index
    %15 = vector.load %arg3[%c1_13, %c0_14, %c0_15] : memref<9x64x128xbf16, #tpu.memory_space<vmem>>, vector<1x64x128xbf16>
    %16 = vector.shape_cast %15 : vector<1x64x128xbf16> to vector<64x128xbf16>
    %cst_16 = arith.constant dense<0.000000e+00> : vector<64x128xf32>
    %17 = tpu.matmul %14, %16, %cst_16 {dimension_numbers = #tpu.dot_dimension_numbers<[1], [0], [0], [1], [0, 0, 1, 1], [], []>} : vector<64x64xbf16>, vector<64x128xbf16>, vector<64x128xf32> -> vector<64x128xf32>
    %18 = arith.addf %10, %17 : vector<64x128xf32>
    %c2 = arith.constant 2 : index
    %c0_17 = arith.constant 0 : index
    %c0_18 = arith.constant 0 : index
    %19 = vector.load %arg2[%c2, %c0_17, %c0_18] : memref<9x64x256xbf16, #tpu.memory_space<vmem>>, vector<1x64x256xbf16>
    %20 = vector.shape_cast %19 : vector<1x64x256xbf16> to vector<64x256xbf16>
    %cst_19 = arith.constant dense<0.000000e+00> : vector<64x64xf32>
    %21 = tpu.matmul %20, %1, %cst_19 {dimension_numbers = #tpu.dot_dimension_numbers<[1], [0], [0], [1], [0, 0, 1, 1], [], []>} : vector<64x256xbf16>, vector<256x64xbf16>, vector<64x64xf32> -> vector<64x64xf32>
    %22 = arith.truncf %21 : vector<64x64xf32> to vector<64x64xbf16>
    %c2_20 = arith.constant 2 : index
    %c0_21 = arith.constant 0 : index
    %c0_22 = arith.constant 0 : index
    %23 = vector.load %arg3[%c2_20, %c0_21, %c0_22] : memref<9x64x128xbf16, #tpu.memory_space<vmem>>, vector<1x64x128xbf16>
    %24 = vector.shape_cast %23 : vector<1x64x128xbf16> to vector<64x128xbf16>
    %cst_23 = arith.constant dense<0.000000e+00> : vector<64x128xf32>
    %25 = tpu.matmul %22, %24, %cst_23 {dimension_numbers = #tpu.dot_dimension_numbers<[1], [0], [0], [1], [0, 0, 1, 1], [], []>} : vector<64x64xbf16>, vector<64x128xbf16>, vector<64x128xf32> -> vector<64x128xf32>
    %26 = arith.addf %18, %25 : vector<64x128xf32>
    %c3 = arith.constant 3 : index
    %c0_24 = arith.constant 0 : index
    %c0_25 = arith.constant 0 : index
    %27 = vector.load %arg2[%c3, %c0_24, %c0_25] : memref<9x64x256xbf16, #tpu.memory_space<vmem>>, vector<1x64x256xbf16>
    %28 = vector.shape_cast %27 : vector<1x64x256xbf16> to vector<64x256xbf16>
    %cst_26 = arith.constant dense<0.000000e+00> : vector<64x64xf32>
    %29 = tpu.matmul %28, %1, %cst_26 {dimension_numbers = #tpu.dot_dimension_numbers<[1], [0], [0], [1], [0, 0, 1, 1], [], []>} : vector<64x256xbf16>, vector<256x64xbf16>, vector<64x64xf32> -> vector<64x64xf32>
    %30 = arith.truncf %29 : vector<64x64xf32> to vector<64x64xbf16>
    %c3_27 = arith.constant 3 : index
    %c0_28 = arith.constant 0 : index
    %c0_29 = arith.constant 0 : index
    %31 = vector.load %arg3[%c3_27, %c0_28, %c0_29] : memref<9x64x128xbf16, #tpu.memory_space<vmem>>, vector<1x64x128xbf16>
    %32 = vector.shape_cast %31 : vector<1x64x128xbf16> to vector<64x128xbf16>
    %cst_30 = arith.constant dense<0.000000e+00> : vector<64x128xf32>
    %33 = tpu.matmul %30, %32, %cst_30 {dimension_numbers = #tpu.dot_dimension_numbers<[1], [0], [0], [1], [0, 0, 1, 1], [], []>} : vector<64x64xbf16>, vector<64x128xbf16>, vector<64x128xf32> -> vector<64x128xf32>
    %34 = arith.addf %26, %33 : vector<64x128xf32>
    %c4 = arith.constant 4 : index
    %c0_31 = arith.constant 0 : index
    %c0_32 = arith.constant 0 : index
    %35 = vector.load %arg2[%c4, %c0_31, %c0_32] : memref<9x64x256xbf16, #tpu.memory_space<vmem>>, vector<1x64x256xbf16>
    %36 = vector.shape_cast %35 : vector<1x64x256xbf16> to vector<64x256xbf16>
    %cst_33 = arith.constant dense<0.000000e+00> : vector<64x64xf32>
    %37 = tpu.matmul %36, %1, %cst_33 {dimension_numbers = #tpu.dot_dimension_numbers<[1], [0], [0], [1], [0, 0, 1, 1], [], []>} : vector<64x256xbf16>, vector<256x64xbf16>, vector<64x64xf32> -> vector<64x64xf32>
    %38 = arith.truncf %37 : vector<64x64xf32> to vector<64x64xbf16>
    %c4_34 = arith.constant 4 : index
    %c0_35 = arith.constant 0 : index
    %c0_36 = arith.constant 0 : index
    %39 = vector.load %arg3[%c4_34, %c0_35, %c0_36] : memref<9x64x128xbf16, #tpu.memory_space<vmem>>, vector<1x64x128xbf16>
    %40 = vector.shape_cast %39 : vector<1x64x128xbf16> to vector<64x128xbf16>
    %cst_37 = arith.constant dense<0.000000e+00> : vector<64x128xf32>
    %41 = tpu.matmul %38, %40, %cst_37 {dimension_numbers = #tpu.dot_dimension_numbers<[1], [0], [0], [1], [0, 0, 1, 1], [], []>} : vector<64x64xbf16>, vector<64x128xbf16>, vector<64x128xf32> -> vector<64x128xf32>
    %42 = arith.addf %34, %41 : vector<64x128xf32>
    %c5 = arith.constant 5 : index
    %c0_38 = arith.constant 0 : index
    %c0_39 = arith.constant 0 : index
    %43 = vector.load %arg2[%c5, %c0_38, %c0_39] : memref<9x64x256xbf16, #tpu.memory_space<vmem>>, vector<1x64x256xbf16>
    %44 = vector.shape_cast %43 : vector<1x64x256xbf16> to vector<64x256xbf16>
    %cst_40 = arith.constant dense<0.000000e+00> : vector<64x64xf32>
    %45 = tpu.matmul %44, %1, %cst_40 {dimension_numbers = #tpu.dot_dimension_numbers<[1], [0], [0], [1], [0, 0, 1, 1], [], []>} : vector<64x256xbf16>, vector<256x64xbf16>, vector<64x64xf32> -> vector<64x64xf32>
    %46 = arith.truncf %45 : vector<64x64xf32> to vector<64x64xbf16>
    %c5_41 = arith.constant 5 : index
    %c0_42 = arith.constant 0 : index
    %c0_43 = arith.constant 0 : index
    %47 = vector.load %arg3[%c5_41, %c0_42, %c0_43] : memref<9x64x128xbf16, #tpu.memory_space<vmem>>, vector<1x64x128xbf16>
    %48 = vector.shape_cast %47 : vector<1x64x128xbf16> to vector<64x128xbf16>
    %cst_44 = arith.constant dense<0.000000e+00> : vector<64x128xf32>
    %49 = tpu.matmul %46, %48, %cst_44 {dimension_numbers = #tpu.dot_dimension_numbers<[1], [0], [0], [1], [0, 0, 1, 1], [], []>} : vector<64x64xbf16>, vector<64x128xbf16>, vector<64x128xf32> -> vector<64x128xf32>
    %50 = arith.addf %42, %49 : vector<64x128xf32>
    %c6 = arith.constant 6 : index
    %c0_45 = arith.constant 0 : index
    %c0_46 = arith.constant 0 : index
    %51 = vector.load %arg2[%c6, %c0_45, %c0_46] : memref<9x64x256xbf16, #tpu.memory_space<vmem>>, vector<1x64x256xbf16>
    %52 = vector.shape_cast %51 : vector<1x64x256xbf16> to vector<64x256xbf16>
    %cst_47 = arith.constant dense<0.000000e+00> : vector<64x64xf32>
    %53 = tpu.matmul %52, %1, %cst_47 {dimension_numbers = #tpu.dot_dimension_numbers<[1], [0], [0], [1], [0, 0, 1, 1], [], []>} : vector<64x256xbf16>, vector<256x64xbf16>, vector<64x64xf32> -> vector<64x64xf32>
    %54 = arith.truncf %53 : vector<64x64xf32> to vector<64x64xbf16>
    %c6_48 = arith.constant 6 : index
    %c0_49 = arith.constant 0 : index
    %c0_50 = arith.constant 0 : index
    %55 = vector.load %arg3[%c6_48, %c0_49, %c0_50] : memref<9x64x128xbf16, #tpu.memory_space<vmem>>, vector<1x64x128xbf16>
    %56 = vector.shape_cast %55 : vector<1x64x128xbf16> to vector<64x128xbf16>
    %cst_51 = arith.constant dense<0.000000e+00> : vector<64x128xf32>
    %57 = tpu.matmul %54, %56, %cst_51 {dimension_numbers = #tpu.dot_dimension_numbers<[1], [0], [0], [1], [0, 0, 1, 1], [], []>} : vector<64x64xbf16>, vector<64x128xbf16>, vector<64x128xf32> -> vector<64x128xf32>
    %58 = arith.addf %50, %57 : vector<64x128xf32>
    %c7 = arith.constant 7 : index
    %c0_52 = arith.constant 0 : index
    %c0_53 = arith.constant 0 : index
    %59 = vector.load %arg2[%c7, %c0_52, %c0_53] : memref<9x64x256xbf16, #tpu.memory_space<vmem>>, vector<1x64x256xbf16>
    %60 = vector.shape_cast %59 : vector<1x64x256xbf16> to vector<64x256xbf16>
    %cst_54 = arith.constant dense<0.000000e+00> : vector<64x64xf32>
    %61 = tpu.matmul %60, %1, %cst_54 {dimension_numbers = #tpu.dot_dimension_numbers<[1], [0], [0], [1], [0, 0, 1, 1], [], []>} : vector<64x256xbf16>, vector<256x64xbf16>, vector<64x64xf32> -> vector<64x64xf32>
    %62 = arith.truncf %61 : vector<64x64xf32> to vector<64x64xbf16>
    %c7_55 = arith.constant 7 : index
    %c0_56 = arith.constant 0 : index
    %c0_57 = arith.constant 0 : index
    %63 = vector.load %arg3[%c7_55, %c0_56, %c0_57] : memref<9x64x128xbf16, #tpu.memory_space<vmem>>, vector<1x64x128xbf16>
    %64 = vector.shape_cast %63 : vector<1x64x128xbf16> to vector<64x128xbf16>
    %cst_58 = arith.constant dense<0.000000e+00> : vector<64x128xf32>
    %65 = tpu.matmul %62, %64, %cst_58 {dimension_numbers = #tpu.dot_dimension_numbers<[1], [0], [0], [1], [0, 0, 1, 1], [], []>} : vector<64x64xbf16>, vector<64x128xbf16>, vector<64x128xf32> -> vector<64x128xf32>
    %66 = arith.addf %58, %65 : vector<64x128xf32>
    %c8 = arith.constant 8 : index
    %c0_59 = arith.constant 0 : index
    %c0_60 = arith.constant 0 : index
    %67 = vector.load %arg2[%c8, %c0_59, %c0_60] : memref<9x64x256xbf16, #tpu.memory_space<vmem>>, vector<1x64x256xbf16>
    %68 = vector.shape_cast %67 : vector<1x64x256xbf16> to vector<64x256xbf16>
    %cst_61 = arith.constant dense<0.000000e+00> : vector<64x64xf32>
    %69 = tpu.matmul %68, %1, %cst_61 {dimension_numbers = #tpu.dot_dimension_numbers<[1], [0], [0], [1], [0, 0, 1, 1], [], []>} : vector<64x256xbf16>, vector<256x64xbf16>, vector<64x64xf32> -> vector<64x64xf32>
    %70 = arith.truncf %69 : vector<64x64xf32> to vector<64x64xbf16>
    %c8_62 = arith.constant 8 : index
    %c0_63 = arith.constant 0 : index
    %c0_64 = arith.constant 0 : index
    %71 = vector.load %arg3[%c8_62, %c0_63, %c0_64] : memref<9x64x128xbf16, #tpu.memory_space<vmem>>, vector<1x64x128xbf16>
    %72 = vector.shape_cast %71 : vector<1x64x128xbf16> to vector<64x128xbf16>
    %cst_65 = arith.constant dense<0.000000e+00> : vector<64x128xf32>
    %73 = tpu.matmul %70, %72, %cst_65 {dimension_numbers = #tpu.dot_dimension_numbers<[1], [0], [0], [1], [0, 0, 1, 1], [], []>} : vector<64x64xbf16>, vector<64x128xbf16>, vector<64x128xf32> -> vector<64x128xf32>
    %74 = arith.addf %66, %73 : vector<64x128xf32>
    %c0_66 = arith.constant 0 : index
    %c0_67 = arith.constant 0 : index
    %75 = vector.load %arg4[%c0_66, %c0_67] : memref<1x128xf32, #tpu.memory_space<vmem>>, vector<1x128xf32>
    %76 = vector.broadcast %75 : vector<1x128xf32> to vector<64x128xf32>
    %77 = arith.addf %74, %76 : vector<64x128xf32>
    %cst_68 = arith.constant 0.000000e+00 : f32
    %78 = vector.broadcast %cst_68 : f32 to vector<64x128xf32>
    %79 = arith.maximumf %77, %78 : vector<64x128xf32>
    %80 = math.absf %77 : vector<64x128xf32>
    %cst_69 = arith.constant 0.000000e+00 : f32
    %81 = vector.broadcast %cst_69 : f32 to vector<64x128xf32>
    %82 = arith.subf %81, %80 : vector<64x128xf32>
    %83 = math.exp %82 : vector<64x128xf32>
    %84 = math.log1p %83 : vector<64x128xf32>
    %85 = arith.addf %79, %84 : vector<64x128xf32>
    %86 = math.tanh %85 : vector<64x128xf32>
    %87 = arith.mulf %77, %86 : vector<64x128xf32>
    %88 = arith.truncf %87 : vector<64x128xf32> to vector<64x128xbf16>
    %c0_70 = arith.constant 0 : index
    %c0_71 = arith.constant 0 : index
    %89 = vector.load %arg5[%c0_70, %c0_71] : memref<128x64xbf16, #tpu.memory_space<vmem>>, vector<128x64xbf16>
    %cst_72 = arith.constant dense<0.000000e+00> : vector<64x64xf32>
    %90 = tpu.matmul %88, %89, %cst_72 {dimension_numbers = #tpu.dot_dimension_numbers<[1], [0], [0], [1], [0, 0, 1, 1], [], []>} : vector<64x128xbf16>, vector<128x64xbf16>, vector<64x64xf32> -> vector<64x64xf32>
    %c0_73 = arith.constant 0 : index
    %c0_74 = arith.constant 0 : index
    %91 = vector.load %arg6[%c0_73, %c0_74] : memref<1x64xf32, #tpu.memory_space<vmem>>, vector<1x64xf32>
    %92 = vector.broadcast %91 : vector<1x64xf32> to vector<64x64xf32>
    %93 = arith.addf %90, %92 : vector<64x64xf32>
    %cst_75 = arith.constant 0.000000e+00 : f32
    %94 = vector.broadcast %cst_75 : f32 to vector<64x64xf32>
    %95 = arith.maximumf %93, %94 : vector<64x64xf32>
    %96 = math.absf %93 : vector<64x64xf32>
    %cst_76 = arith.constant 0.000000e+00 : f32
    %97 = vector.broadcast %cst_76 : f32 to vector<64x64xf32>
    %98 = arith.subf %97, %96 : vector<64x64xf32>
    %99 = math.exp %98 : vector<64x64xf32>
    %100 = math.log1p %99 : vector<64x64xf32>
    %101 = arith.addf %95, %100 : vector<64x64xf32>
    %102 = math.tanh %101 : vector<64x64xf32>
    %103 = arith.mulf %93, %102 : vector<64x64xf32>
    %c0_77 = arith.constant 0 : index
    %c0_78 = arith.constant 0 : index
    %104 = vector.load %arg7[%c0_77, %c0_78] : memref<128x64xbf16, #tpu.memory_space<vmem>>, vector<128x64xbf16>
    %cst_79 = arith.constant dense<0.000000e+00> : vector<64x64xf32>
    %105 = tpu.matmul %88, %104, %cst_79 {dimension_numbers = #tpu.dot_dimension_numbers<[1], [0], [0], [1], [0, 0, 1, 1], [], []>} : vector<64x128xbf16>, vector<128x64xbf16>, vector<64x64xf32> -> vector<64x64xf32>
    %c0_80 = arith.constant 0 : index
    %c0_81 = arith.constant 0 : index
    %106 = vector.load %arg8[%c0_80, %c0_81] : memref<1x64xf32, #tpu.memory_space<vmem>>, vector<1x64xf32>
    %107 = vector.broadcast %106 : vector<1x64xf32> to vector<64x64xf32>
    %108 = arith.addf %105, %107 : vector<64x64xf32>
    %cst_82 = arith.constant 0.000000e+00 : f32
    %109 = vector.broadcast %cst_82 : f32 to vector<64x64xf32>
    %110 = arith.maximumf %108, %109 : vector<64x64xf32>
    %111 = math.absf %108 : vector<64x64xf32>
    %cst_83 = arith.constant 0.000000e+00 : f32
    %112 = vector.broadcast %cst_83 : f32 to vector<64x64xf32>
    %113 = arith.subf %112, %111 : vector<64x64xf32>
    %114 = math.exp %113 : vector<64x64xf32>
    %115 = math.log1p %114 : vector<64x64xf32>
    %116 = arith.addf %110, %115 : vector<64x64xf32>
    %117 = math.tanh %116 : vector<64x64xf32>
    %118 = arith.mulf %108, %117 : vector<64x64xf32>
    %119 = arith.truncf %118 : vector<64x64xf32> to vector<64x64xbf16>
    %c0_84 = arith.constant 0 : index
    %c0_85 = arith.constant 0 : index
    %c0_86 = arith.constant 0 : index
    %120 = vector.load %arg10[%c0_84, %c0_85, %c0_86] : memref<2x64x64xbf16, #tpu.memory_space<vmem>>, vector<1x64x64xbf16>
    %121 = vector.shape_cast %120 : vector<1x64x64xbf16> to vector<64x64xbf16>
    %cst_87 = arith.constant dense<0.000000e+00> : vector<64x64xf32>
    %122 = tpu.matmul %119, %121, %cst_87 {dimension_numbers = #tpu.dot_dimension_numbers<[1], [0], [0], [1], [0, 0, 1, 1], [], []>} : vector<64x64xbf16>, vector<64x64xbf16>, vector<64x64xf32> -> vector<64x64xf32>
    %c0_88 = arith.constant 0 : index
    %c0_89 = arith.constant 0 : index
    %c0_90 = arith.constant 0 : index
    %123 = vector.load %arg11[%c0_88, %c0_89, %c0_90] : memref<2x1x64xf32, #tpu.memory_space<vmem>>, vector<1x1x64xf32>
    %124 = vector.shape_cast %123 : vector<1x1x64xf32> to vector<1x64xf32>
    %125 = vector.broadcast %124 : vector<1x64xf32> to vector<64x64xf32>
    %126 = arith.addf %122, %125 : vector<64x64xf32>
    %cst_91 = arith.constant 0.000000e+00 : f32
    %127 = vector.broadcast %cst_91 : f32 to vector<64x64xf32>
    %128 = arith.maximumf %126, %127 : vector<64x64xf32>
    %129 = math.absf %126 : vector<64x64xf32>
    %cst_92 = arith.constant 0.000000e+00 : f32
    %130 = vector.broadcast %cst_92 : f32 to vector<64x64xf32>
    %131 = arith.subf %130, %129 : vector<64x64xf32>
    %132 = math.exp %131 : vector<64x64xf32>
    %133 = math.log1p %132 : vector<64x64xf32>
    %134 = arith.addf %128, %133 : vector<64x64xf32>
    %135 = math.tanh %134 : vector<64x64xf32>
    %136 = arith.mulf %126, %135 : vector<64x64xf32>
    %137 = arith.truncf %136 : vector<64x64xf32> to vector<64x64xbf16>
    %cst_93 = arith.constant 0.000000e+00 : f32
    %138 = vector.broadcast %cst_93 : f32 to vector<64x64xf32>
    %c0_94 = arith.constant 0 : index
    %c0_95 = arith.constant 0 : index
    %c0_96 = arith.constant 0 : index
    %139 = vector.load %arg9[%c0_94, %c0_95, %c0_96] : memref<9x64x64xbf16, #tpu.memory_space<vmem>>, vector<1x64x64xbf16>
    %140 = vector.shape_cast %139 : vector<1x64x64xbf16> to vector<64x64xbf16>
    %cst_97 = arith.constant dense<0.000000e+00> : vector<64x64xf32>
    %141 = tpu.matmul %140, %137, %cst_97 {dimension_numbers = #tpu.dot_dimension_numbers<[1], [0], [0], [1], [0, 0, 1, 1], [], []>} : vector<64x64xbf16>, vector<64x64xbf16>, vector<64x64xf32> -> vector<64x64xf32>
    %142 = arith.truncf %141 : vector<64x64xf32> to vector<64x64xbf16>
    %c0_98 = arith.constant 0 : index
    %c0_99 = arith.constant 0 : index
    %c0_100 = arith.constant 0 : index
    %c0_101 = arith.constant 0 : index
    %143 = vector.load %arg12[%c0_98, %c0_99, %c0_100, %c0_101] : memref<2x9x64x64xbf16, #tpu.memory_space<vmem>>, vector<1x1x64x64xbf16>
    %144 = vector.shape_cast %143 : vector<1x1x64x64xbf16> to vector<64x64xbf16>
    %cst_102 = arith.constant dense<0.000000e+00> : vector<64x64xf32>
    %145 = tpu.matmul %142, %144, %cst_102 {dimension_numbers = #tpu.dot_dimension_numbers<[1], [0], [0], [1], [0, 0, 1, 1], [], []>} : vector<64x64xbf16>, vector<64x64xbf16>, vector<64x64xf32> -> vector<64x64xf32>
    %146 = arith.addf %138, %145 : vector<64x64xf32>
    %c1_103 = arith.constant 1 : index
    %c0_104 = arith.constant 0 : index
    %c0_105 = arith.constant 0 : index
    %147 = vector.load %arg9[%c1_103, %c0_104, %c0_105] : memref<9x64x64xbf16, #tpu.memory_space<vmem>>, vector<1x64x64xbf16>
    %148 = vector.shape_cast %147 : vector<1x64x64xbf16> to vector<64x64xbf16>
    %cst_106 = arith.constant dense<0.000000e+00> : vector<64x64xf32>
    %149 = tpu.matmul %148, %137, %cst_106 {dimension_numbers = #tpu.dot_dimension_numbers<[1], [0], [0], [1], [0, 0, 1, 1], [], []>} : vector<64x64xbf16>, vector<64x64xbf16>, vector<64x64xf32> -> vector<64x64xf32>
    %150 = arith.truncf %149 : vector<64x64xf32> to vector<64x64xbf16>
    %c0_107 = arith.constant 0 : index
    %c1_108 = arith.constant 1 : index
    %c0_109 = arith.constant 0 : index
    %c0_110 = arith.constant 0 : index
    %151 = vector.load %arg12[%c0_107, %c1_108, %c0_109, %c0_110] : memref<2x9x64x64xbf16, #tpu.memory_space<vmem>>, vector<1x1x64x64xbf16>
    %152 = vector.shape_cast %151 : vector<1x1x64x64xbf16> to vector<64x64xbf16>
    %cst_111 = arith.constant dense<0.000000e+00> : vector<64x64xf32>
    %153 = tpu.matmul %150, %152, %cst_111 {dimension_numbers = #tpu.dot_dimension_numbers<[1], [0], [0], [1], [0, 0, 1, 1], [], []>} : vector<64x64xbf16>, vector<64x64xbf16>, vector<64x64xf32> -> vector<64x64xf32>
    %154 = arith.addf %146, %153 : vector<64x64xf32>
    %c2_112 = arith.constant 2 : index
    %c0_113 = arith.constant 0 : index
    %c0_114 = arith.constant 0 : index
    %155 = vector.load %arg9[%c2_112, %c0_113, %c0_114] : memref<9x64x64xbf16, #tpu.memory_space<vmem>>, vector<1x64x64xbf16>
    %156 = vector.shape_cast %155 : vector<1x64x64xbf16> to vector<64x64xbf16>
    %cst_115 = arith.constant dense<0.000000e+00> : vector<64x64xf32>
    %157 = tpu.matmul %156, %137, %cst_115 {dimension_numbers = #tpu.dot_dimension_numbers<[1], [0], [0], [1], [0, 0, 1, 1], [], []>} : vector<64x64xbf16>, vector<64x64xbf16>, vector<64x64xf32> -> vector<64x64xf32>
    %158 = arith.truncf %157 : vector<64x64xf32> to vector<64x64xbf16>
    %c0_116 = arith.constant 0 : index
    %c2_117 = arith.constant 2 : index
    %c0_118 = arith.constant 0 : index
    %c0_119 = arith.constant 0 : index
    %159 = vector.load %arg12[%c0_116, %c2_117, %c0_118, %c0_119] : memref<2x9x64x64xbf16, #tpu.memory_space<vmem>>, vector<1x1x64x64xbf16>
    %160 = vector.shape_cast %159 : vector<1x1x64x64xbf16> to vector<64x64xbf16>
    %cst_120 = arith.constant dense<0.000000e+00> : vector<64x64xf32>
    %161 = tpu.matmul %158, %160, %cst_120 {dimension_numbers = #tpu.dot_dimension_numbers<[1], [0], [0], [1], [0, 0, 1, 1], [], []>} : vector<64x64xbf16>, vector<64x64xbf16>, vector<64x64xf32> -> vector<64x64xf32>
    %162 = arith.addf %154, %161 : vector<64x64xf32>
    %c3_121 = arith.constant 3 : index
    %c0_122 = arith.constant 0 : index
    %c0_123 = arith.constant 0 : index
    %163 = vector.load %arg9[%c3_121, %c0_122, %c0_123] : memref<9x64x64xbf16, #tpu.memory_space<vmem>>, vector<1x64x64xbf16>
    %164 = vector.shape_cast %163 : vector<1x64x64xbf16> to vector<64x64xbf16>
    %cst_124 = arith.constant dense<0.000000e+00> : vector<64x64xf32>
    %165 = tpu.matmul %164, %137, %cst_124 {dimension_numbers = #tpu.dot_dimension_numbers<[1], [0], [0], [1], [0, 0, 1, 1], [], []>} : vector<64x64xbf16>, vector<64x64xbf16>, vector<64x64xf32> -> vector<64x64xf32>
    %166 = arith.truncf %165 : vector<64x64xf32> to vector<64x64xbf16>
    %c0_125 = arith.constant 0 : index
    %c3_126 = arith.constant 3 : index
    %c0_127 = arith.constant 0 : index
    %c0_128 = arith.constant 0 : index
    %167 = vector.load %arg12[%c0_125, %c3_126, %c0_127, %c0_128] : memref<2x9x64x64xbf16, #tpu.memory_space<vmem>>, vector<1x1x64x64xbf16>
    %168 = vector.shape_cast %167 : vector<1x1x64x64xbf16> to vector<64x64xbf16>
    %cst_129 = arith.constant dense<0.000000e+00> : vector<64x64xf32>
    %169 = tpu.matmul %166, %168, %cst_129 {dimension_numbers = #tpu.dot_dimension_numbers<[1], [0], [0], [1], [0, 0, 1, 1], [], []>} : vector<64x64xbf16>, vector<64x64xbf16>, vector<64x64xf32> -> vector<64x64xf32>
    %170 = arith.addf %162, %169 : vector<64x64xf32>
    %c4_130 = arith.constant 4 : index
    %c0_131 = arith.constant 0 : index
    %c0_132 = arith.constant 0 : index
    %171 = vector.load %arg9[%c4_130, %c0_131, %c0_132] : memref<9x64x64xbf16, #tpu.memory_space<vmem>>, vector<1x64x64xbf16>
    %172 = vector.shape_cast %171 : vector<1x64x64xbf16> to vector<64x64xbf16>
    %cst_133 = arith.constant dense<0.000000e+00> : vector<64x64xf32>
    %173 = tpu.matmul %172, %137, %cst_133 {dimension_numbers = #tpu.dot_dimension_numbers<[1], [0], [0], [1], [0, 0, 1, 1], [], []>} : vector<64x64xbf16>, vector<64x64xbf16>, vector<64x64xf32> -> vector<64x64xf32>
    %174 = arith.truncf %173 : vector<64x64xf32> to vector<64x64xbf16>
    %c0_134 = arith.constant 0 : index
    %c4_135 = arith.constant 4 : index
    %c0_136 = arith.constant 0 : index
    %c0_137 = arith.constant 0 : index
    %175 = vector.load %arg12[%c0_134, %c4_135, %c0_136, %c0_137] : memref<2x9x64x64xbf16, #tpu.memory_space<vmem>>, vector<1x1x64x64xbf16>
    %176 = vector.shape_cast %175 : vector<1x1x64x64xbf16> to vector<64x64xbf16>
    %cst_138 = arith.constant dense<0.000000e+00> : vector<64x64xf32>
    %177 = tpu.matmul %174, %176, %cst_138 {dimension_numbers = #tpu.dot_dimension_numbers<[1], [0], [0], [1], [0, 0, 1, 1], [], []>} : vector<64x64xbf16>, vector<64x64xbf16>, vector<64x64xf32> -> vector<64x64xf32>
    %178 = arith.addf %170, %177 : vector<64x64xf32>
    %c5_139 = arith.constant 5 : index
    %c0_140 = arith.constant 0 : index
    %c0_141 = arith.constant 0 : index
    %179 = vector.load %arg9[%c5_139, %c0_140, %c0_141] : memref<9x64x64xbf16, #tpu.memory_space<vmem>>, vector<1x64x64xbf16>
    %180 = vector.shape_cast %179 : vector<1x64x64xbf16> to vector<64x64xbf16>
    %cst_142 = arith.constant dense<0.000000e+00> : vector<64x64xf32>
    %181 = tpu.matmul %180, %137, %cst_142 {dimension_numbers = #tpu.dot_dimension_numbers<[1], [0], [0], [1], [0, 0, 1, 1], [], []>} : vector<64x64xbf16>, vector<64x64xbf16>, vector<64x64xf32> -> vector<64x64xf32>
    %182 = arith.truncf %181 : vector<64x64xf32> to vector<64x64xbf16>
    %c0_143 = arith.constant 0 : index
    %c5_144 = arith.constant 5 : index
    %c0_145 = arith.constant 0 : index
    %c0_146 = arith.constant 0 : index
    %183 = vector.load %arg12[%c0_143, %c5_144, %c0_145, %c0_146] : memref<2x9x64x64xbf16, #tpu.memory_space<vmem>>, vector<1x1x64x64xbf16>
    %184 = vector.shape_cast %183 : vector<1x1x64x64xbf16> to vector<64x64xbf16>
    %cst_147 = arith.constant dense<0.000000e+00> : vector<64x64xf32>
    %185 = tpu.matmul %182, %184, %cst_147 {dimension_numbers = #tpu.dot_dimension_numbers<[1], [0], [0], [1], [0, 0, 1, 1], [], []>} : vector<64x64xbf16>, vector<64x64xbf16>, vector<64x64xf32> -> vector<64x64xf32>
    %186 = arith.addf %178, %185 : vector<64x64xf32>
    %c6_148 = arith.constant 6 : index
    %c0_149 = arith.constant 0 : index
    %c0_150 = arith.constant 0 : index
    %187 = vector.load %arg9[%c6_148, %c0_149, %c0_150] : memref<9x64x64xbf16, #tpu.memory_space<vmem>>, vector<1x64x64xbf16>
    %188 = vector.shape_cast %187 : vector<1x64x64xbf16> to vector<64x64xbf16>
    %cst_151 = arith.constant dense<0.000000e+00> : vector<64x64xf32>
    %189 = tpu.matmul %188, %137, %cst_151 {dimension_numbers = #tpu.dot_dimension_numbers<[1], [0], [0], [1], [0, 0, 1, 1], [], []>} : vector<64x64xbf16>, vector<64x64xbf16>, vector<64x64xf32> -> vector<64x64xf32>
    %190 = arith.truncf %189 : vector<64x64xf32> to vector<64x64xbf16>
    %c0_152 = arith.constant 0 : index
    %c6_153 = arith.constant 6 : index
    %c0_154 = arith.constant 0 : index
    %c0_155 = arith.constant 0 : index
    %191 = vector.load %arg12[%c0_152, %c6_153, %c0_154, %c0_155] : memref<2x9x64x64xbf16, #tpu.memory_space<vmem>>, vector<1x1x64x64xbf16>
    %192 = vector.shape_cast %191 : vector<1x1x64x64xbf16> to vector<64x64xbf16>
    %cst_156 = arith.constant dense<0.000000e+00> : vector<64x64xf32>
    %193 = tpu.matmul %190, %192, %cst_156 {dimension_numbers = #tpu.dot_dimension_numbers<[1], [0], [0], [1], [0, 0, 1, 1], [], []>} : vector<64x64xbf16>, vector<64x64xbf16>, vector<64x64xf32> -> vector<64x64xf32>
    %194 = arith.addf %186, %193 : vector<64x64xf32>
    %c7_157 = arith.constant 7 : index
    %c0_158 = arith.constant 0 : index
    %c0_159 = arith.constant 0 : index
    %195 = vector.load %arg9[%c7_157, %c0_158, %c0_159] : memref<9x64x64xbf16, #tpu.memory_space<vmem>>, vector<1x64x64xbf16>
    %196 = vector.shape_cast %195 : vector<1x64x64xbf16> to vector<64x64xbf16>
    %cst_160 = arith.constant dense<0.000000e+00> : vector<64x64xf32>
    %197 = tpu.matmul %196, %137, %cst_160 {dimension_numbers = #tpu.dot_dimension_numbers<[1], [0], [0], [1], [0, 0, 1, 1], [], []>} : vector<64x64xbf16>, vector<64x64xbf16>, vector<64x64xf32> -> vector<64x64xf32>
    %198 = arith.truncf %197 : vector<64x64xf32> to vector<64x64xbf16>
    %c0_161 = arith.constant 0 : index
    %c7_162 = arith.constant 7 : index
    %c0_163 = arith.constant 0 : index
    %c0_164 = arith.constant 0 : index
    %199 = vector.load %arg12[%c0_161, %c7_162, %c0_163, %c0_164] : memref<2x9x64x64xbf16, #tpu.memory_space<vmem>>, vector<1x1x64x64xbf16>
    %200 = vector.shape_cast %199 : vector<1x1x64x64xbf16> to vector<64x64xbf16>
    %cst_165 = arith.constant dense<0.000000e+00> : vector<64x64xf32>
    %201 = tpu.matmul %198, %200, %cst_165 {dimension_numbers = #tpu.dot_dimension_numbers<[1], [0], [0], [1], [0, 0, 1, 1], [], []>} : vector<64x64xbf16>, vector<64x64xbf16>, vector<64x64xf32> -> vector<64x64xf32>
    %202 = arith.addf %194, %201 : vector<64x64xf32>
    %c8_166 = arith.constant 8 : index
    %c0_167 = arith.constant 0 : index
    %c0_168 = arith.constant 0 : index
    %203 = vector.load %arg9[%c8_166, %c0_167, %c0_168] : memref<9x64x64xbf16, #tpu.memory_space<vmem>>, vector<1x64x64xbf16>
    %204 = vector.shape_cast %203 : vector<1x64x64xbf16> to vector<64x64xbf16>
    %cst_169 = arith.constant dense<0.000000e+00> : vector<64x64xf32>
    %205 = tpu.matmul %204, %137, %cst_169 {dimension_numbers = #tpu.dot_dimension_numbers<[1], [0], [0], [1], [0, 0, 1, 1], [], []>} : vector<64x64xbf16>, vector<64x64xbf16>, vector<64x64xf32> -> vector<64x64xf32>
    %206 = arith.truncf %205 : vector<64x64xf32> to vector<64x64xbf16>
    %c0_170 = arith.constant 0 : index
    %c8_171 = arith.constant 8 : index
    %c0_172 = arith.constant 0 : index
    %c0_173 = arith.constant 0 : index
    %207 = vector.load %arg12[%c0_170, %c8_171, %c0_172, %c0_173] : memref<2x9x64x64xbf16, #tpu.memory_space<vmem>>, vector<1x1x64x64xbf16>
    %208 = vector.shape_cast %207 : vector<1x1x64x64xbf16> to vector<64x64xbf16>
    %cst_174 = arith.constant dense<0.000000e+00> : vector<64x64xf32>
    %209 = tpu.matmul %206, %208, %cst_174 {dimension_numbers = #tpu.dot_dimension_numbers<[1], [0], [0], [1], [0, 0, 1, 1], [], []>} : vector<64x64xbf16>, vector<64x64xbf16>, vector<64x64xf32> -> vector<64x64xf32>
    %210 = arith.addf %202, %209 : vector<64x64xf32>
    %c0_175 = arith.constant 0 : index
    %c0_176 = arith.constant 0 : index
    %c0_177 = arith.constant 0 : index
    %211 = vector.load %arg13[%c0_175, %c0_176, %c0_177] : memref<2x1x64xf32, #tpu.memory_space<vmem>>, vector<1x1x64xf32>
    %212 = vector.shape_cast %211 : vector<1x1x64xf32> to vector<1x64xf32>
    %213 = vector.broadcast %212 : vector<1x64xf32> to vector<64x64xf32>
    %214 = arith.addf %210, %213 : vector<64x64xf32>
    %cst_178 = arith.constant 0.000000e+00 : f32
    %215 = vector.broadcast %cst_178 : f32 to vector<64x64xf32>
    %216 = arith.maximumf %214, %215 : vector<64x64xf32>
    %217 = math.absf %214 : vector<64x64xf32>
    %cst_179 = arith.constant 0.000000e+00 : f32
    %218 = vector.broadcast %cst_179 : f32 to vector<64x64xf32>
    %219 = arith.subf %218, %217 : vector<64x64xf32>
    %220 = math.exp %219 : vector<64x64xf32>
    %221 = math.log1p %220 : vector<64x64xf32>
    %222 = arith.addf %216, %221 : vector<64x64xf32>
    %223 = math.tanh %222 : vector<64x64xf32>
    %224 = arith.mulf %214, %223 : vector<64x64xf32>
    %225 = arith.addf %118, %224 : vector<64x64xf32>
    %226 = arith.truncf %225 : vector<64x64xf32> to vector<64x64xbf16>
    %c1_180 = arith.constant 1 : index
    %c0_181 = arith.constant 0 : index
    %c0_182 = arith.constant 0 : index
    %227 = vector.load %arg10[%c1_180, %c0_181, %c0_182] : memref<2x64x64xbf16, #tpu.memory_space<vmem>>, vector<1x64x64xbf16>
    %228 = vector.shape_cast %227 : vector<1x64x64xbf16> to vector<64x64xbf16>
    %cst_183 = arith.constant dense<0.000000e+00> : vector<64x64xf32>
    %229 = tpu.matmul %226, %228, %cst_183 {dimension_numbers = #tpu.dot_dimension_numbers<[1], [0], [0], [1], [0, 0, 1, 1], [], []>} : vector<64x64xbf16>, vector<64x64xbf16>, vector<64x64xf32> -> vector<64x64xf32>
    %c1_184 = arith.constant 1 : index
    %c0_185 = arith.constant 0 : index
    %c0_186 = arith.constant 0 : index
    %230 = vector.load %arg11[%c1_184, %c0_185, %c0_186] : memref<2x1x64xf32, #tpu.memory_space<vmem>>, vector<1x1x64xf32>
    %231 = vector.shape_cast %230 : vector<1x1x64xf32> to vector<1x64xf32>
    %232 = vector.broadcast %231 : vector<1x64xf32> to vector<64x64xf32>
    %233 = arith.addf %229, %232 : vector<64x64xf32>
    %cst_187 = arith.constant 0.000000e+00 : f32
    %234 = vector.broadcast %cst_187 : f32 to vector<64x64xf32>
    %235 = arith.maximumf %233, %234 : vector<64x64xf32>
    %236 = math.absf %233 : vector<64x64xf32>
    %cst_188 = arith.constant 0.000000e+00 : f32
    %237 = vector.broadcast %cst_188 : f32 to vector<64x64xf32>
    %238 = arith.subf %237, %236 : vector<64x64xf32>
    %239 = math.exp %238 : vector<64x64xf32>
    %240 = math.log1p %239 : vector<64x64xf32>
    %241 = arith.addf %235, %240 : vector<64x64xf32>
    %242 = math.tanh %241 : vector<64x64xf32>
    %243 = arith.mulf %233, %242 : vector<64x64xf32>
    %244 = arith.truncf %243 : vector<64x64xf32> to vector<64x64xbf16>
    %cst_189 = arith.constant 0.000000e+00 : f32
    %245 = vector.broadcast %cst_189 : f32 to vector<64x64xf32>
    %c0_190 = arith.constant 0 : index
    %c0_191 = arith.constant 0 : index
    %c0_192 = arith.constant 0 : index
    %246 = vector.load %arg9[%c0_190, %c0_191, %c0_192] : memref<9x64x64xbf16, #tpu.memory_space<vmem>>, vector<1x64x64xbf16>
    %247 = vector.shape_cast %246 : vector<1x64x64xbf16> to vector<64x64xbf16>
    %cst_193 = arith.constant dense<0.000000e+00> : vector<64x64xf32>
    %248 = tpu.matmul %247, %244, %cst_193 {dimension_numbers = #tpu.dot_dimension_numbers<[1], [0], [0], [1], [0, 0, 1, 1], [], []>} : vector<64x64xbf16>, vector<64x64xbf16>, vector<64x64xf32> -> vector<64x64xf32>
    %249 = arith.truncf %248 : vector<64x64xf32> to vector<64x64xbf16>
    %c1_194 = arith.constant 1 : index
    %c0_195 = arith.constant 0 : index
    %c0_196 = arith.constant 0 : index
    %c0_197 = arith.constant 0 : index
    %250 = vector.load %arg12[%c1_194, %c0_195, %c0_196, %c0_197] : memref<2x9x64x64xbf16, #tpu.memory_space<vmem>>, vector<1x1x64x64xbf16>
    %251 = vector.shape_cast %250 : vector<1x1x64x64xbf16> to vector<64x64xbf16>
    %cst_198 = arith.constant dense<0.000000e+00> : vector<64x64xf32>
    %252 = tpu.matmul %249, %251, %cst_198 {dimension_numbers = #tpu.dot_dimension_numbers<[1], [0], [0], [1], [0, 0, 1, 1], [], []>} : vector<64x64xbf16>, vector<64x64xbf16>, vector<64x64xf32> -> vector<64x64xf32>
    %253 = arith.addf %245, %252 : vector<64x64xf32>
    %c1_199 = arith.constant 1 : index
    %c0_200 = arith.constant 0 : index
    %c0_201 = arith.constant 0 : index
    %254 = vector.load %arg9[%c1_199, %c0_200, %c0_201] : memref<9x64x64xbf16, #tpu.memory_space<vmem>>, vector<1x64x64xbf16>
    %255 = vector.shape_cast %254 : vector<1x64x64xbf16> to vector<64x64xbf16>
    %cst_202 = arith.constant dense<0.000000e+00> : vector<64x64xf32>
    %256 = tpu.matmul %255, %244, %cst_202 {dimension_numbers = #tpu.dot_dimension_numbers<[1], [0], [0], [1], [0, 0, 1, 1], [], []>} : vector<64x64xbf16>, vector<64x64xbf16>, vector<64x64xf32> -> vector<64x64xf32>
    %257 = arith.truncf %256 : vector<64x64xf32> to vector<64x64xbf16>
    %c1_203 = arith.constant 1 : index
    %c1_204 = arith.constant 1 : index
    %c0_205 = arith.constant 0 : index
    %c0_206 = arith.constant 0 : index
    %258 = vector.load %arg12[%c1_203, %c1_204, %c0_205, %c0_206] : memref<2x9x64x64xbf16, #tpu.memory_space<vmem>>, vector<1x1x64x64xbf16>
    %259 = vector.shape_cast %258 : vector<1x1x64x64xbf16> to vector<64x64xbf16>
    %cst_207 = arith.constant dense<0.000000e+00> : vector<64x64xf32>
    %260 = tpu.matmul %257, %259, %cst_207 {dimension_numbers = #tpu.dot_dimension_numbers<[1], [0], [0], [1], [0, 0, 1, 1], [], []>} : vector<64x64xbf16>, vector<64x64xbf16>, vector<64x64xf32> -> vector<64x64xf32>
    %261 = arith.addf %253, %260 : vector<64x64xf32>
    %c2_208 = arith.constant 2 : index
    %c0_209 = arith.constant 0 : index
    %c0_210 = arith.constant 0 : index
    %262 = vector.load %arg9[%c2_208, %c0_209, %c0_210] : memref<9x64x64xbf16, #tpu.memory_space<vmem>>, vector<1x64x64xbf16>
    %263 = vector.shape_cast %262 : vector<1x64x64xbf16> to vector<64x64xbf16>
    %cst_211 = arith.constant dense<0.000000e+00> : vector<64x64xf32>
    %264 = tpu.matmul %263, %244, %cst_211 {dimension_numbers = #tpu.dot_dimension_numbers<[1], [0], [0], [1], [0, 0, 1, 1], [], []>} : vector<64x64xbf16>, vector<64x64xbf16>, vector<64x64xf32> -> vector<64x64xf32>
    %265 = arith.truncf %264 : vector<64x64xf32> to vector<64x64xbf16>
    %c1_212 = arith.constant 1 : index
    %c2_213 = arith.constant 2 : index
    %c0_214 = arith.constant 0 : index
    %c0_215 = arith.constant 0 : index
    %266 = vector.load %arg12[%c1_212, %c2_213, %c0_214, %c0_215] : memref<2x9x64x64xbf16, #tpu.memory_space<vmem>>, vector<1x1x64x64xbf16>
    %267 = vector.shape_cast %266 : vector<1x1x64x64xbf16> to vector<64x64xbf16>
    %cst_216 = arith.constant dense<0.000000e+00> : vector<64x64xf32>
    %268 = tpu.matmul %265, %267, %cst_216 {dimension_numbers = #tpu.dot_dimension_numbers<[1], [0], [0], [1], [0, 0, 1, 1], [], []>} : vector<64x64xbf16>, vector<64x64xbf16>, vector<64x64xf32> -> vector<64x64xf32>
    %269 = arith.addf %261, %268 : vector<64x64xf32>
    %c3_217 = arith.constant 3 : index
    %c0_218 = arith.constant 0 : index
    %c0_219 = arith.constant 0 : index
    %270 = vector.load %arg9[%c3_217, %c0_218, %c0_219] : memref<9x64x64xbf16, #tpu.memory_space<vmem>>, vector<1x64x64xbf16>
    %271 = vector.shape_cast %270 : vector<1x64x64xbf16> to vector<64x64xbf16>
    %cst_220 = arith.constant dense<0.000000e+00> : vector<64x64xf32>
    %272 = tpu.matmul %271, %244, %cst_220 {dimension_numbers = #tpu.dot_dimension_numbers<[1], [0], [0], [1], [0, 0, 1, 1], [], []>} : vector<64x64xbf16>, vector<64x64xbf16>, vector<64x64xf32> -> vector<64x64xf32>
    %273 = arith.truncf %272 : vector<64x64xf32> to vector<64x64xbf16>
    %c1_221 = arith.constant 1 : index
    %c3_222 = arith.constant 3 : index
    %c0_223 = arith.constant 0 : index
    %c0_224 = arith.constant 0 : index
    %274 = vector.load %arg12[%c1_221, %c3_222, %c0_223, %c0_224] : memref<2x9x64x64xbf16, #tpu.memory_space<vmem>>, vector<1x1x64x64xbf16>
    %275 = vector.shape_cast %274 : vector<1x1x64x64xbf16> to vector<64x64xbf16>
    %cst_225 = arith.constant dense<0.000000e+00> : vector<64x64xf32>
    %276 = tpu.matmul %273, %275, %cst_225 {dimension_numbers = #tpu.dot_dimension_numbers<[1], [0], [0], [1], [0, 0, 1, 1], [], []>} : vector<64x64xbf16>, vector<64x64xbf16>, vector<64x64xf32> -> vector<64x64xf32>
    %277 = arith.addf %269, %276 : vector<64x64xf32>
    %c4_226 = arith.constant 4 : index
    %c0_227 = arith.constant 0 : index
    %c0_228 = arith.constant 0 : index
    %278 = vector.load %arg9[%c4_226, %c0_227, %c0_228] : memref<9x64x64xbf16, #tpu.memory_space<vmem>>, vector<1x64x64xbf16>
    %279 = vector.shape_cast %278 : vector<1x64x64xbf16> to vector<64x64xbf16>
    %cst_229 = arith.constant dense<0.000000e+00> : vector<64x64xf32>
    %280 = tpu.matmul %279, %244, %cst_229 {dimension_numbers = #tpu.dot_dimension_numbers<[1], [0], [0], [1], [0, 0, 1, 1], [], []>} : vector<64x64xbf16>, vector<64x64xbf16>, vector<64x64xf32> -> vector<64x64xf32>
    %281 = arith.truncf %280 : vector<64x64xf32> to vector<64x64xbf16>
    %c1_230 = arith.constant 1 : index
    %c4_231 = arith.constant 4 : index
    %c0_232 = arith.constant 0 : index
    %c0_233 = arith.constant 0 : index
    %282 = vector.load %arg12[%c1_230, %c4_231, %c0_232, %c0_233] : memref<2x9x64x64xbf16, #tpu.memory_space<vmem>>, vector<1x1x64x64xbf16>
    %283 = vector.shape_cast %282 : vector<1x1x64x64xbf16> to vector<64x64xbf16>
    %cst_234 = arith.constant dense<0.000000e+00> : vector<64x64xf32>
    %284 = tpu.matmul %281, %283, %cst_234 {dimension_numbers = #tpu.dot_dimension_numbers<[1], [0], [0], [1], [0, 0, 1, 1], [], []>} : vector<64x64xbf16>, vector<64x64xbf16>, vector<64x64xf32> -> vector<64x64xf32>
    %285 = arith.addf %277, %284 : vector<64x64xf32>
    %c5_235 = arith.constant 5 : index
    %c0_236 = arith.constant 0 : index
    %c0_237 = arith.constant 0 : index
    %286 = vector.load %arg9[%c5_235, %c0_236, %c0_237] : memref<9x64x64xbf16, #tpu.memory_space<vmem>>, vector<1x64x64xbf16>
    %287 = vector.shape_cast %286 : vector<1x64x64xbf16> to vector<64x64xbf16>
    %cst_238 = arith.constant dense<0.000000e+00> : vector<64x64xf32>
    %288 = tpu.matmul %287, %244, %cst_238 {dimension_numbers = #tpu.dot_dimension_numbers<[1], [0], [0], [1], [0, 0, 1, 1], [], []>} : vector<64x64xbf16>, vector<64x64xbf16>, vector<64x64xf32> -> vector<64x64xf32>
    %289 = arith.truncf %288 : vector<64x64xf32> to vector<64x64xbf16>
    %c1_239 = arith.constant 1 : index
    %c5_240 = arith.constant 5 : index
    %c0_241 = arith.constant 0 : index
    %c0_242 = arith.constant 0 : index
    %290 = vector.load %arg12[%c1_239, %c5_240, %c0_241, %c0_242] : memref<2x9x64x64xbf16, #tpu.memory_space<vmem>>, vector<1x1x64x64xbf16>
    %291 = vector.shape_cast %290 : vector<1x1x64x64xbf16> to vector<64x64xbf16>
    %cst_243 = arith.constant dense<0.000000e+00> : vector<64x64xf32>
    %292 = tpu.matmul %289, %291, %cst_243 {dimension_numbers = #tpu.dot_dimension_numbers<[1], [0], [0], [1], [0, 0, 1, 1], [], []>} : vector<64x64xbf16>, vector<64x64xbf16>, vector<64x64xf32> -> vector<64x64xf32>
    %293 = arith.addf %285, %292 : vector<64x64xf32>
    %c6_244 = arith.constant 6 : index
    %c0_245 = arith.constant 0 : index
    %c0_246 = arith.constant 0 : index
    %294 = vector.load %arg9[%c6_244, %c0_245, %c0_246] : memref<9x64x64xbf16, #tpu.memory_space<vmem>>, vector<1x64x64xbf16>
    %295 = vector.shape_cast %294 : vector<1x64x64xbf16> to vector<64x64xbf16>
    %cst_247 = arith.constant dense<0.000000e+00> : vector<64x64xf32>
    %296 = tpu.matmul %295, %244, %cst_247 {dimension_numbers = #tpu.dot_dimension_numbers<[1], [0], [0], [1], [0, 0, 1, 1], [], []>} : vector<64x64xbf16>, vector<64x64xbf16>, vector<64x64xf32> -> vector<64x64xf32>
    %297 = arith.truncf %296 : vector<64x64xf32> to vector<64x64xbf16>
    %c1_248 = arith.constant 1 : index
    %c6_249 = arith.constant 6 : index
    %c0_250 = arith.constant 0 : index
    %c0_251 = arith.constant 0 : index
    %298 = vector.load %arg12[%c1_248, %c6_249, %c0_250, %c0_251] : memref<2x9x64x64xbf16, #tpu.memory_space<vmem>>, vector<1x1x64x64xbf16>
    %299 = vector.shape_cast %298 : vector<1x1x64x64xbf16> to vector<64x64xbf16>
    %cst_252 = arith.constant dense<0.000000e+00> : vector<64x64xf32>
    %300 = tpu.matmul %297, %299, %cst_252 {dimension_numbers = #tpu.dot_dimension_numbers<[1], [0], [0], [1], [0, 0, 1, 1], [], []>} : vector<64x64xbf16>, vector<64x64xbf16>, vector<64x64xf32> -> vector<64x64xf32>
    %301 = arith.addf %293, %300 : vector<64x64xf32>
    %c7_253 = arith.constant 7 : index
    %c0_254 = arith.constant 0 : index
    %c0_255 = arith.constant 0 : index
    %302 = vector.load %arg9[%c7_253, %c0_254, %c0_255] : memref<9x64x64xbf16, #tpu.memory_space<vmem>>, vector<1x64x64xbf16>
    %303 = vector.shape_cast %302 : vector<1x64x64xbf16> to vector<64x64xbf16>
    %cst_256 = arith.constant dense<0.000000e+00> : vector<64x64xf32>
    %304 = tpu.matmul %303, %244, %cst_256 {dimension_numbers = #tpu.dot_dimension_numbers<[1], [0], [0], [1], [0, 0, 1, 1], [], []>} : vector<64x64xbf16>, vector<64x64xbf16>, vector<64x64xf32> -> vector<64x64xf32>
    %305 = arith.truncf %304 : vector<64x64xf32> to vector<64x64xbf16>
    %c1_257 = arith.constant 1 : index
    %c7_258 = arith.constant 7 : index
    %c0_259 = arith.constant 0 : index
    %c0_260 = arith.constant 0 : index
    %306 = vector.load %arg12[%c1_257, %c7_258, %c0_259, %c0_260] : memref<2x9x64x64xbf16, #tpu.memory_space<vmem>>, vector<1x1x64x64xbf16>
    %307 = vector.shape_cast %306 : vector<1x1x64x64xbf16> to vector<64x64xbf16>
    %cst_261 = arith.constant dense<0.000000e+00> : vector<64x64xf32>
    %308 = tpu.matmul %305, %307, %cst_261 {dimension_numbers = #tpu.dot_dimension_numbers<[1], [0], [0], [1], [0, 0, 1, 1], [], []>} : vector<64x64xbf16>, vector<64x64xbf16>, vector<64x64xf32> -> vector<64x64xf32>
    %309 = arith.addf %301, %308 : vector<64x64xf32>
    %c8_262 = arith.constant 8 : index
    %c0_263 = arith.constant 0 : index
    %c0_264 = arith.constant 0 : index
    %310 = vector.load %arg9[%c8_262, %c0_263, %c0_264] : memref<9x64x64xbf16, #tpu.memory_space<vmem>>, vector<1x64x64xbf16>
    %311 = vector.shape_cast %310 : vector<1x64x64xbf16> to vector<64x64xbf16>
    %cst_265 = arith.constant dense<0.000000e+00> : vector<64x64xf32>
    %312 = tpu.matmul %311, %244, %cst_265 {dimension_numbers = #tpu.dot_dimension_numbers<[1], [0], [0], [1], [0, 0, 1, 1], [], []>} : vector<64x64xbf16>, vector<64x64xbf16>, vector<64x64xf32> -> vector<64x64xf32>
    %313 = arith.truncf %312 : vector<64x64xf32> to vector<64x64xbf16>
    %c1_266 = arith.constant 1 : index
    %c8_267 = arith.constant 8 : index
    %c0_268 = arith.constant 0 : index
    %c0_269 = arith.constant 0 : index
    %314 = vector.load %arg12[%c1_266, %c8_267, %c0_268, %c0_269] : memref<2x9x64x64xbf16, #tpu.memory_space<vmem>>, vector<1x1x64x64xbf16>
    %315 = vector.shape_cast %314 : vector<1x1x64x64xbf16> to vector<64x64xbf16>
    %cst_270 = arith.constant dense<0.000000e+00> : vector<64x64xf32>
    %316 = tpu.matmul %313, %315, %cst_270 {dimension_numbers = #tpu.dot_dimension_numbers<[1], [0], [0], [1], [0, 0, 1, 1], [], []>} : vector<64x64xbf16>, vector<64x64xbf16>, vector<64x64xf32> -> vector<64x64xf32>
    %317 = arith.addf %309, %316 : vector<64x64xf32>
    %c1_271 = arith.constant 1 : index
    %c0_272 = arith.constant 0 : index
    %c0_273 = arith.constant 0 : index
    %318 = vector.load %arg13[%c1_271, %c0_272, %c0_273] : memref<2x1x64xf32, #tpu.memory_space<vmem>>, vector<1x1x64xf32>
    %319 = vector.shape_cast %318 : vector<1x1x64xf32> to vector<1x64xf32>
    %320 = vector.broadcast %319 : vector<1x64xf32> to vector<64x64xf32>
    %321 = arith.addf %317, %320 : vector<64x64xf32>
    %cst_274 = arith.constant 0.000000e+00 : f32
    %322 = vector.broadcast %cst_274 : f32 to vector<64x64xf32>
    %323 = arith.maximumf %321, %322 : vector<64x64xf32>
    %324 = math.absf %321 : vector<64x64xf32>
    %cst_275 = arith.constant 0.000000e+00 : f32
    %325 = vector.broadcast %cst_275 : f32 to vector<64x64xf32>
    %326 = arith.subf %325, %324 : vector<64x64xf32>
    %327 = math.exp %326 : vector<64x64xf32>
    %328 = math.log1p %327 : vector<64x64xf32>
    %329 = arith.addf %323, %328 : vector<64x64xf32>
    %330 = math.tanh %329 : vector<64x64xf32>
    %331 = arith.mulf %321, %330 : vector<64x64xf32>
    %332 = arith.addf %225, %331 : vector<64x64xf32>
    %333 = arith.truncf %332 : vector<64x64xf32> to vector<64x64xbf16>
    %c0_276 = arith.constant 0 : index
    %c0_277 = arith.constant 0 : index
    %334 = vector.load %arg14[%c0_276, %c0_277] : memref<64x64xbf16, #tpu.memory_space<vmem>>, vector<64x64xbf16>
    %cst_278 = arith.constant dense<0.000000e+00> : vector<64x64xf32>
    %335 = tpu.matmul %333, %334, %cst_278 {dimension_numbers = #tpu.dot_dimension_numbers<[1], [0], [0], [1], [0, 0, 1, 1], [], []>} : vector<64x64xbf16>, vector<64x64xbf16>, vector<64x64xf32> -> vector<64x64xf32>
    %c0_279 = arith.constant 0 : index
    %c0_280 = arith.constant 0 : index
    %336 = vector.load %arg15[%c0_279, %c0_280] : memref<1x64xf32, #tpu.memory_space<vmem>>, vector<1x64xf32>
    %337 = vector.broadcast %336 : vector<1x64xf32> to vector<64x64xf32>
    %338 = arith.addf %335, %337 : vector<64x64xf32>
    %cst_281 = arith.constant 0.000000e+00 : f32
    %339 = vector.broadcast %cst_281 : f32 to vector<64x64xf32>
    %340 = arith.maximumf %338, %339 : vector<64x64xf32>
    %341 = math.absf %338 : vector<64x64xf32>
    %cst_282 = arith.constant 0.000000e+00 : f32
    %342 = vector.broadcast %cst_282 : f32 to vector<64x64xf32>
    %343 = arith.subf %342, %341 : vector<64x64xf32>
    %344 = math.exp %343 : vector<64x64xf32>
    %345 = math.log1p %344 : vector<64x64xf32>
    %346 = arith.addf %340, %345 : vector<64x64xf32>
    %347 = math.tanh %346 : vector<64x64xf32>
    %348 = arith.mulf %338, %347 : vector<64x64xf32>
    %349 = arith.truncf %348 : vector<64x64xf32> to vector<64x64xbf16>
    %c0_283 = arith.constant 0 : index
    %c0_284 = arith.constant 0 : index
    %c0_285 = arith.constant 0 : index
    %350 = vector.load %arg16[%c0_283, %c0_284, %c0_285] : memref<2x64x128xbf16, #tpu.memory_space<vmem>>, vector<1x64x128xbf16>
    %351 = vector.shape_cast %350 : vector<1x64x128xbf16> to vector<64x128xbf16>
    %cst_286 = arith.constant dense<0.000000e+00> : vector<64x128xf32>
    %352 = tpu.matmul %349, %351, %cst_286 {dimension_numbers = #tpu.dot_dimension_numbers<[1], [0], [0], [1], [0, 0, 1, 1], [], []>} : vector<64x64xbf16>, vector<64x128xbf16>, vector<64x128xf32> -> vector<64x128xf32>
    %353 = arith.truncf %103 : vector<64x64xf32> to vector<64x64xbf16>
    %c1_287 = arith.constant 1 : index
    %c0_288 = arith.constant 0 : index
    %c0_289 = arith.constant 0 : index
    %354 = vector.load %arg16[%c1_287, %c0_288, %c0_289] : memref<2x64x128xbf16, #tpu.memory_space<vmem>>, vector<1x64x128xbf16>
    %355 = vector.shape_cast %354 : vector<1x64x128xbf16> to vector<64x128xbf16>
    %cst_290 = arith.constant dense<0.000000e+00> : vector<64x128xf32>
    %356 = tpu.matmul %353, %355, %cst_290 {dimension_numbers = #tpu.dot_dimension_numbers<[1], [0], [0], [1], [0, 0, 1, 1], [], []>} : vector<64x64xbf16>, vector<64x128xbf16>, vector<64x128xf32> -> vector<64x128xf32>
    %357 = arith.addf %352, %356 : vector<64x128xf32>
    %c0_291 = arith.constant 0 : index
    %c0_292 = arith.constant 0 : index
    %358 = vector.load %arg17[%c0_291, %c0_292] : memref<1x128xf32, #tpu.memory_space<vmem>>, vector<1x128xf32>
    %359 = vector.broadcast %358 : vector<1x128xf32> to vector<64x128xf32>
    %360 = arith.addf %357, %359 : vector<64x128xf32>
    %cst_293 = arith.constant 0.000000e+00 : f32
    %361 = vector.broadcast %cst_293 : f32 to vector<64x128xf32>
    %362 = arith.maximumf %360, %361 : vector<64x128xf32>
    %363 = math.absf %360 : vector<64x128xf32>
    %cst_294 = arith.constant 0.000000e+00 : f32
    %364 = vector.broadcast %cst_294 : f32 to vector<64x128xf32>
    %365 = arith.subf %364, %363 : vector<64x128xf32>
    %366 = math.exp %365 : vector<64x128xf32>
    %367 = math.log1p %366 : vector<64x128xf32>
    %368 = arith.addf %362, %367 : vector<64x128xf32>
    %369 = math.tanh %368 : vector<64x128xf32>
    %370 = arith.mulf %360, %369 : vector<64x128xf32>
    %371 = arith.truncf %370 : vector<64x128xf32> to vector<64x128xbf16>
    %c0_295 = arith.constant 0 : index
    %c0_296 = arith.constant 0 : index
    %c0_297 = arith.constant 0 : index
    %372 = vector.load %arg18[%c0_295, %c0_296, %c0_297] : memref<1x64x128xbf16, #tpu.memory_space<vmem>>, vector<1x64x128xbf16>
    %373 = vector.shape_cast %372 : vector<1x64x128xbf16> to vector<64x128xbf16>
    %374 = vector.shape_cast %371 : vector<64x128xbf16> to vector<1x64x128xbf16>
    tpu.vector_store %arg18[%c0_295, %c0_296, %c0_297], %374 {strides = array<i32>} : memref<1x64x128xbf16, #tpu.memory_space<vmem>>, vector<1x64x128xbf16>,
    return
  }
  func.func @transform_0(%arg0: i32) -> (i32, i32, i32) {
    %c0_i32 = arith.constant 0 : i32
    %c0_i32_0 = arith.constant 0 : i32
    %c0_i32_1 = arith.constant 0 : i32
    return %arg0, %c0_i32, %c0_i32_0 : i32, i32, i32
  }
  func.func @transform_1(%arg0: i32) -> (i32, i32, i32) {
    %c0_i32 = arith.constant 0 : i32
    %c0_i32_0 = arith.constant 0 : i32
    %c0_i32_1 = arith.constant 0 : i32
    %c0_i32_2 = arith.constant 0 : i32
    return %c0_i32, %c0_i32_0, %c0_i32_1 : i32, i32, i32
  }
  func.func @transform_2(%arg0: i32) -> (i32, i32, i32) {
    %c0_i32 = arith.constant 0 : i32
    %c0_i32_0 = arith.constant 0 : i32
    %c0_i32_1 = arith.constant 0 : i32
    %c0_i32_2 = arith.constant 0 : i32
    return %c0_i32, %c0_i32_0, %c0_i32_1 : i32, i32, i32
  }
  func.func @transform_3(%arg0: i32) -> (i32, i32) {
    %c0_i32 = arith.constant 0 : i32
    %c0_i32_0 = arith.constant 0 : i32
    %c0_i32_1 = arith.constant 0 : i32
    return %c0_i32, %c0_i32_0 : i32, i32
  }
  func.func @transform_4(%arg0: i32) -> (i32, i32) {
    %c0_i32 = arith.constant 0 : i32
    %c0_i32_0 = arith.constant 0 : i32
    %c0_i32_1 = arith.constant 0 : i32
    return %c0_i32, %c0_i32_0 : i32, i32
  }
  func.func @transform_5(%arg0: i32) -> (i32, i32) {
    %c0_i32 = arith.constant 0 : i32
    %c0_i32_0 = arith.constant 0 : i32
    %c0_i32_1 = arith.constant 0 : i32
    return %c0_i32, %c0_i32_0 : i32, i32
  }
  func.func @transform_6(%arg0: i32) -> (i32, i32) {
    %c0_i32 = arith.constant 0 : i32
    %c0_i32_0 = arith.constant 0 : i32
    %c0_i32_1 = arith.constant 0 : i32
    return %c0_i32, %c0_i32_0 : i32, i32
  }
  func.func @transform_7(%arg0: i32) -> (i32, i32) {
    %c0_i32 = arith.constant 0 : i32
    %c0_i32_0 = arith.constant 0 : i32
    %c0_i32_1 = arith.constant 0 : i32
    return %c0_i32, %c0_i32_0 : i32, i32
  }
  func.func @transform_8(%arg0: i32) -> (i32, i32, i32) {
    %c0_i32 = arith.constant 0 : i32
    %c0_i32_0 = arith.constant 0 : i32
    %c0_i32_1 = arith.constant 0 : i32
    %c0_i32_2 = arith.constant 0 : i32
    return %c0_i32, %c0_i32_0, %c0_i32_1 : i32, i32, i32
  }
  func.func @transform_9(%arg0: i32) -> (i32, i32, i32) {
    %c0_i32 = arith.constant 0 : i32
    %c0_i32_0 = arith.constant 0 : i32
    %c0_i32_1 = arith.constant 0 : i32
    %c0_i32_2 = arith.constant 0 : i32
    return %c0_i32, %c0_i32_0, %c0_i32_1 : i32, i32, i32
  }
  func.func @transform_10(%arg0: i32) -> (i32, i32, i32) {
    %c0_i32 = arith.constant 0 : i32
    %c0_i32_0 = arith.constant 0 : i32
    %c0_i32_1 = arith.constant 0 : i32
    %c0_i32_2 = arith.constant 0 : i32
    return %c0_i32, %c0_i32_0, %c0_i32_1 : i32, i32, i32
  }
  func.func @transform_11(%arg0: i32) -> (i32, i32, i32, i32) {
    %c0_i32 = arith.constant 0 : i32
    %c0_i32_0 = arith.constant 0 : i32
    %c0_i32_1 = arith.constant 0 : i32
    %c0_i32_2 = arith.constant 0 : i32
    %c0_i32_3 = arith.constant 0 : i32
    return %c0_i32, %c0_i32_0, %c0_i32_1, %c0_i32_2 : i32, i32, i32, i32
  }
  func.func @transform_12(%arg0: i32) -> (i32, i32, i32) {
    %c0_i32 = arith.constant 0 : i32
    %c0_i32_0 = arith.constant 0 : i32
    %c0_i32_1 = arith.constant 0 : i32
    %c0_i32_2 = arith.constant 0 : i32
    return %c0_i32, %c0_i32_0, %c0_i32_1 : i32, i32, i32
  }
  func.func @transform_13(%arg0: i32) -> (i32, i32) {
    %c0_i32 = arith.constant 0 : i32
    %c0_i32_0 = arith.constant 0 : i32
    %c0_i32_1 = arith.constant 0 : i32
    return %c0_i32, %c0_i32_0 : i32, i32
  }
  func.func @transform_14(%arg0: i32) -> (i32, i32) {
    %c0_i32 = arith.constant 0 : i32
    %c0_i32_0 = arith.constant 0 : i32
    %c0_i32_1 = arith.constant 0 : i32
    return %c0_i32, %c0_i32_0 : i32, i32
  }
  func.func @transform_15(%arg0: i32) -> (i32, i32, i32) {
    %c0_i32 = arith.constant 0 : i32
    %c0_i32_0 = arith.constant 0 : i32
    %c0_i32_1 = arith.constant 0 : i32
    %c0_i32_2 = arith.constant 0 : i32
    return %c0_i32, %c0_i32_0, %c0_i32_1 : i32, i32, i32
  }
  func.func @transform_16(%arg0: i32) -> (i32, i32) {
    %c0_i32 = arith.constant 0 : i32
    %c0_i32_0 = arith.constant 0 : i32
    %c0_i32_1 = arith.constant 0 : i32
    return %c0_i32, %c0_i32_0 : i32, i32
  }
  func.func @transform_17(%arg0: i32) -> (i32, i32, i32) {
    %c0_i32 = arith.constant 0 : i32
    %c0_i32_0 = arith.constant 0 : i32
    %c0_i32_1 = arith.constant 0 : i32
    return %arg0, %c0_i32, %c0_i32_0 : i32, i32, i32
  }
}

</mosaic_0001>

<llo_original>
// kernel: downsample2_forward.1
$region0: #{downsample2_forward.1}
  #allocation0 [shape = 'u32[]', space=smem, size = 0x4, offset = 0x4, fixed_abs, tag = 'smem constant byte address 0x4 - core index']
  #allocation1 [shape = 'u32[144,128]{1,0:T(1,128)}', space=vmem, size = 0x12000, scoped, tag = 'internal scratch']
  %s0 = inlined_call_operand.vmem [shape: bf16[2,256,64], index: 0, kind: input, shape index: {}]
  %s1 = inlined_call_operand.hbm [shape: bf16[9,64,256], index: 1, kind: input, shape index: {}]
  %s2 = inlined_call_operand.hbm [shape: bf16[9,64,128], index: 2, kind: input, shape index: {}]
  %s3 = inlined_call_operand.vmem [shape: f32[1,128], index: 3, kind: input, shape index: {}]
  %s4 = inlined_call_operand.hbm [shape: bf16[128,64], index: 4, kind: input, shape index: {}]
  %s5 = inlined_call_operand.vmem [shape: f32[1,64], index: 5, kind: input, shape index: {}]
  %s6 = inlined_call_operand.vmem [shape: bf16[128,64], index: 6, kind: input, shape index: {}]
  %s7 = inlined_call_operand.vmem [shape: f32[1,64], index: 7, kind: input, shape index: {}]
  %s8 = inlined_call_operand.hbm [shape: bf16[9,64,64], index: 8, kind: input, shape index: {}]
  %s9 = inlined_call_operand.vmem [shape: bf16[2,64,64], index: 9, kind: input, shape index: {}]
  %s10 = inlined_call_operand.vmem [shape: f32[2,1,64], index: 10, kind: input, shape index: {}]
  %s11 = inlined_call_operand.vmem [shape: bf16[2,9,64,64], index: 11, kind: input, shape index: {}]
  %s12 = inlined_call_operand.vmem [shape: f32[2,1,64], index: 12, kind: input, shape index: {}]
  %s13 = inlined_call_operand.hbm [shape: bf16[64,64], index: 13, kind: input, shape index: {}]
  %s14 = inlined_call_operand.vmem [shape: f32[1,64], index: 14, kind: input, shape index: {}]
  %s15 = inlined_call_operand.vmem [shape: bf16[2,64,128], index: 15, kind: input, shape index: {}]
  %s16 = inlined_call_operand.vmem [shape: f32[1,128], index: 16, kind: input, shape index: {}]
  %s17 = inlined_call_operand.vmem [shape: bf16[2,64,128], index: 17, kind: output, shape index: {}]
  %s18 = sld [smem:[#allocation0]]
  $region121: #{downsample2_forward.1} parent=0
    _
  %s20 = ssub.s32 1, %s18
  %s21 = scalar_select 0, %s20, %s18
  $region1: #{downsample2_forward.1} parent=0
    #allocation2 [shape = 'u8[294912]{0}', space=vmem, size = 0x48000, scoped, tag = 'input window, operand 1, single buffered']
    #allocation3 [shape = 's32[2]{0}', space=sflag, size = 0x8, scoped, tag = 'scoped memory for downsample2_forward.1']
    #allocation4 [shape = 'u8[147456]{0}', space=vmem, size = 0x24000, scoped, tag = 'input window, operand 2, single buffered']
    #allocation5 [shape = 's32[1]{0}', space=sflag, size = 0x4, scoped, tag = 'scoped memory for downsample2_forward.1']
    #allocation6 [shape = 'u8[32768]{0}', space=vmem, size = 0x8000, scoped, tag = 'input window, operand 4, single buffered']
    #allocation7 [shape = 'u8[147456]{0}', space=vmem, size = 0x24000, scoped, tag = 'input window, operand 8, single buffered']
    #allocation8 [shape = 's32[1]{0}', space=sflag, size = 0x4, scoped, tag = 'scoped memory for downsample2_forward.1']
    #allocation9 [shape = 'u8[16384]{0}', space=vmem, size = 0x4000, scoped, tag = 'input window, operand 13, single buffered']
    %22 = vsyncpa [#allocation3], 0
    %23 = vsyncpa [#allocation5], 0
    %24 = vsyncpa [#allocation8], 0
    loop: start=0, step=1, limit=4
    $region2: #{downsample2_forward.1} parent=1 // loop_pre_header
      _
    $region3: #{downsample2_forward.1} parent=1 // loop_header
      %s26 = sphi 0, %s30
      %p27 = scmp.ge.s32.totalorder %s26, 4
      %s36 = sphi 0, %s38
      %s39 = sphi 0, %s36
      %s40 = sphi 0, %s39
      %s56 = sphi 0, %s40
      %s60 = sphi 0, %s60
      %s62 = sphi 0, %s60
      %s63 = sphi 0, %s62
      %s77 = sphi 0, %s63
      %s81 = sphi 0, %s81
      %s83 = sphi 0, %s81
      %s84 = sphi 0, %s83
      %s98 = sphi 0, %s84
      %s102 = sphi 0, %s102
      %s104 = sphi 0, %s102
      %s105 = sphi 0, %s104
      %s119 = sphi 0, %s105
      %s123 = sphi 0, %s123
      %s125 = sphi 0, %s123
      %s126 = sphi 0, %s125
      %s140 = sphi 0, %s126
      %s144 = sphi 0, %s144
      %s146 = sphi 0, %s144
      %s147 = sphi 0, %s146
      %s161 = sphi 0, %s147
      %s165 = sphi 0, %s165
      %s167 = sphi 0, %s165
      %s168 = sphi 0, %s167
      %s182 = sphi 0, %s168
      %s186 = sphi 0, %s186
      %s188 = sphi 0, %s186
      %s189 = sphi 0, %s188
      %s203 = sphi 0, %s189
      %s207 = sphi 0, %s207
      %s209 = sphi 0, %s207
      %s210 = sphi 0, %s209
      %s224 = sphi 0, %s210
      %s228 = sphi 0, %s228
      %s230 = sphi 0, %s228
      %s231 = sphi 0, %s230
      %s245 = sphi 0, %s231
      %s249 = sphi 0, %s249
      %s251 = sphi 0, %s249
      %s252 = sphi 0, %s251
      %s266 = sphi 0, %s252
      %s270 = sphi 0, %s270
      %s272 = sphi 0, %s270
      %s273 = sphi 0, %s272
      %s287 = sphi 0, %s273
      %s291 = sphi 0, %s291
      %s293 = sphi 0, %s291
      %s294 = sphi 0, %s293
      %s308 = sphi 0, %s294
      %s312 = sphi 0, %s312
      %s314 = sphi 0, %s312
      %s315 = sphi 0, %s314
      %s329 = sphi 0, %s315
      %s333 = sphi 0, %s333
      %s335 = sphi 0, %s333
      %s336 = sphi 0, %s335
      %s350 = sphi 0, %s336
      %s354 = sphi 0, %s354
      %s356 = sphi 0, %s354
      %s357 = sphi 0, %s356
      %s371 = sphi 0, %s357
      %s375 = sphi 0, %s375
      %s377 = sphi 0, %s375
      %s378 = sphi 0, %s377
      %s392 = sphi 0, %s378
      %s398 = sphi 0, %s400
      %s401 = sphi 0, %s398
      %s402 = sphi 0, %s401
      %s418 = sphi 0, %s402
    $region4: #{downsample2_forward.1} parent=1 // loop_header_branch
      %29 = sbr.rel (%p27) target = $region8
    $region5: #{downsample2_forward.1} parent=1 // loop_body
      %s31 = ssub.s32 %s26, 1
      %s32 = ssub.s32 %s26, 2
      %s33 = sadd.s32 %s26, 1
      %s34 = ssub.s32 %s26, %s33
      %p35 = scmp.eq.s32.totalorder %s34, 0
      %s37 = sadd.s32 %s36, 1
      %s38 = scalar_select %p35, %s36, %s37
      %p41 = pneg %p35
      %p42 = scmp.eq.s32.totalorder %s26, 1
      %p43 = por %p41, %p42
      %p44 = scmp.ne.s32.totalorder %s36, %s39
      %p45 = scmp.eq.s32.totalorder %s26, 0
      %p46 = por %p44, %p45
      %p47 = scmp.ne.s32.totalorder %s36, %s39
      %p48 = scmp.eq.s32.totalorder %s31, 1
      %p49 = por %p47, %p48
      %p50 = scmp.ne.s32.totalorder %s39, %s40
      %p51 = scmp.eq.s32.totalorder %s31, 0
      %p52 = por %p50, %p51
      %p53 = scmp.ne.s32.totalorder %s39, %s40
      %p54 = scmp.eq.s32.totalorder %s32, 1
      %p55 = por %p53, %p54
      %p57 = scmp.ne.s32.totalorder %s40, %s56
      %p58 = scmp.eq.s32.totalorder %s32, 0
      %p59 = por %p57, %p58
      %s61 = sadd.s32 %s60, 1
      %p64 = scmp.eq.s32.totalorder %s26, 1
      %p65 = scmp.ne.s32.totalorder %s60, %s62
      %p66 = scmp.eq.s32.totalorder %s26, 0
      %p67 = por %p65, %p66
      %p68 = scmp.ne.s32.totalorder %s60, %s62
      %p69 = scmp.eq.s32.totalorder %s31, 1
      %p70 = por %p68, %p69
      %p71 = scmp.ne.s32.totalorder %s62, %s63
      %p72 = scmp.eq.s32.totalorder %s31, 0
      %p73 = por %p71, %p72
      %p74 = scmp.ne.s32.totalorder %s62, %s63
      %p75 = scmp.eq.s32.totalorder %s32, 1
      %p76 = por %p74, %p75
      %p78 = scmp.ne.s32.totalorder %s63, %s77
      %p79 = scmp.eq.s32.totalorder %s32, 0
      %p80 = por %p78, %p79
      %s82 = sadd.s32 %s81, 1
      %p85 = scmp.eq.s32.totalorder %s26, 1
      %p86 = scmp.ne.s32.totalorder %s81, %s83
      %p87 = scmp.eq.s32.totalorder %s26, 0
      %p88 = por %p86, %p87
      %p89 = scmp.ne.s32.totalorder %s81, %s83
      %p90 = scmp.eq.s32.totalorder %s31, 1
      %p91 = por %p89, %p90
      %p92 = scmp.ne.s32.totalorder %s83, %s84
      %p93 = scmp.eq.s32.totalorder %s31, 0
      %p94 = por %p92, %p93
      %p95 = scmp.ne.s32.totalorder %s83, %s84
      %p96 = scmp.eq.s32.totalorder %s32, 1
      %p97 = por %p95, %p96
      %p99 = scmp.ne.s32.totalorder %s84, %s98
      %p100 = scmp.eq.s32.totalorder %s32, 0
      %p101 = por %p99, %p100
      %s103 = sadd.s32 %s102, 1
      %p106 = scmp.eq.s32.totalorder %s26, 1
      %p107 = scmp.ne.s32.totalorder %s102, %s104
      %p108 = scmp.eq.s32.totalorder %s26, 0
      %p109 = por %p107, %p108
      %p110 = scmp.ne.s32.totalorder %s102, %s104
      %p111 = scmp.eq.s32.totalorder %s31, 1
      %p112 = por %p110, %p111
      %p113 = scmp.ne.s32.totalorder %s104, %s105
      %p114 = scmp.eq.s32.totalorder %s31, 0
      %p115 = por %p113, %p114
      %p116 = scmp.ne.s32.totalorder %s104, %s105
      %p117 = scmp.eq.s32.totalorder %s32, 1
      %p118 = por %p116, %p117
      %p120 = scmp.ne.s32.totalorder %s105, %s119
      %p121 = scmp.eq.s32.totalorder %s32, 0
      %p122 = por %p120, %p121
      %s124 = sadd.s32 %s123, 1
      %p127 = scmp.eq.s32.totalorder %s26, 1
      %p128 = scmp.ne.s32.totalorder %s123, %s125
      %p129 = scmp.eq.s32.totalorder %s26, 0
      %p130 = por %p128, %p129
      %p131 = scmp.ne.s32.totalorder %s123, %s125
      %p132 = scmp.eq.s32.totalorder %s31, 1
      %p133 = por %p131, %p132
      %p134 = scmp.ne.s32.totalorder %s125, %s126
      %p135 = scmp.eq.s32.totalorder %s31, 0
      %p136 = por %p134, %p135
      %p137 = scmp.ne.s32.totalorder %s125, %s126
      %p138 = scmp.eq.s32.totalorder %s32, 1
      %p139 = por %p137, %p138
      %p141 = scmp.ne.s32.totalorder %s126, %s140
      %p142 = scmp.eq.s32.totalorder %s32, 0
      %p143 = por %p141, %p142
      %s145 = sadd.s32 %s144, 1
      %p148 = scmp.eq.s32.totalorder %s26, 1
      %p149 = scmp.ne.s32.totalorder %s144, %s146
      %p150 = scmp.eq.s32.totalorder %s26, 0
      %p151 = por %p149, %p150
      %p152 = scmp.ne.s32.totalorder %s144, %s146
      %p153 = scmp.eq.s32.totalorder %s31, 1
      %p154 = por %p152, %p153
      %p155 = scmp.ne.s32.totalorder %s146, %s147
      %p156 = scmp.eq.s32.totalorder %s31, 0
      %p157 = por %p155, %p156
      %p158 = scmp.ne.s32.totalorder %s146, %s147
      %p159 = scmp.eq.s32.totalorder %s32, 1
      %p160 = por %p158, %p159
      %p162 = scmp.ne.s32.totalorder %s147, %s161
      %p163 = scmp.eq.s32.totalorder %s32, 0
      %p164 = por %p162, %p163
      %s166 = sadd.s32 %s165, 1
      %p169 = scmp.eq.s32.totalorder %s26, 1
      %p170 = scmp.ne.s32.totalorder %s165, %s167
      %p171 = scmp.eq.s32.totalorder %s26, 0
      %p172 = por %p170, %p171
      %p173 = scmp.ne.s32.totalorder %s165, %s167
      %p174 = scmp.eq.s32.totalorder %s31, 1
      %p175 = por %p173, %p174
      %p176 = scmp.ne.s32.totalorder %s167, %s168
      %p177 = scmp.eq.s32.totalorder %s31, 0
      %p178 = por %p176, %p177
      %p179 = scmp.ne.s32.totalorder %s167, %s168
      %p180 = scmp.eq.s32.totalorder %s32, 1
      %p181 = por %p179, %p180
      %p183 = scmp.ne.s32.totalorder %s168, %s182
      %p184 = scmp.eq.s32.totalorder %s32, 0
      %p185 = por %p183, %p184
      %s187 = sadd.s32 %s186, 1
      %p190 = scmp.eq.s32.totalorder %s26, 1
      %p191 = scmp.ne.s32.totalorder %s186, %s188
      %p192 = scmp.eq.s32.totalorder %s26, 0
      %p193 = por %p191, %p192
      %p194 = scmp.ne.s32.totalorder %s186, %s188
      %p195 = scmp.eq.s32.totalorder %s31, 1
      %p196 = por %p194, %p195
      %p197 = scmp.ne.s32.totalorder %s188, %s189
      %p198 = scmp.eq.s32.totalorder %s31, 0
      %p199 = por %p197, %p198
      %p200 = scmp.ne.s32.totalorder %s188, %s189
      %p201 = scmp.eq.s32.totalorder %s32, 1
      %p202 = por %p200, %p201
      %p204 = scmp.ne.s32.totalorder %s189, %s203
      %p205 = scmp.eq.s32.totalorder %s32, 0
      %p206 = por %p204, %p205
      %s208 = sadd.s32 %s207, 1
      %p211 = scmp.eq.s32.totalorder %s26, 1
      %p212 = scmp.ne.s32.totalorder %s207, %s209
      %p213 = scmp.eq.s32.totalorder %s26, 0
      %p214 = por %p212, %p213
      %p215 = scmp.ne.s32.totalorder %s207, %s209
      %p216 = scmp.eq.s32.totalorder %s31, 1
      %p217 = por %p215, %p216
      %p218 = scmp.ne.s32.totalorder %s209, %s210
      %p219 = scmp.eq.s32.totalorder %s31, 0
      %p220 = por %p218, %p219
      %p221 = scmp.ne.s32.totalorder %s209, %s210
      %p222 = scmp.eq.s32.totalorder %s32, 1
      %p223 = por %p221, %p222
      %p225 = scmp.ne.s32.totalorder %s210, %s224
      %p226 = scmp.eq.s32.totalorder %s32, 0
      %p227 = por %p225, %p226
      %s229 = sadd.s32 %s228, 1
      %p232 = scmp.eq.s32.totalorder %s26, 1
      %p233 = scmp.ne.s32.totalorder %s228, %s230
      %p234 = scmp.eq.s32.totalorder %s26, 0
      %p235 = por %p233, %p234
      %p236 = scmp.ne.s32.totalorder %s228, %s230
      %p237 = scmp.eq.s32.totalorder %s31, 1
      %p238 = por %p236, %p237
      %p239 = scmp.ne.s32.totalorder %s230, %s231
      %p240 = scmp.eq.s32.totalorder %s31, 0
      %p241 = por %p239, %p240
      %p242 = scmp.ne.s32.totalorder %s230, %s231
      %p243 = scmp.eq.s32.totalorder %s32, 1
      %p244 = por %p242, %p243
      %p246 = scmp.ne.s32.totalorder %s231, %s245
      %p247 = scmp.eq.s32.totalorder %s32, 0
      %p248 = por %p246, %p247
      %s250 = sadd.s32 %s249, 1
      %p253 = scmp.eq.s32.totalorder %s26, 1
      %p254 = scmp.ne.s32.totalorder %s249, %s251
      %p255 = scmp.eq.s32.totalorder %s26, 0
      %p256 = por %p254, %p255
      %p257 = scmp.ne.s32.totalorder %s249, %s251
      %p258 = scmp.eq.s32.totalorder %s31, 1
      %p259 = por %p257, %p258
      %p260 = scmp.ne.s32.totalorder %s251, %s252
      %p261 = scmp.eq.s32.totalorder %s31, 0
      %p262 = por %p260, %p261
      %p263 = scmp.ne.s32.totalorder %s251, %s252
      %p264 = scmp.eq.s32.totalorder %s32, 1
      %p265 = por %p263, %p264
      %p267 = scmp.ne.s32.totalorder %s252, %s266
      %p268 = scmp.eq.s32.totalorder %s32, 0
      %p269 = por %p267, %p268
      %s271 = sadd.s32 %s270, 1
      %p274 = scmp.eq.s32.totalorder %s26, 1
      %p275 = scmp.ne.s32.totalorder %s270, %s272
      %p276 = scmp.eq.s32.totalorder %s26, 0
      %p277 = por %p275, %p276
      %p278 = scmp.ne.s32.totalorder %s270, %s272
      %p279 = scmp.eq.s32.totalorder %s31, 1
      %p280 = por %p278, %p279
      %p281 = scmp.ne.s32.totalorder %s272, %s273
      %p282 = scmp.eq.s32.totalorder %s31, 0
      %p283 = por %p281, %p282
      %p284 = scmp.ne.s32.totalorder %s272, %s273
      %p285 = scmp.eq.s32.totalorder %s32, 1
      %p286 = por %p284, %p285
      %p288 = scmp.ne.s32.totalorder %s273, %s287
      %p289 = scmp.eq.s32.totalorder %s32, 0
      %p290 = por %p288, %p289
      %s292 = sadd.s32 %s291, 1
      %p295 = scmp.eq.s32.totalorder %s26, 1
      %p296 = scmp.ne.s32.totalorder %s291, %s293
      %p297 = scmp.eq.s32.totalorder %s26, 0
      %p298 = por %p296, %p297
      %p299 = scmp.ne.s32.totalorder %s291, %s293
      %p300 = scmp.eq.s32.totalorder %s31, 1
      %p301 = por %p299, %p300
      %p302 = scmp.ne.s32.totalorder %s293, %s294
      %p303 = scmp.eq.s32.totalorder %s31, 0
      %p304 = por %p302, %p303
      %p305 = scmp.ne.s32.totalorder %s293, %s294
      %p306 = scmp.eq.s32.totalorder %s32, 1
      %p307 = por %p305, %p306
      %p309 = scmp.ne.s32.totalorder %s294, %s308
      %p310 = scmp.eq.s32.totalorder %s32, 0
      %p311 = por %p309, %p310
      %s313 = sadd.s32 %s312, 1
      %p316 = scmp.eq.s32.totalorder %s26, 1
      %p317 = scmp.ne.s32.totalorder %s312, %s314
      %p318 = scmp.eq.s32.totalorder %s26, 0
      %p319 = por %p317, %p318
      %p320 = scmp.ne.s32.totalorder %s312, %s314
      %p321 = scmp.eq.s32.totalorder %s31, 1
      %p322 = por %p320, %p321
      %p323 = scmp.ne.s32.totalorder %s314, %s315
      %p324 = scmp.eq.s32.totalorder %s31, 0
      %p325 = por %p323, %p324
      %p326 = scmp.ne.s32.totalorder %s314, %s315
      %p327 = scmp.eq.s32.totalorder %s32, 1
      %p328 = por %p326, %p327
      %p330 = scmp.ne.s32.totalorder %s315, %s329
      %p331 = scmp.eq.s32.totalorder %s32, 0
      %p332 = por %p330, %p331
      %s334 = sadd.s32 %s333, 1
      %p337 = scmp.eq.s32.totalorder %s26, 1
      %p338 = scmp.ne.s32.totalorder %s333, %s335
      %p339 = scmp.eq.s32.totalorder %s26, 0
      %p340 = por %p338, %p339
      %p341 = scmp.ne.s32.totalorder %s333, %s335
      %p342 = scmp.eq.s32.totalorder %s31, 1
      %p343 = por %p341, %p342
      %p344 = scmp.ne.s32.totalorder %s335, %s336
      %p345 = scmp.eq.s32.totalorder %s31, 0
      %p346 = por %p344, %p345
      %p347 = scmp.ne.s32.totalorder %s335, %s336
      %p348 = scmp.eq.s32.totalorder %s32, 1
      %p349 = por %p347, %p348
      %p351 = scmp.ne.s32.totalorder %s336, %s350
      %p352 = scmp.eq.s32.totalorder %s32, 0
      %p353 = por %p351, %p352
      %s355 = sadd.s32 %s354, 1
      %p358 = scmp.eq.s32.totalorder %s26, 1
      %p359 = scmp.ne.s32.totalorder %s354, %s356
      %p360 = scmp.eq.s32.totalorder %s26, 0
      %p361 = por %p359, %p360
      %p362 = scmp.ne.s32.totalorder %s354, %s356
      %p363 = scmp.eq.s32.totalorder %s31, 1
      %p364 = por %p362, %p363
      %p365 = scmp.ne.s32.totalorder %s356, %s357
      %p366 = scmp.eq.s32.totalorder %s31, 0
      %p367 = por %p365, %p366
      %p368 = scmp.ne.s32.totalorder %s356, %s357
      %p369 = scmp.eq.s32.totalorder %s32, 1
      %p370 = por %p368, %p369
      %p372 = scmp.ne.s32.totalorder %s357, %s371
      %p373 = scmp.eq.s32.totalorder %s32, 0
      %p374 = por %p372, %p373
      %s376 = sadd.s32 %s375, 1
      %p379 = scmp.eq.s32.totalorder %s26, 1
      %p380 = scmp.ne.s32.totalorder %s375, %s377
      %p381 = scmp.eq.s32.totalorder %s26, 0
      %p382 = por %p380, %p381
      %p383 = scmp.ne.s32.totalorder %s375, %s377
      %p384 = scmp.eq.s32.totalorder %s31, 1
      %p385 = por %p383, %p384
      %p386 = scmp.ne.s32.totalorder %s377, %s378
      %p387 = scmp.eq.s32.totalorder %s31, 0
      %p388 = por %p386, %p387
      %p389 = scmp.ne.s32.totalorder %s377, %s378
      %p390 = scmp.eq.s32.totalorder %s32, 1
      %p391 = por %p389, %p390
      %p393 = scmp.ne.s32.totalorder %s378, %s392
      %p394 = scmp.eq.s32.totalorder %s32, 0
      %p395 = por %p393, %p394
      %s396 = ssub.s32 %s26, %s33
      %p397 = scmp.eq.s32.totalorder %s396, 0
      %s399 = sadd.s32 %s398, 1
      %s400 = scalar_select %p397, %s398, %s399
      %p403 = pneg %p397
      %p404 = scmp.eq.s32.totalorder %s26, 1
      %p405 = por %p403, %p404
      %p406 = scmp.ne.s32.totalorder %s398, %s401
      %p407 = scmp.eq.s32.totalorder %s26, 0
      %p408 = por %p406, %p407
      %p409 = scmp.ne.s32.totalorder %s398, %s401
      %p410 = scmp.eq.s32.totalorder %s31, 1
      %p411 = por %p409, %p410
      %p412 = scmp.ne.s32.totalorder %s401, %s402
      %p413 = scmp.eq.s32.totalorder %s31, 0
      %p414 = por %p412, %p413
      %p415 = scmp.ne.s32.totalorder %s401, %s402
      %p416 = scmp.eq.s32.totalorder %s32, 1
      %p417 = por %p415, %p416
      %p419 = scmp.ne.s32.totalorder %s402, %s418
      %p420 = scmp.eq.s32.totalorder %s32, 0
      %p421 = por %p419, %p420
      %p422 = scmp.le.s32.totalorder 1, %s26
      %p423 = scmp.lt.s32.totalorder %s26, 3
      %p424 = pnand %p422, %p423
      %p425 = pneg %p424
      // Predicated region
      $region9: #{downsample2_forward.1} parent=5 // pred_check
        _
      $region10: #{downsample2_forward.1} parent=5 // pred_check_branch
        %427 = sbr.rel (%p424) target = $region12
      $region11: #{downsample2_forward.1} parent=5 // pred_region
        %s428 = ssub.s32 %s26, 1
        // Predicated region
        $region13: #{downsample2_forward.1} parent=11 // pred_check
          %p429 = pneg %p73
        $region14: #{downsample2_forward.1} parent=11 // pred_check_branch
          %431 = sbr.rel (%p429) target = $region16
        $region15: #{downsample2_forward.1} parent=11 // pred_region
          %s433 = ssub.s32 9216, 9216
          %434 = vsyncadd [#allocation3], %s433
          %s435 = sshll.u32 [#allocation2], 4
          %s436 = int_to_ptr.vmem [resolvable:$true] %s435
          %441 = dma.hbm_to_vmem [thread:$0]  %s1, 9216, %s436, [#allocation3], 128, 128, 8
        $region16: #{downsample2_forward.1} parent=11 // pred_fallthru
          _
        // Predicated region
        $region17: #{downsample2_forward.1} parent=11 // pred_check
          %p442 = pneg %p94
        $region18: #{downsample2_forward.1} parent=11 // pred_check_branch
          %444 = sbr.rel (%p442) target = $region20
        $region19: #{downsample2_forward.1} parent=11 // pred_region
          %s446 = ssub.s32 4608, 4608
          %447 = vsyncadd [#allocation5], %s446
          %s448 = sshll.u32 [#allocation4], 4
          %s449 = int_to_ptr.vmem [resolvable:$true] %s448
          %454 = dma.hbm_to_vmem [thread:$0]  %s2, 4608, %s449, [#allocation5], 64, 64, 4
        $region20: #{downsample2_forward.1} parent=11 // pred_fallthru
          _
        // Predicated region
        $region21: #{downsample2_forward.1} parent=11 // pred_check
          %p455 = pneg %p115
        $region22: #{downsample2_forward.1} parent=11 // pred_check_branch
          %457 = sbr.rel (%p455) target = $region24
        $region23: #{downsample2_forward.1} parent=11 // pred_region
          _
        $region24: #{downsample2_forward.1} parent=11 // pred_fallthru
          _
        // Predicated region
        $region25: #{downsample2_forward.1} parent=11 // pred_check
          %p458 = pneg %p136
        $region26: #{downsample2_forward.1} parent=11 // pred_check_branch
          %460 = sbr.rel (%p458) target = $region28
        $region27: #{downsample2_forward.1} parent=11 // pred_region
          %s462 = ssub.s32 1024, 1024
          %463 = vsyncadd [#allocation5], %s462
          %s464 = sshll.u32 [#allocation6], 4
          %s465 = int_to_ptr.vmem [resolvable:$true] %s464
          %470 = dma.hbm_to_vmem [thread:$0]  %s4, 1024, %s465, [#allocation5], 64, 64, 4
        $region28: #{downsample2_forward.1} parent=11 // pred_fallthru
          _
        // Predicated region
        $region29: #{downsample2_forward.1} parent=11 // pred_check
          %p471 = pneg %p157
        $region30: #{downsample2_forward.1} parent=11 // pred_check_branch
          %473 = sbr.rel (%p471) target = $region32
        $region31: #{downsample2_forward.1} parent=11 // pred_region
          _
        $region32: #{downsample2_forward.1} parent=11 // pred_fallthru
          _
        // Predicated region
        $region33: #{downsample2_forward.1} parent=11 // pred_check
          %p474 = pneg %p178
        $region34: #{downsample2_forward.1} parent=11 // pred_check_branch
          %476 = sbr.rel (%p474) target = $region36
        $region35: #{downsample2_forward.1} parent=11 // pred_region
          _
        $region36: #{downsample2_forward.1} parent=11 // pred_fallthru
          _
        // Predicated region
        $region37: #{downsample2_forward.1} parent=11 // pred_check
          %p477 = pneg %p199
        $region38: #{downsample2_forward.1} parent=11 // pred_check_branch
          %479 = sbr.rel (%p477) target = $region40
        $region39: #{downsample2_forward.1} parent=11 // pred_region
          _
        $region40: #{downsample2_forward.1} parent=11 // pred_fallthru
          _
        // Predicated region
        $region41: #{downsample2_forward.1} parent=11 // pred_check
          %p480 = pneg %p220
        $region42: #{downsample2_forward.1} parent=11 // pred_check_branch
          %482 = sbr.rel (%p480) target = $region44
        $region43: #{downsample2_forward.1} parent=11 // pred_region
          %s484 = ssub.s32 4608, 4608
          %485 = vsyncadd [#allocation8], %s484
          %s486 = sshll.u32 [#allocation7], 4
          %s487 = int_to_ptr.vmem [resolvable:$true] %s486
          %492 = dma.hbm_to_vmem [thread:$0]  %s8, 4608, %s487, [#allocation8], 64, 64, 4
        $region44: #{downsample2_forward.1} parent=11 // pred_fallthru
          _
        // Predicated region
        $region45: #{downsample2_forward.1} parent=11 // pred_check
          %p493 = pneg %p241
        $region46: #{downsample2_forward.1} parent=11 // pred_check_branch
          %495 = sbr.rel (%p493) target = $region48
        $region47: #{downsample2_forward.1} parent=11 // pred_region
          _
        $region48: #{downsample2_forward.1} parent=11 // pred_fallthru
          _
        // Predicated region
        $region49: #{downsample2_forward.1} parent=11 // pred_check
          %p496 = pneg %p262
        $region50: #{downsample2_forward.1} parent=11 // pred_check_branch
          %498 = sbr.rel (%p496) target = $region52
        $region51: #{downsample2_forward.1} parent=11 // pred_region
          _
        $region52: #{downsample2_forward.1} parent=11 // pred_fallthru
          _
        // Predicated region
        $region53: #{downsample2_forward.1} parent=11 // pred_check
          %p499 = pneg %p283
        $region54: #{downsample2_forward.1} parent=11 // pred_check_branch
          %501 = sbr.rel (%p499) target = $region56
        $region55: #{downsample2_forward.1} parent=11 // pred_region
          _
        $region56: #{downsample2_forward.1} parent=11 // pred_fallthru
          _
        // Predicated region
        $region57: #{downsample2_forward.1} parent=11 // pred_check
          %p502 = pneg %p304
        $region58: #{downsample2_forward.1} parent=11 // pred_check_branch
          %504 = sbr.rel (%p502) target = $region60
        $region59: #{downsample2_forward.1} parent=11 // pred_region
          _
        $region60: #{downsample2_forward.1} parent=11 // pred_fallthru
          _
        // Predicated region
        $region61: #{downsample2_forward.1} parent=11 // pred_check
          %p505 = pneg %p325
        $region62: #{downsample2_forward.1} parent=11 // pred_check_branch
          %507 = sbr.rel (%p505) target = $region64
        $region63: #{downsample2_forward.1} parent=11 // pred_region
          %s509 = ssub.s32 512, 512
          %510 = vsyncadd [#allocation8], %s509
          %s511 = sshll.u32 [#allocation9], 4
          %s512 = int_to_ptr.vmem [resolvable:$true] %s511
          %517 = dma.hbm_to_vmem [thread:$0]  %s13, 512, %s512, [#allocation8], 64, 64, 4
        $region64: #{downsample2_forward.1} parent=11 // pred_fallthru
          _
        // Predicated region
        $region65: #{downsample2_forward.1} parent=11 // pred_check
          %p518 = pneg %p346
        $region66: #{downsample2_forward.1} parent=11 // pred_check_branch
          %520 = sbr.rel (%p518) target = $region68
        $region67: #{downsample2_forward.1} parent=11 // pred_region
          _
        $region68: #{downsample2_forward.1} parent=11 // pred_fallthru
          _
        // Predicated region
        $region69: #{downsample2_forward.1} parent=11 // pred_check
          %p521 = pneg %p367
        $region70: #{downsample2_forward.1} parent=11 // pred_check_branch
          %523 = sbr.rel (%p521) target = $region72
        $region71: #{downsample2_forward.1} parent=11 // pred_region
          _
        $region72: #{downsample2_forward.1} parent=11 // pred_fallthru
          _
        // Predicated region
        $region73: #{downsample2_forward.1} parent=11 // pred_check
          %p524 = pneg %p388
        $region74: #{downsample2_forward.1} parent=11 // pred_check_branch
          %526 = sbr.rel (%p524) target = $region76
        $region75: #{downsample2_forward.1} parent=11 // pred_region
          _
        $region76: #{downsample2_forward.1} parent=11 // pred_fallthru
          _
      $region12: #{downsample2_forward.1} parent=5 // pred_fallthru
        _
      %p527 = scmp.lt.s32.totalorder %s26, 2
      // Predicated region
      $region77: #{downsample2_forward.1} parent=5 // pred_check
        %p528 = pneg %p527
      $region78: #{downsample2_forward.1} parent=5 // pred_check_branch
        %530 = sbr.rel (%p528) target = $region80
      $region79: #{downsample2_forward.1} parent=5 // pred_region
        // Predicated region
        $region81: #{downsample2_forward.1} parent=79 // pred_check
          %p531 = pneg %p46
        $region82: #{downsample2_forward.1} parent=79 // pred_check_branch
          %533 = sbr.rel (%p531) target = $region84
        $region83: #{downsample2_forward.1} parent=79 // pred_region
          %p534 = scmp.lt.s32.totalorder %s26, 1
          %s535 = scalar_select %p534, %s26, 1
          %s536 = smul.addr %s535, 32
          %s537 = smul.addr %s536, 4
          %s538 = scalar_lea.vmem %s0, %s537
        $region84: #{downsample2_forward.1} parent=79 // pred_fallthru
          _
      $region80: #{downsample2_forward.1} parent=5 // pred_fallthru
        _
      %p539 = scmp.le.s32.totalorder 1, %s26
      %p540 = scmp.lt.s32.totalorder %s26, 3
      %p541 = pnand %p539, %p540
      %p542 = pneg %p541
      // Predicated region
      $region85: #{downsample2_forward.1} parent=5 // pred_check
        _
      $region86: #{downsample2_forward.1} parent=5 // pred_check_branch
        %544 = sbr.rel (%p541) target = $region88
      $region87: #{downsample2_forward.1} parent=5 // pred_region
        %s545 = ssub.s32 %s26, 1
        // Predicated region
        $region89: #{downsample2_forward.1} parent=87 // pred_check
          %p546 = pneg %p73
        $region90: #{downsample2_forward.1} parent=87 // pred_check_branch
          %548 = sbr.rel (%p546) target = $region92
        $region91: #{downsample2_forward.1} parent=87 // pred_region
          %549 = dma.done [#allocation3], 9216
        $region92: #{downsample2_forward.1} parent=87 // pred_fallthru
          _
        // Predicated region
        $region93: #{downsample2_forward.1} parent=87 // pred_check
          %p550 = pneg %p94
        $region94: #{downsample2_forward.1} parent=87 // pred_check_branch
          %552 = sbr.rel (%p550) target = $region96
        $region95: #{downsample2_forward.1} parent=87 // pred_region
          %553 = dma.done [#allocation5], 4608
        $region96: #{downsample2_forward.1} parent=87 // pred_fallthru
          _
        // Predicated region
        $region97: #{downsample2_forward.1} parent=87 // pred_check
          %p554 = pneg %p136
        $region98: #{downsample2_forward.1} parent=87 // pred_check_branch
          %556 = sbr.rel (%p554) target = $region100
        $region99: #{downsample2_forward.1} parent=87 // pred_region
          %557 = dma.done [#allocation5], 1024
        $region100: #{downsample2_forward.1} parent=87 // pred_fallthru
          _
        // Predicated region
        $region101: #{downsample2_forward.1} parent=87 // pred_check
          %p558 = pneg %p220
        $region102: #{downsample2_forward.1} parent=87 // pred_check_branch
          %560 = sbr.rel (%p558) target = $region104
        $region103: #{downsample2_forward.1} parent=87 // pred_region
          %561 = dma.done [#allocation8], 4608
        $region104: #{downsample2_forward.1} parent=87 // pred_fallthru
          _
        // Predicated region
        $region105: #{downsample2_forward.1} parent=87 // pred_check
          %p562 = pneg %p325
        $region106: #{downsample2_forward.1} parent=87 // pred_check_branch
          %564 = sbr.rel (%p562) target = $region108
        $region107: #{downsample2_forward.1} parent=87 // pred_region
          %565 = dma.done [#allocation8], 512
        $region108: #{downsample2_forward.1} parent=87 // pred_fallthru
          _
        %p566 = scmp.lt.s32.totalorder %s31, 1
        %s567 = scalar_select %p566, %s31, 1
        %s568 = smul.addr %s567, 32
        %s569 = smul.addr %s568, 4
        %s570 = scalar_lea.vmem %s0, %s569
        %p571 = pneg %p52
        %p572 = pneg %p49
        %p573 = pneg %p73
        %p574 = pneg %p70
        %p575 = pneg %p94
        %p576 = pneg %p91
        %p577 = pneg %p115
        %p578 = pneg %p112
        %p579 = pneg %p136
        %p580 = pneg %p133
        %p581 = pneg %p157
        %p582 = pneg %p154
        %p583 = pneg %p178
        %p584 = pneg %p175
        %p585 = pneg %p199
        %p586 = pneg %p196
        %p587 = pneg %p220
        %p588 = pneg %p217
        %p589 = pneg %p241
        %p590 = pneg %p238
        %p591 = pneg %p262
        %p592 = pneg %p259
        %p593 = pneg %p283
        %p594 = pneg %p280
        %p595 = pneg %p304
        %p596 = pneg %p301
        %p597 = pneg %p325
        %p598 = pneg %p322
        %p599 = pneg %p346
        %p600 = pneg %p343
        %p601 = pneg %p367
        %p602 = pneg %p364
        %p603 = pneg %p388
        %p604 = pneg %p385
        %p605 = pneg %p414
        %p606 = pneg %p411
        %p607 = scmp.lt.s32.totalorder %s31, 1
        %s608 = scalar_select %p607, %s31, 1
        %s609 = smul.addr %s608, 8
        %s610 = smul.addr %s609, 4
        %s611 = scalar_lea.vmem %s17, %s610
        %p612 = scmp.lt.s32.totalorder %s31, 1
        %s613 = scalar_select %p612, %s31, 1
        %s614 = smul.addr %s613, 32
        %s615 = smul.addr %s614, 4
        %s616 = scalar_lea.vmem %s0, %s615
        %p617 = scmp.lt.s32.totalorder %s31, 1
        %s618 = scalar_select %p617, %s31, 1
        %s619 = smul.addr %s618, 8
        %s620 = smul.addr %s619, 4
        %s621 = scalar_lea.vmem %s17, %s620
        %v623 = vld [vmem:[%s616] sm:$0xf]
        %v624 = vld [vmem:[%s616 + $0x4] sm:$0xf]
        %v625 = vld [vmem:[%s616 + $0x8] sm:$0xf]
        %v626 = vld [vmem:[%s616 + $0xc] sm:$0xf]
        %v627 = vld [vmem:[%s616 + $0x10] sm:$0xf]
        %v628 = vld [vmem:[%s616 + $0x14] sm:$0xf]
        %v629 = vld [vmem:[%s616 + $0x18] sm:$0xf]
        %v630 = vld [vmem:[%s616 + $0x1c] sm:$0xf]
        %v631 = vld [vmem:[%s616 + $0x20] sm:$0xf]
        %v632 = vld [vmem:[%s616 + $0x24] sm:$0xf]
        %v633 = vld [vmem:[%s616 + $0x28] sm:$0xf]
        %v634 = vld [vmem:[%s616 + $0x2c] sm:$0xf]
        %v635 = vld [vmem:[%s616 + $0x30] sm:$0xf]
        %v636 = vld [vmem:[%s616 + $0x34] sm:$0xf]
        %v637 = vld [vmem:[%s616 + $0x38] sm:$0xf]
        %v638 = vld [vmem:[%s616 + $0x3c] sm:$0xf]
        %v639 = vld [vmem:[%s616 + $0x40] sm:$0xf]
        %v640 = vld [vmem:[%s616 + $0x44] sm:$0xf]
        %v641 = vld [vmem:[%s616 + $0x48] sm:$0xf]
        %v642 = vld [vmem:[%s616 + $0x4c] sm:$0xf]
        %v643 = vld [vmem:[%s616 + $0x50] sm:$0xf]
        %v644 = vld [vmem:[%s616 + $0x54] sm:$0xf]
        %v645 = vld [vmem:[%s616 + $0x58] sm:$0xf]
        %v646 = vld [vmem:[%s616 + $0x5c] sm:$0xf]
        %v647 = vld [vmem:[%s616 + $0x60] sm:$0xf]
        %v648 = vld [vmem:[%s616 + $0x64] sm:$0xf]
        %v649 = vld [vmem:[%s616 + $0x68] sm:$0xf]
        %v650 = vld [vmem:[%s616 + $0x6c] sm:$0xf]
        %v651 = vld [vmem:[%s616 + $0x70] sm:$0xf]
        %v652 = vld [vmem:[%s616 + $0x74] sm:$0xf]
        %v653 = vld [vmem:[%s616 + $0x78] sm:$0xf]
        %v654 = vld [vmem:[%s616 + $0x7c] sm:$0xf]
        %v655 = vld [vmem:[#allocation2] sm:$0xff]
        %v656 = vld [vmem:[#allocation2 + $0x8] sm:$0xff]
        %v657 = vld [vmem:[#allocation2 + $0x10] sm:$0xff]
        %v658 = vld [vmem:[#allocation2 + $0x18] sm:$0xff]
        %v659 = vld [vmem:[#allocation2 + $0x20] sm:$0xff]
        %v660 = vld [vmem:[#allocation2 + $0x28] sm:$0xff]
        %v661 = vld [vmem:[#allocation2 + $0x30] sm:$0xff]
        %v662 = vld [vmem:[#allocation2 + $0x38] sm:$0xff]
        %v671 = vunpack.c.l.b16 %v655
        %v672 = vunpack.c.h.b16 %v655
        %v673 = vunpack.c.l.b16 %v656
        %v674 = vunpack.c.h.b16 %v656
        %v675 = vunpack.c.l.b16 %v657
        %v676 = vunpack.c.h.b16 %v657
        %v677 = vunpack.c.l.b16 %v658
        %v678 = vunpack.c.h.b16 %v658
        %v679 = vunpack.c.l.b16 %v659
        %v680 = vunpack.c.h.b16 %v659
        %v681 = vunpack.c.l.b16 %v660
        %v682 = vunpack.c.h.b16 %v660
        %v683 = vunpack.c.l.b16 %v661
        %v684 = vunpack.c.h.b16 %v661
        %v685 = vunpack.c.l.b16 %v662
        %v686 = vunpack.c.h.b16 %v662
        %v687 = vpack.c.b16 %v673, %v671
        %v688 = vpack.c.b16 %v674, %v672
        %v689 = vpack.c.b16 %v677, %v675
        %v690 = vpack.c.b16 %v678, %v676
        %v691 = vpack.c.b16 %v681, %v679
        %v692 = vpack.c.b16 %v682, %v680
        %v693 = vpack.c.b16 %v685, %v683
        %v694 = vpack.c.b16 %v686, %v684
        %v735 = vunpack.c.l.b16 %v623
        %v736 = vunpack.c.l.b16 %v624
        %v737 = vunpack.c.l.b16 %v625
        %v738 = vunpack.c.l.b16 %v626
        %v739 = vunpack.c.l.b16 %v627
        %v740 = vunpack.c.l.b16 %v628
        %v741 = vunpack.c.l.b16 %v629
        %v742 = vunpack.c.l.b16 %v630
        %v743 = vunpack.c.l.b16 %v631
        %v744 = vunpack.c.l.b16 %v632
        %v745 = vunpack.c.l.b16 %v633
        %v746 = vunpack.c.l.b16 %v634
        %v747 = vunpack.c.l.b16 %v635
        %v748 = vunpack.c.l.b16 %v636
        %v749 = vunpack.c.l.b16 %v637
        %v750 = vunpack.c.l.b16 %v638
        %v751 = vunpack.c.l.b16 %v639
        %v752 = vunpack.c.l.b16 %v640
        %v753 = vunpack.c.l.b16 %v641
        %v754 = vunpack.c.l.b16 %v642
        %v755 = vunpack.c.l.b16 %v643
        %v756 = vunpack.c.l.b16 %v644
        %v757 = vunpack.c.l.b16 %v645
        %v758 = vunpack.c.l.b16 %v646
        %v759 = vunpack.c.l.b16 %v647
        %v760 = vunpack.c.l.b16 %v648
        %v761 = vunpack.c.l.b16 %v649
        %v762 = vunpack.c.l.b16 %v650
        %v763 = vunpack.c.l.b16 %v651
        %v764 = vunpack.c.l.b16 %v652
        %v765 = vunpack.c.l.b16 %v653
        %v766 = vunpack.c.l.b16 %v654
        %v767 = vpack.c.b16 %v736, %v735
        %v768 = vpack.c.b16 %v738, %v737
        %v769 = vpack.c.b16 %v740, %v739
        %v770 = vpack.c.b16 %v742, %v741
        %v771 = vpack.c.b16 %v744, %v743
        %v772 = vpack.c.b16 %v746, %v745
        %v773 = vpack.c.b16 %v748, %v747
        %v774 = vpack.c.b16 %v750, %v749
        %v775 = vpack.c.b16 %v752, %v751
        %v776 = vpack.c.b16 %v754, %v753
        %v777 = vpack.c.b16 %v756, %v755
        %v778 = vpack.c.b16 %v758, %v757
        %v779 = vpack.c.b16 %v760, %v759
        %v780 = vpack.c.b16 %v762, %v761
        %v781 = vpack.c.b16 %v764, %v763
        %v782 = vpack.c.b16 %v766, %v765
        %799 = vmatprep.subr.bf16.mxu0 0
        %800 = vmatpush1.bf16.msra.mxu0 %v774
        %801 = vmatprep.subr.bf16.mxu0 0
        %802 = vmatpush1.bf16.msra.mxu0 %v773
        %803 = vmatprep.subr.bf16.mxu0 0
        %804 = vmatpush1.bf16.msra.mxu0 %v772
        %805 = vmatprep.subr.bf16.mxu0 0
        %806 = vmatpush1.bf16.msra.mxu0 %v771
        %807 = vmatprep.subr.bf16.mxu0 0
        %808 = vmatpush1.bf16.msra.mxu0 %v770
        %809 = vmatprep.subr.bf16.mxu0 0
        %810 = vmatpush1.bf16.msra.mxu0 %v769
        %811 = vmatprep.subr.bf16.mxu0 0
        %812 = vmatpush1.bf16.msra.mxu0 %v768
        %813 = vmatprep.subr.bf16.mxu0 0
        %814 = vmatpush1.bf16.msra.mxu0 %v767
        %815 = vmatprep.subr.bf16.mxu0 0
        %816 = vmatpush2.bf16.msra.mxu0 %v782
        %817 = vmatprep.subr.bf16.mxu0 0
        %818 = vmatpush2.bf16.msra.mxu0 %v781
        %819 = vmatprep.subr.bf16.mxu0 0
        %820 = vmatpush2.bf16.msra.mxu0 %v780
        %821 = vmatprep.subr.bf16.mxu0 0
        %822 = vmatpush2.bf16.msra.mxu0 %v779
        %823 = vmatprep.subr.bf16.mxu0 0
        %824 = vmatpush2.bf16.msra.mxu0 %v778
        %825 = vmatprep.subr.bf16.mxu0 0
        %826 = vmatpush2.bf16.msra.mxu0 %v777
        %827 = vmatprep.subr.bf16.mxu0 0
        %828 = vmatpush2.bf16.msra.mxu0 %v776
        %829 = vmatprep.subr.bf16.mxu0 0
        %830 = vmatpush2.bf16.msra.mxu0 %v775
        %831 = vmatprep.mubr.bf16.mxu0 %v688
        %832 = vmatmul.mubr.bf16.gmra.mxu0 %v687
        %v833 = vpop.f32.mrf.mxu0
        %v834 = vadd.f32 0.0, %v833
        %v835 = vpop.f32.mrf.mxu0
        %v836 = vpop.f32.mrf.mxu0
        %v837 = vadd.f32 0.0, %v836
        %v838 = vpop.f32.mrf.mxu0
        %839 = vmatprep.mubr.bf16.mxu0 %v690
        %840 = vmatmul.mubr.bf16.gmra.mxu0 %v689
        %v841 = vpop.f32.mrf.mxu0
        %v842 = vadd.f32 0.0, %v841
        %v843 = vpop.f32.mrf.mxu0
        %v844 = vpop.f32.mrf.mxu0
        %v845 = vadd.f32 0.0, %v844
        %v846 = vpop.f32.mrf.mxu0
        %847 = vmatprep.mubr.bf16.mxu0 %v692
        %848 = vmatmul.mubr.bf16.gmra.mxu0 %v691
        %v849 = vpop.f32.mrf.mxu0
        %v850 = vadd.f32 0.0, %v849
        %v851 = vpop.f32.mrf.mxu0
        %v852 = vpop.f32.mrf.mxu0
        %v853 = vadd.f32 0.0, %v852
        %v854 = vpop.f32.mrf.mxu0
        %855 = vmatprep.mubr.bf16.mxu0 %v694
        %856 = vmatmul.mubr.bf16.gmra.mxu0 %v693
        %v857 = vpop.f32.mrf.mxu0
        %v858 = vadd.f32 0.0, %v857
        %v859 = vpop.f32.mrf.mxu0
        %v860 = vpop.f32.mrf.mxu0
        %v861 = vadd.f32 0.0, %v860
        %v862 = vpop.f32.mrf.mxu0
        %863 = vdwg.mxu0
        %v864 = vpack.c.bf16 %v837, %v834
        %v865 = vpack.c.bf16 %v845, %v842
        %v866 = vpack.c.bf16 %v853, %v850
        %v867 = vpack.c.bf16 %v861, %v858
        %v868 = vld [vmem:[#allocation4] sm:$0xf]
        %v869 = vld [vmem:[#allocation4 + $0x4] sm:$0xf]
        %v870 = vld [vmem:[#allocation4 + $0x8] sm:$0xf]
        %v871 = vld [vmem:[#allocation4 + $0xc] sm:$0xf]
        %v872 = vld [vmem:[#allocation4 + $0x10] sm:$0xf]
        %v873 = vld [vmem:[#allocation4 + $0x14] sm:$0xf]
        %v874 = vld [vmem:[#allocation4 + $0x18] sm:$0xf]
        %v875 = vld [vmem:[#allocation4 + $0x1c] sm:$0xf]
        %s876 = scalar_lea.vmem [#allocation2], 64
        %v877 = vld [vmem:[%s876] sm:$0xff]
        %v878 = vld [vmem:[%s876 + $0x8] sm:$0xff]
        %v879 = vld [vmem:[%s876 + $0x10] sm:$0xff]
        %v880 = vld [vmem:[%s876 + $0x18] sm:$0xff]
        %v881 = vld [vmem:[%s876 + $0x20] sm:$0xff]
        %v882 = vld [vmem:[%s876 + $0x28] sm:$0xff]
        %v883 = vld [vmem:[%s876 + $0x30] sm:$0xff]
        %v884 = vld [vmem:[%s876 + $0x38] sm:$0xff]
        %v893 = vunpack.c.l.b16 %v877
        %v894 = vunpack.c.h.b16 %v877
        %v895 = vunpack.c.l.b16 %v878
        %v896 = vunpack.c.h.b16 %v878
        %v897 = vunpack.c.l.b16 %v879
        %v898 = vunpack.c.h.b16 %v879
        %v899 = vunpack.c.l.b16 %v880
        %v900 = vunpack.c.h.b16 %v880
        %v901 = vunpack.c.l.b16 %v881
        %v902 = vunpack.c.h.b16 %v881
        %v903 = vunpack.c.l.b16 %v882
        %v904 = vunpack.c.h.b16 %v882
        %v905 = vunpack.c.l.b16 %v883
        %v906 = vunpack.c.h.b16 %v883
        %v907 = vunpack.c.l.b16 %v884
        %v908 = vunpack.c.h.b16 %v884
        %v909 = vpack.c.b16 %v895, %v893
        %v910 = vpack.c.b16 %v896, %v894
        %v911 = vpack.c.b16 %v899, %v897
        %v912 = vpack.c.b16 %v900, %v898
        %v913 = vpack.c.b16 %v903, %v901
        %v914 = vpack.c.b16 %v904, %v902
        %v915 = vpack.c.b16 %v907, %v905
        %v916 = vpack.c.b16 %v908, %v906
        %925 = vmatprep.subr.bf16.mxu0 0
        %926 = vmatpush1.bf16.msra.mxu0 %v774
        %927 = vmatprep.subr.bf16.mxu0 0
        %928 = vmatpush1.bf16.msra.mxu0 %v773
        %929 = vmatprep.subr.bf16.mxu0 0
        %930 = vmatpush1.bf16.msra.mxu0 %v772
        %931 = vmatprep.subr.bf16.mxu0 0
        %932 = vmatpush1.bf16.msra.mxu0 %v771
        %933 = vmatprep.subr.bf16.mxu0 0
        %934 = vmatpush1.bf16.msra.mxu0 %v770
        %935 = vmatprep.subr.bf16.mxu0 0
        %936 = vmatpush1.bf16.msra.mxu0 %v769
        %937 = vmatprep.subr.bf16.mxu0 0
        %938 = vmatpush1.bf16.msra.mxu0 %v768
        %939 = vmatprep.subr.bf16.mxu0 0
        %940 = vmatpush1.bf16.msra.mxu0 %v767
        %941 = vmatprep.subr.bf16.mxu0 0
        %942 = vmatpush2.bf16.msra.mxu0 %v782
        %943 = vmatprep.subr.bf16.mxu0 0
        %944 = vmatpush2.bf16.msra.mxu0 %v781
        %945 = vmatprep.subr.bf16.mxu0 0
        %946 = vmatpush2.bf16.msra.mxu0 %v780
        %947 = vmatprep.subr.bf16.mxu0 0
        %948 = vmatpush2.bf16.msra.mxu0 %v779
        %949 = vmatprep.subr.bf16.mxu0 0
        %950 = vmatpush2.bf16.msra.mxu0 %v778
        %951 = vmatprep.subr.bf16.mxu0 0
        %952 = vmatpush2.bf16.msra.mxu0 %v777
        %953 = vmatprep.subr.bf16.mxu0 0
        %954 = vmatpush2.bf16.msra.mxu0 %v776
        %955 = vmatprep.subr.bf16.mxu0 0
        %956 = vmatpush2.bf16.msra.mxu0 %v775
        %957 = vmatprep.mubr.bf16.mxu0 %v910
        %958 = vmatmul.mubr.bf16.gmra.mxu0 %v909
        %v959 = vpop.f32.mrf.mxu0
        %v960 = vadd.f32 0.0, %v959
        %v961 = vpop.f32.mrf.mxu0
        %v962 = vpop.f32.mrf.mxu0
        %v963 = vadd.f32 0.0, %v962
        %v964 = vpop.f32.mrf.mxu0
        %965 = vmatprep.mubr.bf16.mxu0 %v912
        %966 = vmatmul.mubr.bf16.gmra.mxu0 %v911
        %v967 = vpop.f32.mrf.mxu0
        %v968 = vadd.f32 0.0, %v967
        %v969 = vpop.f32.mrf.mxu0
        %v970 = vpop.f32.mrf.mxu0
        %v971 = vadd.f32 0.0, %v970
        %v972 = vpop.f32.mrf.mxu0
        %973 = vmatprep.mubr.bf16.mxu0 %v914
        %974 = vmatmul.mubr.bf16.gmra.mxu0 %v913
        %v975 = vpop.f32.mrf.mxu0
        %v976 = vadd.f32 0.0, %v975
        %v977 = vpop.f32.mrf.mxu0
        %v978 = vpop.f32.mrf.mxu0
        %v979 = vadd.f32 0.0, %v978
        %v980 = vpop.f32.mrf.mxu0
        %981 = vmatprep.mubr.bf16.mxu0 %v916
        %982 = vmatmul.mubr.bf16.gmra.mxu0 %v915
        %v983 = vpop.f32.mrf.mxu0
        %v984 = vadd.f32 0.0, %v983
        %v985 = vpop.f32.mrf.mxu0
        %v986 = vpop.f32.mrf.mxu0
        %v987 = vadd.f32 0.0, %v986
        %v988 = vpop.f32.mrf.mxu0
        %989 = vdwg.mxu0
        %v990 = vpack.c.bf16 %v963, %v960
        %v991 = vpack.c.bf16 %v971, %v968
        %v992 = vpack.c.bf16 %v979, %v976
        %v993 = vpack.c.bf16 %v987, %v984
        %s994 = scalar_lea.vmem [#allocation4], 32
        %v995 = vld [vmem:[%s994] sm:$0xf]
        %v996 = vld [vmem:[%s994 + $0x4] sm:$0xf]
        %v997 = vld [vmem:[%s994 + $0x8] sm:$0xf]
        %v998 = vld [vmem:[%s994 + $0xc] sm:$0xf]
        %v999 = vld [vmem:[%s994 + $0x10] sm:$0xf]
        %v1000 = vld [vmem:[%s994 + $0x14] sm:$0xf]
        %v1001 = vld [vmem:[%s994 + $0x18] sm:$0xf]
        %v1002 = vld [vmem:[%s994 + $0x1c] sm:$0xf]
        %v1011 = vunpack.c.l.b16 %v995
        %v1012 = vunpack.c.l.b16 %v996
        %v1013 = vunpack.c.l.b16 %v997
        %v1014 = vunpack.c.l.b16 %v998
        %v1015 = vunpack.c.l.b16 %v999
        %v1016 = vunpack.c.l.b16 %v1000
        %v1017 = vunpack.c.l.b16 %v1001
        %v1018 = vunpack.c.l.b16 %v1002
        %v1019 = vpack.c.b16 %v1012, %v1011
        %v1020 = vpack.c.b16 %v1014, %v1013
        %v1021 = vpack.c.b16 %v1016, %v1015
        %v1022 = vpack.c.b16 %v1018, %v1017
        %vm1027 = vcmask 523264
        %v1029 = vsel %vm1027, %v990, 0
        %v1032 = vsel %vm1027, %v991, 0
        %v1035 = vsel %vm1027, %v992, 0
        %v1038 = vsel %vm1027, %v993, 0
        %1040 = vmatprep.subr.bf16.mxu0 0
        %1041 = vmatpush1.bf16.msra.mxu0 0
        %1042 = vmatprep.subr.bf16.mxu0 0
        %1043 = vmatpush1.bf16.msra.mxu0 0
        %1044 = vmatprep.subr.bf16.mxu0 0
        %1045 = vmatpush1.bf16.msra.mxu0 0
        %1046 = vmatprep.subr.bf16.mxu0 0
        %1047 = vmatpush1.bf16.msra.mxu0 0
        %1048 = vmatprep.subr.bf16.mxu0 0
        %1049 = vmatpush1.bf16.msra.mxu0 %v1022
        %1050 = vmatprep.subr.bf16.mxu0 0
        %1051 = vmatpush1.bf16.msra.mxu0 %v1021
        %1052 = vmatprep.subr.bf16.mxu0 0
        %1053 = vmatpush1.bf16.msra.mxu0 %v1020
        %1054 = vmatprep.subr.bf16.mxu0 0
        %1055 = vmatpush1.bf16.msra.mxu0 %v1019
        %1056 = vmatprep.subr.bf16.mxu0 0
        %1057 = vmatpush2.bf16.msra.mxu0 0
        %1058 = vmatprep.subr.bf16.mxu0 0
        %1059 = vmatpush2.bf16.msra.mxu0 0
        %1060 = vmatprep.subr.bf16.mxu0 0
        %1061 = vmatpush2.bf16.msra.mxu0 0
        %1062 = vmatprep.subr.bf16.mxu0 0
        %1063 = vmatpush2.bf16.msra.mxu0 0
        %1064 = vmatprep.subr.bf16.mxu0 0
        %1065 = vmatpush2.bf16.msra.mxu0 0
        %1066 = vmatprep.subr.bf16.mxu0 0
        %1067 = vmatpush2.bf16.msra.mxu0 0
        %1068 = vmatprep.subr.bf16.mxu0 0
        %1069 = vmatpush2.bf16.msra.mxu0 0
        %1070 = vmatprep.subr.bf16.mxu0 0
        %1071 = vmatpush2.bf16.msra.mxu0 0
        %1072 = vmatprep.mubr.bf16.mxu0 0
        %1073 = vmatmul.mubr.bf16.gmra.mxu0 %v1029
        %v1074 = vpop.f32.mrf.mxu0
        %v1075 = vadd.f32 0.0, %v1074
        %v1076 = vpop.f32.mrf.mxu0
        %v1077 = vpop.f32.mrf.mxu0
        %v1078 = vadd.f32 0.0, %v1077
        %v1079 = vpop.f32.mrf.mxu0
        %1080 = vmatprep.mubr.bf16.mxu0 0
        %1081 = vmatmul.mubr.bf16.gmra.mxu0 %v1032
        %v1082 = vpop.f32.mrf.mxu0
        %v1083 = vadd.f32 0.0, %v1082
        %v1084 = vpop.f32.mrf.mxu0
        %v1085 = vpop.f32.mrf.mxu0
        %v1086 = vadd.f32 0.0, %v1085
        %v1087 = vpop.f32.mrf.mxu0
        %1088 = vmatprep.mubr.bf16.mxu0 0
        %1089 = vmatmul.mubr.bf16.gmra.mxu0 %v1035
        %v1090 = vpop.f32.mrf.mxu0
        %v1091 = vadd.f32 0.0, %v1090
        %v1092 = vpop.f32.mrf.mxu0
        %v1093 = vpop.f32.mrf.mxu0
        %v1094 = vadd.f32 0.0, %v1093
        %v1095 = vpop.f32.mrf.mxu0
        %1096 = vmatprep.mubr.bf16.mxu0 0
        %1097 = vmatmul.mubr.bf16.gmra.mxu0 %v1038
        %v1098 = vpop.f32.mrf.mxu0
        %v1099 = vadd.f32 0.0, %v1098
        %v1100 = vpop.f32.mrf.mxu0
        %v1101 = vpop.f32.mrf.mxu0
        %v1102 = vadd.f32 0.0, %v1101
        %v1103 = vpop.f32.mrf.mxu0
        %1104 = vdwg.mxu0
        %v1113 = vunpack.c.l.b16 %v868
        %v1114 = vunpack.c.l.b16 %v869
        %v1115 = vunpack.c.l.b16 %v870
        %v1116 = vunpack.c.l.b16 %v871
        %v1117 = vunpack.c.l.b16 %v872
        %v1118 = vunpack.c.l.b16 %v873
        %v1119 = vunpack.c.l.b16 %v874
        %v1120 = vunpack.c.l.b16 %v875
        %v1121 = vpack.c.b16 %v1114, %v1113
        %v1122 = vpack.c.b16 %v1116, %v1115
        %v1123 = vpack.c.b16 %v1118, %v1117
        %v1124 = vpack.c.b16 %v1120, %v1119
        %v1130 = vsel %vm1027, %v864, 0
        %v1133 = vsel %vm1027, %v865, 0
        %v1136 = vsel %vm1027, %v866, 0
        %v1139 = vsel %vm1027, %v867, 0
        %1141 = vmatprep.subr.bf16.mxu0 0
        %1142 = vmatpush1.bf16.msra.mxu0 0
        %1143 = vmatprep.subr.bf16.mxu0 0
        %1144 = vmatpush1.bf16.msra.mxu0 0
        %1145 = vmatprep.subr.bf16.mxu0 0
        %1146 = vmatpush1.bf16.msra.mxu0 0
        %1147 = vmatprep.subr.bf16.mxu0 0
        %1148 = vmatpush1.bf16.msra.mxu0 0
        %1149 = vmatprep.subr.bf16.mxu0 0
        %1150 = vmatpush1.bf16.msra.mxu0 %v1124
        %1151 = vmatprep.subr.bf16.mxu0 0
        %1152 = vmatpush1.bf16.msra.mxu0 %v1123
        %1153 = vmatprep.subr.bf16.mxu0 0
        %1154 = vmatpush1.bf16.msra.mxu0 %v1122
        %1155 = vmatprep.subr.bf16.mxu0 0
        %1156 = vmatpush1.bf16.msra.mxu0 %v1121
        %1157 = vmatprep.subr.bf16.mxu0 0
        %1158 = vmatpush2.bf16.msra.mxu0 0
        %1159 = vmatprep.subr.bf16.mxu0 0
        %1160 = vmatpush2.bf16.msra.mxu0 0
        %1161 = vmatprep.subr.bf16.mxu0 0
        %1162 = vmatpush2.bf16.msra.mxu0 0
        %1163 = vmatprep.subr.bf16.mxu0 0
        %1164 = vmatpush2.bf16.msra.mxu0 0
        %1165 = vmatprep.subr.bf16.mxu0 0
        %1166 = vmatpush2.bf16.msra.mxu0 0
        %1167 = vmatprep.subr.bf16.mxu0 0
        %1168 = vmatpush2.bf16.msra.mxu0 0
        %1169 = vmatprep.subr.bf16.mxu0 0
        %1170 = vmatpush2.bf16.msra.mxu0 0
        %1171 = vmatprep.subr.bf16.mxu0 0
        %1172 = vmatpush2.bf16.msra.mxu0 0
        %1173 = vmatprep.mubr.bf16.mxu0 0
        %1174 = vmatmul.mubr.bf16.gmra.mxu0 %v1130
        %v1175 = vpop.f32.mrf.mxu0
        %v1176 = vadd.f32 %v1075, %v1175
        %v1177 = vpop.f32.mrf.mxu0
        %v1178 = vpop.f32.mrf.mxu0
        %v1179 = vadd.f32 %v1078, %v1178
        %v1180 = vpop.f32.mrf.mxu0
        %1181 = vmatprep.mubr.bf16.mxu0 0
        %1182 = vmatmul.mubr.bf16.gmra.mxu0 %v1133
        %v1183 = vpop.f32.mrf.mxu0
        %v1184 = vadd.f32 %v1083, %v1183
        %v1185 = vpop.f32.mrf.mxu0
        %v1186 = vpop.f32.mrf.mxu0
        %v1187 = vadd.f32 %v1086, %v1186
        %v1188 = vpop.f32.mrf.mxu0
        %1189 = vmatprep.mubr.bf16.mxu0 0
        %1190 = vmatmul.mubr.bf16.gmra.mxu0 %v1136
        %v1191 = vpop.f32.mrf.mxu0
        %v1192 = vadd.f32 %v1091, %v1191
        %v1193 = vpop.f32.mrf.mxu0
        %v1194 = vpop.f32.mrf.mxu0
        %v1195 = vadd.f32 %v1094, %v1194
        %v1196 = vpop.f32.mrf.mxu0
        %1197 = vmatprep.mubr.bf16.mxu0 0
        %1198 = vmatmul.mubr.bf16.gmra.mxu0 %v1139
        %v1199 = vpop.f32.mrf.mxu0
        %v1200 = vadd.f32 %v1099, %v1199
        %v1201 = vpop.f32.mrf.mxu0
        %v1202 = vpop.f32.mrf.mxu0
        %v1203 = vadd.f32 %v1102, %v1202
        %v1204 = vpop.f32.mrf.mxu0
        %1205 = vdwg.mxu0
        %s1206 = scalar_lea.vmem [#allocation2], 128
        %v1207 = vld [vmem:[%s1206] sm:$0xff]
        %v1208 = vld [vmem:[%s1206 + $0x8] sm:$0xff]
        %v1209 = vld [vmem:[%s1206 + $0x10] sm:$0xff]
        %v1210 = vld [vmem:[%s1206 + $0x18] sm:$0xff]
        %v1211 = vld [vmem:[%s1206 + $0x20] sm:$0xff]
        %v1212 = vld [vmem:[%s1206 + $0x28] sm:$0xff]
        %v1213 = vld [vmem:[%s1206 + $0x30] sm:$0xff]
        %v1214 = vld [vmem:[%s1206 + $0x38] sm:$0xff]
        %v1223 = vunpack.c.l.b16 %v1207
        %v1224 = vunpack.c.h.b16 %v1207
        %v1225 = vunpack.c.l.b16 %v1208
        %v1226 = vunpack.c.h.b16 %v1208
        %v1227 = vunpack.c.l.b16 %v1209
        %v1228 = vunpack.c.h.b16 %v1209
        %v1229 = vunpack.c.l.b16 %v1210
        %v1230 = vunpack.c.h.b16 %v1210
        %v1231 = vunpack.c.l.b16 %v1211
        %v1232 = vunpack.c.h.b16 %v1211
        %v1233 = vunpack.c.l.b16 %v1212
        %v1234 = vunpack.c.h.b16 %v1212
        %v1235 = vunpack.c.l.b16 %v1213
        %v1236 = vunpack.c.h.b16 %v1213
        %v1237 = vunpack.c.l.b16 %v1214
        %v1238 = vunpack.c.h.b16 %v1214
        %v1239 = vpack.c.b16 %v1225, %v1223
        %v1240 = vpack.c.b16 %v1226, %v1224
        %v1241 = vpack.c.b16 %v1229, %v1227
        %v1242 = vpack.c.b16 %v1230, %v1228
        %v1243 = vpack.c.b16 %v1233, %v1231
        %v1244 = vpack.c.b16 %v1234, %v1232
        %v1245 = vpack.c.b16 %v1237, %v1235
        %v1246 = vpack.c.b16 %v1238, %v1236
        %1255 = vmatprep.subr.bf16.mxu0 0
        %1256 = vmatpush1.bf16.msra.mxu0 %v774
        %1257 = vmatprep.subr.bf16.mxu0 0
        %1258 = vmatpush1.bf16.msra.mxu0 %v773
        %1259 = vmatprep.subr.bf16.mxu0 0
        %1260 = vmatpush1.bf16.msra.mxu0 %v772
        %1261 = vmatprep.subr.bf16.mxu0 0
        %1262 = vmatpush1.bf16.msra.mxu0 %v771
        %1263 = vmatprep.subr.bf16.mxu0 0
        %1264 = vmatpush1.bf16.msra.mxu0 %v770
        %1265 = vmatprep.subr.bf16.mxu0 0
        %1266 = vmatpush1.bf16.msra.mxu0 %v769
        %1267 = vmatprep.subr.bf16.mxu0 0
        %1268 = vmatpush1.bf16.msra.mxu0 %v768
        %1269 = vmatprep.subr.bf16.mxu0 0
        %1270 = vmatpush1.bf16.msra.mxu0 %v767
        %1271 = vmatprep.subr.bf16.mxu0 0
        %1272 = vmatpush2.bf16.msra.mxu0 %v782
        %1273 = vmatprep.subr.bf16.mxu0 0
        %1274 = vmatpush2.bf16.msra.mxu0 %v781
        %1275 = vmatprep.subr.bf16.mxu0 0
        %1276 = vmatpush2.bf16.msra.mxu0 %v780
        %1277 = vmatprep.subr.bf16.mxu0 0
        %1278 = vmatpush2.bf16.msra.mxu0 %v779
        %1279 = vmatprep.subr.bf16.mxu0 0
        %1280 = vmatpush2.bf16.msra.mxu0 %v778
        %1281 = vmatprep.subr.bf16.mxu0 0
        %1282 = vmatpush2.bf16.msra.mxu0 %v777
        %1283 = vmatprep.subr.bf16.mxu0 0
        %1284 = vmatpush2.bf16.msra.mxu0 %v776
        %1285 = vmatprep.subr.bf16.mxu0 0
        %1286 = vmatpush2.bf16.msra.mxu0 %v775
        %1287 = vmatprep.mubr.bf16.mxu0 %v1240
        %1288 = vmatmul.mubr.bf16.gmra.mxu0 %v1239
        %v1289 = vpop.f32.mrf.mxu0
        %v1290 = vadd.f32 0.0, %v1289
        %v1291 = vpop.f32.mrf.mxu0
        %v1292 = vpop.f32.mrf.mxu0
        %v1293 = vadd.f32 0.0, %v1292
        %v1294 = vpop.f32.mrf.mxu0
        %1295 = vmatprep.mubr.bf16.mxu0 %v1242
        %1296 = vmatmul.mubr.bf16.gmra.mxu0 %v1241
        %v1297 = vpop.f32.mrf.mxu0
        %v1298 = vadd.f32 0.0, %v1297
        %v1299 = vpop.f32.mrf.mxu0
        %v1300 = vpop.f32.mrf.mxu0
        %v1301 = vadd.f32 0.0, %v1300
        %v1302 = vpop.f32.mrf.mxu0
        %1303 = vmatprep.mubr.bf16.mxu0 %v1244
        %1304 = vmatmul.mubr.bf16.gmra.mxu0 %v1243
        %v1305 = vpop.f32.mrf.mxu0
        %v1306 = vadd.f32 0.0, %v1305
        %v1307 = vpop.f32.mrf.mxu0
        %v1308 = vpop.f32.mrf.mxu0
        %v1309 = vadd.f32 0.0, %v1308
        %v1310 = vpop.f32.mrf.mxu0
        %1311 = vmatprep.mubr.bf16.mxu0 %v1246
        %1312 = vmatmul.mubr.bf16.gmra.mxu0 %v1245
        %v1313 = vpop.f32.mrf.mxu0
        %v1314 = vadd.f32 0.0, %v1313
        %v1315 = vpop.f32.mrf.mxu0
        %v1316 = vpop.f32.mrf.mxu0
        %v1317 = vadd.f32 0.0, %v1316
        %v1318 = vpop.f32.mrf.mxu0
        %1319 = vdwg.mxu0
        %v1320 = vpack.c.bf16 %v1293, %v1290
        %v1321 = vpack.c.bf16 %v1301, %v1298
        %v1322 = vpack.c.bf16 %v1309, %v1306
        %v1323 = vpack.c.bf16 %v1317, %v1314
        %s1324 = scalar_lea.vmem [#allocation4], 64
        %v1325 = vld [vmem:[%s1324] sm:$0xf]
        %v1326 = vld [vmem:[%s1324 + $0x4] sm:$0xf]
        %v1327 = vld [vmem:[%s1324 + $0x8] sm:$0xf]
        %v1328 = vld [vmem:[%s1324 + $0xc] sm:$0xf]
        %v1329 = vld [vmem:[%s1324 + $0x10] sm:$0xf]
        %v1330 = vld [vmem:[%s1324 + $0x14] sm:$0xf]
        %v1331 = vld [vmem:[%s1324 + $0x18] sm:$0xf]
        %v1332 = vld [vmem:[%s1324 + $0x1c] sm:$0xf]
        %v1341 = vunpack.c.l.b16 %v1325
        %v1342 = vunpack.c.l.b16 %v1326
        %v1343 = vunpack.c.l.b16 %v1327
        %v1344 = vunpack.c.l.b16 %v1328
        %v1345 = vunpack.c.l.b16 %v1329
        %v1346 = vunpack.c.l.b16 %v1330
        %v1347 = vunpack.c.l.b16 %v1331
        %v1348 = vunpack.c.l.b16 %v1332
        %v1349 = vpack.c.b16 %v1342, %v1341
        %v1350 = vpack.c.b16 %v1344, %v1343
        %v1351 = vpack.c.b16 %v1346, %v1345
        %v1352 = vpack.c.b16 %v1348, %v1347
        %v1358 = vsel %vm1027, %v1320, 0
        %v1361 = vsel %vm1027, %v1321, 0
        %v1364 = vsel %vm1027, %v1322, 0
        %v1367 = vsel %vm1027, %v1323, 0
        %1369 = vmatprep.subr.bf16.mxu0 0
        %1370 = vmatpush1.bf16.msra.mxu0 0
        %1371 = vmatprep.subr.bf16.mxu0 0
        %1372 = vmatpush1.bf16.msra.mxu0 0
        %1373 = vmatprep.subr.bf16.mxu0 0
        %1374 = vmatpush1.bf16.msra.mxu0 0
        %1375 = vmatprep.subr.bf16.mxu0 0
        %1376 = vmatpush1.bf16.msra.mxu0 0
        %1377 = vmatprep.subr.bf16.mxu0 0
        %1378 = vmatpush1.bf16.msra.mxu0 %v1352
        %1379 = vmatprep.subr.bf16.mxu0 0
        %1380 = vmatpush1.bf16.msra.mxu0 %v1351
        %1381 = vmatprep.subr.bf16.mxu0 0
        %1382 = vmatpush1.bf16.msra.mxu0 %v1350
        %1383 = vmatprep.subr.bf16.mxu0 0
        %1384 = vmatpush1.bf16.msra.mxu0 %v1349
        %1385 = vmatprep.subr.bf16.mxu0 0
        %1386 = vmatpush2.bf16.msra.mxu0 0
        %1387 = vmatprep.subr.bf16.mxu0 0
        %1388 = vmatpush2.bf16.msra.mxu0 0
        %1389 = vmatprep.subr.bf16.mxu0 0
        %1390 = vmatpush2.bf16.msra.mxu0 0
        %1391 = vmatprep.subr.bf16.mxu0 0
        %1392 = vmatpush2.bf16.msra.mxu0 0
        %1393 = vmatprep.subr.bf16.mxu0 0
        %1394 = vmatpush2.bf16.msra.mxu0 0
        %1395 = vmatprep.subr.bf16.mxu0 0
        %1396 = vmatpush2.bf16.msra.mxu0 0
        %1397 = vmatprep.subr.bf16.mxu0 0
        %1398 = vmatpush2.bf16.msra.mxu0 0
        %1399 = vmatprep.subr.bf16.mxu0 0
        %1400 = vmatpush2.bf16.msra.mxu0 0
        %1401 = vmatprep.mubr.bf16.mxu0 0
        %1402 = vmatmul.mubr.bf16.gmra.mxu0 %v1358
        %v1403 = vpop.f32.mrf.mxu0
        %v1404 = vadd.f32 0.0, %v1403
        %v1405 = vpop.f32.mrf.mxu0
        %v1406 = vpop.f32.mrf.mxu0
        %v1407 = vadd.f32 0.0, %v1406
        %v1408 = vpop.f32.mrf.mxu0
        %1409 = vmatprep.mubr.bf16.mxu0 0
        %1410 = vmatmul.mubr.bf16.gmra.mxu0 %v1361
        %v1411 = vpop.f32.mrf.mxu0
        %v1412 = vadd.f32 0.0, %v1411
        %v1413 = vpop.f32.mrf.mxu0
        %v1414 = vpop.f32.mrf.mxu0
        %v1415 = vadd.f32 0.0, %v1414
        %v1416 = vpop.f32.mrf.mxu0
        %1417 = vmatprep.mubr.bf16.mxu0 0
        %1418 = vmatmul.mubr.bf16.gmra.mxu0 %v1364
        %v1419 = vpop.f32.mrf.mxu0
        %v1420 = vadd.f32 0.0, %v1419
        %v1421 = vpop.f32.mrf.mxu0
        %v1422 = vpop.f32.mrf.mxu0
        %v1423 = vadd.f32 0.0, %v1422
        %v1424 = vpop.f32.mrf.mxu0
        %1425 = vmatprep.mubr.bf16.mxu0 0
        %1426 = vmatmul.mubr.bf16.gmra.mxu0 %v1367
        %v1427 = vpop.f32.mrf.mxu0
        %v1428 = vadd.f32 0.0, %v1427
        %v1429 = vpop.f32.mrf.mxu0
        %v1430 = vpop.f32.mrf.mxu0
        %v1431 = vadd.f32 0.0, %v1430
        %v1432 = vpop.f32.mrf.mxu0
        %1433 = vdwg.mxu0
        %v1434 = vadd.f32 %v1176, %v1404
        %v1435 = vadd.f32 %v1179, %v1407
        %v1436 = vadd.f32 %v1184, %v1412
        %v1437 = vadd.f32 %v1187, %v1415
        %v1438 = vadd.f32 %v1192, %v1420
        %v1439 = vadd.f32 %v1195, %v1423
        %v1440 = vadd.f32 %v1200, %v1428
        %v1441 = vadd.f32 %v1203, %v1431
        %s1442 = scalar_lea.vmem [#allocation2], 192
        %v1443 = vld [vmem:[%s1442] sm:$0xff]
        %v1444 = vld [vmem:[%s1442 + $0x8] sm:$0xff]
        %v1445 = vld [vmem:[%s1442 + $0x10] sm:$0xff]
        %v1446 = vld [vmem:[%s1442 + $0x18] sm:$0xff]
        %v1447 = vld [vmem:[%s1442 + $0x20] sm:$0xff]
        %v1448 = vld [vmem:[%s1442 + $0x28] sm:$0xff]
        %v1449 = vld [vmem:[%s1442 + $0x30] sm:$0xff]
        %v1450 = vld [vmem:[%s1442 + $0x38] sm:$0xff]
        %v1459 = vunpack.c.l.b16 %v1443
        %v1460 = vunpack.c.h.b16 %v1443
        %v1461 = vunpack.c.l.b16 %v1444
        %v1462 = vunpack.c.h.b16 %v1444
        %v1463 = vunpack.c.l.b16 %v1445
        %v1464 = vunpack.c.h.b16 %v1445
        %v1465 = vunpack.c.l.b16 %v1446
        %v1466 = vunpack.c.h.b16 %v1446
        %v1467 = vunpack.c.l.b16 %v1447
        %v1468 = vunpack.c.h.b16 %v1447
        %v1469 = vunpack.c.l.b16 %v1448
        %v1470 = vunpack.c.h.b16 %v1448
        %v1471 = vunpack.c.l.b16 %v1449
        %v1472 = vunpack.c.h.b16 %v1449
        %v1473 = vunpack.c.l.b16 %v1450
        %v1474 = vunpack.c.h.b16 %v1450
        %v1475 = vpack.c.b16 %v1461, %v1459
        %v1476 = vpack.c.b16 %v1462, %v1460
        %v1477 = vpack.c.b16 %v1465, %v1463
        %v1478 = vpack.c.b16 %v1466, %v1464
        %v1479 = vpack.c.b16 %v1469, %v1467
        %v1480 = vpack.c.b16 %v1470, %v1468
        %v1481 = vpack.c.b16 %v1473, %v1471
        %v1482 = vpack.c.b16 %v1474, %v1472
        %1491 = vmatprep.subr.bf16.mxu0 0
        %1492 = vmatpush1.bf16.msra.mxu0 %v774
        %1493 = vmatprep.subr.bf16.mxu0 0
        %1494 = vmatpush1.bf16.msra.mxu0 %v773
        %1495 = vmatprep.subr.bf16.mxu0 0
        %1496 = vmatpush1.bf16.msra.mxu0 %v772
        %1497 = vmatprep.subr.bf16.mxu0 0
        %1498 = vmatpush1.bf16.msra.mxu0 %v771
        %1499 = vmatprep.subr.bf16.mxu0 0
        %1500 = vmatpush1.bf16.msra.mxu0 %v770
        %1501 = vmatprep.subr.bf16.mxu0 0
        %1502 = vmatpush1.bf16.msra.mxu0 %v769
        %1503 = vmatprep.subr.bf16.mxu0 0
        %1504 = vmatpush1.bf16.msra.mxu0 %v768
        %1505 = vmatprep.subr.bf16.mxu0 0
        %1506 = vmatpush1.bf16.msra.mxu0 %v767
        %1507 = vmatprep.subr.bf16.mxu0 0
        %1508 = vmatpush2.bf16.msra.mxu0 %v782
        %1509 = vmatprep.subr.bf16.mxu0 0
        %1510 = vmatpush2.bf16.msra.mxu0 %v781
        %1511 = vmatprep.subr.bf16.mxu0 0
        %1512 = vmatpush2.bf16.msra.mxu0 %v780
        %1513 = vmatprep.subr.bf16.mxu0 0
        %1514 = vmatpush2.bf16.msra.mxu0 %v779
        %1515 = vmatprep.subr.bf16.mxu0 0
        %1516 = vmatpush2.bf16.msra.mxu0 %v778
        %1517 = vmatprep.subr.bf16.mxu0 0
        %1518 = vmatpush2.bf16.msra.mxu0 %v777
        %1519 = vmatprep.subr.bf16.mxu0 0
        %1520 = vmatpush2.bf16.msra.mxu0 %v776
        %1521 = vmatprep.subr.bf16.mxu0 0
        %1522 = vmatpush2.bf16.msra.mxu0 %v775
        %1523 = vmatprep.mubr.bf16.mxu0 %v1476
        %1524 = vmatmul.mubr.bf16.gmra.mxu0 %v1475
        %v1525 = vpop.f32.mrf.mxu0
        %v1526 = vadd.f32 0.0, %v1525
        %v1527 = vpop.f32.mrf.mxu0
        %v1528 = vpop.f32.mrf.mxu0
        %v1529 = vadd.f32 0.0, %v1528
        %v1530 = vpop.f32.mrf.mxu0
        %1531 = vmatprep.mubr.bf16.mxu0 %v1478
        %1532 = vmatmul.mubr.bf16.gmra.mxu0 %v1477
        %v1533 = vpop.f32.mrf.mxu0
        %v1534 = vadd.f32 0.0, %v1533
        %v1535 = vpop.f32.mrf.mxu0
        %v1536 = vpop.f32.mrf.mxu0
        %v1537 = vadd.f32 0.0, %v1536
        %v1538 = vpop.f32.mrf.mxu0
        %1539 = vmatprep.mubr.bf16.mxu0 %v1480
        %1540 = vmatmul.mubr.bf16.gmra.mxu0 %v1479
        %v1541 = vpop.f32.mrf.mxu0
        %v1542 = vadd.f32 0.0, %v1541
        %v1543 = vpop.f32.mrf.mxu0
        %v1544 = vpop.f32.mrf.mxu0
        %v1545 = vadd.f32 0.0, %v1544
        %v1546 = vpop.f32.mrf.mxu0
        %1547 = vmatprep.mubr.bf16.mxu0 %v1482
        %1548 = vmatmul.mubr.bf16.gmra.mxu0 %v1481
        %v1549 = vpop.f32.mrf.mxu0
        %v1550 = vadd.f32 0.0, %v1549
        %v1551 = vpop.f32.mrf.mxu0
        %v1552 = vpop.f32.mrf.mxu0
        %v1553 = vadd.f32 0.0, %v1552
        %v1554 = vpop.f32.mrf.mxu0
        %1555 = vdwg.mxu0
        %v1556 = vpack.c.bf16 %v1529, %v1526
        %v1557 = vpack.c.bf16 %v1537, %v1534
        %v1558 = vpack.c.bf16 %v1545, %v1542
        %v1559 = vpack.c.bf16 %v1553, %v1550
        %s1560 = scalar_lea.vmem [#allocation4], 96
        %v1561 = vld [vmem:[%s1560] sm:$0xf]
        %v1562 = vld [vmem:[%s1560 + $0x4] sm:$0xf]
        %v1563 = vld [vmem:[%s1560 + $0x8] sm:$0xf]
        %v1564 = vld [vmem:[%s1560 + $0xc] sm:$0xf]
        %v1565 = vld [vmem:[%s1560 + $0x10] sm:$0xf]
        %v1566 = vld [vmem:[%s1560 + $0x14] sm:$0xf]
        %v1567 = vld [vmem:[%s1560 + $0x18] sm:$0xf]
        %v1568 = vld [vmem:[%s1560 + $0x1c] sm:$0xf]
        %v1577 = vunpack.c.l.b16 %v1561
        %v1578 = vunpack.c.l.b16 %v1562
        %v1579 = vunpack.c.l.b16 %v1563
        %v1580 = vunpack.c.l.b16 %v1564
        %v1581 = vunpack.c.l.b16 %v1565
        %v1582 = vunpack.c.l.b16 %v1566
        %v1583 = vunpack.c.l.b16 %v1567
        %v1584 = vunpack.c.l.b16 %v1568
        %v1585 = vpack.c.b16 %v1578, %v1577
        %v1586 = vpack.c.b16 %v1580, %v1579
        %v1587 = vpack.c.b16 %v1582, %v1581
        %v1588 = vpack.c.b16 %v1584, %v1583
        %v1594 = vsel %vm1027, %v1556, 0
        %v1597 = vsel %vm1027, %v1557, 0
        %v1600 = vsel %vm1027, %v1558, 0
        %v1603 = vsel %vm1027, %v1559, 0
        %1605 = vmatprep.subr.bf16.mxu0 0
        %1606 = vmatpush1.bf16.msra.mxu0 0
        %1607 = vmatprep.subr.bf16.mxu0 0
        %1608 = vmatpush1.bf16.msra.mxu0 0
        %1609 = vmatprep.subr.bf16.mxu0 0
        %1610 = vmatpush1.bf16.msra.mxu0 0
        %1611 = vmatprep.subr.bf16.mxu0 0
        %1612 = vmatpush1.bf16.msra.mxu0 0
        %1613 = vmatprep.subr.bf16.mxu0 0
        %1614 = vmatpush1.bf16.msra.mxu0 %v1588
        %1615 = vmatprep.subr.bf16.mxu0 0
        %1616 = vmatpush1.bf16.msra.mxu0 %v1587
        %1617 = vmatprep.subr.bf16.mxu0 0
        %1618 = vmatpush1.bf16.msra.mxu0 %v1586
        %1619 = vmatprep.subr.bf16.mxu0 0
        %1620 = vmatpush1.bf16.msra.mxu0 %v1585
        %1621 = vmatprep.subr.bf16.mxu0 0
        %1622 = vmatpush2.bf16.msra.mxu0 0
        %1623 = vmatprep.subr.bf16.mxu0 0
        %1624 = vmatpush2.bf16.msra.mxu0 0
        %1625 = vmatprep.subr.bf16.mxu0 0
        %1626 = vmatpush2.bf16.msra.mxu0 0
        %1627 = vmatprep.subr.bf16.mxu0 0
        %1628 = vmatpush2.bf16.msra.mxu0 0
        %1629 = vmatprep.subr.bf16.mxu0 0
        %1630 = vmatpush2.bf16.msra.mxu0 0
        %1631 = vmatprep.subr.bf16.mxu0 0
        %1632 = vmatpush2.bf16.msra.mxu0 0
        %1633 = vmatprep.subr.bf16.mxu0 0
        %1634 = vmatpush2.bf16.msra.mxu0 0
        %1635 = vmatprep.subr.bf16.mxu0 0
        %1636 = vmatpush2.bf16.msra.mxu0 0
        %1637 = vmatprep.mubr.bf16.mxu0 0
        %1638 = vmatmul.mubr.bf16.gmra.mxu0 %v1594
        %v1639 = vpop.f32.mrf.mxu0
        %v1640 = vadd.f32 0.0, %v1639
        %v1641 = vpop.f32.mrf.mxu0
        %v1642 = vpop.f32.mrf.mxu0
        %v1643 = vadd.f32 0.0, %v1642
        %v1644 = vpop.f32.mrf.mxu0
        %1645 = vmatprep.mubr.bf16.mxu0 0
        %1646 = vmatmul.mubr.bf16.gmra.mxu0 %v1597
        %v1647 = vpop.f32.mrf.mxu0
        %v1648 = vadd.f32 0.0, %v1647
        %v1649 = vpop.f32.mrf.mxu0
        %v1650 = vpop.f32.mrf.mxu0
        %v1651 = vadd.f32 0.0, %v1650
        %v1652 = vpop.f32.mrf.mxu0
        %1653 = vmatprep.mubr.bf16.mxu0 0
        %1654 = vmatmul.mubr.bf16.gmra.mxu0 %v1600
        %v1655 = vpop.f32.mrf.mxu0
        %v1656 = vadd.f32 0.0, %v1655
        %v1657 = vpop.f32.mrf.mxu0
        %v1658 = vpop.f32.mrf.mxu0
        %v1659 = vadd.f32 0.0, %v1658
        %v1660 = vpop.f32.mrf.mxu0
        %1661 = vmatprep.mubr.bf16.mxu0 0
        %1662 = vmatmul.mubr.bf16.gmra.mxu0 %v1603
        %v1663 = vpop.f32.mrf.mxu0
        %v1664 = vadd.f32 0.0, %v1663
        %v1665 = vpop.f32.mrf.mxu0
        %v1666 = vpop.f32.mrf.mxu0
        %v1667 = vadd.f32 0.0, %v1666
        %v1668 = vpop.f32.mrf.mxu0
        %1669 = vdwg.mxu0
        %v1670 = vadd.f32 %v1434, %v1640
        %v1671 = vadd.f32 %v1435, %v1643
        %v1672 = vadd.f32 %v1436, %v1648
        %v1673 = vadd.f32 %v1437, %v1651
        %v1674 = vadd.f32 %v1438, %v1656
        %v1675 = vadd.f32 %v1439, %v1659
        %v1676 = vadd.f32 %v1440, %v1664
        %v1677 = vadd.f32 %v1441, %v1667
        %s1678 = scalar_lea.vmem [#allocation2], 256
        %v1679 = vld [vmem:[%s1678] sm:$0xff]
        %v1680 = vld [vmem:[%s1678 + $0x8] sm:$0xff]
        %v1681 = vld [vmem:[%s1678 + $0x10] sm:$0xff]
        %v1682 = vld [vmem:[%s1678 + $0x18] sm:$0xff]
        %v1683 = vld [vmem:[%s1678 + $0x20] sm:$0xff]
        %v1684 = vld [vmem:[%s1678 + $0x28] sm:$0xff]
        %v1685 = vld [vmem:[%s1678 + $0x30] sm:$0xff]
        %v1686 = vld [vmem:[%s1678 + $0x38] sm:$0xff]
        %v1695 = vunpack.c.l.b16 %v1679
        %v1696 = vunpack.c.h.b16 %v1679
        %v1697 = vunpack.c.l.b16 %v1680
        %v1698 = vunpack.c.h.b16 %v1680
        %v1699 = vunpack.c.l.b16 %v1681
        %v1700 = vunpack.c.h.b16 %v1681
        %v1701 = vunpack.c.l.b16 %v1682
        %v1702 = vunpack.c.h.b16 %v1682
        %v1703 = vunpack.c.l.b16 %v1683
        %v1704 = vunpack.c.h.b16 %v1683
        %v1705 = vunpack.c.l.b16 %v1684
        %v1706 = vunpack.c.h.b16 %v1684
        %v1707 = vunpack.c.l.b16 %v1685
        %v1708 = vunpack.c.h.b16 %v1685
        %v1709 = vunpack.c.l.b16 %v1686
        %v1710 = vunpack.c.h.b16 %v1686
        %v1711 = vpack.c.b16 %v1697, %v1695
        %v1712 = vpack.c.b16 %v1698, %v1696
        %v1713 = vpack.c.b16 %v1701, %v1699
        %v1714 = vpack.c.b16 %v1702, %v1700
        %v1715 = vpack.c.b16 %v1705, %v1703
        %v1716 = vpack.c.b16 %v1706, %v1704
        %v1717 = vpack.c.b16 %v1709, %v1707
        %v1718 = vpack.c.b16 %v1710, %v1708
        %1727 = vmatprep.subr.bf16.mxu0 0
        %1728 = vmatpush1.bf16.msra.mxu0 %v774
        %1729 = vmatprep.subr.bf16.mxu0 0
        %1730 = vmatpush1.bf16.msra.mxu0 %v773
        %1731 = vmatprep.subr.bf16.mxu0 0
        %1732 = vmatpush1.bf16.msra.mxu0 %v772
        %1733 = vmatprep.subr.bf16.mxu0 0
        %1734 = vmatpush1.bf16.msra.mxu0 %v771
        %1735 = vmatprep.subr.bf16.mxu0 0
        %1736 = vmatpush1.bf16.msra.mxu0 %v770
        %1737 = vmatprep.subr.bf16.mxu0 0
        %1738 = vmatpush1.bf16.msra.mxu0 %v769
        %1739 = vmatprep.subr.bf16.mxu0 0
        %1740 = vmatpush1.bf16.msra.mxu0 %v768
        %1741 = vmatprep.subr.bf16.mxu0 0
        %1742 = vmatpush1.bf16.msra.mxu0 %v767
        %1743 = vmatprep.subr.bf16.mxu0 0
        %1744 = vmatpush2.bf16.msra.mxu0 %v782
        %1745 = vmatprep.subr.bf16.mxu0 0
        %1746 = vmatpush2.bf16.msra.mxu0 %v781
        %1747 = vmatprep.subr.bf16.mxu0 0
        %1748 = vmatpush2.bf16.msra.mxu0 %v780
        %1749 = vmatprep.subr.bf16.mxu0 0
        %1750 = vmatpush2.bf16.msra.mxu0 %v779
        %1751 = vmatprep.subr.bf16.mxu0 0
        %1752 = vmatpush2.bf16.msra.mxu0 %v778
        %1753 = vmatprep.subr.bf16.mxu0 0
        %1754 = vmatpush2.bf16.msra.mxu0 %v777
        %1755 = vmatprep.subr.bf16.mxu0 0
        %1756 = vmatpush2.bf16.msra.mxu0 %v776
        %1757 = vmatprep.subr.bf16.mxu0 0
        %1758 = vmatpush2.bf16.msra.mxu0 %v775
        %1759 = vmatprep.mubr.bf16.mxu0 %v1712
        %1760 = vmatmul.mubr.bf16.gmra.mxu0 %v1711
        %v1761 = vpop.f32.mrf.mxu0
        %v1762 = vadd.f32 0.0, %v1761
        %v1763 = vpop.f32.mrf.mxu0
        %v1764 = vpop.f32.mrf.mxu0
        %v1765 = vadd.f32 0.0, %v1764
        %v1766 = vpop.f32.mrf.mxu0
        %1767 = vmatprep.mubr.bf16.mxu0 %v1714
        %1768 = vmatmul.mubr.bf16.gmra.mxu0 %v1713
        %v1769 = vpop.f32.mrf.mxu0
        %v1770 = vadd.f32 0.0, %v1769
        %v1771 = vpop.f32.mrf.mxu0
        %v1772 = vpop.f32.mrf.mxu0
        %v1773 = vadd.f32 0.0, %v1772
        %v1774 = vpop.f32.mrf.mxu0
        %1775 = vmatprep.mubr.bf16.mxu0 %v1716
        %1776 = vmatmul.mubr.bf16.gmra.mxu0 %v1715
        %v1777 = vpop.f32.mrf.mxu0
        %v1778 = vadd.f32 0.0, %v1777
        %v1779 = vpop.f32.mrf.mxu0
        %v1780 = vpop.f32.mrf.mxu0
        %v1781 = vadd.f32 0.0, %v1780
        %v1782 = vpop.f32.mrf.mxu0
        %1783 = vmatprep.mubr.bf16.mxu0 %v1718
        %1784 = vmatmul.mubr.bf16.gmra.mxu0 %v1717
        %v1785 = vpop.f32.mrf.mxu0
        %v1786 = vadd.f32 0.0, %v1785
        %v1787 = vpop.f32.mrf.mxu0
        %v1788 = vpop.f32.mrf.mxu0
        %v1789 = vadd.f32 0.0, %v1788
        %v1790 = vpop.f32.mrf.mxu0
        %1791 = vdwg.mxu0
        %v1792 = vpack.c.bf16 %v1765, %v1762
        %v1793 = vpack.c.bf16 %v1773, %v1770
        %v1794 = vpack.c.bf16 %v1781, %v1778
        %v1795 = vpack.c.bf16 %v1789, %v1786
        %s1796 = scalar_lea.vmem [#allocation4], 128
        %v1797 = vld [vmem:[%s1796] sm:$0xf]
        %v1798 = vld [vmem:[%s1796 + $0x4] sm:$0xf]
        %v1799 = vld [vmem:[%s1796 + $0x8] sm:$0xf]
        %v1800 = vld [vmem:[%s1796 + $0xc] sm:$0xf]
        %v1801 = vld [vmem:[%s1796 + $0x10] sm:$0xf]
        %v1802 = vld [vmem:[%s1796 + $0x14] sm:$0xf]
        %v1803 = vld [vmem:[%s1796 + $0x18] sm:$0xf]
        %v1804 = vld [vmem:[%s1796 + $0x1c] sm:$0xf]
        %v1813 = vunpack.c.l.b16 %v1797
        %v1814 = vunpack.c.l.b16 %v1798
        %v1815 = vunpack.c.l.b16 %v1799
        %v1816 = vunpack.c.l.b16 %v1800
        %v1817 = vunpack.c.l.b16 %v1801
        %v1818 = vunpack.c.l.b16 %v1802
        %v1819 = vunpack.c.l.b16 %v1803
        %v1820 = vunpack.c.l.b16 %v1804
        %v1821 = vpack.c.b16 %v1814, %v1813
        %v1822 = vpack.c.b16 %v1816, %v1815
        %v1823 = vpack.c.b16 %v1818, %v1817
        %v1824 = vpack.c.b16 %v1820, %v1819
        %v1830 = vsel %vm1027, %v1792, 0
        %v1833 = vsel %vm1027, %v1793, 0
        %v1836 = vsel %vm1027, %v1794, 0
        %v1839 = vsel %vm1027, %v1795, 0
        %1841 = vmatprep.subr.bf16.mxu0 0
        %1842 = vmatpush1.bf16.msra.mxu0 0
        %1843 = vmatprep.subr.bf16.mxu0 0
        %1844 = vmatpush1.bf16.msra.mxu0 0
        %1845 = vmatprep.subr.bf16.mxu0 0
        %1846 = vmatpush1.bf16.msra.mxu0 0
        %1847 = vmatprep.subr.bf16.mxu0 0
        %1848 = vmatpush1.bf16.msra.mxu0 0
        %1849 = vmatprep.subr.bf16.mxu0 0
        %1850 = vmatpush1.bf16.msra.mxu0 %v1824
        %1851 = vmatprep.subr.bf16.mxu0 0
        %1852 = vmatpush1.bf16.msra.mxu0 %v1823
        %1853 = vmatprep.subr.bf16.mxu0 0
        %1854 = vmatpush1.bf16.msra.mxu0 %v1822
        %1855 = vmatprep.subr.bf16.mxu0 0
        %1856 = vmatpush1.bf16.msra.mxu0 %v1821
        %1857 = vmatprep.subr.bf16.mxu0 0
        %1858 = vmatpush2.bf16.msra.mxu0 0
        %1859 = vmatprep.subr.bf16.mxu0 0
        %1860 = vmatpush2.bf16.msra.mxu0 0
        %1861 = vmatprep.subr.bf16.mxu0 0
        %1862 = vmatpush2.bf16.msra.mxu0 0
        %1863 = vmatprep.subr.bf16.mxu0 0
        %1864 = vmatpush2.bf16.msra.mxu0 0
        %1865 = vmatprep.subr.bf16.mxu0 0
        %1866 = vmatpush2.bf16.msra.mxu0 0
        %1867 = vmatprep.subr.bf16.mxu0 0
        %1868 = vmatpush2.bf16.msra.mxu0 0
        %1869 = vmatprep.subr.bf16.mxu0 0
        %1870 = vmatpush2.bf16.msra.mxu0 0
        %1871 = vmatprep.subr.bf16.mxu0 0
        %1872 = vmatpush2.bf16.msra.mxu0 0
        %1873 = vmatprep.mubr.bf16.mxu0 0
        %1874 = vmatmul.mubr.bf16.gmra.mxu0 %v1830
        %v1875 = vpop.f32.mrf.mxu0
        %v1876 = vadd.f32 0.0, %v1875
        %v1877 = vpop.f32.mrf.mxu0
        %v1878 = vpop.f32.mrf.mxu0
        %v1879 = vadd.f32 0.0, %v1878
        %v1880 = vpop.f32.mrf.mxu0
        %1881 = vmatprep.mubr.bf16.mxu0 0
        %1882 = vmatmul.mubr.bf16.gmra.mxu0 %v1833
        %v1883 = vpop.f32.mrf.mxu0
        %v1884 = vadd.f32 0.0, %v1883
        %v1885 = vpop.f32.mrf.mxu0
        %v1886 = vpop.f32.mrf.mxu0
        %v1887 = vadd.f32 0.0, %v1886
        %v1888 = vpop.f32.mrf.mxu0
        %1889 = vmatprep.mubr.bf16.mxu0 0
        %1890 = vmatmul.mubr.bf16.gmra.mxu0 %v1836
        %v1891 = vpop.f32.mrf.mxu0
        %v1892 = vadd.f32 0.0, %v1891
        %v1893 = vpop.f32.mrf.mxu0
        %v1894 = vpop.f32.mrf.mxu0
        %v1895 = vadd.f32 0.0, %v1894
        %v1896 = vpop.f32.mrf.mxu0
        %1897 = vmatprep.mubr.bf16.mxu0 0
        %1898 = vmatmul.mubr.bf16.gmra.mxu0 %v1839
        %v1899 = vpop.f32.mrf.mxu0
        %v1900 = vadd.f32 0.0, %v1899
        %v1901 = vpop.f32.mrf.mxu0
        %v1902 = vpop.f32.mrf.mxu0
        %v1903 = vadd.f32 0.0, %v1902
        %v1904 = vpop.f32.mrf.mxu0
        %1905 = vdwg.mxu0
        %v1906 = vadd.f32 %v1670, %v1876
        %v1907 = vadd.f32 %v1671, %v1879
        %v1908 = vadd.f32 %v1672, %v1884
        %v1909 = vadd.f32 %v1673, %v1887
        %v1910 = vadd.f32 %v1674, %v1892
        %v1911 = vadd.f32 %v1675, %v1895
        %v1912 = vadd.f32 %v1676, %v1900
        %v1913 = vadd.f32 %v1677, %v1903
        %s1914 = scalar_lea.vmem [#allocation2], 320
        %v1915 = vld [vmem:[%s1914] sm:$0xff]
        %v1916 = vld [vmem:[%s1914 + $0x8] sm:$0xff]
        %v1917 = vld [vmem:[%s1914 + $0x10] sm:$0xff]
        %v1918 = vld [vmem:[%s1914 + $0x18] sm:$0xff]
        %v1919 = vld [vmem:[%s1914 + $0x20] sm:$0xff]
        %v1920 = vld [vmem:[%s1914 + $0x28] sm:$0xff]
        %v1921 = vld [vmem:[%s1914 + $0x30] sm:$0xff]
        %v1922 = vld [vmem:[%s1914 + $0x38] sm:$0xff]
        %v1931 = vunpack.c.l.b16 %v1915
        %v1932 = vunpack.c.h.b16 %v1915
        %v1933 = vunpack.c.l.b16 %v1916
        %v1934 = vunpack.c.h.b16 %v1916
        %v1935 = vunpack.c.l.b16 %v1917
        %v1936 = vunpack.c.h.b16 %v1917
        %v1937 = vunpack.c.l.b16 %v1918
        %v1938 = vunpack.c.h.b16 %v1918
        %v1939 = vunpack.c.l.b16 %v1919
        %v1940 = vunpack.c.h.b16 %v1919
        %v1941 = vunpack.c.l.b16 %v1920
        %v1942 = vunpack.c.h.b16 %v1920
        %v1943 = vunpack.c.l.b16 %v1921
        %v1944 = vunpack.c.h.b16 %v1921
        %v1945 = vunpack.c.l.b16 %v1922
        %v1946 = vunpack.c.h.b16 %v1922
        %v1947 = vpack.c.b16 %v1933, %v1931
        %v1948 = vpack.c.b16 %v1934, %v1932
        %v1949 = vpack.c.b16 %v1937, %v1935
        %v1950 = vpack.c.b16 %v1938, %v1936
        %v1951 = vpack.c.b16 %v1941, %v1939
        %v1952 = vpack.c.b16 %v1942, %v1940
        %v1953 = vpack.c.b16 %v1945, %v1943
        %v1954 = vpack.c.b16 %v1946, %v1944
        %1963 = vmatprep.subr.bf16.mxu0 0
        %1964 = vmatpush1.bf16.msra.mxu0 %v774
        %1965 = vmatprep.subr.bf16.mxu0 0
        %1966 = vmatpush1.bf16.msra.mxu0 %v773
        %1967 = vmatprep.subr.bf16.mxu0 0
        %1968 = vmatpush1.bf16.msra.mxu0 %v772
        %1969 = vmatprep.subr.bf16.mxu0 0
        %1970 = vmatpush1.bf16.msra.mxu0 %v771
        %1971 = vmatprep.subr.bf16.mxu0 0
        %1972 = vmatpush1.bf16.msra.mxu0 %v770
        %1973 = vmatprep.subr.bf16.mxu0 0
        %1974 = vmatpush1.bf16.msra.mxu0 %v769
        %1975 = vmatprep.subr.bf16.mxu0 0
        %1976 = vmatpush1.bf16.msra.mxu0 %v768
        %1977 = vmatprep.subr.bf16.mxu0 0
        %1978 = vmatpush1.bf16.msra.mxu0 %v767
        %1979 = vmatprep.subr.bf16.mxu0 0
        %1980 = vmatpush2.bf16.msra.mxu0 %v782
        %1981 = vmatprep.subr.bf16.mxu0 0
        %1982 = vmatpush2.bf16.msra.mxu0 %v781
        %1983 = vmatprep.subr.bf16.mxu0 0
        %1984 = vmatpush2.bf16.msra.mxu0 %v780
        %1985 = vmatprep.subr.bf16.mxu0 0
        %1986 = vmatpush2.bf16.msra.mxu0 %v779
        %1987 = vmatprep.subr.bf16.mxu0 0
        %1988 = vmatpush2.bf16.msra.mxu0 %v778
        %1989 = vmatprep.subr.bf16.mxu0 0
        %1990 = vmatpush2.bf16.msra.mxu0 %v777
        %1991 = vmatprep.subr.bf16.mxu0 0
        %1992 = vmatpush2.bf16.msra.mxu0 %v776
        %1993 = vmatprep.subr.bf16.mxu0 0
        %1994 = vmatpush2.bf16.msra.mxu0 %v775
        %1995 = vmatprep.mubr.bf16.mxu0 %v1948
        %1996 = vmatmul.mubr.bf16.gmra.mxu0 %v1947
        %v1997 = vpop.f32.mrf.mxu0
        %v1998 = vadd.f32 0.0, %v1997
        %v1999 = vpop.f32.mrf.mxu0
        %v2000 = vpop.f32.mrf.mxu0
        %v2001 = vadd.f32 0.0, %v2000
        %v2002 = vpop.f32.mrf.mxu0
        %2003 = vmatprep.mubr.bf16.mxu0 %v1950
        %2004 = vmatmul.mubr.bf16.gmra.mxu0 %v1949
        %v2005 = vpop.f32.mrf.mxu0
        %v2006 = vadd.f32 0.0, %v2005
        %v2007 = vpop.f32.mrf.mxu0
        %v2008 = vpop.f32.mrf.mxu0
        %v2009 = vadd.f32 0.0, %v2008
        %v2010 = vpop.f32.mrf.mxu0
        %2011 = vmatprep.mubr.bf16.mxu0 %v1952
        %2012 = vmatmul.mubr.bf16.gmra.mxu0 %v1951
        %v2013 = vpop.f32.mrf.mxu0
        %v2014 = vadd.f32 0.0, %v2013
        %v2015 = vpop.f32.mrf.mxu0
        %v2016 = vpop.f32.mrf.mxu0
        %v2017 = vadd.f32 0.0, %v2016
        %v2018 = vpop.f32.mrf.mxu0
        %2019 = vmatprep.mubr.bf16.mxu0 %v1954
        %2020 = vmatmul.mubr.bf16.gmra.mxu0 %v1953
        %v2021 = vpop.f32.mrf.mxu0
        %v2022 = vadd.f32 0.0, %v2021
        %v2023 = vpop.f32.mrf.mxu0
        %v2024 = vpop.f32.mrf.mxu0
        %v2025 = vadd.f32 0.0, %v2024
        %v2026 = vpop.f32.mrf.mxu0
        %2027 = vdwg.mxu0
        %v2028 = vpack.c.bf16 %v2001, %v1998
        %v2029 = vpack.c.bf16 %v2009, %v2006
        %v2030 = vpack.c.bf16 %v2017, %v2014
        %v2031 = vpack.c.bf16 %v2025, %v2022
        %s2032 = scalar_lea.vmem [#allocation4], 160
        %v2033 = vld [vmem:[%s2032] sm:$0xf]
        %v2034 = vld [vmem:[%s2032 + $0x4] sm:$0xf]
        %v2035 = vld [vmem:[%s2032 + $0x8] sm:$0xf]
        %v2036 = vld [vmem:[%s2032 + $0xc] sm:$0xf]
        %v2037 = vld [vmem:[%s2032 + $0x10] sm:$0xf]
        %v2038 = vld [vmem:[%s2032 + $0x14] sm:$0xf]
        %v2039 = vld [vmem:[%s2032 + $0x18] sm:$0xf]
        %v2040 = vld [vmem:[%s2032 + $0x1c] sm:$0xf]
        %v2049 = vunpack.c.l.b16 %v2033
        %v2050 = vunpack.c.l.b16 %v2034
        %v2051 = vunpack.c.l.b16 %v2035
        %v2052 = vunpack.c.l.b16 %v2036
        %v2053 = vunpack.c.l.b16 %v2037
        %v2054 = vunpack.c.l.b16 %v2038
        %v2055 = vunpack.c.l.b16 %v2039
        %v2056 = vunpack.c.l.b16 %v2040
        %v2057 = vpack.c.b16 %v2050, %v2049
        %v2058 = vpack.c.b16 %v2052, %v2051
        %v2059 = vpack.c.b16 %v2054, %v2053
        %v2060 = vpack.c.b16 %v2056, %v2055
        %v2066 = vsel %vm1027, %v2028, 0
        %v2069 = vsel %vm1027, %v2029, 0
        %v2072 = vsel %vm1027, %v2030, 0
        %v2075 = vsel %vm1027, %v2031, 0
        %2077 = vmatprep.subr.bf16.mxu0 0
        %2078 = vmatpush1.bf16.msra.mxu0 0
        %2079 = vmatprep.subr.bf16.mxu0 0
        %2080 = vmatpush1.bf16.msra.mxu0 0
        %2081 = vmatprep.subr.bf16.mxu0 0
        %2082 = vmatpush1.bf16.msra.mxu0 0
        %2083 = vmatprep.subr.bf16.mxu0 0
        %2084 = vmatpush1.bf16.msra.mxu0 0
        %2085 = vmatprep.subr.bf16.mxu0 0
        %2086 = vmatpush1.bf16.msra.mxu0 %v2060
        %2087 = vmatprep.subr.bf16.mxu0 0
        %2088 = vmatpush1.bf16.msra.mxu0 %v2059
        %2089 = vmatprep.subr.bf16.mxu0 0
        %2090 = vmatpush1.bf16.msra.mxu0 %v2058
        %2091 = vmatprep.subr.bf16.mxu0 0
        %2092 = vmatpush1.bf16.msra.mxu0 %v2057
        %2093 = vmatprep.subr.bf16.mxu0 0
        %2094 = vmatpush2.bf16.msra.mxu0 0
        %2095 = vmatprep.subr.bf16.mxu0 0
        %2096 = vmatpush2.bf16.msra.mxu0 0
        %2097 = vmatprep.subr.bf16.mxu0 0
        %2098 = vmatpush2.bf16.msra.mxu0 0
        %2099 = vmatprep.subr.bf16.mxu0 0
        %2100 = vmatpush2.bf16.msra.mxu0 0
        %2101 = vmatprep.subr.bf16.mxu0 0
        %2102 = vmatpush2.bf16.msra.mxu0 0
        %2103 = vmatprep.subr.bf16.mxu0 0
        %2104 = vmatpush2.bf16.msra.mxu0 0
        %2105 = vmatprep.subr.bf16.mxu0 0
        %2106 = vmatpush2.bf16.msra.mxu0 0
        %2107 = vmatprep.subr.bf16.mxu0 0
        %2108 = vmatpush2.bf16.msra.mxu0 0
        %2109 = vmatprep.mubr.bf16.mxu0 0
        %2110 = vmatmul.mubr.bf16.gmra.mxu0 %v2066
        %v2111 = vpop.f32.mrf.mxu0
        %v2112 = vadd.f32 0.0, %v2111
        %v2113 = vpop.f32.mrf.mxu0
        %v2114 = vpop.f32.mrf.mxu0
        %v2115 = vadd.f32 0.0, %v2114
        %v2116 = vpop.f32.mrf.mxu0
        %2117 = vmatprep.mubr.bf16.mxu0 0
        %2118 = vmatmul.mubr.bf16.gmra.mxu0 %v2069
        %v2119 = vpop.f32.mrf.mxu0
        %v2120 = vadd.f32 0.0, %v2119
        %v2121 = vpop.f32.mrf.mxu0
        %v2122 = vpop.f32.mrf.mxu0
        %v2123 = vadd.f32 0.0, %v2122
        %v2124 = vpop.f32.mrf.mxu0
        %2125 = vmatprep.mubr.bf16.mxu0 0
        %2126 = vmatmul.mubr.bf16.gmra.mxu0 %v2072
        %v2127 = vpop.f32.mrf.mxu0
        %v2128 = vadd.f32 0.0, %v2127
        %v2129 = vpop.f32.mrf.mxu0
        %v2130 = vpop.f32.mrf.mxu0
        %v2131 = vadd.f32 0.0, %v2130
        %v2132 = vpop.f32.mrf.mxu0
        %2133 = vmatprep.mubr.bf16.mxu0 0
        %2134 = vmatmul.mubr.bf16.gmra.mxu0 %v2075
        %v2135 = vpop.f32.mrf.mxu0
        %v2136 = vadd.f32 0.0, %v2135
        %v2137 = vpop.f32.mrf.mxu0
        %v2138 = vpop.f32.mrf.mxu0
        %v2139 = vadd.f32 0.0, %v2138
        %v2140 = vpop.f32.mrf.mxu0
        %2141 = vdwg.mxu0
        %v2142 = vadd.f32 %v1906, %v2112
        %v2143 = vadd.f32 %v1907, %v2115
        %v2144 = vadd.f32 %v1908, %v2120
        %v2145 = vadd.f32 %v1909, %v2123
        %v2146 = vadd.f32 %v1910, %v2128
        %v2147 = vadd.f32 %v1911, %v2131
        %v2148 = vadd.f32 %v1912, %v2136
        %v2149 = vadd.f32 %v1913, %v2139
        %s2150 = scalar_lea.vmem [#allocation2], 384
        %v2151 = vld [vmem:[%s2150] sm:$0xff]
        %v2152 = vld [vmem:[%s2150 + $0x8] sm:$0xff]
        %v2153 = vld [vmem:[%s2150 + $0x10] sm:$0xff]
        %v2154 = vld [vmem:[%s2150 + $0x18] sm:$0xff]
        %v2155 = vld [vmem:[%s2150 + $0x20] sm:$0xff]
        %v2156 = vld [vmem:[%s2150 + $0x28] sm:$0xff]
        %v2157 = vld [vmem:[%s2150 + $0x30] sm:$0xff]
        %v2158 = vld [vmem:[%s2150 + $0x38] sm:$0xff]
        %v2167 = vunpack.c.l.b16 %v2151
        %v2168 = vunpack.c.h.b16 %v2151
        %v2169 = vunpack.c.l.b16 %v2152
        %v2170 = vunpack.c.h.b16 %v2152
        %v2171 = vunpack.c.l.b16 %v2153
        %v2172 = vunpack.c.h.b16 %v2153
        %v2173 = vunpack.c.l.b16 %v2154
        %v2174 = vunpack.c.h.b16 %v2154
        %v2175 = vunpack.c.l.b16 %v2155
        %v2176 = vunpack.c.h.b16 %v2155
        %v2177 = vunpack.c.l.b16 %v2156
        %v2178 = vunpack.c.h.b16 %v2156
        %v2179 = vunpack.c.l.b16 %v2157
        %v2180 = vunpack.c.h.b16 %v2157
        %v2181 = vunpack.c.l.b16 %v2158
        %v2182 = vunpack.c.h.b16 %v2158
        %v2183 = vpack.c.b16 %v2169, %v2167
        %v2184 = vpack.c.b16 %v2170, %v2168
        %v2185 = vpack.c.b16 %v2173, %v2171
        %v2186 = vpack.c.b16 %v2174, %v2172
        %v2187 = vpack.c.b16 %v2177, %v2175
        %v2188 = vpack.c.b16 %v2178, %v2176
        %v2189 = vpack.c.b16 %v2181, %v2179
        %v2190 = vpack.c.b16 %v2182, %v2180
        %2199 = vmatprep.subr.bf16.mxu0 0
        %2200 = vmatpush1.bf16.msra.mxu0 %v774
        %2201 = vmatprep.subr.bf16.mxu0 0
        %2202 = vmatpush1.bf16.msra.mxu0 %v773
        %2203 = vmatprep.subr.bf16.mxu0 0
        %2204 = vmatpush1.bf16.msra.mxu0 %v772
        %2205 = vmatprep.subr.bf16.mxu0 0
        %2206 = vmatpush1.bf16.msra.mxu0 %v771
        %2207 = vmatprep.subr.bf16.mxu0 0
        %2208 = vmatpush1.bf16.msra.mxu0 %v770
        %2209 = vmatprep.subr.bf16.mxu0 0
        %2210 = vmatpush1.bf16.msra.mxu0 %v769
        %2211 = vmatprep.subr.bf16.mxu0 0
        %2212 = vmatpush1.bf16.msra.mxu0 %v768
        %2213 = vmatprep.subr.bf16.mxu0 0
        %2214 = vmatpush1.bf16.msra.mxu0 %v767
        %2215 = vmatprep.subr.bf16.mxu0 0
        %2216 = vmatpush2.bf16.msra.mxu0 %v782
        %2217 = vmatprep.subr.bf16.mxu0 0
        %2218 = vmatpush2.bf16.msra.mxu0 %v781
        %2219 = vmatprep.subr.bf16.mxu0 0
        %2220 = vmatpush2.bf16.msra.mxu0 %v780
        %2221 = vmatprep.subr.bf16.mxu0 0
        %2222 = vmatpush2.bf16.msra.mxu0 %v779
        %2223 = vmatprep.subr.bf16.mxu0 0
        %2224 = vmatpush2.bf16.msra.mxu0 %v778
        %2225 = vmatprep.subr.bf16.mxu0 0
        %2226 = vmatpush2.bf16.msra.mxu0 %v777
        %2227 = vmatprep.subr.bf16.mxu0 0
        %2228 = vmatpush2.bf16.msra.mxu0 %v776
        %2229 = vmatprep.subr.bf16.mxu0 0
        %2230 = vmatpush2.bf16.msra.mxu0 %v775
        %2231 = vmatprep.mubr.bf16.mxu0 %v2184
        %2232 = vmatmul.mubr.bf16.gmra.mxu0 %v2183
        %v2233 = vpop.f32.mrf.mxu0
        %v2234 = vadd.f32 0.0, %v2233
        %v2235 = vpop.f32.mrf.mxu0
        %v2236 = vpop.f32.mrf.mxu0
        %v2237 = vadd.f32 0.0, %v2236
        %v2238 = vpop.f32.mrf.mxu0
        %2239 = vmatprep.mubr.bf16.mxu0 %v2186
        %2240 = vmatmul.mubr.bf16.gmra.mxu0 %v2185
        %v2241 = vpop.f32.mrf.mxu0
        %v2242 = vadd.f32 0.0, %v2241
        %v2243 = vpop.f32.mrf.mxu0
        %v2244 = vpop.f32.mrf.mxu0
        %v2245 = vadd.f32 0.0, %v2244
        %v2246 = vpop.f32.mrf.mxu0
        %2247 = vmatprep.mubr.bf16.mxu0 %v2188
        %2248 = vmatmul.mubr.bf16.gmra.mxu0 %v2187
        %v2249 = vpop.f32.mrf.mxu0
        %v2250 = vadd.f32 0.0, %v2249
        %v2251 = vpop.f32.mrf.mxu0
        %v2252 = vpop.f32.mrf.mxu0
        %v2253 = vadd.f32 0.0, %v2252
        %v2254 = vpop.f32.mrf.mxu0
        %2255 = vmatprep.mubr.bf16.mxu0 %v2190
        %2256 = vmatmul.mubr.bf16.gmra.mxu0 %v2189
        %v2257 = vpop.f32.mrf.mxu0
        %v2258 = vadd.f32 0.0, %v2257
        %v2259 = vpop.f32.mrf.mxu0
        %v2260 = vpop.f32.mrf.mxu0
        %v2261 = vadd.f32 0.0, %v2260
        %v2262 = vpop.f32.mrf.mxu0
        %2263 = vdwg.mxu0
        %v2264 = vpack.c.bf16 %v2237, %v2234
        %v2265 = vpack.c.bf16 %v2245, %v2242
        %v2266 = vpack.c.bf16 %v2253, %v2250
        %v2267 = vpack.c.bf16 %v2261, %v2258
        %s2268 = scalar_lea.vmem [#allocation4], 192
        %v2269 = vld [vmem:[%s2268] sm:$0xf]
        %v2270 = vld [vmem:[%s2268 + $0x4] sm:$0xf]
        %v2271 = vld [vmem:[%s2268 + $0x8] sm:$0xf]
        %v2272 = vld [vmem:[%s2268 + $0xc] sm:$0xf]
        %v2273 = vld [vmem:[%s2268 + $0x10] sm:$0xf]
        %v2274 = vld [vmem:[%s2268 + $0x14] sm:$0xf]
        %v2275 = vld [vmem:[%s2268 + $0x18] sm:$0xf]
        %v2276 = vld [vmem:[%s2268 + $0x1c] sm:$0xf]
        %v2285 = vunpack.c.l.b16 %v2269
        %v2286 = vunpack.c.l.b16 %v2270
        %v2287 = vunpack.c.l.b16 %v2271
        %v2288 = vunpack.c.l.b16 %v2272
        %v2289 = vunpack.c.l.b16 %v2273
        %v2290 = vunpack.c.l.b16 %v2274
        %v2291 = vunpack.c.l.b16 %v2275
        %v2292 = vunpack.c.l.b16 %v2276
        %v2293 = vpack.c.b16 %v2286, %v2285
        %v2294 = vpack.c.b16 %v2288, %v2287
        %v2295 = vpack.c.b16 %v2290, %v2289
        %v2296 = vpack.c.b16 %v2292, %v2291
        %v2302 = vsel %vm1027, %v2264, 0
        %v2305 = vsel %vm1027, %v2265, 0
        %v2308 = vsel %vm1027, %v2266, 0
        %v2311 = vsel %vm1027, %v2267, 0
        %2313 = vmatprep.subr.bf16.mxu0 0
        %2314 = vmatpush1.bf16.msra.mxu0 0
        %2315 = vmatprep.subr.bf16.mxu0 0
        %2316 = vmatpush1.bf16.msra.mxu0 0
        %2317 = vmatprep.subr.bf16.mxu0 0
        %2318 = vmatpush1.bf16.msra.mxu0 0
        %2319 = vmatprep.subr.bf16.mxu0 0
        %2320 = vmatpush1.bf16.msra.mxu0 0
        %2321 = vmatprep.subr.bf16.mxu0 0
        %2322 = vmatpush1.bf16.msra.mxu0 %v2296
        %2323 = vmatprep.subr.bf16.mxu0 0
        %2324 = vmatpush1.bf16.msra.mxu0 %v2295
        %2325 = vmatprep.subr.bf16.mxu0 0
        %2326 = vmatpush1.bf16.msra.mxu0 %v2294
        %2327 = vmatprep.subr.bf16.mxu0 0
        %2328 = vmatpush1.bf16.msra.mxu0 %v2293
        %2329 = vmatprep.subr.bf16.mxu0 0
        %2330 = vmatpush2.bf16.msra.mxu0 0
        %2331 = vmatprep.subr.bf16.mxu0 0
        %2332 = vmatpush2.bf16.msra.mxu0 0
        %2333 = vmatprep.subr.bf16.mxu0 0
        %2334 = vmatpush2.bf16.msra.mxu0 0
        %2335 = vmatprep.subr.bf16.mxu0 0
        %2336 = vmatpush2.bf16.msra.mxu0 0
        %2337 = vmatprep.subr.bf16.mxu0 0
        %2338 = vmatpush2.bf16.msra.mxu0 0
        %2339 = vmatprep.subr.bf16.mxu0 0
        %2340 = vmatpush2.bf16.msra.mxu0 0
        %2341 = vmatprep.subr.bf16.mxu0 0
        %2342 = vmatpush2.bf16.msra.mxu0 0
        %2343 = vmatprep.subr.bf16.mxu0 0
        %2344 = vmatpush2.bf16.msra.mxu0 0
        %2345 = vmatprep.mubr.bf16.mxu0 0
        %2346 = vmatmul.mubr.bf16.gmra.mxu0 %v2302
        %v2347 = vpop.f32.mrf.mxu0
        %v2348 = vadd.f32 0.0, %v2347
        %v2349 = vpop.f32.mrf.mxu0
        %v2350 = vpop.f32.mrf.mxu0
        %v2351 = vadd.f32 0.0, %v2350
        %v2352 = vpop.f32.mrf.mxu0
        %2353 = vmatprep.mubr.bf16.mxu0 0
        %2354 = vmatmul.mubr.bf16.gmra.mxu0 %v2305
        %v2355 = vpop.f32.mrf.mxu0
        %v2356 = vadd.f32 0.0, %v2355
        %v2357 = vpop.f32.mrf.mxu0
        %v2358 = vpop.f32.mrf.mxu0
        %v2359 = vadd.f32 0.0, %v2358
        %v2360 = vpop.f32.mrf.mxu0
        %2361 = vmatprep.mubr.bf16.mxu0 0
        %2362 = vmatmul.mubr.bf16.gmra.mxu0 %v2308
        %v2363 = vpop.f32.mrf.mxu0
        %v2364 = vadd.f32 0.0, %v2363
        %v2365 = vpop.f32.mrf.mxu0
        %v2366 = vpop.f32.mrf.mxu0
        %v2367 = vadd.f32 0.0, %v2366
        %v2368 = vpop.f32.mrf.mxu0
        %2369 = vmatprep.mubr.bf16.mxu0 0
        %2370 = vmatmul.mubr.bf16.gmra.mxu0 %v2311
        %v2371 = vpop.f32.mrf.mxu0
        %v2372 = vadd.f32 0.0, %v2371
        %v2373 = vpop.f32.mrf.mxu0
        %v2374 = vpop.f32.mrf.mxu0
        %v2375 = vadd.f32 0.0, %v2374
        %v2376 = vpop.f32.mrf.mxu0
        %2377 = vdwg.mxu0
        %v2378 = vadd.f32 %v2142, %v2348
        %v2379 = vadd.f32 %v2143, %v2351
        %v2380 = vadd.f32 %v2144, %v2356
        %v2381 = vadd.f32 %v2145, %v2359
        %v2382 = vadd.f32 %v2146, %v2364
        %v2383 = vadd.f32 %v2147, %v2367
        %v2384 = vadd.f32 %v2148, %v2372
        %v2385 = vadd.f32 %v2149, %v2375
        %s2386 = scalar_lea.vmem [#allocation2], 448
        %v2387 = vld [vmem:[%s2386] sm:$0xff]
        %v2388 = vld [vmem:[%s2386 + $0x8] sm:$0xff]
        %v2389 = vld [vmem:[%s2386 + $0x10] sm:$0xff]
        %v2390 = vld [vmem:[%s2386 + $0x18] sm:$0xff]
        %v2391 = vld [vmem:[%s2386 + $0x20] sm:$0xff]
        %v2392 = vld [vmem:[%s2386 + $0x28] sm:$0xff]
        %v2393 = vld [vmem:[%s2386 + $0x30] sm:$0xff]
        %v2394 = vld [vmem:[%s2386 + $0x38] sm:$0xff]
        %v2403 = vunpack.c.l.b16 %v2387
        %v2404 = vunpack.c.h.b16 %v2387
        %v2405 = vunpack.c.l.b16 %v2388
        %v2406 = vunpack.c.h.b16 %v2388
        %v2407 = vunpack.c.l.b16 %v2389
        %v2408 = vunpack.c.h.b16 %v2389
        %v2409 = vunpack.c.l.b16 %v2390
        %v2410 = vunpack.c.h.b16 %v2390
        %v2411 = vunpack.c.l.b16 %v2391
        %v2412 = vunpack.c.h.b16 %v2391
        %v2413 = vunpack.c.l.b16 %v2392
        %v2414 = vunpack.c.h.b16 %v2392
        %v2415 = vunpack.c.l.b16 %v2393
        %v2416 = vunpack.c.h.b16 %v2393
        %v2417 = vunpack.c.l.b16 %v2394
        %v2418 = vunpack.c.h.b16 %v2394
        %v2419 = vpack.c.b16 %v2405, %v2403
        %v2420 = vpack.c.b16 %v2406, %v2404
        %v2421 = vpack.c.b16 %v2409, %v2407
        %v2422 = vpack.c.b16 %v2410, %v2408
        %v2423 = vpack.c.b16 %v2413, %v2411
        %v2424 = vpack.c.b16 %v2414, %v2412
        %v2425 = vpack.c.b16 %v2417, %v2415
        %v2426 = vpack.c.b16 %v2418, %v2416
        %2435 = vmatprep.subr.bf16.mxu0 0
        %2436 = vmatpush1.bf16.msra.mxu0 %v774
        %2437 = vmatprep.subr.bf16.mxu0 0
        %2438 = vmatpush1.bf16.msra.mxu0 %v773
        %2439 = vmatprep.subr.bf16.mxu0 0
        %2440 = vmatpush1.bf16.msra.mxu0 %v772
        %2441 = vmatprep.subr.bf16.mxu0 0
        %2442 = vmatpush1.bf16.msra.mxu0 %v771
        %2443 = vmatprep.subr.bf16.mxu0 0
        %2444 = vmatpush1.bf16.msra.mxu0 %v770
        %2445 = vmatprep.subr.bf16.mxu0 0
        %2446 = vmatpush1.bf16.msra.mxu0 %v769
        %2447 = vmatprep.subr.bf16.mxu0 0
        %2448 = vmatpush1.bf16.msra.mxu0 %v768
        %2449 = vmatprep.subr.bf16.mxu0 0
        %2450 = vmatpush1.bf16.msra.mxu0 %v767
        %2451 = vmatprep.subr.bf16.mxu0 0
        %2452 = vmatpush2.bf16.msra.mxu0 %v782
        %2453 = vmatprep.subr.bf16.mxu0 0
        %2454 = vmatpush2.bf16.msra.mxu0 %v781
        %2455 = vmatprep.subr.bf16.mxu0 0
        %2456 = vmatpush2.bf16.msra.mxu0 %v780
        %2457 = vmatprep.subr.bf16.mxu0 0
        %2458 = vmatpush2.bf16.msra.mxu0 %v779
        %2459 = vmatprep.subr.bf16.mxu0 0
        %2460 = vmatpush2.bf16.msra.mxu0 %v778
        %2461 = vmatprep.subr.bf16.mxu0 0
        %2462 = vmatpush2.bf16.msra.mxu0 %v777
        %2463 = vmatprep.subr.bf16.mxu0 0
        %2464 = vmatpush2.bf16.msra.mxu0 %v776
        %2465 = vmatprep.subr.bf16.mxu0 0
        %2466 = vmatpush2.bf16.msra.mxu0 %v775
        %2467 = vmatprep.mubr.bf16.mxu0 %v2420
        %2468 = vmatmul.mubr.bf16.gmra.mxu0 %v2419
        %v2469 = vpop.f32.mrf.mxu0
        %v2470 = vadd.f32 0.0, %v2469
        %v2471 = vpop.f32.mrf.mxu0
        %v2472 = vpop.f32.mrf.mxu0
        %v2473 = vadd.f32 0.0, %v2472
        %v2474 = vpop.f32.mrf.mxu0
        %2475 = vmatprep.mubr.bf16.mxu0 %v2422
        %2476 = vmatmul.mubr.bf16.gmra.mxu0 %v2421
        %v2477 = vpop.f32.mrf.mxu0
        %v2478 = vadd.f32 0.0, %v2477
        %v2479 = vpop.f32.mrf.mxu0
        %v2480 = vpop.f32.mrf.mxu0
        %v2481 = vadd.f32 0.0, %v2480
        %v2482 = vpop.f32.mrf.mxu0
        %2483 = vmatprep.mubr.bf16.mxu0 %v2424
        %2484 = vmatmul.mubr.bf16.gmra.mxu0 %v2423
        %v2485 = vpop.f32.mrf.mxu0
        %v2486 = vadd.f32 0.0, %v2485
        %v2487 = vpop.f32.mrf.mxu0
        %v2488 = vpop.f32.mrf.mxu0
        %v2489 = vadd.f32 0.0, %v2488
        %v2490 = vpop.f32.mrf.mxu0
        %2491 = vmatprep.mubr.bf16.mxu0 %v2426
        %2492 = vmatmul.mubr.bf16.gmra.mxu0 %v2425
        %v2493 = vpop.f32.mrf.mxu0
        %v2494 = vadd.f32 0.0, %v2493
        %v2495 = vpop.f32.mrf.mxu0
        %v2496 = vpop.f32.mrf.mxu0
        %v2497 = vadd.f32 0.0, %v2496
        %v2498 = vpop.f32.mrf.mxu0
        %2499 = vdwg.mxu0
        %v2500 = vpack.c.bf16 %v2473, %v2470
        %v2501 = vpack.c.bf16 %v2481, %v2478
        %v2502 = vpack.c.bf16 %v2489, %v2486
        %v2503 = vpack.c.bf16 %v2497, %v2494
        %s2504 = scalar_lea.vmem [#allocation4], 224
        %v2505 = vld [vmem:[%s2504] sm:$0xf]
        %v2506 = vld [vmem:[%s2504 + $0x4] sm:$0xf]
        %v2507 = vld [vmem:[%s2504 + $0x8] sm:$0xf]
        %v2508 = vld [vmem:[%s2504 + $0xc] sm:$0xf]
        %v2509 = vld [vmem:[%s2504 + $0x10] sm:$0xf]
        %v2510 = vld [vmem:[%s2504 + $0x14] sm:$0xf]
        %v2511 = vld [vmem:[%s2504 + $0x18] sm:$0xf]
        %v2512 = vld [vmem:[%s2504 + $0x1c] sm:$0xf]
        %v2521 = vunpack.c.l.b16 %v2505
        %v2522 = vunpack.c.l.b16 %v2506
        %v2523 = vunpack.c.l.b16 %v2507
        %v2524 = vunpack.c.l.b16 %v2508
        %v2525 = vunpack.c.l.b16 %v2509
        %v2526 = vunpack.c.l.b16 %v2510
        %v2527 = vunpack.c.l.b16 %v2511
        %v2528 = vunpack.c.l.b16 %v2512
        %v2529 = vpack.c.b16 %v2522, %v2521
        %v2530 = vpack.c.b16 %v2524, %v2523
        %v2531 = vpack.c.b16 %v2526, %v2525
        %v2532 = vpack.c.b16 %v2528, %v2527
        %v2538 = vsel %vm1027, %v2500, 0
        %v2541 = vsel %vm1027, %v2501, 0
        %v2544 = vsel %vm1027, %v2502, 0
        %v2547 = vsel %vm1027, %v2503, 0
        %2549 = vmatprep.subr.bf16.mxu0 0
        %2550 = vmatpush1.bf16.msra.mxu0 0
        %2551 = vmatprep.subr.bf16.mxu0 0
        %2552 = vmatpush1.bf16.msra.mxu0 0
        %2553 = vmatprep.subr.bf16.mxu0 0
        %2554 = vmatpush1.bf16.msra.mxu0 0
        %2555 = vmatprep.subr.bf16.mxu0 0
        %2556 = vmatpush1.bf16.msra.mxu0 0
        %2557 = vmatprep.subr.bf16.mxu0 0
        %2558 = vmatpush1.bf16.msra.mxu0 %v2532
        %2559 = vmatprep.subr.bf16.mxu0 0
        %2560 = vmatpush1.bf16.msra.mxu0 %v2531
        %2561 = vmatprep.subr.bf16.mxu0 0
        %2562 = vmatpush1.bf16.msra.mxu0 %v2530
        %2563 = vmatprep.subr.bf16.mxu0 0
        %2564 = vmatpush1.bf16.msra.mxu0 %v2529
        %2565 = vmatprep.subr.bf16.mxu0 0
        %2566 = vmatpush2.bf16.msra.mxu0 0
        %2567 = vmatprep.subr.bf16.mxu0 0
        %2568 = vmatpush2.bf16.msra.mxu0 0
        %2569 = vmatprep.subr.bf16.mxu0 0
        %2570 = vmatpush2.bf16.msra.mxu0 0
        %2571 = vmatprep.subr.bf16.mxu0 0
        %2572 = vmatpush2.bf16.msra.mxu0 0
        %2573 = vmatprep.subr.bf16.mxu0 0
        %2574 = vmatpush2.bf16.msra.mxu0 0
        %2575 = vmatprep.subr.bf16.mxu0 0
        %2576 = vmatpush2.bf16.msra.mxu0 0
        %2577 = vmatprep.subr.bf16.mxu0 0
        %2578 = vmatpush2.bf16.msra.mxu0 0
        %2579 = vmatprep.subr.bf16.mxu0 0
        %2580 = vmatpush2.bf16.msra.mxu0 0
        %2581 = vmatprep.mubr.bf16.mxu0 0
        %2582 = vmatmul.mubr.bf16.gmra.mxu0 %v2538
        %v2583 = vpop.f32.mrf.mxu0
        %v2584 = vadd.f32 0.0, %v2583
        %v2585 = vpop.f32.mrf.mxu0
        %v2586 = vpop.f32.mrf.mxu0
        %v2587 = vadd.f32 0.0, %v2586
        %v2588 = vpop.f32.mrf.mxu0
        %2589 = vmatprep.mubr.bf16.mxu0 0
        %2590 = vmatmul.mubr.bf16.gmra.mxu0 %v2541
        %v2591 = vpop.f32.mrf.mxu0
        %v2592 = vadd.f32 0.0, %v2591
        %v2593 = vpop.f32.mrf.mxu0
        %v2594 = vpop.f32.mrf.mxu0
        %v2595 = vadd.f32 0.0, %v2594
        %v2596 = vpop.f32.mrf.mxu0
        %2597 = vmatprep.mubr.bf16.mxu0 0
        %2598 = vmatmul.mubr.bf16.gmra.mxu0 %v2544
        %v2599 = vpop.f32.mrf.mxu0
        %v2600 = vadd.f32 0.0, %v2599
        %v2601 = vpop.f32.mrf.mxu0
        %v2602 = vpop.f32.mrf.mxu0
        %v2603 = vadd.f32 0.0, %v2602
        %v2604 = vpop.f32.mrf.mxu0
        %2605 = vmatprep.mubr.bf16.mxu0 0
        %2606 = vmatmul.mubr.bf16.gmra.mxu0 %v2547
        %v2607 = vpop.f32.mrf.mxu0
        %v2608 = vadd.f32 0.0, %v2607
        %v2609 = vpop.f32.mrf.mxu0
        %v2610 = vpop.f32.mrf.mxu0
        %v2611 = vadd.f32 0.0, %v2610
        %v2612 = vpop.f32.mrf.mxu0
        %2613 = vdwg.mxu0
        %v2614 = vadd.f32 %v2378, %v2584
        %v2615 = vadd.f32 %v2379, %v2587
        %v2616 = vadd.f32 %v2380, %v2592
        %v2617 = vadd.f32 %v2381, %v2595
        %v2618 = vadd.f32 %v2382, %v2600
        %v2619 = vadd.f32 %v2383, %v2603
        %v2620 = vadd.f32 %v2384, %v2608
        %v2621 = vadd.f32 %v2385, %v2611
        %s2622 = scalar_lea.vmem [#allocation2], 512
        %v2623 = vld [vmem:[%s2622] sm:$0xff]
        %v2624 = vld [vmem:[%s2622 + $0x8] sm:$0xff]
        %v2625 = vld [vmem:[%s2622 + $0x10] sm:$0xff]
        %v2626 = vld [vmem:[%s2622 + $0x18] sm:$0xff]
        %v2627 = vld [vmem:[%s2622 + $0x20] sm:$0xff]
        %v2628 = vld [vmem:[%s2622 + $0x28] sm:$0xff]
        %v2629 = vld [vmem:[%s2622 + $0x30] sm:$0xff]
        %v2630 = vld [vmem:[%s2622 + $0x38] sm:$0xff]
        %v2639 = vunpack.c.l.b16 %v2623
        %v2640 = vunpack.c.h.b16 %v2623
        %v2641 = vunpack.c.l.b16 %v2624
        %v2642 = vunpack.c.h.b16 %v2624
        %v2643 = vunpack.c.l.b16 %v2625
        %v2644 = vunpack.c.h.b16 %v2625
        %v2645 = vunpack.c.l.b16 %v2626
        %v2646 = vunpack.c.h.b16 %v2626
        %v2647 = vunpack.c.l.b16 %v2627
        %v2648 = vunpack.c.h.b16 %v2627
        %v2649 = vunpack.c.l.b16 %v2628
        %v2650 = vunpack.c.h.b16 %v2628
        %v2651 = vunpack.c.l.b16 %v2629
        %v2652 = vunpack.c.h.b16 %v2629
        %v2653 = vunpack.c.l.b16 %v2630
        %v2654 = vunpack.c.h.b16 %v2630
        %v2655 = vpack.c.b16 %v2641, %v2639
        %v2656 = vpack.c.b16 %v2642, %v2640
        %v2657 = vpack.c.b16 %v2645, %v2643
        %v2658 = vpack.c.b16 %v2646, %v2644
        %v2659 = vpack.c.b16 %v2649, %v2647
        %v2660 = vpack.c.b16 %v2650, %v2648
        %v2661 = vpack.c.b16 %v2653, %v2651
        %v2662 = vpack.c.b16 %v2654, %v2652
        %2671 = vmatprep.subr.bf16.mxu0 0
        %2672 = vmatpush1.bf16.msra.mxu0 %v774
        %2673 = vmatprep.subr.bf16.mxu0 0
        %2674 = vmatpush1.bf16.msra.mxu0 %v773
        %2675 = vmatprep.subr.bf16.mxu0 0
        %2676 = vmatpush1.bf16.msra.mxu0 %v772
        %2677 = vmatprep.subr.bf16.mxu0 0
        %2678 = vmatpush1.bf16.msra.mxu0 %v771
        %2679 = vmatprep.subr.bf16.mxu0 0
        %2680 = vmatpush1.bf16.msra.mxu0 %v770
        %2681 = vmatprep.subr.bf16.mxu0 0
        %2682 = vmatpush1.bf16.msra.mxu0 %v769
        %2683 = vmatprep.subr.bf16.mxu0 0
        %2684 = vmatpush1.bf16.msra.mxu0 %v768
        %2685 = vmatprep.subr.bf16.mxu0 0
        %2686 = vmatpush1.bf16.msra.mxu0 %v767
        %2687 = vmatprep.subr.bf16.mxu0 0
        %2688 = vmatpush2.bf16.msra.mxu0 %v782
        %2689 = vmatprep.subr.bf16.mxu0 0
        %2690 = vmatpush2.bf16.msra.mxu0 %v781
        %2691 = vmatprep.subr.bf16.mxu0 0
        %2692 = vmatpush2.bf16.msra.mxu0 %v780
        %2693 = vmatprep.subr.bf16.mxu0 0
        %2694 = vmatpush2.bf16.msra.mxu0 %v779
        %2695 = vmatprep.subr.bf16.mxu0 0
        %2696 = vmatpush2.bf16.msra.mxu0 %v778
        %2697 = vmatprep.subr.bf16.mxu0 0
        %2698 = vmatpush2.bf16.msra.mxu0 %v777
        %2699 = vmatprep.subr.bf16.mxu0 0
        %2700 = vmatpush2.bf16.msra.mxu0 %v776
        %2701 = vmatprep.subr.bf16.mxu0 0
        %2702 = vmatpush2.bf16.msra.mxu0 %v775
        %2703 = vmatprep.mubr.bf16.mxu0 %v2656
        %2704 = vmatmul.mubr.bf16.gmra.mxu0 %v2655
        %v2705 = vpop.f32.mrf.mxu0
        %v2706 = vadd.f32 0.0, %v2705
        %v2707 = vpop.f32.mrf.mxu0
        %v2708 = vpop.f32.mrf.mxu0
        %v2709 = vadd.f32 0.0, %v2708
        %v2710 = vpop.f32.mrf.mxu0
        %2711 = vmatprep.mubr.bf16.mxu0 %v2658
        %2712 = vmatmul.mubr.bf16.gmra.mxu0 %v2657
        %v2713 = vpop.f32.mrf.mxu0
        %v2714 = vadd.f32 0.0, %v2713
        %v2715 = vpop.f32.mrf.mxu0
        %v2716 = vpop.f32.mrf.mxu0
        %v2717 = vadd.f32 0.0, %v2716
        %v2718 = vpop.f32.mrf.mxu0
        %2719 = vmatprep.mubr.bf16.mxu0 %v2660
        %2720 = vmatmul.mubr.bf16.gmra.mxu0 %v2659
        %v2721 = vpop.f32.mrf.mxu0
        %v2722 = vadd.f32 0.0, %v2721
        %v2723 = vpop.f32.mrf.mxu0
        %v2724 = vpop.f32.mrf.mxu0
        %v2725 = vadd.f32 0.0, %v2724
        %v2726 = vpop.f32.mrf.mxu0
        %2727 = vmatprep.mubr.bf16.mxu0 %v2662
        %2728 = vmatmul.mubr.bf16.gmra.mxu0 %v2661
        %v2729 = vpop.f32.mrf.mxu0
        %v2730 = vadd.f32 0.0, %v2729
        %v2731 = vpop.f32.mrf.mxu0
        %v2732 = vpop.f32.mrf.mxu0
        %v2733 = vadd.f32 0.0, %v2732
        %v2734 = vpop.f32.mrf.mxu0
        %2735 = vdwg.mxu0
        %v2736 = vpack.c.bf16 %v2709, %v2706
        %v2737 = vpack.c.bf16 %v2717, %v2714
        %v2738 = vpack.c.bf16 %v2725, %v2722
        %v2739 = vpack.c.bf16 %v2733, %v2730
        %s2740 = scalar_lea.vmem [#allocation4], 256
        %v2741 = vld [vmem:[%s2740] sm:$0xf]
        %v2742 = vld [vmem:[%s2740 + $0x4] sm:$0xf]
        %v2743 = vld [vmem:[%s2740 + $0x8] sm:$0xf]
        %v2744 = vld [vmem:[%s2740 + $0xc] sm:$0xf]
        %v2745 = vld [vmem:[%s2740 + $0x10] sm:$0xf]
        %v2746 = vld [vmem:[%s2740 + $0x14] sm:$0xf]
        %v2747 = vld [vmem:[%s2740 + $0x18] sm:$0xf]
        %v2748 = vld [vmem:[%s2740 + $0x1c] sm:$0xf]
        %v2757 = vunpack.c.l.b16 %v2741
        %v2758 = vunpack.c.l.b16 %v2742
        %v2759 = vunpack.c.l.b16 %v2743
        %v2760 = vunpack.c.l.b16 %v2744
        %v2761 = vunpack.c.l.b16 %v2745
        %v2762 = vunpack.c.l.b16 %v2746
        %v2763 = vunpack.c.l.b16 %v2747
        %v2764 = vunpack.c.l.b16 %v2748
        %v2765 = vpack.c.b16 %v2758, %v2757
        %v2766 = vpack.c.b16 %v2760, %v2759
        %v2767 = vpack.c.b16 %v2762, %v2761
        %v2768 = vpack.c.b16 %v2764, %v2763
        %v2774 = vsel %vm1027, %v2736, 0
        %v2777 = vsel %vm1027, %v2737, 0
        %v2780 = vsel %vm1027, %v2738, 0
        %v2783 = vsel %vm1027, %v2739, 0
        %2785 = vmatprep.subr.bf16.mxu0 0
        %2786 = vmatpush1.bf16.msra.mxu0 0
        %2787 = vmatprep.subr.bf16.mxu0 0
        %2788 = vmatpush1.bf16.msra.mxu0 0
        %2789 = vmatprep.subr.bf16.mxu0 0
        %2790 = vmatpush1.bf16.msra.mxu0 0
        %2791 = vmatprep.subr.bf16.mxu0 0
        %2792 = vmatpush1.bf16.msra.mxu0 0
        %2793 = vmatprep.subr.bf16.mxu0 0
        %2794 = vmatpush1.bf16.msra.mxu0 %v2768
        %2795 = vmatprep.subr.bf16.mxu0 0
        %2796 = vmatpush1.bf16.msra.mxu0 %v2767
        %2797 = vmatprep.subr.bf16.mxu0 0
        %2798 = vmatpush1.bf16.msra.mxu0 %v2766
        %2799 = vmatprep.subr.bf16.mxu0 0
        %2800 = vmatpush1.bf16.msra.mxu0 %v2765
        %2801 = vmatprep.subr.bf16.mxu0 0
        %2802 = vmatpush2.bf16.msra.mxu0 0
        %2803 = vmatprep.subr.bf16.mxu0 0
        %2804 = vmatpush2.bf16.msra.mxu0 0
        %2805 = vmatprep.subr.bf16.mxu0 0
        %2806 = vmatpush2.bf16.msra.mxu0 0
        %2807 = vmatprep.subr.bf16.mxu0 0
        %2808 = vmatpush2.bf16.msra.mxu0 0
        %2809 = vmatprep.subr.bf16.mxu0 0
        %2810 = vmatpush2.bf16.msra.mxu0 0
        %2811 = vmatprep.subr.bf16.mxu0 0
        %2812 = vmatpush2.bf16.msra.mxu0 0
        %2813 = vmatprep.subr.bf16.mxu0 0
        %2814 = vmatpush2.bf16.msra.mxu0 0
        %2815 = vmatprep.subr.bf16.mxu0 0
        %2816 = vmatpush2.bf16.msra.mxu0 0
        %2817 = vmatprep.mubr.bf16.mxu0 0
        %2818 = vmatmul.mubr.bf16.gmra.mxu0 %v2774
        %v2819 = vpop.f32.mrf.mxu0
        %v2820 = vadd.f32 0.0, %v2819
        %v2821 = vpop.f32.mrf.mxu0
        %v2822 = vpop.f32.mrf.mxu0
        %v2823 = vadd.f32 0.0, %v2822
        %v2824 = vpop.f32.mrf.mxu0
        %2825 = vmatprep.mubr.bf16.mxu0 0
        %2826 = vmatmul.mubr.bf16.gmra.mxu0 %v2777
        %v2827 = vpop.f32.mrf.mxu0
        %v2828 = vadd.f32 0.0, %v2827
        %v2829 = vpop.f32.mrf.mxu0
        %v2830 = vpop.f32.mrf.mxu0
        %v2831 = vadd.f32 0.0, %v2830
        %v2832 = vpop.f32.mrf.mxu0
        %2833 = vmatprep.mubr.bf16.mxu0 0
        %2834 = vmatmul.mubr.bf16.gmra.mxu0 %v2780
        %v2835 = vpop.f32.mrf.mxu0
        %v2836 = vadd.f32 0.0, %v2835
        %v2837 = vpop.f32.mrf.mxu0
        %v2838 = vpop.f32.mrf.mxu0
        %v2839 = vadd.f32 0.0, %v2838
        %v2840 = vpop.f32.mrf.mxu0
        %2841 = vmatprep.mubr.bf16.mxu0 0
        %2842 = vmatmul.mubr.bf16.gmra.mxu0 %v2783
        %v2843 = vpop.f32.mrf.mxu0
        %v2844 = vadd.f32 0.0, %v2843
        %v2845 = vpop.f32.mrf.mxu0
        %v2846 = vpop.f32.mrf.mxu0
        %v2847 = vadd.f32 0.0, %v2846
        %v2848 = vpop.f32.mrf.mxu0
        %2849 = vdwg.mxu0
        %v2850 = vadd.f32 %v2614, %v2820
        %v2851 = vadd.f32 %v2615, %v2823
        %v2852 = vadd.f32 %v2616, %v2828
        %v2853 = vadd.f32 %v2617, %v2831
        %v2854 = vadd.f32 %v2618, %v2836
        %v2855 = vadd.f32 %v2619, %v2839
        %v2856 = vadd.f32 %v2620, %v2844
        %v2857 = vadd.f32 %v2621, %v2847
        %v2858 = vld [vmem:[%s3] sm:$0x1]
        %v2860 = vlaneseq
        %v2861 = vshrl.u32 %v2860, 7
        %v2862 = vsub.s32 0, %v2861
        %v2863 = vrot.slane %v2858, %v2862
        %v2865 = vadd.f32 %v2850, %v2863
        %v2866 = vadd.f32 %v2851, %v2863
        %v2867 = vadd.f32 %v2852, %v2863
        %v2868 = vadd.f32 %v2853, %v2863
        %v2869 = vadd.f32 %v2854, %v2863
        %v2870 = vadd.f32 %v2855, %v2863
        %v2871 = vadd.f32 %v2856, %v2863
        %v2872 = vadd.f32 %v2857, %v2863
        %v2873 = vmax.f32 %v2865, 0.0
        %v2874 = vmax.f32 %v2866, 0.0
        %v2875 = vmax.f32 %v2867, 0.0
        %v2876 = vmax.f32 %v2868, 0.0
        %v2877 = vmax.f32 %v2869, 0.0
        %v2878 = vmax.f32 %v2870, 0.0
        %v2879 = vmax.f32 %v2871, 0.0
        %v2880 = vmax.f32 %v2872, 0.0
        %v2881 = vand.u32 2147483647, %v2865
        %v2882 = vand.u32 2147483647, %v2866
        %v2883 = vand.u32 2147483647, %v2867
        %v2884 = vand.u32 2147483647, %v2868
        %v2885 = vand.u32 2147483647, %v2869
        %v2886 = vand.u32 2147483647, %v2870
        %v2887 = vand.u32 2147483647, %v2871
        %v2888 = vand.u32 2147483647, %v2872
        %v2889 = vsub.f32 0.0, %v2881
        %v2890 = vsub.f32 0.0, %v2882
        %v2891 = vsub.f32 0.0, %v2883
        %v2892 = vsub.f32 0.0, %v2884
        %v2893 = vsub.f32 0.0, %v2885
        %v2894 = vsub.f32 0.0, %v2886
        %v2895 = vsub.f32 0.0, %v2887
        %v2896 = vsub.f32 0.0, %v2888
        %v2897 = vmul.f32 %v2889, 1.442695
        %v2898 = vpow.pop %v2897
        %v2899 = vmul.f32 %v2890, 1.442695
        %v2900 = vpow.pop %v2899
        %v2901 = vmul.f32 %v2891, 1.442695
        %v2902 = vpow.pop %v2901
        %v2903 = vmul.f32 %v2892, 1.442695
        %v2904 = vpow.pop %v2903
        %v2905 = vmul.f32 %v2893, 1.442695
        %v2906 = vpow.pop %v2905
        %v2907 = vmul.f32 %v2894, 1.442695
        %v2908 = vpow.pop %v2907
        %v2909 = vmul.f32 %v2895, 1.442695
        %v2910 = vpow.pop %v2909
        %v2911 = vmul.f32 %v2896, 1.442695
        %v2912 = vpow.pop %v2911
        %v2913 = vadd.f32 %v2898, 1.0
        %v2914 = vlog2.pop %v2913
        %v2915 = vmul.f32 %v2914, 0.6931472
        %v2916 = vmul.f32 -0.5, %v2898
        %v2917 = vadd.f32 %v2916, 1.0
        %v2918 = vmul.f32 %v2917, %v2898
        %v2919 = vand.u32 2147483647, %v2898
        %vm2920 = vcmp.lt.f32.partialorder %v2919, 0.0004427343
        %v2921 = vsel %vm2920, %v2918, %v2915
        %v2922 = vadd.f32 %v2900, 1.0
        %v2923 = vlog2.pop %v2922
        %v2924 = vmul.f32 %v2923, 0.6931472
        %v2925 = vmul.f32 -0.5, %v2900
        %v2926 = vadd.f32 %v2925, 1.0
        %v2927 = vmul.f32 %v2926, %v2900
        %v2928 = vand.u32 2147483647, %v2900
        %vm2929 = vcmp.lt.f32.partialorder %v2928, 0.0004427343
        %v2930 = vsel %vm2929, %v2927, %v2924
        %v2931 = vadd.f32 %v2902, 1.0
        %v2932 = vlog2.pop %v2931
        %v2933 = vmul.f32 %v2932, 0.6931472
        %v2934 = vmul.f32 -0.5, %v2902
        %v2935 = vadd.f32 %v2934, 1.0
        %v2936 = vmul.f32 %v2935, %v2902
        %v2937 = vand.u32 2147483647, %v2902
        %vm2938 = vcmp.lt.f32.partialorder %v2937, 0.0004427343
        %v2939 = vsel %vm2938, %v2936, %v2933
        %v2940 = vadd.f32 %v2904, 1.0
        %v2941 = vlog2.pop %v2940
        %v2942 = vmul.f32 %v2941, 0.6931472
        %v2943 = vmul.f32 -0.5, %v2904
        %v2944 = vadd.f32 %v2943, 1.0
        %v2945 = vmul.f32 %v2944, %v2904
        %v2946 = vand.u32 2147483647, %v2904
        %vm2947 = vcmp.lt.f32.partialorder %v2946, 0.0004427343
        %v2948 = vsel %vm2947, %v2945, %v2942
        %v2949 = vadd.f32 %v2906, 1.0
        %v2950 = vlog2.pop %v2949
        %v2951 = vmul.f32 %v2950, 0.6931472
        %v2952 = vmul.f32 -0.5, %v2906
        %v2953 = vadd.f32 %v2952, 1.0
        %v2954 = vmul.f32 %v2953, %v2906
        %v2955 = vand.u32 2147483647, %v2906
        %vm2956 = vcmp.lt.f32.partialorder %v2955, 0.0004427343
        %v2957 = vsel %vm2956, %v2954, %v2951
        %v2958 = vadd.f32 %v2908, 1.0
        %v2959 = vlog2.pop %v2958
        %v2960 = vmul.f32 %v2959, 0.6931472
        %v2961 = vmul.f32 -0.5, %v2908
        %v2962 = vadd.f32 %v2961, 1.0
        %v2963 = vmul.f32 %v2962, %v2908
        %v2964 = vand.u32 2147483647, %v2908
        %vm2965 = vcmp.lt.f32.partialorder %v2964, 0.0004427343
        %v2966 = vsel %vm2965, %v2963, %v2960
        %v2967 = vadd.f32 %v2910, 1.0
        %v2968 = vlog2.pop %v2967
        %v2969 = vmul.f32 %v2968, 0.6931472
        %v2970 = vmul.f32 -0.5, %v2910
        %v2971 = vadd.f32 %v2970, 1.0
        %v2972 = vmul.f32 %v2971, %v2910
        %v2973 = vand.u32 2147483647, %v2910
        %vm2974 = vcmp.lt.f32.partialorder %v2973, 0.0004427343
        %v2975 = vsel %vm2974, %v2972, %v2969
        %v2976 = vadd.f32 %v2912, 1.0
        %v2977 = vlog2.pop %v2976
        %v2978 = vmul.f32 %v2977, 0.6931472
        %v2979 = vmul.f32 -0.5, %v2912
        %v2980 = vadd.f32 %v2979, 1.0
        %v2981 = vmul.f32 %v2980, %v2912
        %v2982 = vand.u32 2147483647, %v2912
        %vm2983 = vcmp.lt.f32.partialorder %v2982, 0.0004427343
        %v2984 = vsel %vm2983, %v2981, %v2978
        %v2985 = vadd.f32 %v2873, %v2921
        %v2986 = vadd.f32 %v2874, %v2930
        %v2987 = vadd.f32 %v2875, %v2939
        %v2988 = vadd.f32 %v2876, %v2948
        %v2989 = vadd.f32 %v2877, %v2957
        %v2990 = vadd.f32 %v2878, %v2966
        %v2991 = vadd.f32 %v2879, %v2975
        %v2992 = vadd.f32 %v2880, %v2984
        %v2993 = vtanh.pop %v2985
        %v2994 = vtanh.pop %v2986
        %v2995 = vtanh.pop %v2987
        %v2996 = vtanh.pop %v2988
        %v2997 = vtanh.pop %v2989
        %v2998 = vtanh.pop %v2990
        %v2999 = vtanh.pop %v2991
        %v3000 = vtanh.pop %v2992
        %v3001 = vmul.f32 %v2865, %v2993
        %v3002 = vmul.f32 %v2866, %v2994
        %v3003 = vmul.f32 %v2867, %v2995
        %v3004 = vmul.f32 %v2868, %v2996
        %v3005 = vmul.f32 %v2869, %v2997
        %v3006 = vmul.f32 %v2870, %v2998
        %v3007 = vmul.f32 %v2871, %v2999
        %v3008 = vmul.f32 %v2872, %v3000
        %v3009 = vpack.c.bf16 %v3002, %v3001
        %v3010 = vpack.c.bf16 %v3004, %v3003
        %v3011 = vpack.c.bf16 %v3006, %v3005
        %v3012 = vpack.c.bf16 %v3008, %v3007
        %v3013 = vld [vmem:[#allocation6] sm:$0xf]
        %v3014 = vld [vmem:[#allocation6 + $0x4] sm:$0xf]
        %v3015 = vld [vmem:[#allocation6 + $0x8] sm:$0xf]
        %v3016 = vld [vmem:[#allocation6 + $0xc] sm:$0xf]
        %v3017 = vld [vmem:[#allocation6 + $0x10] sm:$0xf]
        %v3018 = vld [vmem:[#allocation6 + $0x14] sm:$0xf]
        %v3019 = vld [vmem:[#allocation6 + $0x18] sm:$0xf]
        %v3020 = vld [vmem:[#allocation6 + $0x1c] sm:$0xf]
        %v3021 = vld [vmem:[#allocation6 + $0x20] sm:$0xf]
        %v3022 = vld [vmem:[#allocation6 + $0x24] sm:$0xf]
        %v3023 = vld [vmem:[#allocation6 + $0x28] sm:$0xf]
        %v3024 = vld [vmem:[#allocation6 + $0x2c] sm:$0xf]
        %v3025 = vld [vmem:[#allocation6 + $0x30] sm:$0xf]
        %v3026 = vld [vmem:[#allocation6 + $0x34] sm:$0xf]
        %v3027 = vld [vmem:[#allocation6 + $0x38] sm:$0xf]
        %v3028 = vld [vmem:[#allocation6 + $0x3c] sm:$0xf]
        %v3029 = vld [vmem:[%s5] sm:$0x1]
        %v3031 = vlaneseq
        %v3032 = vshrl.u32 %v3031, 7
        %v3033 = vsub.s32 0, %v3032
        %v3034 = vrot.slane %v3029, %v3033
        %v3052 = vunpack.c.l.b16 %v3013
        %v3053 = vunpack.c.l.b16 %v3014
        %v3054 = vunpack.c.l.b16 %v3015
        %v3055 = vunpack.c.l.b16 %v3016
        %v3056 = vunpack.c.l.b16 %v3017
        %v3057 = vunpack.c.l.b16 %v3018
        %v3058 = vunpack.c.l.b16 %v3019
        %v3059 = vunpack.c.l.b16 %v3020
        %v3060 = vunpack.c.l.b16 %v3021
        %v3061 = vunpack.c.l.b16 %v3022
        %v3062 = vunpack.c.l.b16 %v3023
        %v3063 = vunpack.c.l.b16 %v3024
        %v3064 = vunpack.c.l.b16 %v3025
        %v3065 = vunpack.c.l.b16 %v3026
        %v3066 = vunpack.c.l.b16 %v3027
        %v3067 = vunpack.c.l.b16 %v3028
        %v3068 = vpack.c.b16 %v3053, %v3052
        %v3069 = vpack.c.b16 %v3055, %v3054
        %v3070 = vpack.c.b16 %v3057, %v3056
        %v3071 = vpack.c.b16 %v3059, %v3058
        %v3072 = vpack.c.b16 %v3061, %v3060
        %v3073 = vpack.c.b16 %v3063, %v3062
        %v3074 = vpack.c.b16 %v3065, %v3064
        %v3075 = vpack.c.b16 %v3067, %v3066
        %3084 = vmatprep.subr.bf16.mxu0 0
        %3085 = vmatpush1.bf16.msra.mxu0 %v3075
        %3086 = vmatprep.subr.bf16.mxu0 0
        %3087 = vmatpush1.bf16.msra.mxu0 %v3074
        %3088 = vmatprep.subr.bf16.mxu0 0
        %3089 = vmatpush1.bf16.msra.mxu0 %v3073
        %3090 = vmatprep.subr.bf16.mxu0 0
        %3091 = vmatpush1.bf16.msra.mxu0 %v3072
        %3092 = vmatprep.subr.bf16.mxu0 0
        %3093 = vmatpush1.bf16.msra.mxu0 %v3071
        %3094 = vmatprep.subr.bf16.mxu0 0
        %3095 = vmatpush1.bf16.msra.mxu0 %v3070
        %3096 = vmatprep.subr.bf16.mxu0 0
        %3097 = vmatpush1.bf16.msra.mxu0 %v3069
        %3098 = vmatprep.subr.bf16.mxu0 0
        %3099 = vmatpush1.bf16.msra.mxu0 %v3068
        %3100 = vmatprep.subr.bf16.mxu0 0
        %3101 = vmatpush2.bf16.msra.mxu0 0
        %3102 = vmatprep.subr.bf16.mxu0 0
        %3103 = vmatpush2.bf16.msra.mxu0 0
        %3104 = vmatprep.subr.bf16.mxu0 0
        %3105 = vmatpush2.bf16.msra.mxu0 0
        %3106 = vmatprep.subr.bf16.mxu0 0
        %3107 = vmatpush2.bf16.msra.mxu0 0
        %3108 = vmatprep.subr.bf16.mxu0 0
        %3109 = vmatpush2.bf16.msra.mxu0 0
        %3110 = vmatprep.subr.bf16.mxu0 0
        %3111 = vmatpush2.bf16.msra.mxu0 0
        %3112 = vmatprep.subr.bf16.mxu0 0
        %3113 = vmatpush2.bf16.msra.mxu0 0
        %3114 = vmatprep.subr.bf16.mxu0 0
        %3115 = vmatpush2.bf16.msra.mxu0 0
        %3116 = vmatprep.mubr.bf16.mxu0 0
        %3117 = vmatmul.mubr.bf16.gmra.mxu0 %v3009
        %v3118 = vpop.f32.mrf.mxu0
        %v3119 = vadd.f32 %v3034, %v3118
        %v3120 = vpop.f32.mrf.mxu0
        %v3121 = vpop.f32.mrf.mxu0
        %v3122 = vadd.f32 %v3034, %v3121
        %v3123 = vpop.f32.mrf.mxu0
        %3124 = vmatprep.mubr.bf16.mxu0 0
        %3125 = vmatmul.mubr.bf16.gmra.mxu0 %v3010
        %v3126 = vpop.f32.mrf.mxu0
        %v3127 = vadd.f32 %v3034, %v3126
        %v3128 = vpop.f32.mrf.mxu0
        %v3129 = vpop.f32.mrf.mxu0
        %v3130 = vadd.f32 %v3034, %v3129
        %v3131 = vpop.f32.mrf.mxu0
        %3132 = vmatprep.mubr.bf16.mxu0 0
        %3133 = vmatmul.mubr.bf16.gmra.mxu0 %v3011
        %v3134 = vpop.f32.mrf.mxu0
        %v3135 = vadd.f32 %v3034, %v3134
        %v3136 = vpop.f32.mrf.mxu0
        %v3137 = vpop.f32.mrf.mxu0
        %v3138 = vadd.f32 %v3034, %v3137
        %v3139 = vpop.f32.mrf.mxu0
        %3140 = vmatprep.mubr.bf16.mxu0 0
        %3141 = vmatmul.mubr.bf16.gmra.mxu0 %v3012
        %v3142 = vpop.f32.mrf.mxu0
        %v3143 = vadd.f32 %v3034, %v3142
        %v3144 = vpop.f32.mrf.mxu0
        %v3145 = vpop.f32.mrf.mxu0
        %v3146 = vadd.f32 %v3034, %v3145
        %v3147 = vpop.f32.mrf.mxu0
        %3148 = vdwg.mxu0
        %v3149 = vmax.f32 %v3119, 0.0
        %v3150 = vmax.f32 %v3122, 0.0
        %v3151 = vmax.f32 %v3127, 0.0
        %v3152 = vmax.f32 %v3130, 0.0
        %v3153 = vmax.f32 %v3135, 0.0
        %v3154 = vmax.f32 %v3138, 0.0
        %v3155 = vmax.f32 %v3143, 0.0
        %v3156 = vmax.f32 %v3146, 0.0
        %v3157 = vand.u32 2147483647, %v3119
        %v3158 = vand.u32 2147483647, %v3122
        %v3159 = vand.u32 2147483647, %v3127
        %v3160 = vand.u32 2147483647, %v3130
        %v3161 = vand.u32 2147483647, %v3135
        %v3162 = vand.u32 2147483647, %v3138
        %v3163 = vand.u32 2147483647, %v3143
        %v3164 = vand.u32 2147483647, %v3146
        %v3165 = vsub.f32 0.0, %v3157
        %v3166 = vsub.f32 0.0, %v3158
        %v3167 = vsub.f32 0.0, %v3159
        %v3168 = vsub.f32 0.0, %v3160
        %v3169 = vsub.f32 0.0, %v3161
        %v3170 = vsub.f32 0.0, %v3162
        %v3171 = vsub.f32 0.0, %v3163
        %v3172 = vsub.f32 0.0, %v3164
        %v3173 = vmul.f32 %v3165, 1.442695
        %v3174 = vpow.pop %v3173
        %v3175 = vmul.f32 %v3166, 1.442695
        %v3176 = vpow.pop %v3175
        %v3177 = vmul.f32 %v3167, 1.442695
        %v3178 = vpow.pop %v3177
        %v3179 = vmul.f32 %v3168, 1.442695
        %v3180 = vpow.pop %v3179
        %v3181 = vmul.f32 %v3169, 1.442695
        %v3182 = vpow.pop %v3181
        %v3183 = vmul.f32 %v3170, 1.442695
        %v3184 = vpow.pop %v3183
        %v3185 = vmul.f32 %v3171, 1.442695
        %v3186 = vpow.pop %v3185
        %v3187 = vmul.f32 %v3172, 1.442695
        %v3188 = vpow.pop %v3187
        %v3189 = vadd.f32 %v3174, 1.0
        %v3190 = vlog2.pop %v3189
        %v3191 = vmul.f32 %v3190, 0.6931472
        %v3192 = vmul.f32 -0.5, %v3174
        %v3193 = vadd.f32 %v3192, 1.0
        %v3194 = vmul.f32 %v3193, %v3174
        %v3195 = vand.u32 2147483647, %v3174
        %vm3196 = vcmp.lt.f32.partialorder %v3195, 0.0004427343
        %v3197 = vsel %vm3196, %v3194, %v3191
        %v3198 = vadd.f32 %v3176, 1.0
        %v3199 = vlog2.pop %v3198
        %v3200 = vmul.f32 %v3199, 0.6931472
        %v3201 = vmul.f32 -0.5, %v3176
        %v3202 = vadd.f32 %v3201, 1.0
        %v3203 = vmul.f32 %v3202, %v3176
        %v3204 = vand.u32 2147483647, %v3176
        %vm3205 = vcmp.lt.f32.partialorder %v3204, 0.0004427343
        %v3206 = vsel %vm3205, %v3203, %v3200
        %v3207 = vadd.f32 %v3178, 1.0
        %v3208 = vlog2.pop %v3207
        %v3209 = vmul.f32 %v3208, 0.6931472
        %v3210 = vmul.f32 -0.5, %v3178
        %v3211 = vadd.f32 %v3210, 1.0
        %v3212 = vmul.f32 %v3211, %v3178
        %v3213 = vand.u32 2147483647, %v3178
        %vm3214 = vcmp.lt.f32.partialorder %v3213, 0.0004427343
        %v3215 = vsel %vm3214, %v3212, %v3209
        %v3216 = vadd.f32 %v3180, 1.0
        %v3217 = vlog2.pop %v3216
        %v3218 = vmul.f32 %v3217, 0.6931472
        %v3219 = vmul.f32 -0.5, %v3180
        %v3220 = vadd.f32 %v3219, 1.0
        %v3221 = vmul.f32 %v3220, %v3180
        %v3222 = vand.u32 2147483647, %v3180
        %vm3223 = vcmp.lt.f32.partialorder %v3222, 0.0004427343
        %v3224 = vsel %vm3223, %v3221, %v3218
        %v3225 = vadd.f32 %v3182, 1.0
        %v3226 = vlog2.pop %v3225
        %v3227 = vmul.f32 %v3226, 0.6931472
        %v3228 = vmul.f32 -0.5, %v3182
        %v3229 = vadd.f32 %v3228, 1.0
        %v3230 = vmul.f32 %v3229, %v3182
        %v3231 = vand.u32 2147483647, %v3182
        %vm3232 = vcmp.lt.f32.partialorder %v3231, 0.0004427343
        %v3233 = vsel %vm3232, %v3230, %v3227
        %v3234 = vadd.f32 %v3184, 1.0
        %v3235 = vlog2.pop %v3234
        %v3236 = vmul.f32 %v3235, 0.6931472
        %v3237 = vmul.f32 -0.5, %v3184
        %v3238 = vadd.f32 %v3237, 1.0
        %v3239 = vmul.f32 %v3238, %v3184
        %v3240 = vand.u32 2147483647, %v3184
        %vm3241 = vcmp.lt.f32.partialorder %v3240, 0.0004427343
        %v3242 = vsel %vm3241, %v3239, %v3236
        %v3243 = vadd.f32 %v3186, 1.0
        %v3244 = vlog2.pop %v3243
        %v3245 = vmul.f32 %v3244, 0.6931472
        %v3246 = vmul.f32 -0.5, %v3186
        %v3247 = vadd.f32 %v3246, 1.0
        %v3248 = vmul.f32 %v3247, %v3186
        %v3249 = vand.u32 2147483647, %v3186
        %vm3250 = vcmp.lt.f32.partialorder %v3249, 0.0004427343
        %v3251 = vsel %vm3250, %v3248, %v3245
        %v3252 = vadd.f32 %v3188, 1.0
        %v3253 = vlog2.pop %v3252
        %v3254 = vmul.f32 %v3253, 0.6931472
        %v3255 = vmul.f32 -0.5, %v3188
        %v3256 = vadd.f32 %v3255, 1.0
        %v3257 = vmul.f32 %v3256, %v3188
        %v3258 = vand.u32 2147483647, %v3188
        %vm3259 = vcmp.lt.f32.partialorder %v3258, 0.0004427343
        %v3260 = vsel %vm3259, %v3257, %v3254
        %v3261 = vadd.f32 %v3149, %v3197
        %v3262 = vadd.f32 %v3150, %v3206
        %v3263 = vadd.f32 %v3151, %v3215
        %v3264 = vadd.f32 %v3152, %v3224
        %v3265 = vadd.f32 %v3153, %v3233
        %v3266 = vadd.f32 %v3154, %v3242
        %v3267 = vadd.f32 %v3155, %v3251
        %v3268 = vadd.f32 %v3156, %v3260
        %v3269 = vtanh.pop %v3261
        %v3270 = vtanh.pop %v3262
        %v3271 = vtanh.pop %v3263
        %v3272 = vtanh.pop %v3264
        %v3273 = vtanh.pop %v3265
        %v3274 = vtanh.pop %v3266
        %v3275 = vtanh.pop %v3267
        %v3276 = vtanh.pop %v3268
        %v3277 = vmul.f32 %v3119, %v3269
        %v3278 = vmul.f32 %v3122, %v3270
        %v3279 = vmul.f32 %v3127, %v3271
        %v3280 = vmul.f32 %v3130, %v3272
        %v3281 = vmul.f32 %v3135, %v3273
        %v3282 = vmul.f32 %v3138, %v3274
        %v3283 = vmul.f32 %v3143, %v3275
        %v3284 = vmul.f32 %v3146, %v3276
        %v3285 = vld [vmem:[%s6] sm:$0xf]
        %v3286 = vld [vmem:[%s6 + $0x4] sm:$0xf]
        %v3287 = vld [vmem:[%s6 + $0x8] sm:$0xf]
        %v3288 = vld [vmem:[%s6 + $0xc] sm:$0xf]
        %v3289 = vld [vmem:[%s6 + $0x10] sm:$0xf]
        %v3290 = vld [vmem:[%s6 + $0x14] sm:$0xf]
        %v3291 = vld [vmem:[%s6 + $0x18] sm:$0xf]
        %v3292 = vld [vmem:[%s6 + $0x1c] sm:$0xf]
        %v3293 = vld [vmem:[%s6 + $0x20] sm:$0xf]
        %v3294 = vld [vmem:[%s6 + $0x24] sm:$0xf]
        %v3295 = vld [vmem:[%s6 + $0x28] sm:$0xf]
        %v3296 = vld [vmem:[%s6 + $0x2c] sm:$0xf]
        %v3297 = vld [vmem:[%s6 + $0x30] sm:$0xf]
        %v3298 = vld [vmem:[%s6 + $0x34] sm:$0xf]
        %v3299 = vld [vmem:[%s6 + $0x38] sm:$0xf]
        %v3300 = vld [vmem:[%s6 + $0x3c] sm:$0xf]
        %v3301 = vld [vmem:[%s7] sm:$0x1]
        %v3303 = vlaneseq
        %v3304 = vshrl.u32 %v3303, 7
        %v3305 = vsub.s32 0, %v3304
        %v3306 = vrot.slane %v3301, %v3305
        %v3324 = vunpack.c.l.b16 %v3285
        %v3325 = vunpack.c.l.b16 %v3286
        %v3326 = vunpack.c.l.b16 %v3287
        %v3327 = vunpack.c.l.b16 %v3288
        %v3328 = vunpack.c.l.b16 %v3289
        %v3329 = vunpack.c.l.b16 %v3290
        %v3330 = vunpack.c.l.b16 %v3291
        %v3331 = vunpack.c.l.b16 %v3292
        %v3332 = vunpack.c.l.b16 %v3293
        %v3333 = vunpack.c.l.b16 %v3294
        %v3334 = vunpack.c.l.b16 %v3295
        %v3335 = vunpack.c.l.b16 %v3296
        %v3336 = vunpack.c.l.b16 %v3297
        %v3337 = vunpack.c.l.b16 %v3298
        %v3338 = vunpack.c.l.b16 %v3299
        %v3339 = vunpack.c.l.b16 %v3300
        %v3340 = vpack.c.b16 %v3325, %v3324
        %v3341 = vpack.c.b16 %v3327, %v3326
        %v3342 = vpack.c.b16 %v3329, %v3328
        %v3343 = vpack.c.b16 %v3331, %v3330
        %v3344 = vpack.c.b16 %v3333, %v3332
        %v3345 = vpack.c.b16 %v3335, %v3334
        %v3346 = vpack.c.b16 %v3337, %v3336
        %v3347 = vpack.c.b16 %v3339, %v3338
        %3356 = vmatprep.subr.bf16.mxu0 0
        %3357 = vmatpush1.bf16.msra.mxu0 %v3347
        %3358 = vmatprep.subr.bf16.mxu0 0
        %3359 = vmatpush1.bf16.msra.mxu0 %v3346
        %3360 = vmatprep.subr.bf16.mxu0 0
        %3361 = vmatpush1.bf16.msra.mxu0 %v3345
        %3362 = vmatprep.subr.bf16.mxu0 0
        %3363 = vmatpush1.bf16.msra.mxu0 %v3344
        %3364 = vmatprep.subr.bf16.mxu0 0
        %3365 = vmatpush1.bf16.msra.mxu0 %v3343
        %3366 = vmatprep.subr.bf16.mxu0 0
        %3367 = vmatpush1.bf16.msra.mxu0 %v3342
        %3368 = vmatprep.subr.bf16.mxu0 0
        %3369 = vmatpush1.bf16.msra.mxu0 %v3341
        %3370 = vmatprep.subr.bf16.mxu0 0
        %3371 = vmatpush1.bf16.msra.mxu0 %v3340
        %3372 = vmatprep.subr.bf16.mxu0 0
        %3373 = vmatpush2.bf16.msra.mxu0 0
        %3374 = vmatprep.subr.bf16.mxu0 0
        %3375 = vmatpush2.bf16.msra.mxu0 0
        %3376 = vmatprep.subr.bf16.mxu0 0
        %3377 = vmatpush2.bf16.msra.mxu0 0
        %3378 = vmatprep.subr.bf16.mxu0 0
        %3379 = vmatpush2.bf16.msra.mxu0 0
        %3380 = vmatprep.subr.bf16.mxu0 0
        %3381 = vmatpush2.bf16.msra.mxu0 0
        %3382 = vmatprep.subr.bf16.mxu0 0
        %3383 = vmatpush2.bf16.msra.mxu0 0
        %3384 = vmatprep.subr.bf16.mxu0 0
        %3385 = vmatpush2.bf16.msra.mxu0 0
        %3386 = vmatprep.subr.bf16.mxu0 0
        %3387 = vmatpush2.bf16.msra.mxu0 0
        %3388 = vmatprep.mubr.bf16.mxu0 0
        %3389 = vmatmul.mubr.bf16.gmra.mxu0 %v3009
        %v3390 = vpop.f32.mrf.mxu0
        %v3391 = vadd.f32 %v3306, %v3390
        %v3392 = vpop.f32.mrf.mxu0
        %v3393 = vpop.f32.mrf.mxu0
        %v3394 = vadd.f32 %v3306, %v3393
        %v3395 = vpop.f32.mrf.mxu0
        %3396 = vmatprep.mubr.bf16.mxu0 0
        %3397 = vmatmul.mubr.bf16.gmra.mxu0 %v3010
        %v3398 = vpop.f32.mrf.mxu0
        %v3399 = vadd.f32 %v3306, %v3398
        %v3400 = vpop.f32.mrf.mxu0
        %v3401 = vpop.f32.mrf.mxu0
        %v3402 = vadd.f32 %v3306, %v3401
        %v3403 = vpop.f32.mrf.mxu0
        %3404 = vmatprep.mubr.bf16.mxu0 0
        %3405 = vmatmul.mubr.bf16.gmra.mxu0 %v3011
        %v3406 = vpop.f32.mrf.mxu0
        %v3407 = vadd.f32 %v3306, %v3406
        %v3408 = vpop.f32.mrf.mxu0
        %v3409 = vpop.f32.mrf.mxu0
        %v3410 = vadd.f32 %v3306, %v3409
        %v3411 = vpop.f32.mrf.mxu0
        %3412 = vmatprep.mubr.bf16.mxu0 0
        %3413 = vmatmul.mubr.bf16.gmra.mxu0 %v3012
        %v3414 = vpop.f32.mrf.mxu0
        %v3415 = vadd.f32 %v3306, %v3414
        %v3416 = vpop.f32.mrf.mxu0
        %v3417 = vpop.f32.mrf.mxu0
        %v3418 = vadd.f32 %v3306, %v3417
        %v3419 = vpop.f32.mrf.mxu0
        %3420 = vdwg.mxu0
        %v3421 = vmax.f32 %v3391, 0.0
        %v3422 = vmax.f32 %v3394, 0.0
        %v3423 = vmax.f32 %v3399, 0.0
        %v3424 = vmax.f32 %v3402, 0.0
        %v3425 = vmax.f32 %v3407, 0.0
        %v3426 = vmax.f32 %v3410, 0.0
        %v3427 = vmax.f32 %v3415, 0.0
        %v3428 = vmax.f32 %v3418, 0.0
        %v3429 = vand.u32 2147483647, %v3391
        %v3430 = vand.u32 2147483647, %v3394
        %v3431 = vand.u32 2147483647, %v3399
        %v3432 = vand.u32 2147483647, %v3402
        %v3433 = vand.u32 2147483647, %v3407
        %v3434 = vand.u32 2147483647, %v3410
        %v3435 = vand.u32 2147483647, %v3415
        %v3436 = vand.u32 2147483647, %v3418
        %v3437 = vsub.f32 0.0, %v3429
        %v3438 = vsub.f32 0.0, %v3430
        %v3439 = vsub.f32 0.0, %v3431
        %v3440 = vsub.f32 0.0, %v3432
        %v3441 = vsub.f32 0.0, %v3433
        %v3442 = vsub.f32 0.0, %v3434
        %v3443 = vsub.f32 0.0, %v3435
        %v3444 = vsub.f32 0.0, %v3436
        %v3445 = vmul.f32 %v3437, 1.442695
        %v3446 = vpow.pop %v3445
        %v3447 = vmul.f32 %v3438, 1.442695
        %v3448 = vpow.pop %v3447
        %v3449 = vmul.f32 %v3439, 1.442695
        %v3450 = vpow.pop %v3449
        %v3451 = vmul.f32 %v3440, 1.442695
        %v3452 = vpow.pop %v3451
        %v3453 = vmul.f32 %v3441, 1.442695
        %v3454 = vpow.pop %v3453
        %v3455 = vmul.f32 %v3442, 1.442695
        %v3456 = vpow.pop %v3455
        %v3457 = vmul.f32 %v3443, 1.442695
        %v3458 = vpow.pop %v3457
        %v3459 = vmul.f32 %v3444, 1.442695
        %v3460 = vpow.pop %v3459
        %v3461 = vadd.f32 %v3446, 1.0
        %v3462 = vlog2.pop %v3461
        %v3463 = vmul.f32 %v3462, 0.6931472
        %v3464 = vmul.f32 -0.5, %v3446
        %v3465 = vadd.f32 %v3464, 1.0
        %v3466 = vmul.f32 %v3465, %v3446
        %v3467 = vand.u32 2147483647, %v3446
        %vm3468 = vcmp.lt.f32.partialorder %v3467, 0.0004427343
        %v3469 = vsel %vm3468, %v3466, %v3463
        %v3470 = vadd.f32 %v3448, 1.0
        %v3471 = vlog2.pop %v3470
        %v3472 = vmul.f32 %v3471, 0.6931472
        %v3473 = vmul.f32 -0.5, %v3448
        %v3474 = vadd.f32 %v3473, 1.0
        %v3475 = vmul.f32 %v3474, %v3448
        %v3476 = vand.u32 2147483647, %v3448
        %vm3477 = vcmp.lt.f32.partialorder %v3476, 0.0004427343
        %v3478 = vsel %vm3477, %v3475, %v3472
        %v3479 = vadd.f32 %v3450, 1.0
        %v3480 = vlog2.pop %v3479
        %v3481 = vmul.f32 %v3480, 0.6931472
        %v3482 = vmul.f32 -0.5, %v3450
        %v3483 = vadd.f32 %v3482, 1.0
        %v3484 = vmul.f32 %v3483, %v3450
        %v3485 = vand.u32 2147483647, %v3450
        %vm3486 = vcmp.lt.f32.partialorder %v3485, 0.0004427343
        %v3487 = vsel %vm3486, %v3484, %v3481
        %v3488 = vadd.f32 %v3452, 1.0
        %v3489 = vlog2.pop %v3488
        %v3490 = vmul.f32 %v3489, 0.6931472
        %v3491 = vmul.f32 -0.5, %v3452
        %v3492 = vadd.f32 %v3491, 1.0
        %v3493 = vmul.f32 %v3492, %v3452
        %v3494 = vand.u32 2147483647, %v3452
        %vm3495 = vcmp.lt.f32.partialorder %v3494, 0.0004427343
        %v3496 = vsel %vm3495, %v3493, %v3490
        %v3497 = vadd.f32 %v3454, 1.0
        %v3498 = vlog2.pop %v3497
        %v3499 = vmul.f32 %v3498, 0.6931472
        %v3500 = vmul.f32 -0.5, %v3454
        %v3501 = vadd.f32 %v3500, 1.0
        %v3502 = vmul.f32 %v3501, %v3454
        %v3503 = vand.u32 2147483647, %v3454
        %vm3504 = vcmp.lt.f32.partialorder %v3503, 0.0004427343
        %v3505 = vsel %vm3504, %v3502, %v3499
        %v3506 = vadd.f32 %v3456, 1.0
        %v3507 = vlog2.pop %v3506
        %v3508 = vmul.f32 %v3507, 0.6931472
        %v3509 = vmul.f32 -0.5, %v3456
        %v3510 = vadd.f32 %v3509, 1.0
        %v3511 = vmul.f32 %v3510, %v3456
        %v3512 = vand.u32 2147483647, %v3456
        %vm3513 = vcmp.lt.f32.partialorder %v3512, 0.0004427343
        %v3514 = vsel %vm3513, %v3511, %v3508
        %v3515 = vadd.f32 %v3458, 1.0
        %v3516 = vlog2.pop %v3515
        %v3517 = vmul.f32 %v3516, 0.6931472
        %v3518 = vmul.f32 -0.5, %v3458
        %v3519 = vadd.f32 %v3518, 1.0
        %v3520 = vmul.f32 %v3519, %v3458
        %v3521 = vand.u32 2147483647, %v3458
        %vm3522 = vcmp.lt.f32.partialorder %v3521, 0.0004427343
        %v3523 = vsel %vm3522, %v3520, %v3517
        %v3524 = vadd.f32 %v3460, 1.0
        %v3525 = vlog2.pop %v3524
        %v3526 = vmul.f32 %v3525, 0.6931472
        %v3527 = vmul.f32 -0.5, %v3460
        %v3528 = vadd.f32 %v3527, 1.0
        %v3529 = vmul.f32 %v3528, %v3460
        %v3530 = vand.u32 2147483647, %v3460
        %vm3531 = vcmp.lt.f32.partialorder %v3530, 0.0004427343
        %v3532 = vsel %vm3531, %v3529, %v3526
        %v3533 = vadd.f32 %v3421, %v3469
        %v3534 = vadd.f32 %v3422, %v3478
        %v3535 = vadd.f32 %v3423, %v3487
        %v3536 = vadd.f32 %v3424, %v3496
        %v3537 = vadd.f32 %v3425, %v3505
        %v3538 = vadd.f32 %v3426, %v3514
        %v3539 = vadd.f32 %v3427, %v3523
        %v3540 = vadd.f32 %v3428, %v3532
        %v3541 = vtanh.pop %v3533
        %v3542 = vtanh.pop %v3534
        %v3543 = vtanh.pop %v3535
        %v3544 = vtanh.pop %v3536
        %v3545 = vtanh.pop %v3537
        %v3546 = vtanh.pop %v3538
        %v3547 = vtanh.pop %v3539
        %v3548 = vtanh.pop %v3540
        %v3549 = vmul.f32 %v3391, %v3541
        %v3550 = vmul.f32 %v3394, %v3542
        %v3551 = vmul.f32 %v3399, %v3543
        %v3552 = vmul.f32 %v3402, %v3544
        %v3553 = vmul.f32 %v3407, %v3545
        %v3554 = vmul.f32 %v3410, %v3546
        %v3555 = vmul.f32 %v3415, %v3547
        %v3556 = vmul.f32 %v3418, %v3548
        %v3557 = vpack.c.bf16 %v3550, %v3549
        %v3558 = vpack.c.bf16 %v3552, %v3551
        %v3559 = vpack.c.bf16 %v3554, %v3553
        %v3560 = vpack.c.bf16 %v3556, %v3555
        %v3561 = vld [vmem:[%s9] sm:$0xf]
        %v3562 = vld [vmem:[%s9 + $0x4] sm:$0xf]
        %v3563 = vld [vmem:[%s9 + $0x8] sm:$0xf]
        %v3564 = vld [vmem:[%s9 + $0xc] sm:$0xf]
        %v3565 = vld [vmem:[%s9 + $0x10] sm:$0xf]
        %v3566 = vld [vmem:[%s9 + $0x14] sm:$0xf]
        %v3567 = vld [vmem:[%s9 + $0x18] sm:$0xf]
        %v3568 = vld [vmem:[%s9 + $0x1c] sm:$0xf]
        %v3569 = vld [vmem:[%s10] sm:$0x1]
        %v3571 = vlaneseq
        %v3572 = vshrl.u32 %v3571, 7
        %v3573 = vsub.s32 0, %v3572
        %v3574 = vrot.slane %v3569, %v3573
        %v3584 = vunpack.c.l.b16 %v3561
        %v3585 = vunpack.c.l.b16 %v3562
        %v3586 = vunpack.c.l.b16 %v3563
        %v3587 = vunpack.c.l.b16 %v3564
        %v3588 = vunpack.c.l.b16 %v3565
        %v3589 = vunpack.c.l.b16 %v3566
        %v3590 = vunpack.c.l.b16 %v3567
        %v3591 = vunpack.c.l.b16 %v3568
        %v3592 = vpack.c.b16 %v3585, %v3584
        %v3593 = vpack.c.b16 %v3587, %v3586
        %v3594 = vpack.c.b16 %v3589, %v3588
        %v3595 = vpack.c.b16 %v3591, %v3590
        %v3601 = vsel %vm1027, %v3557, 0
        %v3604 = vsel %vm1027, %v3558, 0
        %v3607 = vsel %vm1027, %v3559, 0
        %v3610 = vsel %vm1027, %v3560, 0
        %3612 = vmatprep.subr.bf16.mxu0 0
        %3613 = vmatpush1.bf16.msra.mxu0 0
        %3614 = vmatprep.subr.bf16.mxu0 0
        %3615 = vmatpush1.bf16.msra.mxu0 0
        %3616 = vmatprep.subr.bf16.mxu0 0
        %3617 = vmatpush1.bf16.msra.mxu0 0
        %3618 = vmatprep.subr.bf16.mxu0 0
        %3619 = vmatpush1.bf16.msra.mxu0 0
        %3620 = vmatprep.subr.bf16.mxu0 0
        %3621 = vmatpush1.bf16.msra.mxu0 %v3595
        %3622 = vmatprep.subr.bf16.mxu0 0
        %3623 = vmatpush1.bf16.msra.mxu0 %v3594
        %3624 = vmatprep.subr.bf16.mxu0 0
        %3625 = vmatpush1.bf16.msra.mxu0 %v3593
        %3626 = vmatprep.subr.bf16.mxu0 0
        %3627 = vmatpush1.bf16.msra.mxu0 %v3592
        %3628 = vmatprep.subr.bf16.mxu0 0
        %3629 = vmatpush2.bf16.msra.mxu0 0
        %3630 = vmatprep.subr.bf16.mxu0 0
        %3631 = vmatpush2.bf16.msra.mxu0 0
        %3632 = vmatprep.subr.bf16.mxu0 0
        %3633 = vmatpush2.bf16.msra.mxu0 0
        %3634 = vmatprep.subr.bf16.mxu0 0
        %3635 = vmatpush2.bf16.msra.mxu0 0
        %3636 = vmatprep.subr.bf16.mxu0 0
        %3637 = vmatpush2.bf16.msra.mxu0 0
        %3638 = vmatprep.subr.bf16.mxu0 0
        %3639 = vmatpush2.bf16.msra.mxu0 0
        %3640 = vmatprep.subr.bf16.mxu0 0
        %3641 = vmatpush2.bf16.msra.mxu0 0
        %3642 = vmatprep.subr.bf16.mxu0 0
        %3643 = vmatpush2.bf16.msra.mxu0 0
        %3644 = vmatprep.mubr.bf16.mxu0 0
        %3645 = vmatmul.mubr.bf16.gmra.mxu0 %v3601
        %v3646 = vpop.f32.mrf.mxu0
        %v3647 = vadd.f32 %v3574, %v3646
        %v3648 = vpop.f32.mrf.mxu0
        %v3649 = vpop.f32.mrf.mxu0
        %v3650 = vadd.f32 %v3574, %v3649
        %v3651 = vpop.f32.mrf.mxu0
        %3652 = vmatprep.mubr.bf16.mxu0 0
        %3653 = vmatmul.mubr.bf16.gmra.mxu0 %v3604
        %v3654 = vpop.f32.mrf.mxu0
        %v3655 = vadd.f32 %v3574, %v3654
        %v3656 = vpop.f32.mrf.mxu0
        %v3657 = vpop.f32.mrf.mxu0
        %v3658 = vadd.f32 %v3574, %v3657
        %v3659 = vpop.f32.mrf.mxu0
        %3660 = vmatprep.mubr.bf16.mxu0 0
        %3661 = vmatmul.mubr.bf16.gmra.mxu0 %v3607
        %v3662 = vpop.f32.mrf.mxu0
        %v3663 = vadd.f32 %v3574, %v3662
        %v3664 = vpop.f32.mrf.mxu0
        %v3665 = vpop.f32.mrf.mxu0
        %v3666 = vadd.f32 %v3574, %v3665
        %v3667 = vpop.f32.mrf.mxu0
        %3668 = vmatprep.mubr.bf16.mxu0 0
        %3669 = vmatmul.mubr.bf16.gmra.mxu0 %v3610
        %v3670 = vpop.f32.mrf.mxu0
        %v3671 = vadd.f32 %v3574, %v3670
        %v3672 = vpop.f32.mrf.mxu0
        %v3673 = vpop.f32.mrf.mxu0
        %v3674 = vadd.f32 %v3574, %v3673
        %v3675 = vpop.f32.mrf.mxu0
        %3676 = vdwg.mxu0
        %v3677 = vmax.f32 %v3647, 0.0
        %v3678 = vmax.f32 %v3650, 0.0
        %v3679 = vmax.f32 %v3655, 0.0
        %v3680 = vmax.f32 %v3658, 0.0
        %v3681 = vmax.f32 %v3663, 0.0
        %v3682 = vmax.f32 %v3666, 0.0
        %v3683 = vmax.f32 %v3671, 0.0
        %v3684 = vmax.f32 %v3674, 0.0
        %v3685 = vand.u32 2147483647, %v3647
        %v3686 = vand.u32 2147483647, %v3650
        %v3687 = vand.u32 2147483647, %v3655
        %v3688 = vand.u32 2147483647, %v3658
        %v3689 = vand.u32 2147483647, %v3663
        %v3690 = vand.u32 2147483647, %v3666
        %v3691 = vand.u32 2147483647, %v3671
        %v3692 = vand.u32 2147483647, %v3674
        %v3693 = vsub.f32 0.0, %v3685
        %v3694 = vsub.f32 0.0, %v3686
        %v3695 = vsub.f32 0.0, %v3687
        %v3696 = vsub.f32 0.0, %v3688
        %v3697 = vsub.f32 0.0, %v3689
        %v3698 = vsub.f32 0.0, %v3690
        %v3699 = vsub.f32 0.0, %v3691
        %v3700 = vsub.f32 0.0, %v3692
        %v3701 = vmul.f32 %v3693, 1.442695
        %v3702 = vpow.pop %v3701
        %v3703 = vmul.f32 %v3694, 1.442695
        %v3704 = vpow.pop %v3703
        %v3705 = vmul.f32 %v3695, 1.442695
        %v3706 = vpow.pop %v3705
        %v3707 = vmul.f32 %v3696, 1.442695
        %v3708 = vpow.pop %v3707
        %v3709 = vmul.f32 %v3697, 1.442695
        %v3710 = vpow.pop %v3709
        %v3711 = vmul.f32 %v3698, 1.442695
        %v3712 = vpow.pop %v3711
        %v3713 = vmul.f32 %v3699, 1.442695
        %v3714 = vpow.pop %v3713
        %v3715 = vmul.f32 %v3700, 1.442695
        %v3716 = vpow.pop %v3715
        %v3717 = vadd.f32 %v3702, 1.0
        %v3718 = vlog2.pop %v3717
        %v3719 = vmul.f32 %v3718, 0.6931472
        %v3720 = vmul.f32 -0.5, %v3702
        %v3721 = vadd.f32 %v3720, 1.0
        %v3722 = vmul.f32 %v3721, %v3702
        %v3723 = vand.u32 2147483647, %v3702
        %vm3724 = vcmp.lt.f32.partialorder %v3723, 0.0004427343
        %v3725 = vsel %vm3724, %v3722, %v3719
        %v3726 = vadd.f32 %v3704, 1.0
        %v3727 = vlog2.pop %v3726
        %v3728 = vmul.f32 %v3727, 0.6931472
        %v3729 = vmul.f32 -0.5, %v3704
        %v3730 = vadd.f32 %v3729, 1.0
        %v3731 = vmul.f32 %v3730, %v3704
        %v3732 = vand.u32 2147483647, %v3704
        %vm3733 = vcmp.lt.f32.partialorder %v3732, 0.0004427343
        %v3734 = vsel %vm3733, %v3731, %v3728
        %v3735 = vadd.f32 %v3706, 1.0
        %v3736 = vlog2.pop %v3735
        %v3737 = vmul.f32 %v3736, 0.6931472
        %v3738 = vmul.f32 -0.5, %v3706
        %v3739 = vadd.f32 %v3738, 1.0
        %v3740 = vmul.f32 %v3739, %v3706
        %v3741 = vand.u32 2147483647, %v3706
        %vm3742 = vcmp.lt.f32.partialorder %v3741, 0.0004427343
        %v3743 = vsel %vm3742, %v3740, %v3737
        %v3744 = vadd.f32 %v3708, 1.0
        %v3745 = vlog2.pop %v3744
        %v3746 = vmul.f32 %v3745, 0.6931472
        %v3747 = vmul.f32 -0.5, %v3708
        %v3748 = vadd.f32 %v3747, 1.0
        %v3749 = vmul.f32 %v3748, %v3708
        %v3750 = vand.u32 2147483647, %v3708
        %vm3751 = vcmp.lt.f32.partialorder %v3750, 0.0004427343
        %v3752 = vsel %vm3751, %v3749, %v3746
        %v3753 = vadd.f32 %v3710, 1.0
        %v3754 = vlog2.pop %v3753
        %v3755 = vmul.f32 %v3754, 0.6931472
        %v3756 = vmul.f32 -0.5, %v3710
        %v3757 = vadd.f32 %v3756, 1.0
        %v3758 = vmul.f32 %v3757, %v3710
        %v3759 = vand.u32 2147483647, %v3710
        %vm3760 = vcmp.lt.f32.partialorder %v3759, 0.0004427343
        %v3761 = vsel %vm3760, %v3758, %v3755
        %v3762 = vadd.f32 %v3712, 1.0
        %v3763 = vlog2.pop %v3762
        %v3764 = vmul.f32 %v3763, 0.6931472
        %v3765 = vmul.f32 -0.5, %v3712
        %v3766 = vadd.f32 %v3765, 1.0
        %v3767 = vmul.f32 %v3766, %v3712
        %v3768 = vand.u32 2147483647, %v3712
        %vm3769 = vcmp.lt.f32.partialorder %v3768, 0.0004427343
        %v3770 = vsel %vm3769, %v3767, %v3764
        %v3771 = vadd.f32 %v3714, 1.0
        %v3772 = vlog2.pop %v3771
        %v3773 = vmul.f32 %v3772, 0.6931472
        %v3774 = vmul.f32 -0.5, %v3714
        %v3775 = vadd.f32 %v3774, 1.0
        %v3776 = vmul.f32 %v3775, %v3714
        %v3777 = vand.u32 2147483647, %v3714
        %vm3778 = vcmp.lt.f32.partialorder %v3777, 0.0004427343
        %v3779 = vsel %vm3778, %v3776, %v3773
        %v3780 = vadd.f32 %v3716, 1.0
        %v3781 = vlog2.pop %v3780
        %v3782 = vmul.f32 %v3781, 0.6931472
        %v3783 = vmul.f32 -0.5, %v3716
        %v3784 = vadd.f32 %v3783, 1.0
        %v3785 = vmul.f32 %v3784, %v3716
        %v3786 = vand.u32 2147483647, %v3716
        %vm3787 = vcmp.lt.f32.partialorder %v3786, 0.0004427343
        %v3788 = vsel %vm3787, %v3785, %v3782
        %v3789 = vadd.f32 %v3677, %v3725
        %v3790 = vadd.f32 %v3678, %v3734
        %v3791 = vadd.f32 %v3679, %v3743
        %v3792 = vadd.f32 %v3680, %v3752
        %v3793 = vadd.f32 %v3681, %v3761
        %v3794 = vadd.f32 %v3682, %v3770
        %v3795 = vadd.f32 %v3683, %v3779
        %v3796 = vadd.f32 %v3684, %v3788
        %v3797 = vtanh.pop %v3789
        %v3798 = vtanh.pop %v3790
        %v3799 = vtanh.pop %v3791
        %v3800 = vtanh.pop %v3792
        %v3801 = vtanh.pop %v3793
        %v3802 = vtanh.pop %v3794
        %v3803 = vtanh.pop %v3795
        %v3804 = vtanh.pop %v3796
        %v3805 = vmul.f32 %v3647, %v3797
        %v3806 = vmul.f32 %v3650, %v3798
        %v3807 = vmul.f32 %v3655, %v3799
        %v3808 = vmul.f32 %v3658, %v3800
        %v3809 = vmul.f32 %v3663, %v3801
        %v3810 = vmul.f32 %v3666, %v3802
        %v3811 = vmul.f32 %v3671, %v3803
        %v3812 = vmul.f32 %v3674, %v3804
        %v3813 = vpack.c.bf16 %v3806, %v3805
        %v3814 = vpack.c.bf16 %v3808, %v3807
        %v3815 = vpack.c.bf16 %v3810, %v3809
        %v3816 = vpack.c.bf16 %v3812, %v3811
        %v3817 = vld [vmem:[#allocation7] sm:$0xf]
        %v3818 = vld [vmem:[#allocation7 + $0x4] sm:$0xf]
        %v3819 = vld [vmem:[#allocation7 + $0x8] sm:$0xf]
        %v3820 = vld [vmem:[#allocation7 + $0xc] sm:$0xf]
        %v3821 = vld [vmem:[#allocation7 + $0x10] sm:$0xf]
        %v3822 = vld [vmem:[#allocation7 + $0x14] sm:$0xf]
        %v3823 = vld [vmem:[#allocation7 + $0x18] sm:$0xf]
        %v3824 = vld [vmem:[#allocation7 + $0x1c] sm:$0xf]
        %v3833 = vunpack.c.l.b16 %v3817
        %v3834 = vunpack.c.l.b16 %v3818
        %v3835 = vunpack.c.l.b16 %v3819
        %v3836 = vunpack.c.l.b16 %v3820
        %v3837 = vunpack.c.l.b16 %v3821
        %v3838 = vunpack.c.l.b16 %v3822
        %v3839 = vunpack.c.l.b16 %v3823
        %v3840 = vunpack.c.l.b16 %v3824
        %v3841 = vpack.c.b16 %v3834, %v3833
        %v3842 = vpack.c.b16 %v3836, %v3835
        %v3843 = vpack.c.b16 %v3838, %v3837
        %v3844 = vpack.c.b16 %v3840, %v3839
        %v3846 = vsel %vm1027, %v3841, 0
        %v3849 = vsel %vm1027, %v3842, 0
        %v3852 = vsel %vm1027, %v3843, 0
        %v3855 = vsel %vm1027, %v3844, 0
        %3857 = vmatprep.subr.bf16.mxu0 0
        %3858 = vmatpush1.bf16.msra.mxu0 0
        %3859 = vmatprep.subr.bf16.mxu0 0
        %3860 = vmatpush1.bf16.msra.mxu0 0
        %3861 = vmatprep.subr.bf16.mxu0 0
        %3862 = vmatpush1.bf16.msra.mxu0 0
        %3863 = vmatprep.subr.bf16.mxu0 0
        %3864 = vmatpush1.bf16.msra.mxu0 0
        %3865 = vmatprep.subr.bf16.mxu0 0
        %3866 = vmatpush1.bf16.msra.mxu0 %v3816
        %3867 = vmatprep.subr.bf16.mxu0 0
        %3868 = vmatpush1.bf16.msra.mxu0 %v3815
        %3869 = vmatprep.subr.bf16.mxu0 0
        %3870 = vmatpush1.bf16.msra.mxu0 %v3814
        %3871 = vmatprep.subr.bf16.mxu0 0
        %3872 = vmatpush1.bf16.msra.mxu0 %v3813
        %3873 = vmatprep.subr.bf16.mxu0 0
        %3874 = vmatpush2.bf16.msra.mxu0 0
        %3875 = vmatprep.subr.bf16.mxu0 0
        %3876 = vmatpush2.bf16.msra.mxu0 0
        %3877 = vmatprep.subr.bf16.mxu0 0
        %3878 = vmatpush2.bf16.msra.mxu0 0
        %3879 = vmatprep.subr.bf16.mxu0 0
        %3880 = vmatpush2.bf16.msra.mxu0 0
        %3881 = vmatprep.subr.bf16.mxu0 0
        %3882 = vmatpush2.bf16.msra.mxu0 0
        %3883 = vmatprep.subr.bf16.mxu0 0
        %3884 = vmatpush2.bf16.msra.mxu0 0
        %3885 = vmatprep.subr.bf16.mxu0 0
        %3886 = vmatpush2.bf16.msra.mxu0 0
        %3887 = vmatprep.subr.bf16.mxu0 0
        %3888 = vmatpush2.bf16.msra.mxu0 0
        %3889 = vmatprep.mubr.bf16.mxu0 0
        %3890 = vmatmul.mubr.bf16.gmra.mxu0 %v3846
        %v3891 = vpop.f32.mrf.mxu0
        %v3892 = vadd.f32 0.0, %v3891
        %v3893 = vpop.f32.mrf.mxu0
        %v3894 = vpop.f32.mrf.mxu0
        %v3895 = vadd.f32 0.0, %v3894
        %v3896 = vpop.f32.mrf.mxu0
        %3897 = vmatprep.mubr.bf16.mxu0 0
        %3898 = vmatmul.mubr.bf16.gmra.mxu0 %v3849
        %v3899 = vpop.f32.mrf.mxu0
        %v3900 = vadd.f32 0.0, %v3899
        %v3901 = vpop.f32.mrf.mxu0
        %v3902 = vpop.f32.mrf.mxu0
        %v3903 = vadd.f32 0.0, %v3902
        %v3904 = vpop.f32.mrf.mxu0
        %3905 = vmatprep.mubr.bf16.mxu0 0
        %3906 = vmatmul.mubr.bf16.gmra.mxu0 %v3852
        %v3907 = vpop.f32.mrf.mxu0
        %v3908 = vadd.f32 0.0, %v3907
        %v3909 = vpop.f32.mrf.mxu0
        %v3910 = vpop.f32.mrf.mxu0
        %v3911 = vadd.f32 0.0, %v3910
        %v3912 = vpop.f32.mrf.mxu0
        %3913 = vmatprep.mubr.bf16.mxu0 0
        %3914 = vmatmul.mubr.bf16.gmra.mxu0 %v3855
        %v3915 = vpop.f32.mrf.mxu0
        %v3916 = vadd.f32 0.0, %v3915
        %v3917 = vpop.f32.mrf.mxu0
        %v3918 = vpop.f32.mrf.mxu0
        %v3919 = vadd.f32 0.0, %v3918
        %v3920 = vpop.f32.mrf.mxu0
        %3921 = vdwg.mxu0
        %v3922 = vpack.c.bf16 %v3895, %v3892
        %v3923 = vpack.c.bf16 %v3903, %v3900
        %v3924 = vpack.c.bf16 %v3911, %v3908
        %v3925 = vpack.c.bf16 %v3919, %v3916
        %v3926 = vld [vmem:[%s11] sm:$0xf]
        %v3927 = vld [vmem:[%s11 + $0x4] sm:$0xf]
        %v3928 = vld [vmem:[%s11 + $0x8] sm:$0xf]
        %v3929 = vld [vmem:[%s11 + $0xc] sm:$0xf]
        %v3930 = vld [vmem:[%s11 + $0x10] sm:$0xf]
        %v3931 = vld [vmem:[%s11 + $0x14] sm:$0xf]
        %v3932 = vld [vmem:[%s11 + $0x18] sm:$0xf]
        %v3933 = vld [vmem:[%s11 + $0x1c] sm:$0xf]
        %s3934 = scalar_lea.vmem [#allocation7], 32
        %v3935 = vld [vmem:[%s3934] sm:$0xf]
        %v3936 = vld [vmem:[%s3934 + $0x4] sm:$0xf]
        %v3937 = vld [vmem:[%s3934 + $0x8] sm:$0xf]
        %v3938 = vld [vmem:[%s3934 + $0xc] sm:$0xf]
        %v3939 = vld [vmem:[%s3934 + $0x10] sm:$0xf]
        %v3940 = vld [vmem:[%s3934 + $0x14] sm:$0xf]
        %v3941 = vld [vmem:[%s3934 + $0x18] sm:$0xf]
        %v3942 = vld [vmem:[%s3934 + $0x1c] sm:$0xf]
        %v3951 = vunpack.c.l.b16 %v3935
        %v3952 = vunpack.c.l.b16 %v3936
        %v3953 = vunpack.c.l.b16 %v3937
        %v3954 = vunpack.c.l.b16 %v3938
        %v3955 = vunpack.c.l.b16 %v3939
        %v3956 = vunpack.c.l.b16 %v3940
        %v3957 = vunpack.c.l.b16 %v3941
        %v3958 = vunpack.c.l.b16 %v3942
        %v3959 = vpack.c.b16 %v3952, %v3951
        %v3960 = vpack.c.b16 %v3954, %v3953
        %v3961 = vpack.c.b16 %v3956, %v3955
        %v3962 = vpack.c.b16 %v3958, %v3957
        %v3964 = vsel %vm1027, %v3959, 0
        %v3967 = vsel %vm1027, %v3960, 0
        %v3970 = vsel %vm1027, %v3961, 0
        %v3973 = vsel %vm1027, %v3962, 0
        %3975 = vmatprep.subr.bf16.mxu0 0
        %3976 = vmatpush1.bf16.msra.mxu0 0
        %3977 = vmatprep.subr.bf16.mxu0 0
        %3978 = vmatpush1.bf16.msra.mxu0 0
        %3979 = vmatprep.subr.bf16.mxu0 0
        %3980 = vmatpush1.bf16.msra.mxu0 0
        %3981 = vmatprep.subr.bf16.mxu0 0
        %3982 = vmatpush1.bf16.msra.mxu0 0
        %3983 = vmatprep.subr.bf16.mxu0 0
        %3984 = vmatpush1.bf16.msra.mxu0 %v3816
        %3985 = vmatprep.subr.bf16.mxu0 0
        %3986 = vmatpush1.bf16.msra.mxu0 %v3815
        %3987 = vmatprep.subr.bf16.mxu0 0
        %3988 = vmatpush1.bf16.msra.mxu0 %v3814
        %3989 = vmatprep.subr.bf16.mxu0 0
        %3990 = vmatpush1.bf16.msra.mxu0 %v3813
        %3991 = vmatprep.subr.bf16.mxu0 0
        %3992 = vmatpush2.bf16.msra.mxu0 0
        %3993 = vmatprep.subr.bf16.mxu0 0
        %3994 = vmatpush2.bf16.msra.mxu0 0
        %3995 = vmatprep.subr.bf16.mxu0 0
        %3996 = vmatpush2.bf16.msra.mxu0 0
        %3997 = vmatprep.subr.bf16.mxu0 0
        %3998 = vmatpush2.bf16.msra.mxu0 0
        %3999 = vmatprep.subr.bf16.mxu0 0
        %4000 = vmatpush2.bf16.msra.mxu0 0
        %4001 = vmatprep.subr.bf16.mxu0 0
        %4002 = vmatpush2.bf16.msra.mxu0 0
        %4003 = vmatprep.subr.bf16.mxu0 0
        %4004 = vmatpush2.bf16.msra.mxu0 0
        %4005 = vmatprep.subr.bf16.mxu0 0
        %4006 = vmatpush2.bf16.msra.mxu0 0
        %4007 = vmatprep.mubr.bf16.mxu0 0
        %4008 = vmatmul.mubr.bf16.gmra.mxu0 %v3964
        %v4009 = vpop.f32.mrf.mxu0
        %v4010 = vadd.f32 0.0, %v4009
        %v4011 = vpop.f32.mrf.mxu0
        %v4012 = vpop.f32.mrf.mxu0
        %v4013 = vadd.f32 0.0, %v4012
        %v4014 = vpop.f32.mrf.mxu0
        %4015 = vmatprep.mubr.bf16.mxu0 0
        %4016 = vmatmul.mubr.bf16.gmra.mxu0 %v3967
        %v4017 = vpop.f32.mrf.mxu0
        %v4018 = vadd.f32 0.0, %v4017
        %v4019 = vpop.f32.mrf.mxu0
        %v4020 = vpop.f32.mrf.mxu0
        %v4021 = vadd.f32 0.0, %v4020
        %v4022 = vpop.f32.mrf.mxu0
        %4023 = vmatprep.mubr.bf16.mxu0 0
        %4024 = vmatmul.mubr.bf16.gmra.mxu0 %v3970
        %v4025 = vpop.f32.mrf.mxu0
        %v4026 = vadd.f32 0.0, %v4025
        %v4027 = vpop.f32.mrf.mxu0
        %v4028 = vpop.f32.mrf.mxu0
        %v4029 = vadd.f32 0.0, %v4028
        %v4030 = vpop.f32.mrf.mxu0
        %4031 = vmatprep.mubr.bf16.mxu0 0
        %4032 = vmatmul.mubr.bf16.gmra.mxu0 %v3973
        %v4033 = vpop.f32.mrf.mxu0
        %v4034 = vadd.f32 0.0, %v4033
        %v4035 = vpop.f32.mrf.mxu0
        %v4036 = vpop.f32.mrf.mxu0
        %v4037 = vadd.f32 0.0, %v4036
        %v4038 = vpop.f32.mrf.mxu0
        %4039 = vdwg.mxu0
        %v4040 = vpack.c.bf16 %v4013, %v4010
        %v4041 = vpack.c.bf16 %v4021, %v4018
        %v4042 = vpack.c.bf16 %v4029, %v4026
        %v4043 = vpack.c.bf16 %v4037, %v4034
        %s4044 = scalar_lea.vmem %s11, 32
        %v4045 = vld [vmem:[%s4044] sm:$0xf]
        %v4046 = vld [vmem:[%s4044 + $0x4] sm:$0xf]
        %v4047 = vld [vmem:[%s4044 + $0x8] sm:$0xf]
        %v4048 = vld [vmem:[%s4044 + $0xc] sm:$0xf]
        %v4049 = vld [vmem:[%s4044 + $0x10] sm:$0xf]
        %v4050 = vld [vmem:[%s4044 + $0x14] sm:$0xf]
        %v4051 = vld [vmem:[%s4044 + $0x18] sm:$0xf]
        %v4052 = vld [vmem:[%s4044 + $0x1c] sm:$0xf]
        %v4061 = vunpack.c.l.b16 %v4045
        %v4062 = vunpack.c.l.b16 %v4046
        %v4063 = vunpack.c.l.b16 %v4047
        %v4064 = vunpack.c.l.b16 %v4048
        %v4065 = vunpack.c.l.b16 %v4049
        %v4066 = vunpack.c.l.b16 %v4050
        %v4067 = vunpack.c.l.b16 %v4051
        %v4068 = vunpack.c.l.b16 %v4052
        %v4069 = vpack.c.b16 %v4062, %v4061
        %v4070 = vpack.c.b16 %v4064, %v4063
        %v4071 = vpack.c.b16 %v4066, %v4065
        %v4072 = vpack.c.b16 %v4068, %v4067
        %v4078 = vsel %vm1027, %v4040, 0
        %v4081 = vsel %vm1027, %v4041, 0
        %v4084 = vsel %vm1027, %v4042, 0
        %v4087 = vsel %vm1027, %v4043, 0
        %4089 = vmatprep.subr.bf16.mxu0 0
        %4090 = vmatpush1.bf16.msra.mxu0 0
        %4091 = vmatprep.subr.bf16.mxu0 0
        %4092 = vmatpush1.bf16.msra.mxu0 0
        %4093 = vmatprep.subr.bf16.mxu0 0
        %4094 = vmatpush1.bf16.msra.mxu0 0
        %4095 = vmatprep.subr.bf16.mxu0 0
        %4096 = vmatpush1.bf16.msra.mxu0 0
        %4097 = vmatprep.subr.bf16.mxu0 0
        %4098 = vmatpush1.bf16.msra.mxu0 %v4072
        %4099 = vmatprep.subr.bf16.mxu0 0
        %4100 = vmatpush1.bf16.msra.mxu0 %v4071
        %4101 = vmatprep.subr.bf16.mxu0 0
        %4102 = vmatpush1.bf16.msra.mxu0 %v4070
        %4103 = vmatprep.subr.bf16.mxu0 0
        %4104 = vmatpush1.bf16.msra.mxu0 %v4069
        %4105 = vmatprep.subr.bf16.mxu0 0
        %4106 = vmatpush2.bf16.msra.mxu0 0
        %4107 = vmatprep.subr.bf16.mxu0 0
        %4108 = vmatpush2.bf16.msra.mxu0 0
        %4109 = vmatprep.subr.bf16.mxu0 0
        %4110 = vmatpush2.bf16.msra.mxu0 0
        %4111 = vmatprep.subr.bf16.mxu0 0
        %4112 = vmatpush2.bf16.msra.mxu0 0
        %4113 = vmatprep.subr.bf16.mxu0 0
        %4114 = vmatpush2.bf16.msra.mxu0 0
        %4115 = vmatprep.subr.bf16.mxu0 0
        %4116 = vmatpush2.bf16.msra.mxu0 0
        %4117 = vmatprep.subr.bf16.mxu0 0
        %4118 = vmatpush2.bf16.msra.mxu0 0
        %4119 = vmatprep.subr.bf16.mxu0 0
        %4120 = vmatpush2.bf16.msra.mxu0 0
        %4121 = vmatprep.mubr.bf16.mxu0 0
        %4122 = vmatmul.mubr.bf16.gmra.mxu0 %v4078
        %v4123 = vpop.f32.mrf.mxu0
        %v4124 = vadd.f32 0.0, %v4123
        %v4125 = vpop.f32.mrf.mxu0
        %v4126 = vpop.f32.mrf.mxu0
        %v4127 = vadd.f32 0.0, %v4126
        %v4128 = vpop.f32.mrf.mxu0
        %4129 = vmatprep.mubr.bf16.mxu0 0
        %4130 = vmatmul.mubr.bf16.gmra.mxu0 %v4081
        %v4131 = vpop.f32.mrf.mxu0
        %v4132 = vadd.f32 0.0, %v4131
        %v4133 = vpop.f32.mrf.mxu0
        %v4134 = vpop.f32.mrf.mxu0
        %v4135 = vadd.f32 0.0, %v4134
        %v4136 = vpop.f32.mrf.mxu0
        %4137 = vmatprep.mubr.bf16.mxu0 0
        %4138 = vmatmul.mubr.bf16.gmra.mxu0 %v4084
        %v4139 = vpop.f32.mrf.mxu0
        %v4140 = vadd.f32 0.0, %v4139
        %v4141 = vpop.f32.mrf.mxu0
        %v4142 = vpop.f32.mrf.mxu0
        %v4143 = vadd.f32 0.0, %v4142
        %v4144 = vpop.f32.mrf.mxu0
        %4145 = vmatprep.mubr.bf16.mxu0 0
        %4146 = vmatmul.mubr.bf16.gmra.mxu0 %v4087
        %v4147 = vpop.f32.mrf.mxu0
        %v4148 = vadd.f32 0.0, %v4147
        %v4149 = vpop.f32.mrf.mxu0
        %v4150 = vpop.f32.mrf.mxu0
        %v4151 = vadd.f32 0.0, %v4150
        %v4152 = vpop.f32.mrf.mxu0
        %4153 = vdwg.mxu0
        %v4162 = vunpack.c.l.b16 %v3926
        %v4163 = vunpack.c.l.b16 %v3927
        %v4164 = vunpack.c.l.b16 %v3928
        %v4165 = vunpack.c.l.b16 %v3929
        %v4166 = vunpack.c.l.b16 %v3930
        %v4167 = vunpack.c.l.b16 %v3931
        %v4168 = vunpack.c.l.b16 %v3932
        %v4169 = vunpack.c.l.b16 %v3933
        %v4170 = vpack.c.b16 %v4163, %v4162
        %v4171 = vpack.c.b16 %v4165, %v4164
        %v4172 = vpack.c.b16 %v4167, %v4166
        %v4173 = vpack.c.b16 %v4169, %v4168
        %v4179 = vsel %vm1027, %v3922, 0
        %v4182 = vsel %vm1027, %v3923, 0
        %v4185 = vsel %vm1027, %v3924, 0
        %v4188 = vsel %vm1027, %v3925, 0
        %4190 = vmatprep.subr.bf16.mxu0 0
        %4191 = vmatpush1.bf16.msra.mxu0 0
        %4192 = vmatprep.subr.bf16.mxu0 0
        %4193 = vmatpush1.bf16.msra.mxu0 0
        %4194 = vmatprep.subr.bf16.mxu0 0
        %4195 = vmatpush1.bf16.msra.mxu0 0
        %4196 = vmatprep.subr.bf16.mxu0 0
        %4197 = vmatpush1.bf16.msra.mxu0 0
        %4198 = vmatprep.subr.bf16.mxu0 0
        %4199 = vmatpush1.bf16.msra.mxu0 %v4173
        %4200 = vmatprep.subr.bf16.mxu0 0
        %4201 = vmatpush1.bf16.msra.mxu0 %v4172
        %4202 = vmatprep.subr.bf16.mxu0 0
        %4203 = vmatpush1.bf16.msra.mxu0 %v4171
        %4204 = vmatprep.subr.bf16.mxu0 0
        %4205 = vmatpush1.bf16.msra.mxu0 %v4170
        %4206 = vmatprep.subr.bf16.mxu0 0
        %4207 = vmatpush2.bf16.msra.mxu0 0
        %4208 = vmatprep.subr.bf16.mxu0 0
        %4209 = vmatpush2.bf16.msra.mxu0 0
        %4210 = vmatprep.subr.bf16.mxu0 0
        %4211 = vmatpush2.bf16.msra.mxu0 0
        %4212 = vmatprep.subr.bf16.mxu0 0
        %4213 = vmatpush2.bf16.msra.mxu0 0
        %4214 = vmatprep.subr.bf16.mxu0 0
        %4215 = vmatpush2.bf16.msra.mxu0 0
        %4216 = vmatprep.subr.bf16.mxu0 0
        %4217 = vmatpush2.bf16.msra.mxu0 0
        %4218 = vmatprep.subr.bf16.mxu0 0
        %4219 = vmatpush2.bf16.msra.mxu0 0
        %4220 = vmatprep.subr.bf16.mxu0 0
        %4221 = vmatpush2.bf16.msra.mxu0 0
        %4222 = vmatprep.mubr.bf16.mxu0 0
        %4223 = vmatmul.mubr.bf16.gmra.mxu0 %v4179
        %v4224 = vpop.f32.mrf.mxu0
        %v4225 = vadd.f32 %v4124, %v4224
        %v4226 = vpop.f32.mrf.mxu0
        %v4227 = vpop.f32.mrf.mxu0
        %v4228 = vadd.f32 %v4127, %v4227
        %v4229 = vpop.f32.mrf.mxu0
        %4230 = vmatprep.mubr.bf16.mxu0 0
        %4231 = vmatmul.mubr.bf16.gmra.mxu0 %v4182
        %v4232 = vpop.f32.mrf.mxu0
        %v4233 = vadd.f32 %v4132, %v4232
        %v4234 = vpop.f32.mrf.mxu0
        %v4235 = vpop.f32.mrf.mxu0
        %v4236 = vadd.f32 %v4135, %v4235
        %v4237 = vpop.f32.mrf.mxu0
        %4238 = vmatprep.mubr.bf16.mxu0 0
        %4239 = vmatmul.mubr.bf16.gmra.mxu0 %v4185
        %v4240 = vpop.f32.mrf.mxu0
        %v4241 = vadd.f32 %v4140, %v4240
        %v4242 = vpop.f32.mrf.mxu0
        %v4243 = vpop.f32.mrf.mxu0
        %v4244 = vadd.f32 %v4143, %v4243
        %v4245 = vpop.f32.mrf.mxu0
        %4246 = vmatprep.mubr.bf16.mxu0 0
        %4247 = vmatmul.mubr.bf16.gmra.mxu0 %v4188
        %v4248 = vpop.f32.mrf.mxu0
        %v4249 = vadd.f32 %v4148, %v4248
        %v4250 = vpop.f32.mrf.mxu0
        %v4251 = vpop.f32.mrf.mxu0
        %v4252 = vadd.f32 %v4151, %v4251
        %v4253 = vpop.f32.mrf.mxu0
        %4254 = vdwg.mxu0
        %s4255 = scalar_lea.vmem [#allocation7], 64
        %v4256 = vld [vmem:[%s4255] sm:$0xf]
        %v4257 = vld [vmem:[%s4255 + $0x4] sm:$0xf]
        %v4258 = vld [vmem:[%s4255 + $0x8] sm:$0xf]
        %v4259 = vld [vmem:[%s4255 + $0xc] sm:$0xf]
        %v4260 = vld [vmem:[%s4255 + $0x10] sm:$0xf]
        %v4261 = vld [vmem:[%s4255 + $0x14] sm:$0xf]
        %v4262 = vld [vmem:[%s4255 + $0x18] sm:$0xf]
        %v4263 = vld [vmem:[%s4255 + $0x1c] sm:$0xf]
        %v4272 = vunpack.c.l.b16 %v4256
        %v4273 = vunpack.c.l.b16 %v4257
        %v4274 = vunpack.c.l.b16 %v4258
        %v4275 = vunpack.c.l.b16 %v4259
        %v4276 = vunpack.c.l.b16 %v4260
        %v4277 = vunpack.c.l.b16 %v4261
        %v4278 = vunpack.c.l.b16 %v4262
        %v4279 = vunpack.c.l.b16 %v4263
        %v4280 = vpack.c.b16 %v4273, %v4272
        %v4281 = vpack.c.b16 %v4275, %v4274
        %v4282 = vpack.c.b16 %v4277, %v4276
        %v4283 = vpack.c.b16 %v4279, %v4278
        %v4285 = vsel %vm1027, %v4280, 0
        %v4288 = vsel %vm1027, %v4281, 0
        %v4291 = vsel %vm1027, %v4282, 0
        %v4294 = vsel %vm1027, %v4283, 0
        %4296 = vmatprep.subr.bf16.mxu0 0
        %4297 = vmatpush1.bf16.msra.mxu0 0
        %4298 = vmatprep.subr.bf16.mxu0 0
        %4299 = vmatpush1.bf16.msra.mxu0 0
        %4300 = vmatprep.subr.bf16.mxu0 0
        %4301 = vmatpush1.bf16.msra.mxu0 0
        %4302 = vmatprep.subr.bf16.mxu0 0
        %4303 = vmatpush1.bf16.msra.mxu0 0
        %4304 = vmatprep.subr.bf16.mxu0 0
        %4305 = vmatpush1.bf16.msra.mxu0 %v3816
        %4306 = vmatprep.subr.bf16.mxu0 0
        %4307 = vmatpush1.bf16.msra.mxu0 %v3815
        %4308 = vmatprep.subr.bf16.mxu0 0
        %4309 = vmatpush1.bf16.msra.mxu0 %v3814
        %4310 = vmatprep.subr.bf16.mxu0 0
        %4311 = vmatpush1.bf16.msra.mxu0 %v3813
        %4312 = vmatprep.subr.bf16.mxu0 0
        %4313 = vmatpush2.bf16.msra.mxu0 0
        %4314 = vmatprep.subr.bf16.mxu0 0
        %4315 = vmatpush2.bf16.msra.mxu0 0
        %4316 = vmatprep.subr.bf16.mxu0 0
        %4317 = vmatpush2.bf16.msra.mxu0 0
        %4318 = vmatprep.subr.bf16.mxu0 0
        %4319 = vmatpush2.bf16.msra.mxu0 0
        %4320 = vmatprep.subr.bf16.mxu0 0
        %4321 = vmatpush2.bf16.msra.mxu0 0
        %4322 = vmatprep.subr.bf16.mxu0 0
        %4323 = vmatpush2.bf16.msra.mxu0 0
        %4324 = vmatprep.subr.bf16.mxu0 0
        %4325 = vmatpush2.bf16.msra.mxu0 0
        %4326 = vmatprep.subr.bf16.mxu0 0
        %4327 = vmatpush2.bf16.msra.mxu0 0
        %4328 = vmatprep.mubr.bf16.mxu0 0
        %4329 = vmatmul.mubr.bf16.gmra.mxu0 %v4285
        %v4330 = vpop.f32.mrf.mxu0
        %v4331 = vadd.f32 0.0, %v4330
        %v4332 = vpop.f32.mrf.mxu0
        %v4333 = vpop.f32.mrf.mxu0
        %v4334 = vadd.f32 0.0, %v4333
        %v4335 = vpop.f32.mrf.mxu0
        %4336 = vmatprep.mubr.bf16.mxu0 0
        %4337 = vmatmul.mubr.bf16.gmra.mxu0 %v4288
        %v4338 = vpop.f32.mrf.mxu0
        %v4339 = vadd.f32 0.0, %v4338
        %v4340 = vpop.f32.mrf.mxu0
        %v4341 = vpop.f32.mrf.mxu0
        %v4342 = vadd.f32 0.0, %v4341
        %v4343 = vpop.f32.mrf.mxu0
        %4344 = vmatprep.mubr.bf16.mxu0 0
        %4345 = vmatmul.mubr.bf16.gmra.mxu0 %v4291
        %v4346 = vpop.f32.mrf.mxu0
        %v4347 = vadd.f32 0.0, %v4346
        %v4348 = vpop.f32.mrf.mxu0
        %v4349 = vpop.f32.mrf.mxu0
        %v4350 = vadd.f32 0.0, %v4349
        %v4351 = vpop.f32.mrf.mxu0
        %4352 = vmatprep.mubr.bf16.mxu0 0
        %4353 = vmatmul.mubr.bf16.gmra.mxu0 %v4294
        %v4354 = vpop.f32.mrf.mxu0
        %v4355 = vadd.f32 0.0, %v4354
        %v4356 = vpop.f32.mrf.mxu0
        %v4357 = vpop.f32.mrf.mxu0
        %v4358 = vadd.f32 0.0, %v4357
        %v4359 = vpop.f32.mrf.mxu0
        %4360 = vdwg.mxu0
        %v4361 = vpack.c.bf16 %v4334, %v4331
        %v4362 = vpack.c.bf16 %v4342, %v4339
        %v4363 = vpack.c.bf16 %v4350, %v4347
        %v4364 = vpack.c.bf16 %v4358, %v4355
        %s4365 = scalar_lea.vmem %s11, 64
        %v4366 = vld [vmem:[%s4365] sm:$0xf]
        %v4367 = vld [vmem:[%s4365 + $0x4] sm:$0xf]
        %v4368 = vld [vmem:[%s4365 + $0x8] sm:$0xf]
        %v4369 = vld [vmem:[%s4365 + $0xc] sm:$0xf]
        %v4370 = vld [vmem:[%s4365 + $0x10] sm:$0xf]
        %v4371 = vld [vmem:[%s4365 + $0x14] sm:$0xf]
        %v4372 = vld [vmem:[%s4365 + $0x18] sm:$0xf]
        %v4373 = vld [vmem:[%s4365 + $0x1c] sm:$0xf]
        %v4382 = vunpack.c.l.b16 %v4366
        %v4383 = vunpack.c.l.b16 %v4367
        %v4384 = vunpack.c.l.b16 %v4368
        %v4385 = vunpack.c.l.b16 %v4369
        %v4386 = vunpack.c.l.b16 %v4370
        %v4387 = vunpack.c.l.b16 %v4371
        %v4388 = vunpack.c.l.b16 %v4372
        %v4389 = vunpack.c.l.b16 %v4373
        %v4390 = vpack.c.b16 %v4383, %v4382
        %v4391 = vpack.c.b16 %v4385, %v4384
        %v4392 = vpack.c.b16 %v4387, %v4386
        %v4393 = vpack.c.b16 %v4389, %v4388
        %v4399 = vsel %vm1027, %v4361, 0
        %v4402 = vsel %vm1027, %v4362, 0
        %v4405 = vsel %vm1027, %v4363, 0
        %v4408 = vsel %vm1027, %v4364, 0
        %4410 = vmatprep.subr.bf16.mxu0 0
        %4411 = vmatpush1.bf16.msra.mxu0 0
        %4412 = vmatprep.subr.bf16.mxu0 0
        %4413 = vmatpush1.bf16.msra.mxu0 0
        %4414 = vmatprep.subr.bf16.mxu0 0
        %4415 = vmatpush1.bf16.msra.mxu0 0
        %4416 = vmatprep.subr.bf16.mxu0 0
        %4417 = vmatpush1.bf16.msra.mxu0 0
        %4418 = vmatprep.subr.bf16.mxu0 0
        %4419 = vmatpush1.bf16.msra.mxu0 %v4393
        %4420 = vmatprep.subr.bf16.mxu0 0
        %4421 = vmatpush1.bf16.msra.mxu0 %v4392
        %4422 = vmatprep.subr.bf16.mxu0 0
        %4423 = vmatpush1.bf16.msra.mxu0 %v4391
        %4424 = vmatprep.subr.bf16.mxu0 0
        %4425 = vmatpush1.bf16.msra.mxu0 %v4390
        %4426 = vmatprep.subr.bf16.mxu0 0
        %4427 = vmatpush2.bf16.msra.mxu0 0
        %4428 = vmatprep.subr.bf16.mxu0 0
        %4429 = vmatpush2.bf16.msra.mxu0 0
        %4430 = vmatprep.subr.bf16.mxu0 0
        %4431 = vmatpush2.bf16.msra.mxu0 0
        %4432 = vmatprep.subr.bf16.mxu0 0
        %4433 = vmatpush2.bf16.msra.mxu0 0
        %4434 = vmatprep.subr.bf16.mxu0 0
        %4435 = vmatpush2.bf16.msra.mxu0 0
        %4436 = vmatprep.subr.bf16.mxu0 0
        %4437 = vmatpush2.bf16.msra.mxu0 0
        %4438 = vmatprep.subr.bf16.mxu0 0
        %4439 = vmatpush2.bf16.msra.mxu0 0
        %4440 = vmatprep.subr.bf16.mxu0 0
        %4441 = vmatpush2.bf16.msra.mxu0 0
        %4442 = vmatprep.mubr.bf16.mxu0 0
        %4443 = vmatmul.mubr.bf16.gmra.mxu0 %v4399
        %v4444 = vpop.f32.mrf.mxu0
        %v4445 = vadd.f32 0.0, %v4444
        %v4446 = vpop.f32.mrf.mxu0
        %v4447 = vpop.f32.mrf.mxu0
        %v4448 = vadd.f32 0.0, %v4447
        %v4449 = vpop.f32.mrf.mxu0
        %4450 = vmatprep.mubr.bf16.mxu0 0
        %4451 = vmatmul.mubr.bf16.gmra.mxu0 %v4402
        %v4452 = vpop.f32.mrf.mxu0
        %v4453 = vadd.f32 0.0, %v4452
        %v4454 = vpop.f32.mrf.mxu0
        %v4455 = vpop.f32.mrf.mxu0
        %v4456 = vadd.f32 0.0, %v4455
        %v4457 = vpop.f32.mrf.mxu0
        %4458 = vmatprep.mubr.bf16.mxu0 0
        %4459 = vmatmul.mubr.bf16.gmra.mxu0 %v4405
        %v4460 = vpop.f32.mrf.mxu0
        %v4461 = vadd.f32 0.0, %v4460
        %v4462 = vpop.f32.mrf.mxu0
        %v4463 = vpop.f32.mrf.mxu0
        %v4464 = vadd.f32 0.0, %v4463
        %v4465 = vpop.f32.mrf.mxu0
        %4466 = vmatprep.mubr.bf16.mxu0 0
        %4467 = vmatmul.mubr.bf16.gmra.mxu0 %v4408
        %v4468 = vpop.f32.mrf.mxu0
        %v4469 = vadd.f32 0.0, %v4468
        %v4470 = vpop.f32.mrf.mxu0
        %v4471 = vpop.f32.mrf.mxu0
        %v4472 = vadd.f32 0.0, %v4471
        %v4473 = vpop.f32.mrf.mxu0
        %4474 = vdwg.mxu0
        %v4475 = vadd.f32 %v4225, %v4445
        %v4476 = vadd.f32 %v4228, %v4448
        %v4477 = vadd.f32 %v4233, %v4453
        %v4478 = vadd.f32 %v4236, %v4456
        %v4479 = vadd.f32 %v4241, %v4461
        %v4480 = vadd.f32 %v4244, %v4464
        %v4481 = vadd.f32 %v4249, %v4469
        %v4482 = vadd.f32 %v4252, %v4472
        %s4483 = scalar_lea.vmem [#allocation7], 96
        %v4484 = vld [vmem:[%s4483] sm:$0xf]
        %v4485 = vld [vmem:[%s4483 + $0x4] sm:$0xf]
        %v4486 = vld [vmem:[%s4483 + $0x8] sm:$0xf]
        %v4487 = vld [vmem:[%s4483 + $0xc] sm:$0xf]
        %v4488 = vld [vmem:[%s4483 + $0x10] sm:$0xf]
        %v4489 = vld [vmem:[%s4483 + $0x14] sm:$0xf]
        %v4490 = vld [vmem:[%s4483 + $0x18] sm:$0xf]
        %v4491 = vld [vmem:[%s4483 + $0x1c] sm:$0xf]
        %v4500 = vunpack.c.l.b16 %v4484
        %v4501 = vunpack.c.l.b16 %v4485
        %v4502 = vunpack.c.l.b16 %v4486
        %v4503 = vunpack.c.l.b16 %v4487
        %v4504 = vunpack.c.l.b16 %v4488
        %v4505 = vunpack.c.l.b16 %v4489
        %v4506 = vunpack.c.l.b16 %v4490
        %v4507 = vunpack.c.l.b16 %v4491
        %v4508 = vpack.c.b16 %v4501, %v4500
        %v4509 = vpack.c.b16 %v4503, %v4502
        %v4510 = vpack.c.b16 %v4505, %v4504
        %v4511 = vpack.c.b16 %v4507, %v4506
        %v4513 = vsel %vm1027, %v4508, 0
        %v4516 = vsel %vm1027, %v4509, 0
        %v4519 = vsel %vm1027, %v4510, 0
        %v4522 = vsel %vm1027, %v4511, 0
        %4524 = vmatprep.subr.bf16.mxu0 0
        %4525 = vmatpush1.bf16.msra.mxu0 0
        %4526 = vmatprep.subr.bf16.mxu0 0
        %4527 = vmatpush1.bf16.msra.mxu0 0
        %4528 = vmatprep.subr.bf16.mxu0 0
        %4529 = vmatpush1.bf16.msra.mxu0 0
        %4530 = vmatprep.subr.bf16.mxu0 0
        %4531 = vmatpush1.bf16.msra.mxu0 0
        %4532 = vmatprep.subr.bf16.mxu0 0
        %4533 = vmatpush1.bf16.msra.mxu0 %v3816
        %4534 = vmatprep.subr.bf16.mxu0 0
        %4535 = vmatpush1.bf16.msra.mxu0 %v3815
        %4536 = vmatprep.subr.bf16.mxu0 0
        %4537 = vmatpush1.bf16.msra.mxu0 %v3814
        %4538 = vmatprep.subr.bf16.mxu0 0
        %4539 = vmatpush1.bf16.msra.mxu0 %v3813
        %4540 = vmatprep.subr.bf16.mxu0 0
        %4541 = vmatpush2.bf16.msra.mxu0 0
        %4542 = vmatprep.subr.bf16.mxu0 0
        %4543 = vmatpush2.bf16.msra.mxu0 0
        %4544 = vmatprep.subr.bf16.mxu0 0
        %4545 = vmatpush2.bf16.msra.mxu0 0
        %4546 = vmatprep.subr.bf16.mxu0 0
        %4547 = vmatpush2.bf16.msra.mxu0 0
        %4548 = vmatprep.subr.bf16.mxu0 0
        %4549 = vmatpush2.bf16.msra.mxu0 0
        %4550 = vmatprep.subr.bf16.mxu0 0
        %4551 = vmatpush2.bf16.msra.mxu0 0
        %4552 = vmatprep.subr.bf16.mxu0 0
        %4553 = vmatpush2.bf16.msra.mxu0 0
        %4554 = vmatprep.subr.bf16.mxu0 0
        %4555 = vmatpush2.bf16.msra.mxu0 0
        %4556 = vmatprep.mubr.bf16.mxu0 0
        %4557 = vmatmul.mubr.bf16.gmra.mxu0 %v4513
        %v4558 = vpop.f32.mrf.mxu0
        %v4559 = vadd.f32 0.0, %v4558
        %v4560 = vpop.f32.mrf.mxu0
        %v4561 = vpop.f32.mrf.mxu0
        %v4562 = vadd.f32 0.0, %v4561
        %v4563 = vpop.f32.mrf.mxu0
        %4564 = vmatprep.mubr.bf16.mxu0 0
        %4565 = vmatmul.mubr.bf16.gmra.mxu0 %v4516
        %v4566 = vpop.f32.mrf.mxu0
        %v4567 = vadd.f32 0.0, %v4566
        %v4568 = vpop.f32.mrf.mxu0
        %v4569 = vpop.f32.mrf.mxu0
        %v4570 = vadd.f32 0.0, %v4569
        %v4571 = vpop.f32.mrf.mxu0
        %4572 = vmatprep.mubr.bf16.mxu0 0
        %4573 = vmatmul.mubr.bf16.gmra.mxu0 %v4519
        %v4574 = vpop.f32.mrf.mxu0
        %v4575 = vadd.f32 0.0, %v4574
        %v4576 = vpop.f32.mrf.mxu0
        %v4577 = vpop.f32.mrf.mxu0
        %v4578 = vadd.f32 0.0, %v4577
        %v4579 = vpop.f32.mrf.mxu0
        %4580 = vmatprep.mubr.bf16.mxu0 0
        %4581 = vmatmul.mubr.bf16.gmra.mxu0 %v4522
        %v4582 = vpop.f32.mrf.mxu0
        %v4583 = vadd.f32 0.0, %v4582
        %v4584 = vpop.f32.mrf.mxu0
        %v4585 = vpop.f32.mrf.mxu0
        %v4586 = vadd.f32 0.0, %v4585
        %v4587 = vpop.f32.mrf.mxu0
        %4588 = vdwg.mxu0
        %v4589 = vpack.c.bf16 %v4562, %v4559
        %v4590 = vpack.c.bf16 %v4570, %v4567
        %v4591 = vpack.c.bf16 %v4578, %v4575
        %v4592 = vpack.c.bf16 %v4586, %v4583
        %s4593 = scalar_lea.vmem %s11, 96
        %v4594 = vld [vmem:[%s4593] sm:$0xf]
        %v4595 = vld [vmem:[%s4593 + $0x4] sm:$0xf]
        %v4596 = vld [vmem:[%s4593 + $0x8] sm:$0xf]
        %v4597 = vld [vmem:[%s4593 + $0xc] sm:$0xf]
        %v4598 = vld [vmem:[%s4593 + $0x10] sm:$0xf]
        %v4599 = vld [vmem:[%s4593 + $0x14] sm:$0xf]
        %v4600 = vld [vmem:[%s4593 + $0x18] sm:$0xf]
        %v4601 = vld [vmem:[%s4593 + $0x1c] sm:$0xf]
        %v4610 = vunpack.c.l.b16 %v4594
        %v4611 = vunpack.c.l.b16 %v4595
        %v4612 = vunpack.c.l.b16 %v4596
        %v4613 = vunpack.c.l.b16 %v4597
        %v4614 = vunpack.c.l.b16 %v4598
        %v4615 = vunpack.c.l.b16 %v4599
        %v4616 = vunpack.c.l.b16 %v4600
        %v4617 = vunpack.c.l.b16 %v4601
        %v4618 = vpack.c.b16 %v4611, %v4610
        %v4619 = vpack.c.b16 %v4613, %v4612
        %v4620 = vpack.c.b16 %v4615, %v4614
        %v4621 = vpack.c.b16 %v4617, %v4616
        %v4627 = vsel %vm1027, %v4589, 0
        %v4630 = vsel %vm1027, %v4590, 0
        %v4633 = vsel %vm1027, %v4591, 0
        %v4636 = vsel %vm1027, %v4592, 0
        %4638 = vmatprep.subr.bf16.mxu0 0
        %4639 = vmatpush1.bf16.msra.mxu0 0
        %4640 = vmatprep.subr.bf16.mxu0 0
        %4641 = vmatpush1.bf16.msra.mxu0 0
        %4642 = vmatprep.subr.bf16.mxu0 0
        %4643 = vmatpush1.bf16.msra.mxu0 0
        %4644 = vmatprep.subr.bf16.mxu0 0
        %4645 = vmatpush1.bf16.msra.mxu0 0
        %4646 = vmatprep.subr.bf16.mxu0 0
        %4647 = vmatpush1.bf16.msra.mxu0 %v4621
        %4648 = vmatprep.subr.bf16.mxu0 0
        %4649 = vmatpush1.bf16.msra.mxu0 %v4620
        %4650 = vmatprep.subr.bf16.mxu0 0
        %4651 = vmatpush1.bf16.msra.mxu0 %v4619
        %4652 = vmatprep.subr.bf16.mxu0 0
        %4653 = vmatpush1.bf16.msra.mxu0 %v4618
        %4654 = vmatprep.subr.bf16.mxu0 0
        %4655 = vmatpush2.bf16.msra.mxu0 0
        %4656 = vmatprep.subr.bf16.mxu0 0
        %4657 = vmatpush2.bf16.msra.mxu0 0
        %4658 = vmatprep.subr.bf16.mxu0 0
        %4659 = vmatpush2.bf16.msra.mxu0 0
        %4660 = vmatprep.subr.bf16.mxu0 0
        %4661 = vmatpush2.bf16.msra.mxu0 0
        %4662 = vmatprep.subr.bf16.mxu0 0
        %4663 = vmatpush2.bf16.msra.mxu0 0
        %4664 = vmatprep.subr.bf16.mxu0 0
        %4665 = vmatpush2.bf16.msra.mxu0 0
        %4666 = vmatprep.subr.bf16.mxu0 0
        %4667 = vmatpush2.bf16.msra.mxu0 0
        %4668 = vmatprep.subr.bf16.mxu0 0
        %4669 = vmatpush2.bf16.msra.mxu0 0
        %4670 = vmatprep.mubr.bf16.mxu0 0
        %4671 = vmatmul.mubr.bf16.gmra.mxu0 %v4627
        %v4672 = vpop.f32.mrf.mxu0
        %v4673 = vadd.f32 0.0, %v4672
        %v4674 = vpop.f32.mrf.mxu0
        %v4675 = vpop.f32.mrf.mxu0
        %v4676 = vadd.f32 0.0, %v4675
        %v4677 = vpop.f32.mrf.mxu0
        %4678 = vmatprep.mubr.bf16.mxu0 0
        %4679 = vmatmul.mubr.bf16.gmra.mxu0 %v4630
        %v4680 = vpop.f32.mrf.mxu0
        %v4681 = vadd.f32 0.0, %v4680
        %v4682 = vpop.f32.mrf.mxu0
        %v4683 = vpop.f32.mrf.mxu0
        %v4684 = vadd.f32 0.0, %v4683
        %v4685 = vpop.f32.mrf.mxu0
        %4686 = vmatprep.mubr.bf16.mxu0 0
        %4687 = vmatmul.mubr.bf16.gmra.mxu0 %v4633
        %v4688 = vpop.f32.mrf.mxu0
        %v4689 = vadd.f32 0.0, %v4688
        %v4690 = vpop.f32.mrf.mxu0
        %v4691 = vpop.f32.mrf.mxu0
        %v4692 = vadd.f32 0.0, %v4691
        %v4693 = vpop.f32.mrf.mxu0
        %4694 = vmatprep.mubr.bf16.mxu0 0
        %4695 = vmatmul.mubr.bf16.gmra.mxu0 %v4636
        %v4696 = vpop.f32.mrf.mxu0
        %v4697 = vadd.f32 0.0, %v4696
        %v4698 = vpop.f32.mrf.mxu0
        %v4699 = vpop.f32.mrf.mxu0
        %v4700 = vadd.f32 0.0, %v4699
        %v4701 = vpop.f32.mrf.mxu0
        %4702 = vdwg.mxu0
        %v4703 = vadd.f32 %v4475, %v4673
        %v4704 = vadd.f32 %v4476, %v4676
        %v4705 = vadd.f32 %v4477, %v4681
        %v4706 = vadd.f32 %v4478, %v4684
        %v4707 = vadd.f32 %v4479, %v4689
        %v4708 = vadd.f32 %v4480, %v4692
        %v4709 = vadd.f32 %v4481, %v4697
        %v4710 = vadd.f32 %v4482, %v4700
        %s4711 = scalar_lea.vmem [#allocation7], 128
        %v4712 = vld [vmem:[%s4711] sm:$0xf]
        %v4713 = vld [vmem:[%s4711 + $0x4] sm:$0xf]
        %v4714 = vld [vmem:[%s4711 + $0x8] sm:$0xf]
        %v4715 = vld [vmem:[%s4711 + $0xc] sm:$0xf]
        %v4716 = vld [vmem:[%s4711 + $0x10] sm:$0xf]
        %v4717 = vld [vmem:[%s4711 + $0x14] sm:$0xf]
        %v4718 = vld [vmem:[%s4711 + $0x18] sm:$0xf]
        %v4719 = vld [vmem:[%s4711 + $0x1c] sm:$0xf]
        %v4728 = vunpack.c.l.b16 %v4712
        %v4729 = vunpack.c.l.b16 %v4713
        %v4730 = vunpack.c.l.b16 %v4714
        %v4731 = vunpack.c.l.b16 %v4715
        %v4732 = vunpack.c.l.b16 %v4716
        %v4733 = vunpack.c.l.b16 %v4717
        %v4734 = vunpack.c.l.b16 %v4718
        %v4735 = vunpack.c.l.b16 %v4719
        %v4736 = vpack.c.b16 %v4729, %v4728
        %v4737 = vpack.c.b16 %v4731, %v4730
        %v4738 = vpack.c.b16 %v4733, %v4732
        %v4739 = vpack.c.b16 %v4735, %v4734
        %v4741 = vsel %vm1027, %v4736, 0
        %v4744 = vsel %vm1027, %v4737, 0
        %v4747 = vsel %vm1027, %v4738, 0
        %v4750 = vsel %vm1027, %v4739, 0
        %4752 = vmatprep.subr.bf16.mxu0 0
        %4753 = vmatpush1.bf16.msra.mxu0 0
        %4754 = vmatprep.subr.bf16.mxu0 0
        %4755 = vmatpush1.bf16.msra.mxu0 0
        %4756 = vmatprep.subr.bf16.mxu0 0
        %4757 = vmatpush1.bf16.msra.mxu0 0
        %4758 = vmatprep.subr.bf16.mxu0 0
        %4759 = vmatpush1.bf16.msra.mxu0 0
        %4760 = vmatprep.subr.bf16.mxu0 0
        %4761 = vmatpush1.bf16.msra.mxu0 %v3816
        %4762 = vmatprep.subr.bf16.mxu0 0
        %4763 = vmatpush1.bf16.msra.mxu0 %v3815
        %4764 = vmatprep.subr.bf16.mxu0 0
        %4765 = vmatpush1.bf16.msra.mxu0 %v3814
        %4766 = vmatprep.subr.bf16.mxu0 0
        %4767 = vmatpush1.bf16.msra.mxu0 %v3813
        %4768 = vmatprep.subr.bf16.mxu0 0
        %4769 = vmatpush2.bf16.msra.mxu0 0
        %4770 = vmatprep.subr.bf16.mxu0 0
        %4771 = vmatpush2.bf16.msra.mxu0 0
        %4772 = vmatprep.subr.bf16.mxu0 0
        %4773 = vmatpush2.bf16.msra.mxu0 0
        %4774 = vmatprep.subr.bf16.mxu0 0
        %4775 = vmatpush2.bf16.msra.mxu0 0
        %4776 = vmatprep.subr.bf16.mxu0 0
        %4777 = vmatpush2.bf16.msra.mxu0 0
        %4778 = vmatprep.subr.bf16.mxu0 0
        %4779 = vmatpush2.bf16.msra.mxu0 0
        %4780 = vmatprep.subr.bf16.mxu0 0
        %4781 = vmatpush2.bf16.msra.mxu0 0
        %4782 = vmatprep.subr.bf16.mxu0 0
        %4783 = vmatpush2.bf16.msra.mxu0 0
        %4784 = vmatprep.mubr.bf16.mxu0 0
        %4785 = vmatmul.mubr.bf16.gmra.mxu0 %v4741
        %v4786 = vpop.f32.mrf.mxu0
        %v4787 = vadd.f32 0.0, %v4786
        %v4788 = vpop.f32.mrf.mxu0
        %v4789 = vpop.f32.mrf.mxu0
        %v4790 = vadd.f32 0.0, %v4789
        %v4791 = vpop.f32.mrf.mxu0
        %4792 = vmatprep.mubr.bf16.mxu0 0
        %4793 = vmatmul.mubr.bf16.gmra.mxu0 %v4744
        %v4794 = vpop.f32.mrf.mxu0
        %v4795 = vadd.f32 0.0, %v4794
        %v4796 = vpop.f32.mrf.mxu0
        %v4797 = vpop.f32.mrf.mxu0
        %v4798 = vadd.f32 0.0, %v4797
        %v4799 = vpop.f32.mrf.mxu0
        %4800 = vmatprep.mubr.bf16.mxu0 0
        %4801 = vmatmul.mubr.bf16.gmra.mxu0 %v4747
        %v4802 = vpop.f32.mrf.mxu0
        %v4803 = vadd.f32 0.0, %v4802
        %v4804 = vpop.f32.mrf.mxu0
        %v4805 = vpop.f32.mrf.mxu0
        %v4806 = vadd.f32 0.0, %v4805
        %v4807 = vpop.f32.mrf.mxu0
        %4808 = vmatprep.mubr.bf16.mxu0 0
        %4809 = vmatmul.mubr.bf16.gmra.mxu0 %v4750
        %v4810 = vpop.f32.mrf.mxu0
        %v4811 = vadd.f32 0.0, %v4810
        %v4812 = vpop.f32.mrf.mxu0
        %v4813 = vpop.f32.mrf.mxu0
        %v4814 = vadd.f32 0.0, %v4813
        %v4815 = vpop.f32.mrf.mxu0
        %4816 = vdwg.mxu0
        %v4817 = vpack.c.bf16 %v4790, %v4787
        %v4818 = vpack.c.bf16 %v4798, %v4795
        %v4819 = vpack.c.bf16 %v4806, %v4803
        %v4820 = vpack.c.bf16 %v4814, %v4811
        %s4821 = scalar_lea.vmem %s11, 128
        %v4822 = vld [vmem:[%s4821] sm:$0xf]
        %v4823 = vld [vmem:[%s4821 + $0x4] sm:$0xf]
        %v4824 = vld [vmem:[%s4821 + $0x8] sm:$0xf]
        %v4825 = vld [vmem:[%s4821 + $0xc] sm:$0xf]
        %v4826 = vld [vmem:[%s4821 + $0x10] sm:$0xf]
        %v4827 = vld [vmem:[%s4821 + $0x14] sm:$0xf]
        %v4828 = vld [vmem:[%s4821 + $0x18] sm:$0xf]
        %v4829 = vld [vmem:[%s4821 + $0x1c] sm:$0xf]
        %v4838 = vunpack.c.l.b16 %v4822
        %v4839 = vunpack.c.l.b16 %v4823
        %v4840 = vunpack.c.l.b16 %v4824
        %v4841 = vunpack.c.l.b16 %v4825
        %v4842 = vunpack.c.l.b16 %v4826
        %v4843 = vunpack.c.l.b16 %v4827
        %v4844 = vunpack.c.l.b16 %v4828
        %v4845 = vunpack.c.l.b16 %v4829
        %v4846 = vpack.c.b16 %v4839, %v4838
        %v4847 = vpack.c.b16 %v4841, %v4840
        %v4848 = vpack.c.b16 %v4843, %v4842
        %v4849 = vpack.c.b16 %v4845, %v4844
        %v4855 = vsel %vm1027, %v4817, 0
        %v4858 = vsel %vm1027, %v4818, 0
        %v4861 = vsel %vm1027, %v4819, 0
        %v4864 = vsel %vm1027, %v4820, 0
        %4866 = vmatprep.subr.bf16.mxu0 0
        %4867 = vmatpush1.bf16.msra.mxu0 0
        %4868 = vmatprep.subr.bf16.mxu0 0
        %4869 = vmatpush1.bf16.msra.mxu0 0
        %4870 = vmatprep.subr.bf16.mxu0 0
        %4871 = vmatpush1.bf16.msra.mxu0 0
        %4872 = vmatprep.subr.bf16.mxu0 0
        %4873 = vmatpush1.bf16.msra.mxu0 0
        %4874 = vmatprep.subr.bf16.mxu0 0
        %4875 = vmatpush1.bf16.msra.mxu0 %v4849
        %4876 = vmatprep.subr.bf16.mxu0 0
        %4877 = vmatpush1.bf16.msra.mxu0 %v4848
        %4878 = vmatprep.subr.bf16.mxu0 0
        %4879 = vmatpush1.bf16.msra.mxu0 %v4847
        %4880 = vmatprep.subr.bf16.mxu0 0
        %4881 = vmatpush1.bf16.msra.mxu0 %v4846
        %4882 = vmatprep.subr.bf16.mxu0 0
        %4883 = vmatpush2.bf16.msra.mxu0 0
        %4884 = vmatprep.subr.bf16.mxu0 0
        %4885 = vmatpush2.bf16.msra.mxu0 0
        %4886 = vmatprep.subr.bf16.mxu0 0
        %4887 = vmatpush2.bf16.msra.mxu0 0
        %4888 = vmatprep.subr.bf16.mxu0 0
        %4889 = vmatpush2.bf16.msra.mxu0 0
        %4890 = vmatprep.subr.bf16.mxu0 0
        %4891 = vmatpush2.bf16.msra.mxu0 0
        %4892 = vmatprep.subr.bf16.mxu0 0
        %4893 = vmatpush2.bf16.msra.mxu0 0
        %4894 = vmatprep.subr.bf16.mxu0 0
        %4895 = vmatpush2.bf16.msra.mxu0 0
        %4896 = vmatprep.subr.bf16.mxu0 0
        %4897 = vmatpush2.bf16.msra.mxu0 0
        %4898 = vmatprep.mubr.bf16.mxu0 0
        %4899 = vmatmul.mubr.bf16.gmra.mxu0 %v4855
        %v4900 = vpop.f32.mrf.mxu0
        %v4901 = vadd.f32 0.0, %v4900
        %v4902 = vpop.f32.mrf.mxu0
        %v4903 = vpop.f32.mrf.mxu0
        %v4904 = vadd.f32 0.0, %v4903
        %v4905 = vpop.f32.mrf.mxu0
        %4906 = vmatprep.mubr.bf16.mxu0 0
        %4907 = vmatmul.mubr.bf16.gmra.mxu0 %v4858
        %v4908 = vpop.f32.mrf.mxu0
        %v4909 = vadd.f32 0.0, %v4908
        %v4910 = vpop.f32.mrf.mxu0
        %v4911 = vpop.f32.mrf.mxu0
        %v4912 = vadd.f32 0.0, %v4911
        %v4913 = vpop.f32.mrf.mxu0
        %4914 = vmatprep.mubr.bf16.mxu0 0
        %4915 = vmatmul.mubr.bf16.gmra.mxu0 %v4861
        %v4916 = vpop.f32.mrf.mxu0
        %v4917 = vadd.f32 0.0, %v4916
        %v4918 = vpop.f32.mrf.mxu0
        %v4919 = vpop.f32.mrf.mxu0
        %v4920 = vadd.f32 0.0, %v4919
        %v4921 = vpop.f32.mrf.mxu0
        %4922 = vmatprep.mubr.bf16.mxu0 0
        %4923 = vmatmul.mubr.bf16.gmra.mxu0 %v4864
        %v4924 = vpop.f32.mrf.mxu0
        %v4925 = vadd.f32 0.0, %v4924
        %v4926 = vpop.f32.mrf.mxu0
        %v4927 = vpop.f32.mrf.mxu0
        %v4928 = vadd.f32 0.0, %v4927
        %v4929 = vpop.f32.mrf.mxu0
        %4930 = vdwg.mxu0
        %v4931 = vadd.f32 %v4703, %v4901
        %v4932 = vadd.f32 %v4704, %v4904
        %v4933 = vadd.f32 %v4705, %v4909
        %v4934 = vadd.f32 %v4706, %v4912
        %v4935 = vadd.f32 %v4707, %v4917
        %v4936 = vadd.f32 %v4708, %v4920
        %v4937 = vadd.f32 %v4709, %v4925
        %v4938 = vadd.f32 %v4710, %v4928
        %s4939 = scalar_lea.vmem [#allocation7], 160
        %v4940 = vld [vmem:[%s4939] sm:$0xf]
        %v4941 = vld [vmem:[%s4939 + $0x4] sm:$0xf]
        %v4942 = vld [vmem:[%s4939 + $0x8] sm:$0xf]
        %v4943 = vld [vmem:[%s4939 + $0xc] sm:$0xf]
        %v4944 = vld [vmem:[%s4939 + $0x10] sm:$0xf]
        %v4945 = vld [vmem:[%s4939 + $0x14] sm:$0xf]
        %v4946 = vld [vmem:[%s4939 + $0x18] sm:$0xf]
        %v4947 = vld [vmem:[%s4939 + $0x1c] sm:$0xf]
        %v4956 = vunpack.c.l.b16 %v4940
        %v4957 = vunpack.c.l.b16 %v4941
        %v4958 = vunpack.c.l.b16 %v4942
        %v4959 = vunpack.c.l.b16 %v4943
        %v4960 = vunpack.c.l.b16 %v4944
        %v4961 = vunpack.c.l.b16 %v4945
        %v4962 = vunpack.c.l.b16 %v4946
        %v4963 = vunpack.c.l.b16 %v4947
        %v4964 = vpack.c.b16 %v4957, %v4956
        %v4965 = vpack.c.b16 %v4959, %v4958
        %v4966 = vpack.c.b16 %v4961, %v4960
        %v4967 = vpack.c.b16 %v4963, %v4962
        %v4969 = vsel %vm1027, %v4964, 0
        %v4972 = vsel %vm1027, %v4965, 0
        %v4975 = vsel %vm1027, %v4966, 0
        %v4978 = vsel %vm1027, %v4967, 0
        %4980 = vmatprep.subr.bf16.mxu0 0
        %4981 = vmatpush1.bf16.msra.mxu0 0
        %4982 = vmatprep.subr.bf16.mxu0 0
        %4983 = vmatpush1.bf16.msra.mxu0 0
        %4984 = vmatprep.subr.bf16.mxu0 0
        %4985 = vmatpush1.bf16.msra.mxu0 0
        %4986 = vmatprep.subr.bf16.mxu0 0
        %4987 = vmatpush1.bf16.msra.mxu0 0
        %4988 = vmatprep.subr.bf16.mxu0 0
        %4989 = vmatpush1.bf16.msra.mxu0 %v3816
        %4990 = vmatprep.subr.bf16.mxu0 0
        %4991 = vmatpush1.bf16.msra.mxu0 %v3815
        %4992 = vmatprep.subr.bf16.mxu0 0
        %4993 = vmatpush1.bf16.msra.mxu0 %v3814
        %4994 = vmatprep.subr.bf16.mxu0 0
        %4995 = vmatpush1.bf16.msra.mxu0 %v3813
        %4996 = vmatprep.subr.bf16.mxu0 0
        %4997 = vmatpush2.bf16.msra.mxu0 0
        %4998 = vmatprep.subr.bf16.mxu0 0
        %4999 = vmatpush2.bf16.msra.mxu0 0
        %5000 = vmatprep.subr.bf16.mxu0 0
        %5001 = vmatpush2.bf16.msra.mxu0 0
        %5002 = vmatprep.subr.bf16.mxu0 0
        %5003 = vmatpush2.bf16.msra.mxu0 0
        %5004 = vmatprep.subr.bf16.mxu0 0
        %5005 = vmatpush2.bf16.msra.mxu0 0
        %5006 = vmatprep.subr.bf16.mxu0 0
        %5007 = vmatpush2.bf16.msra.mxu0 0
        %5008 = vmatprep.subr.bf16.mxu0 0
        %5009 = vmatpush2.bf16.msra.mxu0 0
        %5010 = vmatprep.subr.bf16.mxu0 0
        %5011 = vmatpush2.bf16.msra.mxu0 0
        %5012 = vmatprep.mubr.bf16.mxu0 0
        %5013 = vmatmul.mubr.bf16.gmra.mxu0 %v4969
        %v5014 = vpop.f32.mrf.mxu0
        %v5015 = vadd.f32 0.0, %v5014
        %v5016 = vpop.f32.mrf.mxu0
        %v5017 = vpop.f32.mrf.mxu0
        %v5018 = vadd.f32 0.0, %v5017
        %v5019 = vpop.f32.mrf.mxu0
        %5020 = vmatprep.mubr.bf16.mxu0 0
        %5021 = vmatmul.mubr.bf16.gmra.mxu0 %v4972
        %v5022 = vpop.f32.mrf.mxu0
        %v5023 = vadd.f32 0.0, %v5022
        %v5024 = vpop.f32.mrf.mxu0
        %v5025 = vpop.f32.mrf.mxu0
        %v5026 = vadd.f32 0.0, %v5025
        %v5027 = vpop.f32.mrf.mxu0
        %5028 = vmatprep.mubr.bf16.mxu0 0
        %5029 = vmatmul.mubr.bf16.gmra.mxu0 %v4975
        %v5030 = vpop.f32.mrf.mxu0
        %v5031 = vadd.f32 0.0, %v5030
        %v5032 = vpop.f32.mrf.mxu0
        %v5033 = vpop.f32.mrf.mxu0
        %v5034 = vadd.f32 0.0, %v5033
        %v5035 = vpop.f32.mrf.mxu0
        %5036 = vmatprep.mubr.bf16.mxu0 0
        %5037 = vmatmul.mubr.bf16.gmra.mxu0 %v4978
        %v5038 = vpop.f32.mrf.mxu0
        %v5039 = vadd.f32 0.0, %v5038
        %v5040 = vpop.f32.mrf.mxu0
        %v5041 = vpop.f32.mrf.mxu0
        %v5042 = vadd.f32 0.0, %v5041
        %v5043 = vpop.f32.mrf.mxu0
        %5044 = vdwg.mxu0
        %v5045 = vpack.c.bf16 %v5018, %v5015
        %v5046 = vpack.c.bf16 %v5026, %v5023
        %v5047 = vpack.c.bf16 %v5034, %v5031
        %v5048 = vpack.c.bf16 %v5042, %v5039
        %s5049 = scalar_lea.vmem %s11, 160
        %v5050 = vld [vmem:[%s5049] sm:$0xf]
        %v5051 = vld [vmem:[%s5049 + $0x4] sm:$0xf]
        %v5052 = vld [vmem:[%s5049 + $0x8] sm:$0xf]
        %v5053 = vld [vmem:[%s5049 + $0xc] sm:$0xf]
        %v5054 = vld [vmem:[%s5049 + $0x10] sm:$0xf]
        %v5055 = vld [vmem:[%s5049 + $0x14] sm:$0xf]
        %v5056 = vld [vmem:[%s5049 + $0x18] sm:$0xf]
        %v5057 = vld [vmem:[%s5049 + $0x1c] sm:$0xf]
        %v5066 = vunpack.c.l.b16 %v5050
        %v5067 = vunpack.c.l.b16 %v5051
        %v5068 = vunpack.c.l.b16 %v5052
        %v5069 = vunpack.c.l.b16 %v5053
        %v5070 = vunpack.c.l.b16 %v5054
        %v5071 = vunpack.c.l.b16 %v5055
        %v5072 = vunpack.c.l.b16 %v5056
        %v5073 = vunpack.c.l.b16 %v5057
        %v5074 = vpack.c.b16 %v5067, %v5066
        %v5075 = vpack.c.b16 %v5069, %v5068
        %v5076 = vpack.c.b16 %v5071, %v5070
        %v5077 = vpack.c.b16 %v5073, %v5072
        %v5083 = vsel %vm1027, %v5045, 0
        %v5086 = vsel %vm1027, %v5046, 0
        %v5089 = vsel %vm1027, %v5047, 0
        %v5092 = vsel %vm1027, %v5048, 0
        %5094 = vmatprep.subr.bf16.mxu0 0
        %5095 = vmatpush1.bf16.msra.mxu0 0
        %5096 = vmatprep.subr.bf16.mxu0 0
        %5097 = vmatpush1.bf16.msra.mxu0 0
        %5098 = vmatprep.subr.bf16.mxu0 0
        %5099 = vmatpush1.bf16.msra.mxu0 0
        %5100 = vmatprep.subr.bf16.mxu0 0
        %5101 = vmatpush1.bf16.msra.mxu0 0
        %5102 = vmatprep.subr.bf16.mxu0 0
        %5103 = vmatpush1.bf16.msra.mxu0 %v5077
        %5104 = vmatprep.subr.bf16.mxu0 0
        %5105 = vmatpush1.bf16.msra.mxu0 %v5076
        %5106 = vmatprep.subr.bf16.mxu0 0
        %5107 = vmatpush1.bf16.msra.mxu0 %v5075
        %5108 = vmatprep.subr.bf16.mxu0 0
        %5109 = vmatpush1.bf16.msra.mxu0 %v5074
        %5110 = vmatprep.subr.bf16.mxu0 0
        %5111 = vmatpush2.bf16.msra.mxu0 0
        %5112 = vmatprep.subr.bf16.mxu0 0
        %5113 = vmatpush2.bf16.msra.mxu0 0
        %5114 = vmatprep.subr.bf16.mxu0 0
        %5115 = vmatpush2.bf16.msra.mxu0 0
        %5116 = vmatprep.subr.bf16.mxu0 0
        %5117 = vmatpush2.bf16.msra.mxu0 0
        %5118 = vmatprep.subr.bf16.mxu0 0
        %5119 = vmatpush2.bf16.msra.mxu0 0
        %5120 = vmatprep.subr.bf16.mxu0 0
        %5121 = vmatpush2.bf16.msra.mxu0 0
        %5122 = vmatprep.subr.bf16.mxu0 0
        %5123 = vmatpush2.bf16.msra.mxu0 0
        %5124 = vmatprep.subr.bf16.mxu0 0
        %5125 = vmatpush2.bf16.msra.mxu0 0
        %5126 = vmatprep.mubr.bf16.mxu0 0
        %5127 = vmatmul.mubr.bf16.gmra.mxu0 %v5083
        %v5128 = vpop.f32.mrf.mxu0
        %v5129 = vadd.f32 0.0, %v5128
        %v5130 = vpop.f32.mrf.mxu0
        %v5131 = vpop.f32.mrf.mxu0
        %v5132 = vadd.f32 0.0, %v5131
        %v5133 = vpop.f32.mrf.mxu0
        %5134 = vmatprep.mubr.bf16.mxu0 0
        %5135 = vmatmul.mubr.bf16.gmra.mxu0 %v5086
        %v5136 = vpop.f32.mrf.mxu0
        %v5137 = vadd.f32 0.0, %v5136
        %v5138 = vpop.f32.mrf.mxu0
        %v5139 = vpop.f32.mrf.mxu0
        %v5140 = vadd.f32 0.0, %v5139
        %v5141 = vpop.f32.mrf.mxu0
        %5142 = vmatprep.mubr.bf16.mxu0 0
        %5143 = vmatmul.mubr.bf16.gmra.mxu0 %v5089
        %v5144 = vpop.f32.mrf.mxu0
        %v5145 = vadd.f32 0.0, %v5144
        %v5146 = vpop.f32.mrf.mxu0
        %v5147 = vpop.f32.mrf.mxu0
        %v5148 = vadd.f32 0.0, %v5147
        %v5149 = vpop.f32.mrf.mxu0
        %5150 = vmatprep.mubr.bf16.mxu0 0
        %5151 = vmatmul.mubr.bf16.gmra.mxu0 %v5092
        %v5152 = vpop.f32.mrf.mxu0
        %v5153 = vadd.f32 0.0, %v5152
        %v5154 = vpop.f32.mrf.mxu0
        %v5155 = vpop.f32.mrf.mxu0
        %v5156 = vadd.f32 0.0, %v5155
        %v5157 = vpop.f32.mrf.mxu0
        %5158 = vdwg.mxu0
        %v5159 = vadd.f32 %v4931, %v5129
        %v5160 = vadd.f32 %v4932, %v5132
        %v5161 = vadd.f32 %v4933, %v5137
        %v5162 = vadd.f32 %v4934, %v5140
        %v5163 = vadd.f32 %v4935, %v5145
        %v5164 = vadd.f32 %v4936, %v5148
        %v5165 = vadd.f32 %v4937, %v5153
        %v5166 = vadd.f32 %v4938, %v5156
        %s5167 = scalar_lea.vmem [#allocation7], 192
        %v5168 = vld [vmem:[%s5167] sm:$0xf]
        %v5169 = vld [vmem:[%s5167 + $0x4] sm:$0xf]
        %v5170 = vld [vmem:[%s5167 + $0x8] sm:$0xf]
        %v5171 = vld [vmem:[%s5167 + $0xc] sm:$0xf]
        %v5172 = vld [vmem:[%s5167 + $0x10] sm:$0xf]
        %v5173 = vld [vmem:[%s5167 + $0x14] sm:$0xf]
        %v5174 = vld [vmem:[%s5167 + $0x18] sm:$0xf]
        %v5175 = vld [vmem:[%s5167 + $0x1c] sm:$0xf]
        %v5184 = vunpack.c.l.b16 %v5168
        %v5185 = vunpack.c.l.b16 %v5169
        %v5186 = vunpack.c.l.b16 %v5170
        %v5187 = vunpack.c.l.b16 %v5171
        %v5188 = vunpack.c.l.b16 %v5172
        %v5189 = vunpack.c.l.b16 %v5173
        %v5190 = vunpack.c.l.b16 %v5174
        %v5191 = vunpack.c.l.b16 %v5175
        %v5192 = vpack.c.b16 %v5185, %v5184
        %v5193 = vpack.c.b16 %v5187, %v5186
        %v5194 = vpack.c.b16 %v5189, %v5188
        %v5195 = vpack.c.b16 %v5191, %v5190
        %v5197 = vsel %vm1027, %v5192, 0
        %v5200 = vsel %vm1027, %v5193, 0
        %v5203 = vsel %vm1027, %v5194, 0
        %v5206 = vsel %vm1027, %v5195, 0
        %5208 = vmatprep.subr.bf16.mxu0 0
        %5209 = vmatpush1.bf16.msra.mxu0 0
        %5210 = vmatprep.subr.bf16.mxu0 0
        %5211 = vmatpush1.bf16.msra.mxu0 0
        %5212 = vmatprep.subr.bf16.mxu0 0
        %5213 = vmatpush1.bf16.msra.mxu0 0
        %5214 = vmatprep.subr.bf16.mxu0 0
        %5215 = vmatpush1.bf16.msra.mxu0 0
        %5216 = vmatprep.subr.bf16.mxu0 0
        %5217 = vmatpush1.bf16.msra.mxu0 %v3816
        %5218 = vmatprep.subr.bf16.mxu0 0
        %5219 = vmatpush1.bf16.msra.mxu0 %v3815
        %5220 = vmatprep.subr.bf16.mxu0 0
        %5221 = vmatpush1.bf16.msra.mxu0 %v3814
        %5222 = vmatprep.subr.bf16.mxu0 0
        %5223 = vmatpush1.bf16.msra.mxu0 %v3813
        %5224 = vmatprep.subr.bf16.mxu0 0
        %5225 = vmatpush2.bf16.msra.mxu0 0
        %5226 = vmatprep.subr.bf16.mxu0 0
        %5227 = vmatpush2.bf16.msra.mxu0 0
        %5228 = vmatprep.subr.bf16.mxu0 0
        %5229 = vmatpush2.bf16.msra.mxu0 0
        %5230 = vmatprep.subr.bf16.mxu0 0
        %5231 = vmatpush2.bf16.msra.mxu0 0
        %5232 = vmatprep.subr.bf16.mxu0 0
        %5233 = vmatpush2.bf16.msra.mxu0 0
        %5234 = vmatprep.subr.bf16.mxu0 0
        %5235 = vmatpush2.bf16.msra.mxu0 0
        %5236 = vmatprep.subr.bf16.mxu0 0
        %5237 = vmatpush2.bf16.msra.mxu0 0
        %5238 = vmatprep.subr.bf16.mxu0 0
        %5239 = vmatpush2.bf16.msra.mxu0 0
        %5240 = vmatprep.mubr.bf16.mxu0 0
        %5241 = vmatmul.mubr.bf16.gmra.mxu0 %v5197
        %v5242 = vpop.f32.mrf.mxu0
        %v5243 = vadd.f32 0.0, %v5242
        %v5244 = vpop.f32.mrf.mxu0
        %v5245 = vpop.f32.mrf.mxu0
        %v5246 = vadd.f32 0.0, %v5245
        %v5247 = vpop.f32.mrf.mxu0
        %5248 = vmatprep.mubr.bf16.mxu0 0
        %5249 = vmatmul.mubr.bf16.gmra.mxu0 %v5200
        %v5250 = vpop.f32.mrf.mxu0
        %v5251 = vadd.f32 0.0, %v5250
        %v5252 = vpop.f32.mrf.mxu0
        %v5253 = vpop.f32.mrf.mxu0
        %v5254 = vadd.f32 0.0, %v5253
        %v5255 = vpop.f32.mrf.mxu0
        %5256 = vmatprep.mubr.bf16.mxu0 0
        %5257 = vmatmul.mubr.bf16.gmra.mxu0 %v5203
        %v5258 = vpop.f32.mrf.mxu0
        %v5259 = vadd.f32 0.0, %v5258
        %v5260 = vpop.f32.mrf.mxu0
        %v5261 = vpop.f32.mrf.mxu0
        %v5262 = vadd.f32 0.0, %v5261
        %v5263 = vpop.f32.mrf.mxu0
        %5264 = vmatprep.mubr.bf16.mxu0 0
        %5265 = vmatmul.mubr.bf16.gmra.mxu0 %v5206
        %v5266 = vpop.f32.mrf.mxu0
        %v5267 = vadd.f32 0.0, %v5266
        %v5268 = vpop.f32.mrf.mxu0
        %v5269 = vpop.f32.mrf.mxu0
        %v5270 = vadd.f32 0.0, %v5269
        %v5271 = vpop.f32.mrf.mxu0
        %5272 = vdwg.mxu0
        %v5273 = vpack.c.bf16 %v5246, %v5243
        %v5274 = vpack.c.bf16 %v5254, %v5251
        %v5275 = vpack.c.bf16 %v5262, %v5259
        %v5276 = vpack.c.bf16 %v5270, %v5267
        %s5277 = scalar_lea.vmem %s11, 192
        %v5278 = vld [vmem:[%s5277] sm:$0xf]
        %v5279 = vld [vmem:[%s5277 + $0x4] sm:$0xf]
        %v5280 = vld [vmem:[%s5277 + $0x8] sm:$0xf]
        %v5281 = vld [vmem:[%s5277 + $0xc] sm:$0xf]
        %v5282 = vld [vmem:[%s5277 + $0x10] sm:$0xf]
        %v5283 = vld [vmem:[%s5277 + $0x14] sm:$0xf]
        %v5284 = vld [vmem:[%s5277 + $0x18] sm:$0xf]
        %v5285 = vld [vmem:[%s5277 + $0x1c] sm:$0xf]
        %v5294 = vunpack.c.l.b16 %v5278
        %v5295 = vunpack.c.l.b16 %v5279
        %v5296 = vunpack.c.l.b16 %v5280
        %v5297 = vunpack.c.l.b16 %v5281
        %v5298 = vunpack.c.l.b16 %v5282
        %v5299 = vunpack.c.l.b16 %v5283
        %v5300 = vunpack.c.l.b16 %v5284
        %v5301 = vunpack.c.l.b16 %v5285
        %v5302 = vpack.c.b16 %v5295, %v5294
        %v5303 = vpack.c.b16 %v5297, %v5296
        %v5304 = vpack.c.b16 %v5299, %v5298
        %v5305 = vpack.c.b16 %v5301, %v5300
        %v5311 = vsel %vm1027, %v5273, 0
        %v5314 = vsel %vm1027, %v5274, 0
        %v5317 = vsel %vm1027, %v5275, 0
        %v5320 = vsel %vm1027, %v5276, 0
        %5322 = vmatprep.subr.bf16.mxu0 0
        %5323 = vmatpush1.bf16.msra.mxu0 0
        %5324 = vmatprep.subr.bf16.mxu0 0
        %5325 = vmatpush1.bf16.msra.mxu0 0
        %5326 = vmatprep.subr.bf16.mxu0 0
        %5327 = vmatpush1.bf16.msra.mxu0 0
        %5328 = vmatprep.subr.bf16.mxu0 0
        %5329 = vmatpush1.bf16.msra.mxu0 0
        %5330 = vmatprep.subr.bf16.mxu0 0
        %5331 = vmatpush1.bf16.msra.mxu0 %v5305
        %5332 = vmatprep.subr.bf16.mxu0 0
        %5333 = vmatpush1.bf16.msra.mxu0 %v5304
        %5334 = vmatprep.subr.bf16.mxu0 0
        %5335 = vmatpush1.bf16.msra.mxu0 %v5303
        %5336 = vmatprep.subr.bf16.mxu0 0
        %5337 = vmatpush1.bf16.msra.mxu0 %v5302
        %5338 = vmatprep.subr.bf16.mxu0 0
        %5339 = vmatpush2.bf16.msra.mxu0 0
        %5340 = vmatprep.subr.bf16.mxu0 0
        %5341 = vmatpush2.bf16.msra.mxu0 0
        %5342 = vmatprep.subr.bf16.mxu0 0
        %5343 = vmatpush2.bf16.msra.mxu0 0
        %5344 = vmatprep.subr.bf16.mxu0 0
        %5345 = vmatpush2.bf16.msra.mxu0 0
        %5346 = vmatprep.subr.bf16.mxu0 0
        %5347 = vmatpush2.bf16.msra.mxu0 0
        %5348 = vmatprep.subr.bf16.mxu0 0
        %5349 = vmatpush2.bf16.msra.mxu0 0
        %5350 = vmatprep.subr.bf16.mxu0 0
        %5351 = vmatpush2.bf16.msra.mxu0 0
        %5352 = vmatprep.subr.bf16.mxu0 0
        %5353 = vmatpush2.bf16.msra.mxu0 0
        %5354 = vmatprep.mubr.bf16.mxu0 0
        %5355 = vmatmul.mubr.bf16.gmra.mxu0 %v5311
        %v5356 = vpop.f32.mrf.mxu0
        %v5357 = vadd.f32 0.0, %v5356
        %v5358 = vpop.f32.mrf.mxu0
        %v5359 = vpop.f32.mrf.mxu0
        %v5360 = vadd.f32 0.0, %v5359
        %v5361 = vpop.f32.mrf.mxu0
        %5362 = vmatprep.mubr.bf16.mxu0 0
        %5363 = vmatmul.mubr.bf16.gmra.mxu0 %v5314
        %v5364 = vpop.f32.mrf.mxu0
        %v5365 = vadd.f32 0.0, %v5364
        %v5366 = vpop.f32.mrf.mxu0
        %v5367 = vpop.f32.mrf.mxu0
        %v5368 = vadd.f32 0.0, %v5367
        %v5369 = vpop.f32.mrf.mxu0
        %5370 = vmatprep.mubr.bf16.mxu0 0
        %5371 = vmatmul.mubr.bf16.gmra.mxu0 %v5317
        %v5372 = vpop.f32.mrf.mxu0
        %v5373 = vadd.f32 0.0, %v5372
        %v5374 = vpop.f32.mrf.mxu0
        %v5375 = vpop.f32.mrf.mxu0
        %v5376 = vadd.f32 0.0, %v5375
        %v5377 = vpop.f32.mrf.mxu0
        %5378 = vmatprep.mubr.bf16.mxu0 0
        %5379 = vmatmul.mubr.bf16.gmra.mxu0 %v5320
        %v5380 = vpop.f32.mrf.mxu0
        %v5381 = vadd.f32 0.0, %v5380
        %v5382 = vpop.f32.mrf.mxu0
        %v5383 = vpop.f32.mrf.mxu0
        %v5384 = vadd.f32 0.0, %v5383
        %v5385 = vpop.f32.mrf.mxu0
        %5386 = vdwg.mxu0
        %v5387 = vadd.f32 %v5159, %v5357
        %v5388 = vadd.f32 %v5160, %v5360
        %v5389 = vadd.f32 %v5161, %v5365
        %v5390 = vadd.f32 %v5162, %v5368
        %v5391 = vadd.f32 %v5163, %v5373
        %v5392 = vadd.f32 %v5164, %v5376
        %v5393 = vadd.f32 %v5165, %v5381
        %v5394 = vadd.f32 %v5166, %v5384
        %s5395 = scalar_lea.vmem [#allocation7], 224
        %v5396 = vld [vmem:[%s5395] sm:$0xf]
        %v5397 = vld [vmem:[%s5395 + $0x4] sm:$0xf]
        %v5398 = vld [vmem:[%s5395 + $0x8] sm:$0xf]
        %v5399 = vld [vmem:[%s5395 + $0xc] sm:$0xf]
        %v5400 = vld [vmem:[%s5395 + $0x10] sm:$0xf]
        %v5401 = vld [vmem:[%s5395 + $0x14] sm:$0xf]
        %v5402 = vld [vmem:[%s5395 + $0x18] sm:$0xf]
        %v5403 = vld [vmem:[%s5395 + $0x1c] sm:$0xf]
        %v5412 = vunpack.c.l.b16 %v5396
        %v5413 = vunpack.c.l.b16 %v5397
        %v5414 = vunpack.c.l.b16 %v5398
        %v5415 = vunpack.c.l.b16 %v5399
        %v5416 = vunpack.c.l.b16 %v5400
        %v5417 = vunpack.c.l.b16 %v5401
        %v5418 = vunpack.c.l.b16 %v5402
        %v5419 = vunpack.c.l.b16 %v5403
        %v5420 = vpack.c.b16 %v5413, %v5412
        %v5421 = vpack.c.b16 %v5415, %v5414
        %v5422 = vpack.c.b16 %v5417, %v5416
        %v5423 = vpack.c.b16 %v5419, %v5418
        %v5425 = vsel %vm1027, %v5420, 0
        %v5428 = vsel %vm1027, %v5421, 0
        %v5431 = vsel %vm1027, %v5422, 0
        %v5434 = vsel %vm1027, %v5423, 0
        %5436 = vmatprep.subr.bf16.mxu0 0
        %5437 = vmatpush1.bf16.msra.mxu0 0
        %5438 = vmatprep.subr.bf16.mxu0 0
        %5439 = vmatpush1.bf16.msra.mxu0 0
        %5440 = vmatprep.subr.bf16.mxu0 0
        %5441 = vmatpush1.bf16.msra.mxu0 0
        %5442 = vmatprep.subr.bf16.mxu0 0
        %5443 = vmatpush1.bf16.msra.mxu0 0
        %5444 = vmatprep.subr.bf16.mxu0 0
        %5445 = vmatpush1.bf16.msra.mxu0 %v3816
        %5446 = vmatprep.subr.bf16.mxu0 0
        %5447 = vmatpush1.bf16.msra.mxu0 %v3815
        %5448 = vmatprep.subr.bf16.mxu0 0
        %5449 = vmatpush1.bf16.msra.mxu0 %v3814
        %5450 = vmatprep.subr.bf16.mxu0 0
        %5451 = vmatpush1.bf16.msra.mxu0 %v3813
        %5452 = vmatprep.subr.bf16.mxu0 0
        %5453 = vmatpush2.bf16.msra.mxu0 0
        %5454 = vmatprep.subr.bf16.mxu0 0
        %5455 = vmatpush2.bf16.msra.mxu0 0
        %5456 = vmatprep.subr.bf16.mxu0 0
        %5457 = vmatpush2.bf16.msra.mxu0 0
        %5458 = vmatprep.subr.bf16.mxu0 0
        %5459 = vmatpush2.bf16.msra.mxu0 0
        %5460 = vmatprep.subr.bf16.mxu0 0
        %5461 = vmatpush2.bf16.msra.mxu0 0
        %5462 = vmatprep.subr.bf16.mxu0 0
        %5463 = vmatpush2.bf16.msra.mxu0 0
        %5464 = vmatprep.subr.bf16.mxu0 0
        %5465 = vmatpush2.bf16.msra.mxu0 0
        %5466 = vmatprep.subr.bf16.mxu0 0
        %5467 = vmatpush2.bf16.msra.mxu0 0
        %5468 = vmatprep.mubr.bf16.mxu0 0
        %5469 = vmatmul.mubr.bf16.gmra.mxu0 %v5425
        %v5470 = vpop.f32.mrf.mxu0
        %v5471 = vadd.f32 0.0, %v5470
        %v5472 = vpop.f32.mrf.mxu0
        %v5473 = vpop.f32.mrf.mxu0
        %v5474 = vadd.f32 0.0, %v5473
        %v5475 = vpop.f32.mrf.mxu0
        %5476 = vmatprep.mubr.bf16.mxu0 0
        %5477 = vmatmul.mubr.bf16.gmra.mxu0 %v5428
        %v5478 = vpop.f32.mrf.mxu0
        %v5479 = vadd.f32 0.0, %v5478
        %v5480 = vpop.f32.mrf.mxu0
        %v5481 = vpop.f32.mrf.mxu0
        %v5482 = vadd.f32 0.0, %v5481
        %v5483 = vpop.f32.mrf.mxu0
        %5484 = vmatprep.mubr.bf16.mxu0 0
        %5485 = vmatmul.mubr.bf16.gmra.mxu0 %v5431
        %v5486 = vpop.f32.mrf.mxu0
        %v5487 = vadd.f32 0.0, %v5486
        %v5488 = vpop.f32.mrf.mxu0
        %v5489 = vpop.f32.mrf.mxu0
        %v5490 = vadd.f32 0.0, %v5489
        %v5491 = vpop.f32.mrf.mxu0
        %5492 = vmatprep.mubr.bf16.mxu0 0
        %5493 = vmatmul.mubr.bf16.gmra.mxu0 %v5434
        %v5494 = vpop.f32.mrf.mxu0
        %v5495 = vadd.f32 0.0, %v5494
        %v5496 = vpop.f32.mrf.mxu0
        %v5497 = vpop.f32.mrf.mxu0
        %v5498 = vadd.f32 0.0, %v5497
        %v5499 = vpop.f32.mrf.mxu0
        %5500 = vdwg.mxu0
        %v5501 = vpack.c.bf16 %v5474, %v5471
        %v5502 = vpack.c.bf16 %v5482, %v5479
        %v5503 = vpack.c.bf16 %v5490, %v5487
        %v5504 = vpack.c.bf16 %v5498, %v5495
        %s5505 = scalar_lea.vmem %s11, 224
        %v5506 = vld [vmem:[%s5505] sm:$0xf]
        %v5507 = vld [vmem:[%s5505 + $0x4] sm:$0xf]
        %v5508 = vld [vmem:[%s5505 + $0x8] sm:$0xf]
        %v5509 = vld [vmem:[%s5505 + $0xc] sm:$0xf]
        %v5510 = vld [vmem:[%s5505 + $0x10] sm:$0xf]
        %v5511 = vld [vmem:[%s5505 + $0x14] sm:$0xf]
        %v5512 = vld [vmem:[%s5505 + $0x18] sm:$0xf]
        %v5513 = vld [vmem:[%s5505 + $0x1c] sm:$0xf]
        %v5522 = vunpack.c.l.b16 %v5506
        %v5523 = vunpack.c.l.b16 %v5507
        %v5524 = vunpack.c.l.b16 %v5508
        %v5525 = vunpack.c.l.b16 %v5509
        %v5526 = vunpack.c.l.b16 %v5510
        %v5527 = vunpack.c.l.b16 %v5511
        %v5528 = vunpack.c.l.b16 %v5512
        %v5529 = vunpack.c.l.b16 %v5513
        %v5530 = vpack.c.b16 %v5523, %v5522
        %v5531 = vpack.c.b16 %v5525, %v5524
        %v5532 = vpack.c.b16 %v5527, %v5526
        %v5533 = vpack.c.b16 %v5529, %v5528
        %v5539 = vsel %vm1027, %v5501, 0
        %v5542 = vsel %vm1027, %v5502, 0
        %v5545 = vsel %vm1027, %v5503, 0
        %v5548 = vsel %vm1027, %v5504, 0
        %5550 = vmatprep.subr.bf16.mxu0 0
        %5551 = vmatpush1.bf16.msra.mxu0 0
        %5552 = vmatprep.subr.bf16.mxu0 0
        %5553 = vmatpush1.bf16.msra.mxu0 0
        %5554 = vmatprep.subr.bf16.mxu0 0
        %5555 = vmatpush1.bf16.msra.mxu0 0
        %5556 = vmatprep.subr.bf16.mxu0 0
        %5557 = vmatpush1.bf16.msra.mxu0 0
        %5558 = vmatprep.subr.bf16.mxu0 0
        %5559 = vmatpush1.bf16.msra.mxu0 %v5533
        %5560 = vmatprep.subr.bf16.mxu0 0
        %5561 = vmatpush1.bf16.msra.mxu0 %v5532
        %5562 = vmatprep.subr.bf16.mxu0 0
        %5563 = vmatpush1.bf16.msra.mxu0 %v5531
        %5564 = vmatprep.subr.bf16.mxu0 0
        %5565 = vmatpush1.bf16.msra.mxu0 %v5530
        %5566 = vmatprep.subr.bf16.mxu0 0
        %5567 = vmatpush2.bf16.msra.mxu0 0
        %5568 = vmatprep.subr.bf16.mxu0 0
        %5569 = vmatpush2.bf16.msra.mxu0 0
        %5570 = vmatprep.subr.bf16.mxu0 0
        %5571 = vmatpush2.bf16.msra.mxu0 0
        %5572 = vmatprep.subr.bf16.mxu0 0
        %5573 = vmatpush2.bf16.msra.mxu0 0
        %5574 = vmatprep.subr.bf16.mxu0 0
        %5575 = vmatpush2.bf16.msra.mxu0 0
        %5576 = vmatprep.subr.bf16.mxu0 0
        %5577 = vmatpush2.bf16.msra.mxu0 0
        %5578 = vmatprep.subr.bf16.mxu0 0
        %5579 = vmatpush2.bf16.msra.mxu0 0
        %5580 = vmatprep.subr.bf16.mxu0 0
        %5581 = vmatpush2.bf16.msra.mxu0 0
        %5582 = vmatprep.mubr.bf16.mxu0 0
        %5583 = vmatmul.mubr.bf16.gmra.mxu0 %v5539
        %v5584 = vpop.f32.mrf.mxu0
        %v5585 = vadd.f32 0.0, %v5584
        %v5586 = vpop.f32.mrf.mxu0
        %v5587 = vpop.f32.mrf.mxu0
        %v5588 = vadd.f32 0.0, %v5587
        %v5589 = vpop.f32.mrf.mxu0
        %5590 = vmatprep.mubr.bf16.mxu0 0
        %5591 = vmatmul.mubr.bf16.gmra.mxu0 %v5542
        %v5592 = vpop.f32.mrf.mxu0
        %v5593 = vadd.f32 0.0, %v5592
        %v5594 = vpop.f32.mrf.mxu0
        %v5595 = vpop.f32.mrf.mxu0
        %v5596 = vadd.f32 0.0, %v5595
        %v5597 = vpop.f32.mrf.mxu0
        %5598 = vmatprep.mubr.bf16.mxu0 0
        %5599 = vmatmul.mubr.bf16.gmra.mxu0 %v5545
        %v5600 = vpop.f32.mrf.mxu0
        %v5601 = vadd.f32 0.0, %v5600
        %v5602 = vpop.f32.mrf.mxu0
        %v5603 = vpop.f32.mrf.mxu0
        %v5604 = vadd.f32 0.0, %v5603
        %v5605 = vpop.f32.mrf.mxu0
        %5606 = vmatprep.mubr.bf16.mxu0 0
        %5607 = vmatmul.mubr.bf16.gmra.mxu0 %v5548
        %v5608 = vpop.f32.mrf.mxu0
        %v5609 = vadd.f32 0.0, %v5608
        %v5610 = vpop.f32.mrf.mxu0
        %v5611 = vpop.f32.mrf.mxu0
        %v5612 = vadd.f32 0.0, %v5611
        %v5613 = vpop.f32.mrf.mxu0
        %5614 = vdwg.mxu0
        %v5615 = vadd.f32 %v5387, %v5585
        %v5616 = vadd.f32 %v5388, %v5588
        %v5617 = vadd.f32 %v5389, %v5593
        %v5618 = vadd.f32 %v5390, %v5596
        %v5619 = vadd.f32 %v5391, %v5601
        %v5620 = vadd.f32 %v5392, %v5604
        %v5621 = vadd.f32 %v5393, %v5609
        %v5622 = vadd.f32 %v5394, %v5612
        %s5623 = scalar_lea.vmem [#allocation7], 256
        %v5624 = vld [vmem:[%s5623] sm:$0xf]
        %v5625 = vld [vmem:[%s5623 + $0x4] sm:$0xf]
        %v5626 = vld [vmem:[%s5623 + $0x8] sm:$0xf]
        %v5627 = vld [vmem:[%s5623 + $0xc] sm:$0xf]
        %v5628 = vld [vmem:[%s5623 + $0x10] sm:$0xf]
        %v5629 = vld [vmem:[%s5623 + $0x14] sm:$0xf]
        %v5630 = vld [vmem:[%s5623 + $0x18] sm:$0xf]
        %v5631 = vld [vmem:[%s5623 + $0x1c] sm:$0xf]
        %v5640 = vunpack.c.l.b16 %v5624
        %v5641 = vunpack.c.l.b16 %v5625
        %v5642 = vunpack.c.l.b16 %v5626
        %v5643 = vunpack.c.l.b16 %v5627
        %v5644 = vunpack.c.l.b16 %v5628
        %v5645 = vunpack.c.l.b16 %v5629
        %v5646 = vunpack.c.l.b16 %v5630
        %v5647 = vunpack.c.l.b16 %v5631
        %v5648 = vpack.c.b16 %v5641, %v5640
        %v5649 = vpack.c.b16 %v5643, %v5642
        %v5650 = vpack.c.b16 %v5645, %v5644
        %v5651 = vpack.c.b16 %v5647, %v5646
        %v5653 = vsel %vm1027, %v5648, 0
        %v5656 = vsel %vm1027, %v5649, 0
        %v5659 = vsel %vm1027, %v5650, 0
        %v5662 = vsel %vm1027, %v5651, 0
        %5664 = vmatprep.subr.bf16.mxu0 0
        %5665 = vmatpush1.bf16.msra.mxu0 0
        %5666 = vmatprep.subr.bf16.mxu0 0
        %5667 = vmatpush1.bf16.msra.mxu0 0
        %5668 = vmatprep.subr.bf16.mxu0 0
        %5669 = vmatpush1.bf16.msra.mxu0 0
        %5670 = vmatprep.subr.bf16.mxu0 0
        %5671 = vmatpush1.bf16.msra.mxu0 0
        %5672 = vmatprep.subr.bf16.mxu0 0
        %5673 = vmatpush1.bf16.msra.mxu0 %v3816
        %5674 = vmatprep.subr.bf16.mxu0 0
        %5675 = vmatpush1.bf16.msra.mxu0 %v3815
        %5676 = vmatprep.subr.bf16.mxu0 0
        %5677 = vmatpush1.bf16.msra.mxu0 %v3814
        %5678 = vmatprep.subr.bf16.mxu0 0
        %5679 = vmatpush1.bf16.msra.mxu0 %v3813
        %5680 = vmatprep.subr.bf16.mxu0 0
        %5681 = vmatpush2.bf16.msra.mxu0 0
        %5682 = vmatprep.subr.bf16.mxu0 0
        %5683 = vmatpush2.bf16.msra.mxu0 0
        %5684 = vmatprep.subr.bf16.mxu0 0
        %5685 = vmatpush2.bf16.msra.mxu0 0
        %5686 = vmatprep.subr.bf16.mxu0 0
        %5687 = vmatpush2.bf16.msra.mxu0 0
        %5688 = vmatprep.subr.bf16.mxu0 0
        %5689 = vmatpush2.bf16.msra.mxu0 0
        %5690 = vmatprep.subr.bf16.mxu0 0
        %5691 = vmatpush2.bf16.msra.mxu0 0
        %5692 = vmatprep.subr.bf16.mxu0 0
        %5693 = vmatpush2.bf16.msra.mxu0 0
        %5694 = vmatprep.subr.bf16.mxu0 0
        %5695 = vmatpush2.bf16.msra.mxu0 0
        %5696 = vmatprep.mubr.bf16.mxu0 0
        %5697 = vmatmul.mubr.bf16.gmra.mxu0 %v5653
        %v5698 = vpop.f32.mrf.mxu0
        %v5699 = vadd.f32 0.0, %v5698
        %v5700 = vpop.f32.mrf.mxu0
        %v5701 = vpop.f32.mrf.mxu0
        %v5702 = vadd.f32 0.0, %v5701
        %v5703 = vpop.f32.mrf.mxu0
        %5704 = vmatprep.mubr.bf16.mxu0 0
        %5705 = vmatmul.mubr.bf16.gmra.mxu0 %v5656
        %v5706 = vpop.f32.mrf.mxu0
        %v5707 = vadd.f32 0.0, %v5706
        %v5708 = vpop.f32.mrf.mxu0
        %v5709 = vpop.f32.mrf.mxu0
        %v5710 = vadd.f32 0.0, %v5709
        %v5711 = vpop.f32.mrf.mxu0
        %5712 = vmatprep.mubr.bf16.mxu0 0
        %5713 = vmatmul.mubr.bf16.gmra.mxu0 %v5659
        %v5714 = vpop.f32.mrf.mxu0
        %v5715 = vadd.f32 0.0, %v5714
        %v5716 = vpop.f32.mrf.mxu0
        %v5717 = vpop.f32.mrf.mxu0
        %v5718 = vadd.f32 0.0, %v5717
        %v5719 = vpop.f32.mrf.mxu0
        %5720 = vmatprep.mubr.bf16.mxu0 0
        %5721 = vmatmul.mubr.bf16.gmra.mxu0 %v5662
        %v5722 = vpop.f32.mrf.mxu0
        %v5723 = vadd.f32 0.0, %v5722
        %v5724 = vpop.f32.mrf.mxu0
        %v5725 = vpop.f32.mrf.mxu0
        %v5726 = vadd.f32 0.0, %v5725
        %v5727 = vpop.f32.mrf.mxu0
        %5728 = vdwg.mxu0
        %v5729 = vpack.c.bf16 %v5702, %v5699
        %v5730 = vpack.c.bf16 %v5710, %v5707
        %v5731 = vpack.c.bf16 %v5718, %v5715
        %v5732 = vpack.c.bf16 %v5726, %v5723
        %s5733 = scalar_lea.vmem %s11, 256
        %v5734 = vld [vmem:[%s5733] sm:$0xf]
        %v5735 = vld [vmem:[%s5733 + $0x4] sm:$0xf]
        %v5736 = vld [vmem:[%s5733 + $0x8] sm:$0xf]
        %v5737 = vld [vmem:[%s5733 + $0xc] sm:$0xf]
        %v5738 = vld [vmem:[%s5733 + $0x10] sm:$0xf]
        %v5739 = vld [vmem:[%s5733 + $0x14] sm:$0xf]
        %v5740 = vld [vmem:[%s5733 + $0x18] sm:$0xf]
        %v5741 = vld [vmem:[%s5733 + $0x1c] sm:$0xf]
        %v5750 = vunpack.c.l.b16 %v5734
        %v5751 = vunpack.c.l.b16 %v5735
        %v5752 = vunpack.c.l.b16 %v5736
        %v5753 = vunpack.c.l.b16 %v5737
        %v5754 = vunpack.c.l.b16 %v5738
        %v5755 = vunpack.c.l.b16 %v5739
        %v5756 = vunpack.c.l.b16 %v5740
        %v5757 = vunpack.c.l.b16 %v5741
        %v5758 = vpack.c.b16 %v5751, %v5750
        %v5759 = vpack.c.b16 %v5753, %v5752
        %v5760 = vpack.c.b16 %v5755, %v5754
        %v5761 = vpack.c.b16 %v5757, %v5756
        %v5767 = vsel %vm1027, %v5729, 0
        %v5770 = vsel %vm1027, %v5730, 0
        %v5773 = vsel %vm1027, %v5731, 0
        %v5776 = vsel %vm1027, %v5732, 0
        %5778 = vmatprep.subr.bf16.mxu0 0
        %5779 = vmatpush1.bf16.msra.mxu0 0
        %5780 = vmatprep.subr.bf16.mxu0 0
        %5781 = vmatpush1.bf16.msra.mxu0 0
        %5782 = vmatprep.subr.bf16.mxu0 0
        %5783 = vmatpush1.bf16.msra.mxu0 0
        %5784 = vmatprep.subr.bf16.mxu0 0
        %5785 = vmatpush1.bf16.msra.mxu0 0
        %5786 = vmatprep.subr.bf16.mxu0 0
        %5787 = vmatpush1.bf16.msra.mxu0 %v5761
        %5788 = vmatprep.subr.bf16.mxu0 0
        %5789 = vmatpush1.bf16.msra.mxu0 %v5760
        %5790 = vmatprep.subr.bf16.mxu0 0
        %5791 = vmatpush1.bf16.msra.mxu0 %v5759
        %5792 = vmatprep.subr.bf16.mxu0 0
        %5793 = vmatpush1.bf16.msra.mxu0 %v5758
        %5794 = vmatprep.subr.bf16.mxu0 0
        %5795 = vmatpush2.bf16.msra.mxu0 0
        %5796 = vmatprep.subr.bf16.mxu0 0
        %5797 = vmatpush2.bf16.msra.mxu0 0
        %5798 = vmatprep.subr.bf16.mxu0 0
        %5799 = vmatpush2.bf16.msra.mxu0 0
        %5800 = vmatprep.subr.bf16.mxu0 0
        %5801 = vmatpush2.bf16.msra.mxu0 0
        %5802 = vmatprep.subr.bf16.mxu0 0
        %5803 = vmatpush2.bf16.msra.mxu0 0
        %5804 = vmatprep.subr.bf16.mxu0 0
        %5805 = vmatpush2.bf16.msra.mxu0 0
        %5806 = vmatprep.subr.bf16.mxu0 0
        %5807 = vmatpush2.bf16.msra.mxu0 0
        %5808 = vmatprep.subr.bf16.mxu0 0
        %5809 = vmatpush2.bf16.msra.mxu0 0
        %5810 = vmatprep.mubr.bf16.mxu0 0
        %5811 = vmatmul.mubr.bf16.gmra.mxu0 %v5767
        %v5812 = vpop.f32.mrf.mxu0
        %v5813 = vadd.f32 0.0, %v5812
        %v5814 = vpop.f32.mrf.mxu0
        %v5815 = vpop.f32.mrf.mxu0
        %v5816 = vadd.f32 0.0, %v5815
        %v5817 = vpop.f32.mrf.mxu0
        %5818 = vmatprep.mubr.bf16.mxu0 0
        %5819 = vmatmul.mubr.bf16.gmra.mxu0 %v5770
        %v5820 = vpop.f32.mrf.mxu0
        %v5821 = vadd.f32 0.0, %v5820
        %v5822 = vpop.f32.mrf.mxu0
        %v5823 = vpop.f32.mrf.mxu0
        %v5824 = vadd.f32 0.0, %v5823
        %v5825 = vpop.f32.mrf.mxu0
        %5826 = vmatprep.mubr.bf16.mxu0 0
        %5827 = vmatmul.mubr.bf16.gmra.mxu0 %v5773
        %v5828 = vpop.f32.mrf.mxu0
        %v5829 = vadd.f32 0.0, %v5828
        %v5830 = vpop.f32.mrf.mxu0
        %v5831 = vpop.f32.mrf.mxu0
        %v5832 = vadd.f32 0.0, %v5831
        %v5833 = vpop.f32.mrf.mxu0
        %5834 = vmatprep.mubr.bf16.mxu0 0
        %5835 = vmatmul.mubr.bf16.gmra.mxu0 %v5776
        %v5836 = vpop.f32.mrf.mxu0
        %v5837 = vadd.f32 0.0, %v5836
        %v5838 = vpop.f32.mrf.mxu0
        %v5839 = vpop.f32.mrf.mxu0
        %v5840 = vadd.f32 0.0, %v5839
        %v5841 = vpop.f32.mrf.mxu0
        %5842 = vdwg.mxu0
        %v5843 = vadd.f32 %v5615, %v5813
        %v5844 = vadd.f32 %v5616, %v5816
        %v5845 = vadd.f32 %v5617, %v5821
        %v5846 = vadd.f32 %v5618, %v5824
        %v5847 = vadd.f32 %v5619, %v5829
        %v5848 = vadd.f32 %v5620, %v5832
        %v5849 = vadd.f32 %v5621, %v5837
        %v5850 = vadd.f32 %v5622, %v5840
        %v5851 = vld [vmem:[%s12] sm:$0x1]
        %v5853 = vlaneseq
        %v5854 = vshrl.u32 %v5853, 7
        %v5855 = vsub.s32 0, %v5854
        %v5856 = vrot.slane %v5851, %v5855
        %v5858 = vadd.f32 %v5843, %v5856
        %v5859 = vadd.f32 %v5844, %v5856
        %v5860 = vadd.f32 %v5845, %v5856
        %v5861 = vadd.f32 %v5846, %v5856
        %v5862 = vadd.f32 %v5847, %v5856
        %v5863 = vadd.f32 %v5848, %v5856
        %v5864 = vadd.f32 %v5849, %v5856
        %v5865 = vadd.f32 %v5850, %v5856
        %v5866 = vmax.f32 %v5858, 0.0
        %v5867 = vmax.f32 %v5859, 0.0
        %v5868 = vmax.f32 %v5860, 0.0
        %v5869 = vmax.f32 %v5861, 0.0
        %v5870 = vmax.f32 %v5862, 0.0
        %v5871 = vmax.f32 %v5863, 0.0
        %v5872 = vmax.f32 %v5864, 0.0
        %v5873 = vmax.f32 %v5865, 0.0
        %v5874 = vand.u32 2147483647, %v5858
        %v5875 = vand.u32 2147483647, %v5859
        %v5876 = vand.u32 2147483647, %v5860
        %v5877 = vand.u32 2147483647, %v5861
        %v5878 = vand.u32 2147483647, %v5862
        %v5879 = vand.u32 2147483647, %v5863
        %v5880 = vand.u32 2147483647, %v5864
        %v5881 = vand.u32 2147483647, %v5865
        %v5882 = vsub.f32 0.0, %v5874
        %v5883 = vsub.f32 0.0, %v5875
        %v5884 = vsub.f32 0.0, %v5876
        %v5885 = vsub.f32 0.0, %v5877
        %v5886 = vsub.f32 0.0, %v5878
        %v5887 = vsub.f32 0.0, %v5879
        %v5888 = vsub.f32 0.0, %v5880
        %v5889 = vsub.f32 0.0, %v5881
        %v5890 = vmul.f32 %v5882, 1.442695
        %v5891 = vpow.pop %v5890
        %v5892 = vmul.f32 %v5883, 1.442695
        %v5893 = vpow.pop %v5892
        %v5894 = vmul.f32 %v5884, 1.442695
        %v5895 = vpow.pop %v5894
        %v5896 = vmul.f32 %v5885, 1.442695
        %v5897 = vpow.pop %v5896
        %v5898 = vmul.f32 %v5886, 1.442695
        %v5899 = vpow.pop %v5898
        %v5900 = vmul.f32 %v5887, 1.442695
        %v5901 = vpow.pop %v5900
        %v5902 = vmul.f32 %v5888, 1.442695
        %v5903 = vpow.pop %v5902
        %v5904 = vmul.f32 %v5889, 1.442695
        %v5905 = vpow.pop %v5904
        %v5906 = vadd.f32 %v5891, 1.0
        %v5907 = vlog2.pop %v5906
        %v5908 = vmul.f32 %v5907, 0.6931472
        %v5909 = vmul.f32 -0.5, %v5891
        %v5910 = vadd.f32 %v5909, 1.0
        %v5911 = vmul.f32 %v5910, %v5891
        %v5912 = vand.u32 2147483647, %v5891
        %vm5913 = vcmp.lt.f32.partialorder %v5912, 0.0004427343
        %v5914 = vsel %vm5913, %v5911, %v5908
        %v5915 = vadd.f32 %v5893, 1.0
        %v5916 = vlog2.pop %v5915
        %v5917 = vmul.f32 %v5916, 0.6931472
        %v5918 = vmul.f32 -0.5, %v5893
        %v5919 = vadd.f32 %v5918, 1.0
        %v5920 = vmul.f32 %v5919, %v5893
        %v5921 = vand.u32 2147483647, %v5893
        %vm5922 = vcmp.lt.f32.partialorder %v5921, 0.0004427343
        %v5923 = vsel %vm5922, %v5920, %v5917
        %v5924 = vadd.f32 %v5895, 1.0
        %v5925 = vlog2.pop %v5924
        %v5926 = vmul.f32 %v5925, 0.6931472
        %v5927 = vmul.f32 -0.5, %v5895
        %v5928 = vadd.f32 %v5927, 1.0
        %v5929 = vmul.f32 %v5928, %v5895
        %v5930 = vand.u32 2147483647, %v5895
        %vm5931 = vcmp.lt.f32.partialorder %v5930, 0.0004427343
        %v5932 = vsel %vm5931, %v5929, %v5926
        %v5933 = vadd.f32 %v5897, 1.0
        %v5934 = vlog2.pop %v5933
        %v5935 = vmul.f32 %v5934, 0.6931472
        %v5936 = vmul.f32 -0.5, %v5897
        %v5937 = vadd.f32 %v5936, 1.0
        %v5938 = vmul.f32 %v5937, %v5897
        %v5939 = vand.u32 2147483647, %v5897
        %vm5940 = vcmp.lt.f32.partialorder %v5939, 0.0004427343
        %v5941 = vsel %vm5940, %v5938, %v5935
        %v5942 = vadd.f32 %v5899, 1.0
        %v5943 = vlog2.pop %v5942
        %v5944 = vmul.f32 %v5943, 0.6931472
        %v5945 = vmul.f32 -0.5, %v5899
        %v5946 = vadd.f32 %v5945, 1.0
        %v5947 = vmul.f32 %v5946, %v5899
        %v5948 = vand.u32 2147483647, %v5899
        %vm5949 = vcmp.lt.f32.partialorder %v5948, 0.0004427343
        %v5950 = vsel %vm5949, %v5947, %v5944
        %v5951 = vadd.f32 %v5901, 1.0
        %v5952 = vlog2.pop %v5951
        %v5953 = vmul.f32 %v5952, 0.6931472
        %v5954 = vmul.f32 -0.5, %v5901
        %v5955 = vadd.f32 %v5954, 1.0
        %v5956 = vmul.f32 %v5955, %v5901
        %v5957 = vand.u32 2147483647, %v5901
        %vm5958 = vcmp.lt.f32.partialorder %v5957, 0.0004427343
        %v5959 = vsel %vm5958, %v5956, %v5953
        %v5960 = vadd.f32 %v5903, 1.0
        %v5961 = vlog2.pop %v5960
        %v5962 = vmul.f32 %v5961, 0.6931472
        %v5963 = vmul.f32 -0.5, %v5903
        %v5964 = vadd.f32 %v5963, 1.0
        %v5965 = vmul.f32 %v5964, %v5903
        %v5966 = vand.u32 2147483647, %v5903
        %vm5967 = vcmp.lt.f32.partialorder %v5966, 0.0004427343
        %v5968 = vsel %vm5967, %v5965, %v5962
        %v5969 = vadd.f32 %v5905, 1.0
        %v5970 = vlog2.pop %v5969
        %v5971 = vmul.f32 %v5970, 0.6931472
        %v5972 = vmul.f32 -0.5, %v5905
        %v5973 = vadd.f32 %v5972, 1.0
        %v5974 = vmul.f32 %v5973, %v5905
        %v5975 = vand.u32 2147483647, %v5905
        %vm5976 = vcmp.lt.f32.partialorder %v5975, 0.0004427343
        %v5977 = vsel %vm5976, %v5974, %v5971
        %v5978 = vadd.f32 %v5866, %v5914
        %v5979 = vadd.f32 %v5867, %v5923
        %v5980 = vadd.f32 %v5868, %v5932
        %v5981 = vadd.f32 %v5869, %v5941
        %v5982 = vadd.f32 %v5870, %v5950
        %v5983 = vadd.f32 %v5871, %v5959
        %v5984 = vadd.f32 %v5872, %v5968
        %v5985 = vadd.f32 %v5873, %v5977
        %v5986 = vtanh.pop %v5978
        %v5987 = vtanh.pop %v5979
        %v5988 = vtanh.pop %v5980
        %v5989 = vtanh.pop %v5981
        %v5990 = vtanh.pop %v5982
        %v5991 = vtanh.pop %v5983
        %v5992 = vtanh.pop %v5984
        %v5993 = vtanh.pop %v5985
        %v5994 = vmul.f32 %v5858, %v5986
        %v5995 = vmul.f32 %v5859, %v5987
        %v5996 = vmul.f32 %v5860, %v5988
        %v5997 = vmul.f32 %v5861, %v5989
        %v5998 = vmul.f32 %v5862, %v5990
        %v5999 = vmul.f32 %v5863, %v5991
        %v6000 = vmul.f32 %v5864, %v5992
        %v6001 = vmul.f32 %v5865, %v5993
        %v6002 = vadd.f32 %v3549, %v5994
        %v6003 = vadd.f32 %v3550, %v5995
        %v6004 = vadd.f32 %v3551, %v5996
        %v6005 = vadd.f32 %v3552, %v5997
        %v6006 = vadd.f32 %v3553, %v5998
        %v6007 = vadd.f32 %v3554, %v5999
        %v6008 = vadd.f32 %v3555, %v6000
        %v6009 = vadd.f32 %v3556, %v6001
        %v6010 = vpack.c.bf16 %v6003, %v6002
        %v6011 = vpack.c.bf16 %v6005, %v6004
        %v6012 = vpack.c.bf16 %v6007, %v6006
        %v6013 = vpack.c.bf16 %v6009, %v6008
        %s6014 = scalar_lea.vmem %s9, 32
        %v6015 = vld [vmem:[%s6014] sm:$0xf]
        %v6016 = vld [vmem:[%s6014 + $0x4] sm:$0xf]
        %v6017 = vld [vmem:[%s6014 + $0x8] sm:$0xf]
        %v6018 = vld [vmem:[%s6014 + $0xc] sm:$0xf]
        %v6019 = vld [vmem:[%s6014 + $0x10] sm:$0xf]
        %v6020 = vld [vmem:[%s6014 + $0x14] sm:$0xf]
        %v6021 = vld [vmem:[%s6014 + $0x18] sm:$0xf]
        %v6022 = vld [vmem:[%s6014 + $0x1c] sm:$0xf]
        %s6023 = scalar_lea.vmem %s10, 1
        %v6024 = vld [vmem:[%s6023] sm:$0x1]
        %v6026 = vlaneseq
        %v6027 = vshrl.u32 %v6026, 7
        %v6028 = vsub.s32 0, %v6027
        %v6029 = vrot.slane %v6024, %v6028
        %v6039 = vunpack.c.l.b16 %v6015
        %v6040 = vunpack.c.l.b16 %v6016
        %v6041 = vunpack.c.l.b16 %v6017
        %v6042 = vunpack.c.l.b16 %v6018
        %v6043 = vunpack.c.l.b16 %v6019
        %v6044 = vunpack.c.l.b16 %v6020
        %v6045 = vunpack.c.l.b16 %v6021
        %v6046 = vunpack.c.l.b16 %v6022
        %v6047 = vpack.c.b16 %v6040, %v6039
        %v6048 = vpack.c.b16 %v6042, %v6041
        %v6049 = vpack.c.b16 %v6044, %v6043
        %v6050 = vpack.c.b16 %v6046, %v6045
        %v6056 = vsel %vm1027, %v6010, 0
        %v6059 = vsel %vm1027, %v6011, 0
        %v6062 = vsel %vm1027, %v6012, 0
        %v6065 = vsel %vm1027, %v6013, 0
        %6067 = vmatprep.subr.bf16.mxu0 0
        %6068 = vmatpush1.bf16.msra.mxu0 0
        %6069 = vmatprep.subr.bf16.mxu0 0
        %6070 = vmatpush1.bf16.msra.mxu0 0
        %6071 = vmatprep.subr.bf16.mxu0 0
        %6072 = vmatpush1.bf16.msra.mxu0 0
        %6073 = vmatprep.subr.bf16.mxu0 0
        %6074 = vmatpush1.bf16.msra.mxu0 0
        %6075 = vmatprep.subr.bf16.mxu0 0
        %6076 = vmatpush1.bf16.msra.mxu0 %v6050
        %6077 = vmatprep.subr.bf16.mxu0 0
        %6078 = vmatpush1.bf16.msra.mxu0 %v6049
        %6079 = vmatprep.subr.bf16.mxu0 0
        %6080 = vmatpush1.bf16.msra.mxu0 %v6048
        %6081 = vmatprep.subr.bf16.mxu0 0
        %6082 = vmatpush1.bf16.msra.mxu0 %v6047
        %6083 = vmatprep.subr.bf16.mxu0 0
        %6084 = vmatpush2.bf16.msra.mxu0 0
        %6085 = vmatprep.subr.bf16.mxu0 0
        %6086 = vmatpush2.bf16.msra.mxu0 0
        %6087 = vmatprep.subr.bf16.mxu0 0
        %6088 = vmatpush2.bf16.msra.mxu0 0
        %6089 = vmatprep.subr.bf16.mxu0 0
        %6090 = vmatpush2.bf16.msra.mxu0 0
        %6091 = vmatprep.subr.bf16.mxu0 0
        %6092 = vmatpush2.bf16.msra.mxu0 0
        %6093 = vmatprep.subr.bf16.mxu0 0
        %6094 = vmatpush2.bf16.msra.mxu0 0
        %6095 = vmatprep.subr.bf16.mxu0 0
        %6096 = vmatpush2.bf16.msra.mxu0 0
        %6097 = vmatprep.subr.bf16.mxu0 0
        %6098 = vmatpush2.bf16.msra.mxu0 0
        %6099 = vmatprep.mubr.bf16.mxu0 0
        %6100 = vmatmul.mubr.bf16.gmra.mxu0 %v6056
        %v6101 = vpop.f32.mrf.mxu0
        %v6102 = vadd.f32 %v6029, %v6101
        %v6103 = vpop.f32.mrf.mxu0
        %v6104 = vpop.f32.mrf.mxu0
        %v6105 = vadd.f32 %v6029, %v6104
        %v6106 = vpop.f32.mrf.mxu0
        %6107 = vmatprep.mubr.bf16.mxu0 0
        %6108 = vmatmul.mubr.bf16.gmra.mxu0 %v6059
        %v6109 = vpop.f32.mrf.mxu0
        %v6110 = vadd.f32 %v6029, %v6109
        %v6111 = vpop.f32.mrf.mxu0
        %v6112 = vpop.f32.mrf.mxu0
        %v6113 = vadd.f32 %v6029, %v6112
        %v6114 = vpop.f32.mrf.mxu0
        %6115 = vmatprep.mubr.bf16.mxu0 0
        %6116 = vmatmul.mubr.bf16.gmra.mxu0 %v6062
        %v6117 = vpop.f32.mrf.mxu0
        %v6118 = vadd.f32 %v6029, %v6117
        %v6119 = vpop.f32.mrf.mxu0
        %v6120 = vpop.f32.mrf.mxu0
        %v6121 = vadd.f32 %v6029, %v6120
        %v6122 = vpop.f32.mrf.mxu0
        %6123 = vmatprep.mubr.bf16.mxu0 0
        %6124 = vmatmul.mubr.bf16.gmra.mxu0 %v6065
        %v6125 = vpop.f32.mrf.mxu0
        %v6126 = vadd.f32 %v6029, %v6125
        %v6127 = vpop.f32.mrf.mxu0
        %v6128 = vpop.f32.mrf.mxu0
        %v6129 = vadd.f32 %v6029, %v6128
        %v6130 = vpop.f32.mrf.mxu0
        %6131 = vdwg.mxu0
        %v6132 = vmax.f32 %v6102, 0.0
        %v6133 = vmax.f32 %v6105, 0.0
        %v6134 = vmax.f32 %v6110, 0.0
        %v6135 = vmax.f32 %v6113, 0.0
        %v6136 = vmax.f32 %v6118, 0.0
        %v6137 = vmax.f32 %v6121, 0.0
        %v6138 = vmax.f32 %v6126, 0.0
        %v6139 = vmax.f32 %v6129, 0.0
        %v6140 = vand.u32 2147483647, %v6102
        %v6141 = vand.u32 2147483647, %v6105
        %v6142 = vand.u32 2147483647, %v6110
        %v6143 = vand.u32 2147483647, %v6113
        %v6144 = vand.u32 2147483647, %v6118
        %v6145 = vand.u32 2147483647, %v6121
        %v6146 = vand.u32 2147483647, %v6126
        %v6147 = vand.u32 2147483647, %v6129
        %v6148 = vsub.f32 0.0, %v6140
        %v6149 = vsub.f32 0.0, %v6141
        %v6150 = vsub.f32 0.0, %v6142
        %v6151 = vsub.f32 0.0, %v6143
        %v6152 = vsub.f32 0.0, %v6144
        %v6153 = vsub.f32 0.0, %v6145
        %v6154 = vsub.f32 0.0, %v6146
        %v6155 = vsub.f32 0.0, %v6147
        %v6156 = vmul.f32 %v6148, 1.442695
        %v6157 = vpow.pop %v6156
        %v6158 = vmul.f32 %v6149, 1.442695
        %v6159 = vpow.pop %v6158
        %v6160 = vmul.f32 %v6150, 1.442695
        %v6161 = vpow.pop %v6160
        %v6162 = vmul.f32 %v6151, 1.442695
        %v6163 = vpow.pop %v6162
        %v6164 = vmul.f32 %v6152, 1.442695
        %v6165 = vpow.pop %v6164
        %v6166 = vmul.f32 %v6153, 1.442695
        %v6167 = vpow.pop %v6166
        %v6168 = vmul.f32 %v6154, 1.442695
        %v6169 = vpow.pop %v6168
        %v6170 = vmul.f32 %v6155, 1.442695
        %v6171 = vpow.pop %v6170
        %v6172 = vadd.f32 %v6157, 1.0
        %v6173 = vlog2.pop %v6172
        %v6174 = vmul.f32 %v6173, 0.6931472
        %v6175 = vmul.f32 -0.5, %v6157
        %v6176 = vadd.f32 %v6175, 1.0
        %v6177 = vmul.f32 %v6176, %v6157
        %v6178 = vand.u32 2147483647, %v6157
        %vm6179 = vcmp.lt.f32.partialorder %v6178, 0.0004427343
        %v6180 = vsel %vm6179, %v6177, %v6174
        %v6181 = vadd.f32 %v6159, 1.0
        %v6182 = vlog2.pop %v6181
        %v6183 = vmul.f32 %v6182, 0.6931472
        %v6184 = vmul.f32 -0.5, %v6159
        %v6185 = vadd.f32 %v6184, 1.0
        %v6186 = vmul.f32 %v6185, %v6159
        %v6187 = vand.u32 2147483647, %v6159
        %vm6188 = vcmp.lt.f32.partialorder %v6187, 0.0004427343
        %v6189 = vsel %vm6188, %v6186, %v6183
        %v6190 = vadd.f32 %v6161, 1.0
        %v6191 = vlog2.pop %v6190
        %v6192 = vmul.f32 %v6191, 0.6931472
        %v6193 = vmul.f32 -0.5, %v6161
        %v6194 = vadd.f32 %v6193, 1.0
        %v6195 = vmul.f32 %v6194, %v6161
        %v6196 = vand.u32 2147483647, %v6161
        %vm6197 = vcmp.lt.f32.partialorder %v6196, 0.0004427343
        %v6198 = vsel %vm6197, %v6195, %v6192
        %v6199 = vadd.f32 %v6163, 1.0
        %v6200 = vlog2.pop %v6199
        %v6201 = vmul.f32 %v6200, 0.6931472
        %v6202 = vmul.f32 -0.5, %v6163
        %v6203 = vadd.f32 %v6202, 1.0
        %v6204 = vmul.f32 %v6203, %v6163
        %v6205 = vand.u32 2147483647, %v6163
        %vm6206 = vcmp.lt.f32.partialorder %v6205, 0.0004427343
        %v6207 = vsel %vm6206, %v6204, %v6201
        %v6208 = vadd.f32 %v6165, 1.0
        %v6209 = vlog2.pop %v6208
        %v6210 = vmul.f32 %v6209, 0.6931472
        %v6211 = vmul.f32 -0.5, %v6165
        %v6212 = vadd.f32 %v6211, 1.0
        %v6213 = vmul.f32 %v6212, %v6165
        %v6214 = vand.u32 2147483647, %v6165
        %vm6215 = vcmp.lt.f32.partialorder %v6214, 0.0004427343
        %v6216 = vsel %vm6215, %v6213, %v6210
        %v6217 = vadd.f32 %v6167, 1.0
        %v6218 = vlog2.pop %v6217
        %v6219 = vmul.f32 %v6218, 0.6931472
        %v6220 = vmul.f32 -0.5, %v6167
        %v6221 = vadd.f32 %v6220, 1.0
        %v6222 = vmul.f32 %v6221, %v6167
        %v6223 = vand.u32 2147483647, %v6167
        %vm6224 = vcmp.lt.f32.partialorder %v6223, 0.0004427343
        %v6225 = vsel %vm6224, %v6222, %v6219
        %v6226 = vadd.f32 %v6169, 1.0
        %v6227 = vlog2.pop %v6226
        %v6228 = vmul.f32 %v6227, 0.6931472
        %v6229 = vmul.f32 -0.5, %v6169
        %v6230 = vadd.f32 %v6229, 1.0
        %v6231 = vmul.f32 %v6230, %v6169
        %v6232 = vand.u32 2147483647, %v6169
        %vm6233 = vcmp.lt.f32.partialorder %v6232, 0.0004427343
        %v6234 = vsel %vm6233, %v6231, %v6228
        %v6235 = vadd.f32 %v6171, 1.0
        %v6236 = vlog2.pop %v6235
        %v6237 = vmul.f32 %v6236, 0.6931472
        %v6238 = vmul.f32 -0.5, %v6171
        %v6239 = vadd.f32 %v6238, 1.0
        %v6240 = vmul.f32 %v6239, %v6171
        %v6241 = vand.u32 2147483647, %v6171
        %vm6242 = vcmp.lt.f32.partialorder %v6241, 0.0004427343
        %v6243 = vsel %vm6242, %v6240, %v6237
        %v6244 = vadd.f32 %v6132, %v6180
        %v6245 = vadd.f32 %v6133, %v6189
        %v6246 = vadd.f32 %v6134, %v6198
        %v6247 = vadd.f32 %v6135, %v6207
        %v6248 = vadd.f32 %v6136, %v6216
        %v6249 = vadd.f32 %v6137, %v6225
        %v6250 = vadd.f32 %v6138, %v6234
        %v6251 = vadd.f32 %v6139, %v6243
        %v6252 = vtanh.pop %v6244
        %v6253 = vtanh.pop %v6245
        %v6254 = vtanh.pop %v6246
        %v6255 = vtanh.pop %v6247
        %v6256 = vtanh.pop %v6248
        %v6257 = vtanh.pop %v6249
        %v6258 = vtanh.pop %v6250
        %v6259 = vtanh.pop %v6251
        %v6260 = vmul.f32 %v6102, %v6252
        %v6261 = vmul.f32 %v6105, %v6253
        %v6262 = vmul.f32 %v6110, %v6254
        %v6263 = vmul.f32 %v6113, %v6255
        %v6264 = vmul.f32 %v6118, %v6256
        %v6265 = vmul.f32 %v6121, %v6257
        %v6266 = vmul.f32 %v6126, %v6258
        %v6267 = vmul.f32 %v6129, %v6259
        %v6268 = vpack.c.bf16 %v6261, %v6260
        %v6269 = vpack.c.bf16 %v6263, %v6262
        %v6270 = vpack.c.bf16 %v6265, %v6264
        %v6271 = vpack.c.bf16 %v6267, %v6266
        %6272 = vmatprep.subr.bf16.mxu0 0
        %6273 = vmatpush1.bf16.msra.mxu0 0
        %6274 = vmatprep.subr.bf16.mxu0 0
        %6275 = vmatpush1.bf16.msra.mxu0 0
        %6276 = vmatprep.subr.bf16.mxu0 0
        %6277 = vmatpush1.bf16.msra.mxu0 0
        %6278 = vmatprep.subr.bf16.mxu0 0
        %6279 = vmatpush1.bf16.msra.mxu0 0
        %6280 = vmatprep.subr.bf16.mxu0 0
        %6281 = vmatpush1.bf16.msra.mxu0 %v6271
        %6282 = vmatprep.subr.bf16.mxu0 0
        %6283 = vmatpush1.bf16.msra.mxu0 %v6270
        %6284 = vmatprep.subr.bf16.mxu0 0
        %6285 = vmatpush1.bf16.msra.mxu0 %v6269
        %6286 = vmatprep.subr.bf16.mxu0 0
        %6287 = vmatpush1.bf16.msra.mxu0 %v6268
        %6288 = vmatprep.subr.bf16.mxu0 0
        %6289 = vmatpush2.bf16.msra.mxu0 0
        %6290 = vmatprep.subr.bf16.mxu0 0
        %6291 = vmatpush2.bf16.msra.mxu0 0
        %6292 = vmatprep.subr.bf16.mxu0 0
        %6293 = vmatpush2.bf16.msra.mxu0 0
        %6294 = vmatprep.subr.bf16.mxu0 0
        %6295 = vmatpush2.bf16.msra.mxu0 0
        %6296 = vmatprep.subr.bf16.mxu0 0
        %6297 = vmatpush2.bf16.msra.mxu0 0
        %6298 = vmatprep.subr.bf16.mxu0 0
        %6299 = vmatpush2.bf16.msra.mxu0 0
        %6300 = vmatprep.subr.bf16.mxu0 0
        %6301 = vmatpush2.bf16.msra.mxu0 0
        %6302 = vmatprep.subr.bf16.mxu0 0
        %6303 = vmatpush2.bf16.msra.mxu0 0
        %6304 = vmatprep.mubr.bf16.mxu0 0
        %6305 = vmatmul.mubr.bf16.gmra.mxu0 %v3846
        %v6306 = vpop.f32.mrf.mxu0
        %v6307 = vadd.f32 0.0, %v6306
        %v6308 = vpop.f32.mrf.mxu0
        %v6309 = vpop.f32.mrf.mxu0
        %v6310 = vadd.f32 0.0, %v6309
        %v6311 = vpop.f32.mrf.mxu0
        %6312 = vmatprep.mubr.bf16.mxu0 0
        %6313 = vmatmul.mubr.bf16.gmra.mxu0 %v3849
        %v6314 = vpop.f32.mrf.mxu0
        %v6315 = vadd.f32 0.0, %v6314
        %v6316 = vpop.f32.mrf.mxu0
        %v6317 = vpop.f32.mrf.mxu0
        %v6318 = vadd.f32 0.0, %v6317
        %v6319 = vpop.f32.mrf.mxu0
        %6320 = vmatprep.mubr.bf16.mxu0 0
        %6321 = vmatmul.mubr.bf16.gmra.mxu0 %v3852
        %v6322 = vpop.f32.mrf.mxu0
        %v6323 = vadd.f32 0.0, %v6322
        %v6324 = vpop.f32.mrf.mxu0
        %v6325 = vpop.f32.mrf.mxu0
        %v6326 = vadd.f32 0.0, %v6325
        %v6327 = vpop.f32.mrf.mxu0
        %6328 = vmatprep.mubr.bf16.mxu0 0
        %6329 = vmatmul.mubr.bf16.gmra.mxu0 %v3855
        %v6330 = vpop.f32.mrf.mxu0
        %v6331 = vadd.f32 0.0, %v6330
        %v6332 = vpop.f32.mrf.mxu0
        %v6333 = vpop.f32.mrf.mxu0
        %v6334 = vadd.f32 0.0, %v6333
        %v6335 = vpop.f32.mrf.mxu0
        %6336 = vdwg.mxu0
        %v6337 = vpack.c.bf16 %v6310, %v6307
        %v6338 = vpack.c.bf16 %v6318, %v6315
        %v6339 = vpack.c.bf16 %v6326, %v6323
        %v6340 = vpack.c.bf16 %v6334, %v6331
        %s6341 = scalar_lea.vmem %s11, 288
        %v6342 = vld [vmem:[%s6341] sm:$0xf]
        %v6343 = vld [vmem:[%s6341 + $0x4] sm:$0xf]
        %v6344 = vld [vmem:[%s6341 + $0x8] sm:$0xf]
        %v6345 = vld [vmem:[%s6341 + $0xc] sm:$0xf]
        %v6346 = vld [vmem:[%s6341 + $0x10] sm:$0xf]
        %v6347 = vld [vmem:[%s6341 + $0x14] sm:$0xf]
        %v6348 = vld [vmem:[%s6341 + $0x18] sm:$0xf]
        %v6349 = vld [vmem:[%s6341 + $0x1c] sm:$0xf]
        %6350 = vmatprep.subr.bf16.mxu0 0
        %6351 = vmatpush1.bf16.msra.mxu0 0
        %6352 = vmatprep.subr.bf16.mxu0 0
        %6353 = vmatpush1.bf16.msra.mxu0 0
        %6354 = vmatprep.subr.bf16.mxu0 0
        %6355 = vmatpush1.bf16.msra.mxu0 0
        %6356 = vmatprep.subr.bf16.mxu0 0
        %6357 = vmatpush1.bf16.msra.mxu0 0
        %6358 = vmatprep.subr.bf16.mxu0 0
        %6359 = vmatpush1.bf16.msra.mxu0 %v6271
        %6360 = vmatprep.subr.bf16.mxu0 0
        %6361 = vmatpush1.bf16.msra.mxu0 %v6270
        %6362 = vmatprep.subr.bf16.mxu0 0
        %6363 = vmatpush1.bf16.msra.mxu0 %v6269
        %6364 = vmatprep.subr.bf16.mxu0 0
        %6365 = vmatpush1.bf16.msra.mxu0 %v6268
        %6366 = vmatprep.subr.bf16.mxu0 0
        %6367 = vmatpush2.bf16.msra.mxu0 0
        %6368 = vmatprep.subr.bf16.mxu0 0
        %6369 = vmatpush2.bf16.msra.mxu0 0
        %6370 = vmatprep.subr.bf16.mxu0 0
        %6371 = vmatpush2.bf16.msra.mxu0 0
        %6372 = vmatprep.subr.bf16.mxu0 0
        %6373 = vmatpush2.bf16.msra.mxu0 0
        %6374 = vmatprep.subr.bf16.mxu0 0
        %6375 = vmatpush2.bf16.msra.mxu0 0
        %6376 = vmatprep.subr.bf16.mxu0 0
        %6377 = vmatpush2.bf16.msra.mxu0 0
        %6378 = vmatprep.subr.bf16.mxu0 0
        %6379 = vmatpush2.bf16.msra.mxu0 0
        %6380 = vmatprep.subr.bf16.mxu0 0
        %6381 = vmatpush2.bf16.msra.mxu0 0
        %6382 = vmatprep.mubr.bf16.mxu0 0
        %6383 = vmatmul.mubr.bf16.gmra.mxu0 %v3964
        %v6384 = vpop.f32.mrf.mxu0
        %v6385 = vadd.f32 0.0, %v6384
        %v6386 = vpop.f32.mrf.mxu0
        %v6387 = vpop.f32.mrf.mxu0
        %v6388 = vadd.f32 0.0, %v6387
        %v6389 = vpop.f32.mrf.mxu0
        %6390 = vmatprep.mubr.bf16.mxu0 0
        %6391 = vmatmul.mubr.bf16.gmra.mxu0 %v3967
        %v6392 = vpop.f32.mrf.mxu0
        %v6393 = vadd.f32 0.0, %v6392
        %v6394 = vpop.f32.mrf.mxu0
        %v6395 = vpop.f32.mrf.mxu0
        %v6396 = vadd.f32 0.0, %v6395
        %v6397 = vpop.f32.mrf.mxu0
        %6398 = vmatprep.mubr.bf16.mxu0 0
        %6399 = vmatmul.mubr.bf16.gmra.mxu0 %v3970
        %v6400 = vpop.f32.mrf.mxu0
        %v6401 = vadd.f32 0.0, %v6400
        %v6402 = vpop.f32.mrf.mxu0
        %v6403 = vpop.f32.mrf.mxu0
        %v6404 = vadd.f32 0.0, %v6403
        %v6405 = vpop.f32.mrf.mxu0
        %6406 = vmatprep.mubr.bf16.mxu0 0
        %6407 = vmatmul.mubr.bf16.gmra.mxu0 %v3973
        %v6408 = vpop.f32.mrf.mxu0
        %v6409 = vadd.f32 0.0, %v6408
        %v6410 = vpop.f32.mrf.mxu0
        %v6411 = vpop.f32.mrf.mxu0
        %v6412 = vadd.f32 0.0, %v6411
        %v6413 = vpop.f32.mrf.mxu0
        %6414 = vdwg.mxu0
        %v6415 = vpack.c.bf16 %v6388, %v6385
        %v6416 = vpack.c.bf16 %v6396, %v6393
        %v6417 = vpack.c.bf16 %v6404, %v6401
        %v6418 = vpack.c.bf16 %v6412, %v6409
        %s6419 = scalar_lea.vmem %s11, 320
        %v6420 = vld [vmem:[%s6419] sm:$0xf]
        %v6421 = vld [vmem:[%s6419 + $0x4] sm:$0xf]
        %v6422 = vld [vmem:[%s6419 + $0x8] sm:$0xf]
        %v6423 = vld [vmem:[%s6419 + $0xc] sm:$0xf]
        %v6424 = vld [vmem:[%s6419 + $0x10] sm:$0xf]
        %v6425 = vld [vmem:[%s6419 + $0x14] sm:$0xf]
        %v6426 = vld [vmem:[%s6419 + $0x18] sm:$0xf]
        %v6427 = vld [vmem:[%s6419 + $0x1c] sm:$0xf]
        %v6436 = vunpack.c.l.b16 %v6420
        %v6437 = vunpack.c.l.b16 %v6421
        %v6438 = vunpack.c.l.b16 %v6422
        %v6439 = vunpack.c.l.b16 %v6423
        %v6440 = vunpack.c.l.b16 %v6424
        %v6441 = vunpack.c.l.b16 %v6425
        %v6442 = vunpack.c.l.b16 %v6426
        %v6443 = vunpack.c.l.b16 %v6427
        %v6444 = vpack.c.b16 %v6437, %v6436
        %v6445 = vpack.c.b16 %v6439, %v6438
        %v6446 = vpack.c.b16 %v6441, %v6440
        %v6447 = vpack.c.b16 %v6443, %v6442
        %v6453 = vsel %vm1027, %v6415, 0
        %v6456 = vsel %vm1027, %v6416, 0
        %v6459 = vsel %vm1027, %v6417, 0
        %v6462 = vsel %vm1027, %v6418, 0
        %6464 = vmatprep.subr.bf16.mxu0 0
        %6465 = vmatpush1.bf16.msra.mxu0 0
        %6466 = vmatprep.subr.bf16.mxu0 0
        %6467 = vmatpush1.bf16.msra.mxu0 0
        %6468 = vmatprep.subr.bf16.mxu0 0
        %6469 = vmatpush1.bf16.msra.mxu0 0
        %6470 = vmatprep.subr.bf16.mxu0 0
        %6471 = vmatpush1.bf16.msra.mxu0 0
        %6472 = vmatprep.subr.bf16.mxu0 0
        %6473 = vmatpush1.bf16.msra.mxu0 %v6447
        %6474 = vmatprep.subr.bf16.mxu0 0
        %6475 = vmatpush1.bf16.msra.mxu0 %v6446
        %6476 = vmatprep.subr.bf16.mxu0 0
        %6477 = vmatpush1.bf16.msra.mxu0 %v6445
        %6478 = vmatprep.subr.bf16.mxu0 0
        %6479 = vmatpush1.bf16.msra.mxu0 %v6444
        %6480 = vmatprep.subr.bf16.mxu0 0
        %6481 = vmatpush2.bf16.msra.mxu0 0
        %6482 = vmatprep.subr.bf16.mxu0 0
        %6483 = vmatpush2.bf16.msra.mxu0 0
        %6484 = vmatprep.subr.bf16.mxu0 0
        %6485 = vmatpush2.bf16.msra.mxu0 0
        %6486 = vmatprep.subr.bf16.mxu0 0
        %6487 = vmatpush2.bf16.msra.mxu0 0
        %6488 = vmatprep.subr.bf16.mxu0 0
        %6489 = vmatpush2.bf16.msra.mxu0 0
        %6490 = vmatprep.subr.bf16.mxu0 0
        %6491 = vmatpush2.bf16.msra.mxu0 0
        %6492 = vmatprep.subr.bf16.mxu0 0
        %6493 = vmatpush2.bf16.msra.mxu0 0
        %6494 = vmatprep.subr.bf16.mxu0 0
        %6495 = vmatpush2.bf16.msra.mxu0 0
        %6496 = vmatprep.mubr.bf16.mxu0 0
        %6497 = vmatmul.mubr.bf16.gmra.mxu0 %v6453
        %v6498 = vpop.f32.mrf.mxu0
        %v6499 = vadd.f32 0.0, %v6498
        %v6500 = vpop.f32.mrf.mxu0
        %v6501 = vpop.f32.mrf.mxu0
        %v6502 = vadd.f32 0.0, %v6501
        %v6503 = vpop.f32.mrf.mxu0
        %6504 = vmatprep.mubr.bf16.mxu0 0
        %6505 = vmatmul.mubr.bf16.gmra.mxu0 %v6456
        %v6506 = vpop.f32.mrf.mxu0
        %v6507 = vadd.f32 0.0, %v6506
        %v6508 = vpop.f32.mrf.mxu0
        %v6509 = vpop.f32.mrf.mxu0
        %v6510 = vadd.f32 0.0, %v6509
        %v6511 = vpop.f32.mrf.mxu0
        %6512 = vmatprep.mubr.bf16.mxu0 0
        %6513 = vmatmul.mubr.bf16.gmra.mxu0 %v6459
        %v6514 = vpop.f32.mrf.mxu0
        %v6515 = vadd.f32 0.0, %v6514
        %v6516 = vpop.f32.mrf.mxu0
        %v6517 = vpop.f32.mrf.mxu0
        %v6518 = vadd.f32 0.0, %v6517
        %v6519 = vpop.f32.mrf.mxu0
        %6520 = vmatprep.mubr.bf16.mxu0 0
        %6521 = vmatmul.mubr.bf16.gmra.mxu0 %v6462
        %v6522 = vpop.f32.mrf.mxu0
        %v6523 = vadd.f32 0.0, %v6522
        %v6524 = vpop.f32.mrf.mxu0
        %v6525 = vpop.f32.mrf.mxu0
        %v6526 = vadd.f32 0.0, %v6525
        %v6527 = vpop.f32.mrf.mxu0
        %6528 = vdwg.mxu0
        %v6537 = vunpack.c.l.b16 %v6342
        %v6538 = vunpack.c.l.b16 %v6343
        %v6539 = vunpack.c.l.b16 %v6344
        %v6540 = vunpack.c.l.b16 %v6345
        %v6541 = vunpack.c.l.b16 %v6346
        %v6542 = vunpack.c.l.b16 %v6347
        %v6543 = vunpack.c.l.b16 %v6348
        %v6544 = vunpack.c.l.b16 %v6349
        %v6545 = vpack.c.b16 %v6538, %v6537
        %v6546 = vpack.c.b16 %v6540, %v6539
        %v6547 = vpack.c.b16 %v6542, %v6541
        %v6548 = vpack.c.b16 %v6544, %v6543
        %v6554 = vsel %vm1027, %v6337, 0
        %v6557 = vsel %vm1027, %v6338, 0
        %v6560 = vsel %vm1027, %v6339, 0
        %v6563 = vsel %vm1027, %v6340, 0
        %6565 = vmatprep.subr.bf16.mxu0 0
        %6566 = vmatpush1.bf16.msra.mxu0 0
        %6567 = vmatprep.subr.bf16.mxu0 0
        %6568 = vmatpush1.bf16.msra.mxu0 0
        %6569 = vmatprep.subr.bf16.mxu0 0
        %6570 = vmatpush1.bf16.msra.mxu0 0
        %6571 = vmatprep.subr.bf16.mxu0 0
        %6572 = vmatpush1.bf16.msra.mxu0 0
        %6573 = vmatprep.subr.bf16.mxu0 0
        %6574 = vmatpush1.bf16.msra.mxu0 %v6548
        %6575 = vmatprep.subr.bf16.mxu0 0
        %6576 = vmatpush1.bf16.msra.mxu0 %v6547
        %6577 = vmatprep.subr.bf16.mxu0 0
        %6578 = vmatpush1.bf16.msra.mxu0 %v6546
        %6579 = vmatprep.subr.bf16.mxu0 0
        %6580 = vmatpush1.bf16.msra.mxu0 %v6545
        %6581 = vmatprep.subr.bf16.mxu0 0
        %6582 = vmatpush2.bf16.msra.mxu0 0
        %6583 = vmatprep.subr.bf16.mxu0 0
        %6584 = vmatpush2.bf16.msra.mxu0 0
        %6585 = vmatprep.subr.bf16.mxu0 0
        %6586 = vmatpush2.bf16.msra.mxu0 0
        %6587 = vmatprep.subr.bf16.mxu0 0
        %6588 = vmatpush2.bf16.msra.mxu0 0
        %6589 = vmatprep.subr.bf16.mxu0 0
        %6590 = vmatpush2.bf16.msra.mxu0 0
        %6591 = vmatprep.subr.bf16.mxu0 0
        %6592 = vmatpush2.bf16.msra.mxu0 0
        %6593 = vmatprep.subr.bf16.mxu0 0
        %6594 = vmatpush2.bf16.msra.mxu0 0
        %6595 = vmatprep.subr.bf16.mxu0 0
        %6596 = vmatpush2.bf16.msra.mxu0 0
        %6597 = vmatprep.mubr.bf16.mxu0 0
        %6598 = vmatmul.mubr.bf16.gmra.mxu0 %v6554
        %v6599 = vpop.f32.mrf.mxu0
        %v6600 = vadd.f32 %v6499, %v6599
        %v6601 = vpop.f32.mrf.mxu0
        %v6602 = vpop.f32.mrf.mxu0
        %v6603 = vadd.f32 %v6502, %v6602
        %v6604 = vpop.f32.mrf.mxu0
        %6605 = vmatprep.mubr.bf16.mxu0 0
        %6606 = vmatmul.mubr.bf16.gmra.mxu0 %v6557
        %v6607 = vpop.f32.mrf.mxu0
        %v6608 = vadd.f32 %v6507, %v6607
        %v6609 = vpop.f32.mrf.mxu0
        %v6610 = vpop.f32.mrf.mxu0
        %v6611 = vadd.f32 %v6510, %v6610
        %v6612 = vpop.f32.mrf.mxu0
        %6613 = vmatprep.mubr.bf16.mxu0 0
        %6614 = vmatmul.mubr.bf16.gmra.mxu0 %v6560
        %v6615 = vpop.f32.mrf.mxu0
        %v6616 = vadd.f32 %v6515, %v6615
        %v6617 = vpop.f32.mrf.mxu0
        %v6618 = vpop.f32.mrf.mxu0
        %v6619 = vadd.f32 %v6518, %v6618
        %v6620 = vpop.f32.mrf.mxu0
        %6621 = vmatprep.mubr.bf16.mxu0 0
        %6622 = vmatmul.mubr.bf16.gmra.mxu0 %v6563
        %v6623 = vpop.f32.mrf.mxu0
        %v6624 = vadd.f32 %v6523, %v6623
        %v6625 = vpop.f32.mrf.mxu0
        %v6626 = vpop.f32.mrf.mxu0
        %v6627 = vadd.f32 %v6526, %v6626
        %v6628 = vpop.f32.mrf.mxu0
        %6629 = vdwg.mxu0
        %6630 = vmatprep.subr.bf16.mxu0 0
        %6631 = vmatpush1.bf16.msra.mxu0 0
        %6632 = vmatprep.subr.bf16.mxu0 0
        %6633 = vmatpush1.bf16.msra.mxu0 0
        %6634 = vmatprep.subr.bf16.mxu0 0
        %6635 = vmatpush1.bf16.msra.mxu0 0
        %6636 = vmatprep.subr.bf16.mxu0 0
        %6637 = vmatpush1.bf16.msra.mxu0 0
        %6638 = vmatprep.subr.bf16.mxu0 0
        %6639 = vmatpush1.bf16.msra.mxu0 %v6271
        %6640 = vmatprep.subr.bf16.mxu0 0
        %6641 = vmatpush1.bf16.msra.mxu0 %v6270
        %6642 = vmatprep.subr.bf16.mxu0 0
        %6643 = vmatpush1.bf16.msra.mxu0 %v6269
        %6644 = vmatprep.subr.bf16.mxu0 0
        %6645 = vmatpush1.bf16.msra.mxu0 %v6268
        %6646 = vmatprep.subr.bf16.mxu0 0
        %6647 = vmatpush2.bf16.msra.mxu0 0
        %6648 = vmatprep.subr.bf16.mxu0 0
        %6649 = vmatpush2.bf16.msra.mxu0 0
        %6650 = vmatprep.subr.bf16.mxu0 0
        %6651 = vmatpush2.bf16.msra.mxu0 0
        %6652 = vmatprep.subr.bf16.mxu0 0
        %6653 = vmatpush2.bf16.msra.mxu0 0
        %6654 = vmatprep.subr.bf16.mxu0 0
        %6655 = vmatpush2.bf16.msra.mxu0 0
        %6656 = vmatprep.subr.bf16.mxu0 0
        %6657 = vmatpush2.bf16.msra.mxu0 0
        %6658 = vmatprep.subr.bf16.mxu0 0
        %6659 = vmatpush2.bf16.msra.mxu0 0
        %6660 = vmatprep.subr.bf16.mxu0 0
        %6661 = vmatpush2.bf16.msra.mxu0 0
        %6662 = vmatprep.mubr.bf16.mxu0 0
        %6663 = vmatmul.mubr.bf16.gmra.mxu0 %v4285
        %v6664 = vpop.f32.mrf.mxu0
        %v6665 = vadd.f32 0.0, %v6664
        %v6666 = vpop.f32.mrf.mxu0
        %v6667 = vpop.f32.mrf.mxu0
        %v6668 = vadd.f32 0.0, %v6667
        %v6669 = vpop.f32.mrf.mxu0
        %6670 = vmatprep.mubr.bf16.mxu0 0
        %6671 = vmatmul.mubr.bf16.gmra.mxu0 %v4288
        %v6672 = vpop.f32.mrf.mxu0
        %v6673 = vadd.f32 0.0, %v6672
        %v6674 = vpop.f32.mrf.mxu0
        %v6675 = vpop.f32.mrf.mxu0
        %v6676 = vadd.f32 0.0, %v6675
        %v6677 = vpop.f32.mrf.mxu0
        %6678 = vmatprep.mubr.bf16.mxu0 0
        %6679 = vmatmul.mubr.bf16.gmra.mxu0 %v4291
        %v6680 = vpop.f32.mrf.mxu0
        %v6681 = vadd.f32 0.0, %v6680
        %v6682 = vpop.f32.mrf.mxu0
        %v6683 = vpop.f32.mrf.mxu0
        %v6684 = vadd.f32 0.0, %v6683
        %v6685 = vpop.f32.mrf.mxu0
        %6686 = vmatprep.mubr.bf16.mxu0 0
        %6687 = vmatmul.mubr.bf16.gmra.mxu0 %v4294
        %v6688 = vpop.f32.mrf.mxu0
        %v6689 = vadd.f32 0.0, %v6688
        %v6690 = vpop.f32.mrf.mxu0
        %v6691 = vpop.f32.mrf.mxu0
        %v6692 = vadd.f32 0.0, %v6691
        %v6693 = vpop.f32.mrf.mxu0
        %6694 = vdwg.mxu0
        %v6695 = vpack.c.bf16 %v6668, %v6665
        %v6696 = vpack.c.bf16 %v6676, %v6673
        %v6697 = vpack.c.bf16 %v6684, %v6681
        %v6698 = vpack.c.bf16 %v6692, %v6689
        %s6699 = scalar_lea.vmem %s11, 352
        %v6700 = vld [vmem:[%s6699] sm:$0xf]
        %v6701 = vld [vmem:[%s6699 + $0x4] sm:$0xf]
        %v6702 = vld [vmem:[%s6699 + $0x8] sm:$0xf]
        %v6703 = vld [vmem:[%s6699 + $0xc] sm:$0xf]
        %v6704 = vld [vmem:[%s6699 + $0x10] sm:$0xf]
        %v6705 = vld [vmem:[%s6699 + $0x14] sm:$0xf]
        %v6706 = vld [vmem:[%s6699 + $0x18] sm:$0xf]
        %v6707 = vld [vmem:[%s6699 + $0x1c] sm:$0xf]
        %v6716 = vunpack.c.l.b16 %v6700
        %v6717 = vunpack.c.l.b16 %v6701
        %v6718 = vunpack.c.l.b16 %v6702
        %v6719 = vunpack.c.l.b16 %v6703
        %v6720 = vunpack.c.l.b16 %v6704
        %v6721 = vunpack.c.l.b16 %v6705
        %v6722 = vunpack.c.l.b16 %v6706
        %v6723 = vunpack.c.l.b16 %v6707
        %v6724 = vpack.c.b16 %v6717, %v6716
        %v6725 = vpack.c.b16 %v6719, %v6718
        %v6726 = vpack.c.b16 %v6721, %v6720
        %v6727 = vpack.c.b16 %v6723, %v6722
        %v6733 = vsel %vm1027, %v6695, 0
        %v6736 = vsel %vm1027, %v6696, 0
        %v6739 = vsel %vm1027, %v6697, 0
        %v6742 = vsel %vm1027, %v6698, 0
        %6744 = vmatprep.subr.bf16.mxu0 0
        %6745 = vmatpush1.bf16.msra.mxu0 0
        %6746 = vmatprep.subr.bf16.mxu0 0
        %6747 = vmatpush1.bf16.msra.mxu0 0
        %6748 = vmatprep.subr.bf16.mxu0 0
        %6749 = vmatpush1.bf16.msra.mxu0 0
        %6750 = vmatprep.subr.bf16.mxu0 0
        %6751 = vmatpush1.bf16.msra.mxu0 0
        %6752 = vmatprep.subr.bf16.mxu0 0
        %6753 = vmatpush1.bf16.msra.mxu0 %v6727
        %6754 = vmatprep.subr.bf16.mxu0 0
        %6755 = vmatpush1.bf16.msra.mxu0 %v6726
        %6756 = vmatprep.subr.bf16.mxu0 0
        %6757 = vmatpush1.bf16.msra.mxu0 %v6725
        %6758 = vmatprep.subr.bf16.mxu0 0
        %6759 = vmatpush1.bf16.msra.mxu0 %v6724
        %6760 = vmatprep.subr.bf16.mxu0 0
        %6761 = vmatpush2.bf16.msra.mxu0 0
        %6762 = vmatprep.subr.bf16.mxu0 0
        %6763 = vmatpush2.bf16.msra.mxu0 0
        %6764 = vmatprep.subr.bf16.mxu0 0
        %6765 = vmatpush2.bf16.msra.mxu0 0
        %6766 = vmatprep.subr.bf16.mxu0 0
        %6767 = vmatpush2.bf16.msra.mxu0 0
        %6768 = vmatprep.subr.bf16.mxu0 0
        %6769 = vmatpush2.bf16.msra.mxu0 0
        %6770 = vmatprep.subr.bf16.mxu0 0
        %6771 = vmatpush2.bf16.msra.mxu0 0
        %6772 = vmatprep.subr.bf16.mxu0 0
        %6773 = vmatpush2.bf16.msra.mxu0 0
        %6774 = vmatprep.subr.bf16.mxu0 0
        %6775 = vmatpush2.bf16.msra.mxu0 0
        %6776 = vmatprep.mubr.bf16.mxu0 0
        %6777 = vmatmul.mubr.bf16.gmra.mxu0 %v6733
        %v6778 = vpop.f32.mrf.mxu0
        %v6779 = vadd.f32 0.0, %v6778
        %v6780 = vpop.f32.mrf.mxu0
        %v6781 = vpop.f32.mrf.mxu0
        %v6782 = vadd.f32 0.0, %v6781
        %v6783 = vpop.f32.mrf.mxu0
        %6784 = vmatprep.mubr.bf16.mxu0 0
        %6785 = vmatmul.mubr.bf16.gmra.mxu0 %v6736
        %v6786 = vpop.f32.mrf.mxu0
        %v6787 = vadd.f32 0.0, %v6786
        %v6788 = vpop.f32.mrf.mxu0
        %v6789 = vpop.f32.mrf.mxu0
        %v6790 = vadd.f32 0.0, %v6789
        %v6791 = vpop.f32.mrf.mxu0
        %6792 = vmatprep.mubr.bf16.mxu0 0
        %6793 = vmatmul.mubr.bf16.gmra.mxu0 %v6739
        %v6794 = vpop.f32.mrf.mxu0
        %v6795 = vadd.f32 0.0, %v6794
        %v6796 = vpop.f32.mrf.mxu0
        %v6797 = vpop.f32.mrf.mxu0
        %v6798 = vadd.f32 0.0, %v6797
        %v6799 = vpop.f32.mrf.mxu0
        %6800 = vmatprep.mubr.bf16.mxu0 0
        %6801 = vmatmul.mubr.bf16.gmra.mxu0 %v6742
        %v6802 = vpop.f32.mrf.mxu0
        %v6803 = vadd.f32 0.0, %v6802
        %v6804 = vpop.f32.mrf.mxu0
        %v6805 = vpop.f32.mrf.mxu0
        %v6806 = vadd.f32 0.0, %v6805
        %v6807 = vpop.f32.mrf.mxu0
        %6808 = vdwg.mxu0
        %v6809 = vadd.f32 %v6600, %v6779
        %v6810 = vadd.f32 %v6603, %v6782
        %v6811 = vadd.f32 %v6608, %v6787
        %v6812 = vadd.f32 %v6611, %v6790
        %v6813 = vadd.f32 %v6616, %v6795
        %v6814 = vadd.f32 %v6619, %v6798
        %v6815 = vadd.f32 %v6624, %v6803
        %v6816 = vadd.f32 %v6627, %v6806
        %6817 = vmatprep.subr.bf16.mxu0 0
        %6818 = vmatpush1.bf16.msra.mxu0 0
        %6819 = vmatprep.subr.bf16.mxu0 0
        %6820 = vmatpush1.bf16.msra.mxu0 0
        %6821 = vmatprep.subr.bf16.mxu0 0
        %6822 = vmatpush1.bf16.msra.mxu0 0
        %6823 = vmatprep.subr.bf16.mxu0 0
        %6824 = vmatpush1.bf16.msra.mxu0 0
        %6825 = vmatprep.subr.bf16.mxu0 0
        %6826 = vmatpush1.bf16.msra.mxu0 %v6271
        %6827 = vmatprep.subr.bf16.mxu0 0
        %6828 = vmatpush1.bf16.msra.mxu0 %v6270
        %6829 = vmatprep.subr.bf16.mxu0 0
        %6830 = vmatpush1.bf16.msra.mxu0 %v6269
        %6831 = vmatprep.subr.bf16.mxu0 0
        %6832 = vmatpush1.bf16.msra.mxu0 %v6268
        %6833 = vmatprep.subr.bf16.mxu0 0
        %6834 = vmatpush2.bf16.msra.mxu0 0
        %6835 = vmatprep.subr.bf16.mxu0 0
        %6836 = vmatpush2.bf16.msra.mxu0 0
        %6837 = vmatprep.subr.bf16.mxu0 0
        %6838 = vmatpush2.bf16.msra.mxu0 0
        %6839 = vmatprep.subr.bf16.mxu0 0
        %6840 = vmatpush2.bf16.msra.mxu0 0
        %6841 = vmatprep.subr.bf16.mxu0 0
        %6842 = vmatpush2.bf16.msra.mxu0 0
        %6843 = vmatprep.subr.bf16.mxu0 0
        %6844 = vmatpush2.bf16.msra.mxu0 0
        %6845 = vmatprep.subr.bf16.mxu0 0
        %6846 = vmatpush2.bf16.msra.mxu0 0
        %6847 = vmatprep.subr.bf16.mxu0 0
        %6848 = vmatpush2.bf16.msra.mxu0 0
        %6849 = vmatprep.mubr.bf16.mxu0 0
        %6850 = vmatmul.mubr.bf16.gmra.mxu0 %v4513
        %v6851 = vpop.f32.mrf.mxu0
        %v6852 = vadd.f32 0.0, %v6851
        %v6853 = vpop.f32.mrf.mxu0
        %v6854 = vpop.f32.mrf.mxu0
        %v6855 = vadd.f32 0.0, %v6854
        %v6856 = vpop.f32.mrf.mxu0
        %6857 = vmatprep.mubr.bf16.mxu0 0
        %6858 = vmatmul.mubr.bf16.gmra.mxu0 %v4516
        %v6859 = vpop.f32.mrf.mxu0
        %v6860 = vadd.f32 0.0, %v6859
        %v6861 = vpop.f32.mrf.mxu0
        %v6862 = vpop.f32.mrf.mxu0
        %v6863 = vadd.f32 0.0, %v6862
        %v6864 = vpop.f32.mrf.mxu0
        %6865 = vmatprep.mubr.bf16.mxu0 0
        %6866 = vmatmul.mubr.bf16.gmra.mxu0 %v4519
        %v6867 = vpop.f32.mrf.mxu0
        %v6868 = vadd.f32 0.0, %v6867
        %v6869 = vpop.f32.mrf.mxu0
        %v6870 = vpop.f32.mrf.mxu0
        %v6871 = vadd.f32 0.0, %v6870
        %v6872 = vpop.f32.mrf.mxu0
        %6873 = vmatprep.mubr.bf16.mxu0 0
        %6874 = vmatmul.mubr.bf16.gmra.mxu0 %v4522
        %v6875 = vpop.f32.mrf.mxu0
        %v6876 = vadd.f32 0.0, %v6875
        %v6877 = vpop.f32.mrf.mxu0
        %v6878 = vpop.f32.mrf.mxu0
        %v6879 = vadd.f32 0.0, %v6878
        %v6880 = vpop.f32.mrf.mxu0
        %6881 = vdwg.mxu0
        %v6882 = vpack.c.bf16 %v6855, %v6852
        %v6883 = vpack.c.bf16 %v6863, %v6860
        %v6884 = vpack.c.bf16 %v6871, %v6868
        %v6885 = vpack.c.bf16 %v6879, %v6876
        %s6886 = scalar_lea.vmem %s11, 384
        %v6887 = vld [vmem:[%s6886] sm:$0xf]
        %v6888 = vld [vmem:[%s6886 + $0x4] sm:$0xf]
        %v6889 = vld [vmem:[%s6886 + $0x8] sm:$0xf]
        %v6890 = vld [vmem:[%s6886 + $0xc] sm:$0xf]
        %v6891 = vld [vmem:[%s6886 + $0x10] sm:$0xf]
        %v6892 = vld [vmem:[%s6886 + $0x14] sm:$0xf]
        %v6893 = vld [vmem:[%s6886 + $0x18] sm:$0xf]
        %v6894 = vld [vmem:[%s6886 + $0x1c] sm:$0xf]
        %v6903 = vunpack.c.l.b16 %v6887
        %v6904 = vunpack.c.l.b16 %v6888
        %v6905 = vunpack.c.l.b16 %v6889
        %v6906 = vunpack.c.l.b16 %v6890
        %v6907 = vunpack.c.l.b16 %v6891
        %v6908 = vunpack.c.l.b16 %v6892
        %v6909 = vunpack.c.l.b16 %v6893
        %v6910 = vunpack.c.l.b16 %v6894
        %v6911 = vpack.c.b16 %v6904, %v6903
        %v6912 = vpack.c.b16 %v6906, %v6905
        %v6913 = vpack.c.b16 %v6908, %v6907
        %v6914 = vpack.c.b16 %v6910, %v6909
        %v6920 = vsel %vm1027, %v6882, 0
        %v6923 = vsel %vm1027, %v6883, 0
        %v6926 = vsel %vm1027, %v6884, 0
        %v6929 = vsel %vm1027, %v6885, 0
        %6931 = vmatprep.subr.bf16.mxu0 0
        %6932 = vmatpush1.bf16.msra.mxu0 0
        %6933 = vmatprep.subr.bf16.mxu0 0
        %6934 = vmatpush1.bf16.msra.mxu0 0
        %6935 = vmatprep.subr.bf16.mxu0 0
        %6936 = vmatpush1.bf16.msra.mxu0 0
        %6937 = vmatprep.subr.bf16.mxu0 0
        %6938 = vmatpush1.bf16.msra.mxu0 0
        %6939 = vmatprep.subr.bf16.mxu0 0
        %6940 = vmatpush1.bf16.msra.mxu0 %v6914
        %6941 = vmatprep.subr.bf16.mxu0 0
        %6942 = vmatpush1.bf16.msra.mxu0 %v6913
        %6943 = vmatprep.subr.bf16.mxu0 0
        %6944 = vmatpush1.bf16.msra.mxu0 %v6912
        %6945 = vmatprep.subr.bf16.mxu0 0
        %6946 = vmatpush1.bf16.msra.mxu0 %v6911
        %6947 = vmatprep.subr.bf16.mxu0 0
        %6948 = vmatpush2.bf16.msra.mxu0 0
        %6949 = vmatprep.subr.bf16.mxu0 0
        %6950 = vmatpush2.bf16.msra.mxu0 0
        %6951 = vmatprep.subr.bf16.mxu0 0
        %6952 = vmatpush2.bf16.msra.mxu0 0
        %6953 = vmatprep.subr.bf16.mxu0 0
        %6954 = vmatpush2.bf16.msra.mxu0 0
        %6955 = vmatprep.subr.bf16.mxu0 0
        %6956 = vmatpush2.bf16.msra.mxu0 0
        %6957 = vmatprep.subr.bf16.mxu0 0
        %6958 = vmatpush2.bf16.msra.mxu0 0
        %6959 = vmatprep.subr.bf16.mxu0 0
        %6960 = vmatpush2.bf16.msra.mxu0 0
        %6961 = vmatprep.subr.bf16.mxu0 0
        %6962 = vmatpush2.bf16.msra.mxu0 0
        %6963 = vmatprep.mubr.bf16.mxu0 0
        %6964 = vmatmul.mubr.bf16.gmra.mxu0 %v6920
        %v6965 = vpop.f32.mrf.mxu0
        %v6966 = vadd.f32 0.0, %v6965
        %v6967 = vpop.f32.mrf.mxu0
        %v6968 = vpop.f32.mrf.mxu0
        %v6969 = vadd.f32 0.0, %v6968
        %v6970 = vpop.f32.mrf.mxu0
        %6971 = vmatprep.mubr.bf16.mxu0 0
        %6972 = vmatmul.mubr.bf16.gmra.mxu0 %v6923
        %v6973 = vpop.f32.mrf.mxu0
        %v6974 = vadd.f32 0.0, %v6973
        %v6975 = vpop.f32.mrf.mxu0
        %v6976 = vpop.f32.mrf.mxu0
        %v6977 = vadd.f32 0.0, %v6976
        %v6978 = vpop.f32.mrf.mxu0
        %6979 = vmatprep.mubr.bf16.mxu0 0
        %6980 = vmatmul.mubr.bf16.gmra.mxu0 %v6926
        %v6981 = vpop.f32.mrf.mxu0
        %v6982 = vadd.f32 0.0, %v6981
        %v6983 = vpop.f32.mrf.mxu0
        %v6984 = vpop.f32.mrf.mxu0
        %v6985 = vadd.f32 0.0, %v6984
        %v6986 = vpop.f32.mrf.mxu0
        %6987 = vmatprep.mubr.bf16.mxu0 0
        %6988 = vmatmul.mubr.bf16.gmra.mxu0 %v6929
        %v6989 = vpop.f32.mrf.mxu0
        %v6990 = vadd.f32 0.0, %v6989
        %v6991 = vpop.f32.mrf.mxu0
        %v6992 = vpop.f32.mrf.mxu0
        %v6993 = vadd.f32 0.0, %v6992
        %v6994 = vpop.f32.mrf.mxu0
        %6995 = vdwg.mxu0
        %v6996 = vadd.f32 %v6809, %v6966
        %v6997 = vadd.f32 %v6810, %v6969
        %v6998 = vadd.f32 %v6811, %v6974
        %v6999 = vadd.f32 %v6812, %v6977
        %v7000 = vadd.f32 %v6813, %v6982
        %v7001 = vadd.f32 %v6814, %v6985
        %v7002 = vadd.f32 %v6815, %v6990
        %v7003 = vadd.f32 %v6816, %v6993
        %7004 = vmatprep.subr.bf16.mxu0 0
        %7005 = vmatpush1.bf16.msra.mxu0 0
        %7006 = vmatprep.subr.bf16.mxu0 0
        %7007 = vmatpush1.bf16.msra.mxu0 0
        %7008 = vmatprep.subr.bf16.mxu0 0
        %7009 = vmatpush1.bf16.msra.mxu0 0
        %7010 = vmatprep.subr.bf16.mxu0 0
        %7011 = vmatpush1.bf16.msra.mxu0 0
        %7012 = vmatprep.subr.bf16.mxu0 0
        %7013 = vmatpush1.bf16.msra.mxu0 %v6271
        %7014 = vmatprep.subr.bf16.mxu0 0
        %7015 = vmatpush1.bf16.msra.mxu0 %v6270
        %7016 = vmatprep.subr.bf16.mxu0 0
        %7017 = vmatpush1.bf16.msra.mxu0 %v6269
        %7018 = vmatprep.subr.bf16.mxu0 0
        %7019 = vmatpush1.bf16.msra.mxu0 %v6268
        %7020 = vmatprep.subr.bf16.mxu0 0
        %7021 = vmatpush2.bf16.msra.mxu0 0
        %7022 = vmatprep.subr.bf16.mxu0 0
        %7023 = vmatpush2.bf16.msra.mxu0 0
        %7024 = vmatprep.subr.bf16.mxu0 0
        %7025 = vmatpush2.bf16.msra.mxu0 0
        %7026 = vmatprep.subr.bf16.mxu0 0
        %7027 = vmatpush2.bf16.msra.mxu0 0
        %7028 = vmatprep.subr.bf16.mxu0 0
        %7029 = vmatpush2.bf16.msra.mxu0 0
        %7030 = vmatprep.subr.bf16.mxu0 0
        %7031 = vmatpush2.bf16.msra.mxu0 0
        %7032 = vmatprep.subr.bf16.mxu0 0
        %7033 = vmatpush2.bf16.msra.mxu0 0
        %7034 = vmatprep.subr.bf16.mxu0 0
        %7035 = vmatpush2.bf16.msra.mxu0 0
        %7036 = vmatprep.mubr.bf16.mxu0 0
        %7037 = vmatmul.mubr.bf16.gmra.mxu0 %v4741
        %v7038 = vpop.f32.mrf.mxu0
        %v7039 = vadd.f32 0.0, %v7038
        %v7040 = vpop.f32.mrf.mxu0
        %v7041 = vpop.f32.mrf.mxu0
        %v7042 = vadd.f32 0.0, %v7041
        %v7043 = vpop.f32.mrf.mxu0
        %7044 = vmatprep.mubr.bf16.mxu0 0
        %7045 = vmatmul.mubr.bf16.gmra.mxu0 %v4744
        %v7046 = vpop.f32.mrf.mxu0
        %v7047 = vadd.f32 0.0, %v7046
        %v7048 = vpop.f32.mrf.mxu0
        %v7049 = vpop.f32.mrf.mxu0
        %v7050 = vadd.f32 0.0, %v7049
        %v7051 = vpop.f32.mrf.mxu0
        %7052 = vmatprep.mubr.bf16.mxu0 0
        %7053 = vmatmul.mubr.bf16.gmra.mxu0 %v4747
        %v7054 = vpop.f32.mrf.mxu0
        %v7055 = vadd.f32 0.0, %v7054
        %v7056 = vpop.f32.mrf.mxu0
        %v7057 = vpop.f32.mrf.mxu0
        %v7058 = vadd.f32 0.0, %v7057
        %v7059 = vpop.f32.mrf.mxu0
        %7060 = vmatprep.mubr.bf16.mxu0 0
        %7061 = vmatmul.mubr.bf16.gmra.mxu0 %v4750
        %v7062 = vpop.f32.mrf.mxu0
        %v7063 = vadd.f32 0.0, %v7062
        %v7064 = vpop.f32.mrf.mxu0
        %v7065 = vpop.f32.mrf.mxu0
        %v7066 = vadd.f32 0.0, %v7065
        %v7067 = vpop.f32.mrf.mxu0
        %7068 = vdwg.mxu0
        %v7069 = vpack.c.bf16 %v7042, %v7039
        %v7070 = vpack.c.bf16 %v7050, %v7047
        %v7071 = vpack.c.bf16 %v7058, %v7055
        %v7072 = vpack.c.bf16 %v7066, %v7063
        %s7073 = scalar_lea.vmem %s11, 416
        %v7074 = vld [vmem:[%s7073] sm:$0xf]
        %v7075 = vld [vmem:[%s7073 + $0x4] sm:$0xf]
        %v7076 = vld [vmem:[%s7073 + $0x8] sm:$0xf]
        %v7077 = vld [vmem:[%s7073 + $0xc] sm:$0xf]
        %v7078 = vld [vmem:[%s7073 + $0x10] sm:$0xf]
        %v7079 = vld [vmem:[%s7073 + $0x14] sm:$0xf]
        %v7080 = vld [vmem:[%s7073 + $0x18] sm:$0xf]
        %v7081 = vld [vmem:[%s7073 + $0x1c] sm:$0xf]
        %v7090 = vunpack.c.l.b16 %v7074
        %v7091 = vunpack.c.l.b16 %v7075
        %v7092 = vunpack.c.l.b16 %v7076
        %v7093 = vunpack.c.l.b16 %v7077
        %v7094 = vunpack.c.l.b16 %v7078
        %v7095 = vunpack.c.l.b16 %v7079
        %v7096 = vunpack.c.l.b16 %v7080
        %v7097 = vunpack.c.l.b16 %v7081
        %v7098 = vpack.c.b16 %v7091, %v7090
        %v7099 = vpack.c.b16 %v7093, %v7092
        %v7100 = vpack.c.b16 %v7095, %v7094
        %v7101 = vpack.c.b16 %v7097, %v7096
        %v7107 = vsel %vm1027, %v7069, 0
        %v7110 = vsel %vm1027, %v7070, 0
        %v7113 = vsel %vm1027, %v7071, 0
        %v7116 = vsel %vm1027, %v7072, 0
        %7118 = vmatprep.subr.bf16.mxu0 0
        %7119 = vmatpush1.bf16.msra.mxu0 0
        %7120 = vmatprep.subr.bf16.mxu0 0
        %7121 = vmatpush1.bf16.msra.mxu0 0
        %7122 = vmatprep.subr.bf16.mxu0 0
        %7123 = vmatpush1.bf16.msra.mxu0 0
        %7124 = vmatprep.subr.bf16.mxu0 0
        %7125 = vmatpush1.bf16.msra.mxu0 0
        %7126 = vmatprep.subr.bf16.mxu0 0
        %7127 = vmatpush1.bf16.msra.mxu0 %v7101
        %7128 = vmatprep.subr.bf16.mxu0 0
        %7129 = vmatpush1.bf16.msra.mxu0 %v7100
        %7130 = vmatprep.subr.bf16.mxu0 0
        %7131 = vmatpush1.bf16.msra.mxu0 %v7099
        %7132 = vmatprep.subr.bf16.mxu0 0
        %7133 = vmatpush1.bf16.msra.mxu0 %v7098
        %7134 = vmatprep.subr.bf16.mxu0 0
        %7135 = vmatpush2.bf16.msra.mxu0 0
        %7136 = vmatprep.subr.bf16.mxu0 0
        %7137 = vmatpush2.bf16.msra.mxu0 0
        %7138 = vmatprep.subr.bf16.mxu0 0
        %7139 = vmatpush2.bf16.msra.mxu0 0
        %7140 = vmatprep.subr.bf16.mxu0 0
        %7141 = vmatpush2.bf16.msra.mxu0 0
        %7142 = vmatprep.subr.bf16.mxu0 0
        %7143 = vmatpush2.bf16.msra.mxu0 0
        %7144 = vmatprep.subr.bf16.mxu0 0
        %7145 = vmatpush2.bf16.msra.mxu0 0
        %7146 = vmatprep.subr.bf16.mxu0 0
        %7147 = vmatpush2.bf16.msra.mxu0 0
        %7148 = vmatprep.subr.bf16.mxu0 0
        %7149 = vmatpush2.bf16.msra.mxu0 0
        %7150 = vmatprep.mubr.bf16.mxu0 0
        %7151 = vmatmul.mubr.bf16.gmra.mxu0 %v7107
        %v7152 = vpop.f32.mrf.mxu0
        %v7153 = vadd.f32 0.0, %v7152
        %v7154 = vpop.f32.mrf.mxu0
        %v7155 = vpop.f32.mrf.mxu0
        %v7156 = vadd.f32 0.0, %v7155
        %v7157 = vpop.f32.mrf.mxu0
        %7158 = vmatprep.mubr.bf16.mxu0 0
        %7159 = vmatmul.mubr.bf16.gmra.mxu0 %v7110
        %v7160 = vpop.f32.mrf.mxu0
        %v7161 = vadd.f32 0.0, %v7160
        %v7162 = vpop.f32.mrf.mxu0
        %v7163 = vpop.f32.mrf.mxu0
        %v7164 = vadd.f32 0.0, %v7163
        %v7165 = vpop.f32.mrf.mxu0
        %7166 = vmatprep.mubr.bf16.mxu0 0
        %7167 = vmatmul.mubr.bf16.gmra.mxu0 %v7113
        %v7168 = vpop.f32.mrf.mxu0
        %v7169 = vadd.f32 0.0, %v7168
        %v7170 = vpop.f32.mrf.mxu0
        %v7171 = vpop.f32.mrf.mxu0
        %v7172 = vadd.f32 0.0, %v7171
        %v7173 = vpop.f32.mrf.mxu0
        %7174 = vmatprep.mubr.bf16.mxu0 0
        %7175 = vmatmul.mubr.bf16.gmra.mxu0 %v7116
        %v7176 = vpop.f32.mrf.mxu0
        %v7177 = vadd.f32 0.0, %v7176
        %v7178 = vpop.f32.mrf.mxu0
        %v7179 = vpop.f32.mrf.mxu0
        %v7180 = vadd.f32 0.0, %v7179
        %v7181 = vpop.f32.mrf.mxu0
        %7182 = vdwg.mxu0
        %v7183 = vadd.f32 %v6996, %v7153
        %v7184 = vadd.f32 %v6997, %v7156
        %v7185 = vadd.f32 %v6998, %v7161
        %v7186 = vadd.f32 %v6999, %v7164
        %v7187 = vadd.f32 %v7000, %v7169
        %v7188 = vadd.f32 %v7001, %v7172
        %v7189 = vadd.f32 %v7002, %v7177
        %v7190 = vadd.f32 %v7003, %v7180
        %7191 = vmatprep.subr.bf16.mxu0 0
        %7192 = vmatpush1.bf16.msra.mxu0 0
        %7193 = vmatprep.subr.bf16.mxu0 0
        %7194 = vmatpush1.bf16.msra.mxu0 0
        %7195 = vmatprep.subr.bf16.mxu0 0
        %7196 = vmatpush1.bf16.msra.mxu0 0
        %7197 = vmatprep.subr.bf16.mxu0 0
        %7198 = vmatpush1.bf16.msra.mxu0 0
        %7199 = vmatprep.subr.bf16.mxu0 0
        %7200 = vmatpush1.bf16.msra.mxu0 %v6271
        %7201 = vmatprep.subr.bf16.mxu0 0
        %7202 = vmatpush1.bf16.msra.mxu0 %v6270
        %7203 = vmatprep.subr.bf16.mxu0 0
        %7204 = vmatpush1.bf16.msra.mxu0 %v6269
        %7205 = vmatprep.subr.bf16.mxu0 0
        %7206 = vmatpush1.bf16.msra.mxu0 %v6268
        %7207 = vmatprep.subr.bf16.mxu0 0
        %7208 = vmatpush2.bf16.msra.mxu0 0
        %7209 = vmatprep.subr.bf16.mxu0 0
        %7210 = vmatpush2.bf16.msra.mxu0 0
        %7211 = vmatprep.subr.bf16.mxu0 0
        %7212 = vmatpush2.bf16.msra.mxu0 0
        %7213 = vmatprep.subr.bf16.mxu0 0
        %7214 = vmatpush2.bf16.msra.mxu0 0
        %7215 = vmatprep.subr.bf16.mxu0 0
        %7216 = vmatpush2.bf16.msra.mxu0 0
        %7217 = vmatprep.subr.bf16.mxu0 0
        %7218 = vmatpush2.bf16.msra.mxu0 0
        %7219 = vmatprep.subr.bf16.mxu0 0
        %7220 = vmatpush2.bf16.msra.mxu0 0
        %7221 = vmatprep.subr.bf16.mxu0 0
        %7222 = vmatpush2.bf16.msra.mxu0 0
        %7223 = vmatprep.mubr.bf16.mxu0 0
        %7224 = vmatmul.mubr.bf16.gmra.mxu0 %v4969
        %v7225 = vpop.f32.mrf.mxu0
        %v7226 = vadd.f32 0.0, %v7225
        %v7227 = vpop.f32.mrf.mxu0
        %v7228 = vpop.f32.mrf.mxu0
        %v7229 = vadd.f32 0.0, %v7228
        %v7230 = vpop.f32.mrf.mxu0
        %7231 = vmatprep.mubr.bf16.mxu0 0
        %7232 = vmatmul.mubr.bf16.gmra.mxu0 %v4972
        %v7233 = vpop.f32.mrf.mxu0
        %v7234 = vadd.f32 0.0, %v7233
        %v7235 = vpop.f32.mrf.mxu0
        %v7236 = vpop.f32.mrf.mxu0
        %v7237 = vadd.f32 0.0, %v7236
        %v7238 = vpop.f32.mrf.mxu0
        %7239 = vmatprep.mubr.bf16.mxu0 0
        %7240 = vmatmul.mubr.bf16.gmra.mxu0 %v4975
        %v7241 = vpop.f32.mrf.mxu0
        %v7242 = vadd.f32 0.0, %v7241
        %v7243 = vpop.f32.mrf.mxu0
        %v7244 = vpop.f32.mrf.mxu0
        %v7245 = vadd.f32 0.0, %v7244
        %v7246 = vpop.f32.mrf.mxu0
        %7247 = vmatprep.mubr.bf16.mxu0 0
        %7248 = vmatmul.mubr.bf16.gmra.mxu0 %v4978
        %v7249 = vpop.f32.mrf.mxu0
        %v7250 = vadd.f32 0.0, %v7249
        %v7251 = vpop.f32.mrf.mxu0
        %v7252 = vpop.f32.mrf.mxu0
        %v7253 = vadd.f32 0.0, %v7252
        %v7254 = vpop.f32.mrf.mxu0
        %7255 = vdwg.mxu0
        %v7256 = vpack.c.bf16 %v7229, %v7226
        %v7257 = vpack.c.bf16 %v7237, %v7234
        %v7258 = vpack.c.bf16 %v7245, %v7242
        %v7259 = vpack.c.bf16 %v7253, %v7250
        %s7260 = scalar_lea.vmem %s11, 448
        %v7261 = vld [vmem:[%s7260] sm:$0xf]
        %v7262 = vld [vmem:[%s7260 + $0x4] sm:$0xf]
        %v7263 = vld [vmem:[%s7260 + $0x8] sm:$0xf]
        %v7264 = vld [vmem:[%s7260 + $0xc] sm:$0xf]
        %v7265 = vld [vmem:[%s7260 + $0x10] sm:$0xf]
        %v7266 = vld [vmem:[%s7260 + $0x14] sm:$0xf]
        %v7267 = vld [vmem:[%s7260 + $0x18] sm:$0xf]
        %v7268 = vld [vmem:[%s7260 + $0x1c] sm:$0xf]
        %v7277 = vunpack.c.l.b16 %v7261
        %v7278 = vunpack.c.l.b16 %v7262
        %v7279 = vunpack.c.l.b16 %v7263
        %v7280 = vunpack.c.l.b16 %v7264
        %v7281 = vunpack.c.l.b16 %v7265
        %v7282 = vunpack.c.l.b16 %v7266
        %v7283 = vunpack.c.l.b16 %v7267
        %v7284 = vunpack.c.l.b16 %v7268
        %v7285 = vpack.c.b16 %v7278, %v7277
        %v7286 = vpack.c.b16 %v7280, %v7279
        %v7287 = vpack.c.b16 %v7282, %v7281
        %v7288 = vpack.c.b16 %v7284, %v7283
        %v7294 = vsel %vm1027, %v7256, 0
        %v7297 = vsel %vm1027, %v7257, 0
        %v7300 = vsel %vm1027, %v7258, 0
        %v7303 = vsel %vm1027, %v7259, 0
        %7305 = vmatprep.subr.bf16.mxu0 0
        %7306 = vmatpush1.bf16.msra.mxu0 0
        %7307 = vmatprep.subr.bf16.mxu0 0
        %7308 = vmatpush1.bf16.msra.mxu0 0
        %7309 = vmatprep.subr.bf16.mxu0 0
        %7310 = vmatpush1.bf16.msra.mxu0 0
        %7311 = vmatprep.subr.bf16.mxu0 0
        %7312 = vmatpush1.bf16.msra.mxu0 0
        %7313 = vmatprep.subr.bf16.mxu0 0
        %7314 = vmatpush1.bf16.msra.mxu0 %v7288
        %7315 = vmatprep.subr.bf16.mxu0 0
        %7316 = vmatpush1.bf16.msra.mxu0 %v7287
        %7317 = vmatprep.subr.bf16.mxu0 0
        %7318 = vmatpush1.bf16.msra.mxu0 %v7286
        %7319 = vmatprep.subr.bf16.mxu0 0
        %7320 = vmatpush1.bf16.msra.mxu0 %v7285
        %7321 = vmatprep.subr.bf16.mxu0 0
        %7322 = vmatpush2.bf16.msra.mxu0 0
        %7323 = vmatprep.subr.bf16.mxu0 0
        %7324 = vmatpush2.bf16.msra.mxu0 0
        %7325 = vmatprep.subr.bf16.mxu0 0
        %7326 = vmatpush2.bf16.msra.mxu0 0
        %7327 = vmatprep.subr.bf16.mxu0 0
        %7328 = vmatpush2.bf16.msra.mxu0 0
        %7329 = vmatprep.subr.bf16.mxu0 0
        %7330 = vmatpush2.bf16.msra.mxu0 0
        %7331 = vmatprep.subr.bf16.mxu0 0
        %7332 = vmatpush2.bf16.msra.mxu0 0
        %7333 = vmatprep.subr.bf16.mxu0 0
        %7334 = vmatpush2.bf16.msra.mxu0 0
        %7335 = vmatprep.subr.bf16.mxu0 0
        %7336 = vmatpush2.bf16.msra.mxu0 0
        %7337 = vmatprep.mubr.bf16.mxu0 0
        %7338 = vmatmul.mubr.bf16.gmra.mxu0 %v7294
        %v7339 = vpop.f32.mrf.mxu0
        %v7340 = vadd.f32 0.0, %v7339
        %v7341 = vpop.f32.mrf.mxu0
        %v7342 = vpop.f32.mrf.mxu0
        %v7343 = vadd.f32 0.0, %v7342
        %v7344 = vpop.f32.mrf.mxu0
        %7345 = vmatprep.mubr.bf16.mxu0 0
        %7346 = vmatmul.mubr.bf16.gmra.mxu0 %v7297
        %v7347 = vpop.f32.mrf.mxu0
        %v7348 = vadd.f32 0.0, %v7347
        %v7349 = vpop.f32.mrf.mxu0
        %v7350 = vpop.f32.mrf.mxu0
        %v7351 = vadd.f32 0.0, %v7350
        %v7352 = vpop.f32.mrf.mxu0
        %7353 = vmatprep.mubr.bf16.mxu0 0
        %7354 = vmatmul.mubr.bf16.gmra.mxu0 %v7300
        %v7355 = vpop.f32.mrf.mxu0
        %v7356 = vadd.f32 0.0, %v7355
        %v7357 = vpop.f32.mrf.mxu0
        %v7358 = vpop.f32.mrf.mxu0
        %v7359 = vadd.f32 0.0, %v7358
        %v7360 = vpop.f32.mrf.mxu0
        %7361 = vmatprep.mubr.bf16.mxu0 0
        %7362 = vmatmul.mubr.bf16.gmra.mxu0 %v7303
        %v7363 = vpop.f32.mrf.mxu0
        %v7364 = vadd.f32 0.0, %v7363
        %v7365 = vpop.f32.mrf.mxu0
        %v7366 = vpop.f32.mrf.mxu0
        %v7367 = vadd.f32 0.0, %v7366
        %v7368 = vpop.f32.mrf.mxu0
        %7369 = vdwg.mxu0
        %v7370 = vadd.f32 %v7183, %v7340
        %v7371 = vadd.f32 %v7184, %v7343
        %v7372 = vadd.f32 %v7185, %v7348
        %v7373 = vadd.f32 %v7186, %v7351
        %v7374 = vadd.f32 %v7187, %v7356
        %v7375 = vadd.f32 %v7188, %v7359
        %v7376 = vadd.f32 %v7189, %v7364
        %v7377 = vadd.f32 %v7190, %v7367
        %7378 = vmatprep.subr.bf16.mxu0 0
        %7379 = vmatpush1.bf16.msra.mxu0 0
        %7380 = vmatprep.subr.bf16.mxu0 0
        %7381 = vmatpush1.bf16.msra.mxu0 0
        %7382 = vmatprep.subr.bf16.mxu0 0
        %7383 = vmatpush1.bf16.msra.mxu0 0
        %7384 = vmatprep.subr.bf16.mxu0 0
        %7385 = vmatpush1.bf16.msra.mxu0 0
        %7386 = vmatprep.subr.bf16.mxu0 0
        %7387 = vmatpush1.bf16.msra.mxu0 %v6271
        %7388 = vmatprep.subr.bf16.mxu0 0
        %7389 = vmatpush1.bf16.msra.mxu0 %v6270
        %7390 = vmatprep.subr.bf16.mxu0 0
        %7391 = vmatpush1.bf16.msra.mxu0 %v6269
        %7392 = vmatprep.subr.bf16.mxu0 0
        %7393 = vmatpush1.bf16.msra.mxu0 %v6268
        %7394 = vmatprep.subr.bf16.mxu0 0
        %7395 = vmatpush2.bf16.msra.mxu0 0
        %7396 = vmatprep.subr.bf16.mxu0 0
        %7397 = vmatpush2.bf16.msra.mxu0 0
        %7398 = vmatprep.subr.bf16.mxu0 0
        %7399 = vmatpush2.bf16.msra.mxu0 0
        %7400 = vmatprep.subr.bf16.mxu0 0
        %7401 = vmatpush2.bf16.msra.mxu0 0
        %7402 = vmatprep.subr.bf16.mxu0 0
        %7403 = vmatpush2.bf16.msra.mxu0 0
        %7404 = vmatprep.subr.bf16.mxu0 0
        %7405 = vmatpush2.bf16.msra.mxu0 0
        %7406 = vmatprep.subr.bf16.mxu0 0
        %7407 = vmatpush2.bf16.msra.mxu0 0
        %7408 = vmatprep.subr.bf16.mxu0 0
        %7409 = vmatpush2.bf16.msra.mxu0 0
        %7410 = vmatprep.mubr.bf16.mxu0 0
        %7411 = vmatmul.mubr.bf16.gmra.mxu0 %v5197
        %v7412 = vpop.f32.mrf.mxu0
        %v7413 = vadd.f32 0.0, %v7412
        %v7414 = vpop.f32.mrf.mxu0
        %v7415 = vpop.f32.mrf.mxu0
        %v7416 = vadd.f32 0.0, %v7415
        %v7417 = vpop.f32.mrf.mxu0
        %7418 = vmatprep.mubr.bf16.mxu0 0
        %7419 = vmatmul.mubr.bf16.gmra.mxu0 %v5200
        %v7420 = vpop.f32.mrf.mxu0
        %v7421 = vadd.f32 0.0, %v7420
        %v7422 = vpop.f32.mrf.mxu0
        %v7423 = vpop.f32.mrf.mxu0
        %v7424 = vadd.f32 0.0, %v7423
        %v7425 = vpop.f32.mrf.mxu0
        %7426 = vmatprep.mubr.bf16.mxu0 0
        %7427 = vmatmul.mubr.bf16.gmra.mxu0 %v5203
        %v7428 = vpop.f32.mrf.mxu0
        %v7429 = vadd.f32 0.0, %v7428
        %v7430 = vpop.f32.mrf.mxu0
        %v7431 = vpop.f32.mrf.mxu0
        %v7432 = vadd.f32 0.0, %v7431
        %v7433 = vpop.f32.mrf.mxu0
        %7434 = vmatprep.mubr.bf16.mxu0 0
        %7435 = vmatmul.mubr.bf16.gmra.mxu0 %v5206
        %v7436 = vpop.f32.mrf.mxu0
        %v7437 = vadd.f32 0.0, %v7436
        %v7438 = vpop.f32.mrf.mxu0
        %v7439 = vpop.f32.mrf.mxu0
        %v7440 = vadd.f32 0.0, %v7439
        %v7441 = vpop.f32.mrf.mxu0
        %7442 = vdwg.mxu0
        %v7443 = vpack.c.bf16 %v7416, %v7413
        %v7444 = vpack.c.bf16 %v7424, %v7421
        %v7445 = vpack.c.bf16 %v7432, %v7429
        %v7446 = vpack.c.bf16 %v7440, %v7437
        %s7447 = scalar_lea.vmem %s11, 480
        %v7448 = vld [vmem:[%s7447] sm:$0xf]
        %v7449 = vld [vmem:[%s7447 + $0x4] sm:$0xf]
        %v7450 = vld [vmem:[%s7447 + $0x8] sm:$0xf]
        %v7451 = vld [vmem:[%s7447 + $0xc] sm:$0xf]
        %v7452 = vld [vmem:[%s7447 + $0x10] sm:$0xf]
        %v7453 = vld [vmem:[%s7447 + $0x14] sm:$0xf]
        %v7454 = vld [vmem:[%s7447 + $0x18] sm:$0xf]
        %v7455 = vld [vmem:[%s7447 + $0x1c] sm:$0xf]
        %v7464 = vunpack.c.l.b16 %v7448
        %v7465 = vunpack.c.l.b16 %v7449
        %v7466 = vunpack.c.l.b16 %v7450
        %v7467 = vunpack.c.l.b16 %v7451
        %v7468 = vunpack.c.l.b16 %v7452
        %v7469 = vunpack.c.l.b16 %v7453
        %v7470 = vunpack.c.l.b16 %v7454
        %v7471 = vunpack.c.l.b16 %v7455
        %v7472 = vpack.c.b16 %v7465, %v7464
        %v7473 = vpack.c.b16 %v7467, %v7466
        %v7474 = vpack.c.b16 %v7469, %v7468
        %v7475 = vpack.c.b16 %v7471, %v7470
        %v7481 = vsel %vm1027, %v7443, 0
        %v7484 = vsel %vm1027, %v7444, 0
        %v7487 = vsel %vm1027, %v7445, 0
        %v7490 = vsel %vm1027, %v7446, 0
        %7492 = vmatprep.subr.bf16.mxu0 0
        %7493 = vmatpush1.bf16.msra.mxu0 0
        %7494 = vmatprep.subr.bf16.mxu0 0
        %7495 = vmatpush1.bf16.msra.mxu0 0
        %7496 = vmatprep.subr.bf16.mxu0 0
        %7497 = vmatpush1.bf16.msra.mxu0 0
        %7498 = vmatprep.subr.bf16.mxu0 0
        %7499 = vmatpush1.bf16.msra.mxu0 0
        %7500 = vmatprep.subr.bf16.mxu0 0
        %7501 = vmatpush1.bf16.msra.mxu0 %v7475
        %7502 = vmatprep.subr.bf16.mxu0 0
        %7503 = vmatpush1.bf16.msra.mxu0 %v7474
        %7504 = vmatprep.subr.bf16.mxu0 0
        %7505 = vmatpush1.bf16.msra.mxu0 %v7473
        %7506 = vmatprep.subr.bf16.mxu0 0
        %7507 = vmatpush1.bf16.msra.mxu0 %v7472
        %7508 = vmatprep.subr.bf16.mxu0 0
        %7509 = vmatpush2.bf16.msra.mxu0 0
        %7510 = vmatprep.subr.bf16.mxu0 0
        %7511 = vmatpush2.bf16.msra.mxu0 0
        %7512 = vmatprep.subr.bf16.mxu0 0
        %7513 = vmatpush2.bf16.msra.mxu0 0
        %7514 = vmatprep.subr.bf16.mxu0 0
        %7515 = vmatpush2.bf16.msra.mxu0 0
        %7516 = vmatprep.subr.bf16.mxu0 0
        %7517 = vmatpush2.bf16.msra.mxu0 0
        %7518 = vmatprep.subr.bf16.mxu0 0
        %7519 = vmatpush2.bf16.msra.mxu0 0
        %7520 = vmatprep.subr.bf16.mxu0 0
        %7521 = vmatpush2.bf16.msra.mxu0 0
        %7522 = vmatprep.subr.bf16.mxu0 0
        %7523 = vmatpush2.bf16.msra.mxu0 0
        %7524 = vmatprep.mubr.bf16.mxu0 0
        %7525 = vmatmul.mubr.bf16.gmra.mxu0 %v7481
        %v7526 = vpop.f32.mrf.mxu0
        %v7527 = vadd.f32 0.0, %v7526
        %v7528 = vpop.f32.mrf.mxu0
        %v7529 = vpop.f32.mrf.mxu0
        %v7530 = vadd.f32 0.0, %v7529
        %v7531 = vpop.f32.mrf.mxu0
        %7532 = vmatprep.mubr.bf16.mxu0 0
        %7533 = vmatmul.mubr.bf16.gmra.mxu0 %v7484
        %v7534 = vpop.f32.mrf.mxu0
        %v7535 = vadd.f32 0.0, %v7534
        %v7536 = vpop.f32.mrf.mxu0
        %v7537 = vpop.f32.mrf.mxu0
        %v7538 = vadd.f32 0.0, %v7537
        %v7539 = vpop.f32.mrf.mxu0
        %7540 = vmatprep.mubr.bf16.mxu0 0
        %7541 = vmatmul.mubr.bf16.gmra.mxu0 %v7487
        %v7542 = vpop.f32.mrf.mxu0
        %v7543 = vadd.f32 0.0, %v7542
        %v7544 = vpop.f32.mrf.mxu0
        %v7545 = vpop.f32.mrf.mxu0
        %v7546 = vadd.f32 0.0, %v7545
        %v7547 = vpop.f32.mrf.mxu0
        %7548 = vmatprep.mubr.bf16.mxu0 0
        %7549 = vmatmul.mubr.bf16.gmra.mxu0 %v7490
        %v7550 = vpop.f32.mrf.mxu0
        %v7551 = vadd.f32 0.0, %v7550
        %v7552 = vpop.f32.mrf.mxu0
        %v7553 = vpop.f32.mrf.mxu0
        %v7554 = vadd.f32 0.0, %v7553
        %v7555 = vpop.f32.mrf.mxu0
        %7556 = vdwg.mxu0
        %v7557 = vadd.f32 %v7370, %v7527
        %v7558 = vadd.f32 %v7371, %v7530
        %v7559 = vadd.f32 %v7372, %v7535
        %v7560 = vadd.f32 %v7373, %v7538
        %v7561 = vadd.f32 %v7374, %v7543
        %v7562 = vadd.f32 %v7375, %v7546
        %v7563 = vadd.f32 %v7376, %v7551
        %v7564 = vadd.f32 %v7377, %v7554
        %7565 = vmatprep.subr.bf16.mxu0 0
        %7566 = vmatpush1.bf16.msra.mxu0 0
        %7567 = vmatprep.subr.bf16.mxu0 0
        %7568 = vmatpush1.bf16.msra.mxu0 0
        %7569 = vmatprep.subr.bf16.mxu0 0
        %7570 = vmatpush1.bf16.msra.mxu0 0
        %7571 = vmatprep.subr.bf16.mxu0 0
        %7572 = vmatpush1.bf16.msra.mxu0 0
        %7573 = vmatprep.subr.bf16.mxu0 0
        %7574 = vmatpush1.bf16.msra.mxu0 %v6271
        %7575 = vmatprep.subr.bf16.mxu0 0
        %7576 = vmatpush1.bf16.msra.mxu0 %v6270
        %7577 = vmatprep.subr.bf16.mxu0 0
        %7578 = vmatpush1.bf16.msra.mxu0 %v6269
        %7579 = vmatprep.subr.bf16.mxu0 0
        %7580 = vmatpush1.bf16.msra.mxu0 %v6268
        %7581 = vmatprep.subr.bf16.mxu0 0
        %7582 = vmatpush2.bf16.msra.mxu0 0
        %7583 = vmatprep.subr.bf16.mxu0 0
        %7584 = vmatpush2.bf16.msra.mxu0 0
        %7585 = vmatprep.subr.bf16.mxu0 0
        %7586 = vmatpush2.bf16.msra.mxu0 0
        %7587 = vmatprep.subr.bf16.mxu0 0
        %7588 = vmatpush2.bf16.msra.mxu0 0
        %7589 = vmatprep.subr.bf16.mxu0 0
        %7590 = vmatpush2.bf16.msra.mxu0 0
        %7591 = vmatprep.subr.bf16.mxu0 0
        %7592 = vmatpush2.bf16.msra.mxu0 0
        %7593 = vmatprep.subr.bf16.mxu0 0
        %7594 = vmatpush2.bf16.msra.mxu0 0
        %7595 = vmatprep.subr.bf16.mxu0 0
        %7596 = vmatpush2.bf16.msra.mxu0 0
        %7597 = vmatprep.mubr.bf16.mxu0 0
        %7598 = vmatmul.mubr.bf16.gmra.mxu0 %v5425
        %v7599 = vpop.f32.mrf.mxu0
        %v7600 = vadd.f32 0.0, %v7599
        %v7601 = vpop.f32.mrf.mxu0
        %v7602 = vpop.f32.mrf.mxu0
        %v7603 = vadd.f32 0.0, %v7602
        %v7604 = vpop.f32.mrf.mxu0
        %7605 = vmatprep.mubr.bf16.mxu0 0
        %7606 = vmatmul.mubr.bf16.gmra.mxu0 %v5428
        %v7607 = vpop.f32.mrf.mxu0
        %v7608 = vadd.f32 0.0, %v7607
        %v7609 = vpop.f32.mrf.mxu0
        %v7610 = vpop.f32.mrf.mxu0
        %v7611 = vadd.f32 0.0, %v7610
        %v7612 = vpop.f32.mrf.mxu0
        %7613 = vmatprep.mubr.bf16.mxu0 0
        %7614 = vmatmul.mubr.bf16.gmra.mxu0 %v5431
        %v7615 = vpop.f32.mrf.mxu0
        %v7616 = vadd.f32 0.0, %v7615
        %v7617 = vpop.f32.mrf.mxu0
        %v7618 = vpop.f32.mrf.mxu0
        %v7619 = vadd.f32 0.0, %v7618
        %v7620 = vpop.f32.mrf.mxu0
        %7621 = vmatprep.mubr.bf16.mxu0 0
        %7622 = vmatmul.mubr.bf16.gmra.mxu0 %v5434
        %v7623 = vpop.f32.mrf.mxu0
        %v7624 = vadd.f32 0.0, %v7623
        %v7625 = vpop.f32.mrf.mxu0
        %v7626 = vpop.f32.mrf.mxu0
        %v7627 = vadd.f32 0.0, %v7626
        %v7628 = vpop.f32.mrf.mxu0
        %7629 = vdwg.mxu0
        %v7630 = vpack.c.bf16 %v7603, %v7600
        %v7631 = vpack.c.bf16 %v7611, %v7608
        %v7632 = vpack.c.bf16 %v7619, %v7616
        %v7633 = vpack.c.bf16 %v7627, %v7624
        %s7634 = scalar_lea.vmem %s11, 512
        %v7635 = vld [vmem:[%s7634] sm:$0xf]
        %v7636 = vld [vmem:[%s7634 + $0x4] sm:$0xf]
        %v7637 = vld [vmem:[%s7634 + $0x8] sm:$0xf]
        %v7638 = vld [vmem:[%s7634 + $0xc] sm:$0xf]
        %v7639 = vld [vmem:[%s7634 + $0x10] sm:$0xf]
        %v7640 = vld [vmem:[%s7634 + $0x14] sm:$0xf]
        %v7641 = vld [vmem:[%s7634 + $0x18] sm:$0xf]
        %v7642 = vld [vmem:[%s7634 + $0x1c] sm:$0xf]
        %v7651 = vunpack.c.l.b16 %v7635
        %v7652 = vunpack.c.l.b16 %v7636
        %v7653 = vunpack.c.l.b16 %v7637
        %v7654 = vunpack.c.l.b16 %v7638
        %v7655 = vunpack.c.l.b16 %v7639
        %v7656 = vunpack.c.l.b16 %v7640
        %v7657 = vunpack.c.l.b16 %v7641
        %v7658 = vunpack.c.l.b16 %v7642
        %v7659 = vpack.c.b16 %v7652, %v7651
        %v7660 = vpack.c.b16 %v7654, %v7653
        %v7661 = vpack.c.b16 %v7656, %v7655
        %v7662 = vpack.c.b16 %v7658, %v7657
        %v7668 = vsel %vm1027, %v7630, 0
        %v7671 = vsel %vm1027, %v7631, 0
        %v7674 = vsel %vm1027, %v7632, 0
        %v7677 = vsel %vm1027, %v7633, 0
        %7679 = vmatprep.subr.bf16.mxu0 0
        %7680 = vmatpush1.bf16.msra.mxu0 0
        %7681 = vmatprep.subr.bf16.mxu0 0
        %7682 = vmatpush1.bf16.msra.mxu0 0
        %7683 = vmatprep.subr.bf16.mxu0 0
        %7684 = vmatpush1.bf16.msra.mxu0 0
        %7685 = vmatprep.subr.bf16.mxu0 0
        %7686 = vmatpush1.bf16.msra.mxu0 0
        %7687 = vmatprep.subr.bf16.mxu0 0
        %7688 = vmatpush1.bf16.msra.mxu0 %v7662
        %7689 = vmatprep.subr.bf16.mxu0 0
        %7690 = vmatpush1.bf16.msra.mxu0 %v7661
        %7691 = vmatprep.subr.bf16.mxu0 0
        %7692 = vmatpush1.bf16.msra.mxu0 %v7660
        %7693 = vmatprep.subr.bf16.mxu0 0
        %7694 = vmatpush1.bf16.msra.mxu0 %v7659
        %7695 = vmatprep.subr.bf16.mxu0 0
        %7696 = vmatpush2.bf16.msra.mxu0 0
        %7697 = vmatprep.subr.bf16.mxu0 0
        %7698 = vmatpush2.bf16.msra.mxu0 0
        %7699 = vmatprep.subr.bf16.mxu0 0
        %7700 = vmatpush2.bf16.msra.mxu0 0
        %7701 = vmatprep.subr.bf16.mxu0 0
        %7702 = vmatpush2.bf16.msra.mxu0 0
        %7703 = vmatprep.subr.bf16.mxu0 0
        %7704 = vmatpush2.bf16.msra.mxu0 0
        %7705 = vmatprep.subr.bf16.mxu0 0
        %7706 = vmatpush2.bf16.msra.mxu0 0
        %7707 = vmatprep.subr.bf16.mxu0 0
        %7708 = vmatpush2.bf16.msra.mxu0 0
        %7709 = vmatprep.subr.bf16.mxu0 0
        %7710 = vmatpush2.bf16.msra.mxu0 0
        %7711 = vmatprep.mubr.bf16.mxu0 0
        %7712 = vmatmul.mubr.bf16.gmra.mxu0 %v7668
        %v7713 = vpop.f32.mrf.mxu0
        %v7714 = vadd.f32 0.0, %v7713
        %v7715 = vpop.f32.mrf.mxu0
        %v7716 = vpop.f32.mrf.mxu0
        %v7717 = vadd.f32 0.0, %v7716
        %v7718 = vpop.f32.mrf.mxu0
        %7719 = vmatprep.mubr.bf16.mxu0 0
        %7720 = vmatmul.mubr.bf16.gmra.mxu0 %v7671
        %v7721 = vpop.f32.mrf.mxu0
        %v7722 = vadd.f32 0.0, %v7721
        %v7723 = vpop.f32.mrf.mxu0
        %v7724 = vpop.f32.mrf.mxu0
        %v7725 = vadd.f32 0.0, %v7724
        %v7726 = vpop.f32.mrf.mxu0
        %7727 = vmatprep.mubr.bf16.mxu0 0
        %7728 = vmatmul.mubr.bf16.gmra.mxu0 %v7674
        %v7729 = vpop.f32.mrf.mxu0
        %v7730 = vadd.f32 0.0, %v7729
        %v7731 = vpop.f32.mrf.mxu0
        %v7732 = vpop.f32.mrf.mxu0
        %v7733 = vadd.f32 0.0, %v7732
        %v7734 = vpop.f32.mrf.mxu0
        %7735 = vmatprep.mubr.bf16.mxu0 0
        %7736 = vmatmul.mubr.bf16.gmra.mxu0 %v7677
        %v7737 = vpop.f32.mrf.mxu0
        %v7738 = vadd.f32 0.0, %v7737
        %v7739 = vpop.f32.mrf.mxu0
        %v7740 = vpop.f32.mrf.mxu0
        %v7741 = vadd.f32 0.0, %v7740
        %v7742 = vpop.f32.mrf.mxu0
        %7743 = vdwg.mxu0
        %v7744 = vadd.f32 %v7557, %v7714
        %v7745 = vadd.f32 %v7558, %v7717
        %v7746 = vadd.f32 %v7559, %v7722
        %v7747 = vadd.f32 %v7560, %v7725
        %v7748 = vadd.f32 %v7561, %v7730
        %v7749 = vadd.f32 %v7562, %v7733
        %v7750 = vadd.f32 %v7563, %v7738
        %v7751 = vadd.f32 %v7564, %v7741
        %7752 = vmatprep.subr.bf16.mxu0 0
        %7753 = vmatpush1.bf16.msra.mxu0 0
        %7754 = vmatprep.subr.bf16.mxu0 0
        %7755 = vmatpush1.bf16.msra.mxu0 0
        %7756 = vmatprep.subr.bf16.mxu0 0
        %7757 = vmatpush1.bf16.msra.mxu0 0
        %7758 = vmatprep.subr.bf16.mxu0 0
        %7759 = vmatpush1.bf16.msra.mxu0 0
        %7760 = vmatprep.subr.bf16.mxu0 0
        %7761 = vmatpush1.bf16.msra.mxu0 %v6271
        %7762 = vmatprep.subr.bf16.mxu0 0
        %7763 = vmatpush1.bf16.msra.mxu0 %v6270
        %7764 = vmatprep.subr.bf16.mxu0 0
        %7765 = vmatpush1.bf16.msra.mxu0 %v6269
        %7766 = vmatprep.subr.bf16.mxu0 0
        %7767 = vmatpush1.bf16.msra.mxu0 %v6268
        %7768 = vmatprep.subr.bf16.mxu0 0
        %7769 = vmatpush2.bf16.msra.mxu0 0
        %7770 = vmatprep.subr.bf16.mxu0 0
        %7771 = vmatpush2.bf16.msra.mxu0 0
        %7772 = vmatprep.subr.bf16.mxu0 0
        %7773 = vmatpush2.bf16.msra.mxu0 0
        %7774 = vmatprep.subr.bf16.mxu0 0
        %7775 = vmatpush2.bf16.msra.mxu0 0
        %7776 = vmatprep.subr.bf16.mxu0 0
        %7777 = vmatpush2.bf16.msra.mxu0 0
        %7778 = vmatprep.subr.bf16.mxu0 0
        %7779 = vmatpush2.bf16.msra.mxu0 0
        %7780 = vmatprep.subr.bf16.mxu0 0
        %7781 = vmatpush2.bf16.msra.mxu0 0
        %7782 = vmatprep.subr.bf16.mxu0 0
        %7783 = vmatpush2.bf16.msra.mxu0 0
        %7784 = vmatprep.mubr.bf16.mxu0 0
        %7785 = vmatmul.mubr.bf16.gmra.mxu0 %v5653
        %v7786 = vpop.f32.mrf.mxu0
        %v7787 = vadd.f32 0.0, %v7786
        %v7788 = vpop.f32.mrf.mxu0
        %v7789 = vpop.f32.mrf.mxu0
        %v7790 = vadd.f32 0.0, %v7789
        %v7791 = vpop.f32.mrf.mxu0
        %7792 = vmatprep.mubr.bf16.mxu0 0
        %7793 = vmatmul.mubr.bf16.gmra.mxu0 %v5656
        %v7794 = vpop.f32.mrf.mxu0
        %v7795 = vadd.f32 0.0, %v7794
        %v7796 = vpop.f32.mrf.mxu0
        %v7797 = vpop.f32.mrf.mxu0
        %v7798 = vadd.f32 0.0, %v7797
        %v7799 = vpop.f32.mrf.mxu0
        %7800 = vmatprep.mubr.bf16.mxu0 0
        %7801 = vmatmul.mubr.bf16.gmra.mxu0 %v5659
        %v7802 = vpop.f32.mrf.mxu0
        %v7803 = vadd.f32 0.0, %v7802
        %v7804 = vpop.f32.mrf.mxu0
        %v7805 = vpop.f32.mrf.mxu0
        %v7806 = vadd.f32 0.0, %v7805
        %v7807 = vpop.f32.mrf.mxu0
        %7808 = vmatprep.mubr.bf16.mxu0 0
        %7809 = vmatmul.mubr.bf16.gmra.mxu0 %v5662
        %v7810 = vpop.f32.mrf.mxu0
        %v7811 = vadd.f32 0.0, %v7810
        %v7812 = vpop.f32.mrf.mxu0
        %v7813 = vpop.f32.mrf.mxu0
        %v7814 = vadd.f32 0.0, %v7813
        %v7815 = vpop.f32.mrf.mxu0
        %7816 = vdwg.mxu0
        %v7817 = vpack.c.bf16 %v7790, %v7787
        %v7818 = vpack.c.bf16 %v7798, %v7795
        %v7819 = vpack.c.bf16 %v7806, %v7803
        %v7820 = vpack.c.bf16 %v7814, %v7811
        %s7821 = scalar_lea.vmem %s11, 544
        %v7822 = vld [vmem:[%s7821] sm:$0xf]
        %v7823 = vld [vmem:[%s7821 + $0x4] sm:$0xf]
        %v7824 = vld [vmem:[%s7821 + $0x8] sm:$0xf]
        %v7825 = vld [vmem:[%s7821 + $0xc] sm:$0xf]
        %v7826 = vld [vmem:[%s7821 + $0x10] sm:$0xf]
        %v7827 = vld [vmem:[%s7821 + $0x14] sm:$0xf]
        %v7828 = vld [vmem:[%s7821 + $0x18] sm:$0xf]
        %v7829 = vld [vmem:[%s7821 + $0x1c] sm:$0xf]
        %v7838 = vunpack.c.l.b16 %v7822
        %v7839 = vunpack.c.l.b16 %v7823
        %v7840 = vunpack.c.l.b16 %v7824
        %v7841 = vunpack.c.l.b16 %v7825
        %v7842 = vunpack.c.l.b16 %v7826
        %v7843 = vunpack.c.l.b16 %v7827
        %v7844 = vunpack.c.l.b16 %v7828
        %v7845 = vunpack.c.l.b16 %v7829
        %v7846 = vpack.c.b16 %v7839, %v7838
        %v7847 = vpack.c.b16 %v7841, %v7840
        %v7848 = vpack.c.b16 %v7843, %v7842
        %v7849 = vpack.c.b16 %v7845, %v7844
        %v7855 = vsel %vm1027, %v7817, 0
        %v7858 = vsel %vm1027, %v7818, 0
        %v7861 = vsel %vm1027, %v7819, 0
        %v7864 = vsel %vm1027, %v7820, 0
        %7866 = vmatprep.subr.bf16.mxu0 0
        %7867 = vmatpush1.bf16.msra.mxu0 0
        %7868 = vmatprep.subr.bf16.mxu0 0
        %7869 = vmatpush1.bf16.msra.mxu0 0
        %7870 = vmatprep.subr.bf16.mxu0 0
        %7871 = vmatpush1.bf16.msra.mxu0 0
        %7872 = vmatprep.subr.bf16.mxu0 0
        %7873 = vmatpush1.bf16.msra.mxu0 0
        %7874 = vmatprep.subr.bf16.mxu0 0
        %7875 = vmatpush1.bf16.msra.mxu0 %v7849
        %7876 = vmatprep.subr.bf16.mxu0 0
        %7877 = vmatpush1.bf16.msra.mxu0 %v7848
        %7878 = vmatprep.subr.bf16.mxu0 0
        %7879 = vmatpush1.bf16.msra.mxu0 %v7847
        %7880 = vmatprep.subr.bf16.mxu0 0
        %7881 = vmatpush1.bf16.msra.mxu0 %v7846
        %7882 = vmatprep.subr.bf16.mxu0 0
        %7883 = vmatpush2.bf16.msra.mxu0 0
        %7884 = vmatprep.subr.bf16.mxu0 0
        %7885 = vmatpush2.bf16.msra.mxu0 0
        %7886 = vmatprep.subr.bf16.mxu0 0
        %7887 = vmatpush2.bf16.msra.mxu0 0
        %7888 = vmatprep.subr.bf16.mxu0 0
        %7889 = vmatpush2.bf16.msra.mxu0 0
        %7890 = vmatprep.subr.bf16.mxu0 0
        %7891 = vmatpush2.bf16.msra.mxu0 0
        %7892 = vmatprep.subr.bf16.mxu0 0
        %7893 = vmatpush2.bf16.msra.mxu0 0
        %7894 = vmatprep.subr.bf16.mxu0 0
        %7895 = vmatpush2.bf16.msra.mxu0 0
        %7896 = vmatprep.subr.bf16.mxu0 0
        %7897 = vmatpush2.bf16.msra.mxu0 0
        %7898 = vmatprep.mubr.bf16.mxu0 0
        %7899 = vmatmul.mubr.bf16.gmra.mxu0 %v7855
        %v7900 = vpop.f32.mrf.mxu0
        %v7901 = vadd.f32 0.0, %v7900
        %v7902 = vpop.f32.mrf.mxu0
        %v7903 = vpop.f32.mrf.mxu0
        %v7904 = vadd.f32 0.0, %v7903
        %v7905 = vpop.f32.mrf.mxu0
        %7906 = vmatprep.mubr.bf16.mxu0 0
        %7907 = vmatmul.mubr.bf16.gmra.mxu0 %v7858
        %v7908 = vpop.f32.mrf.mxu0
        %v7909 = vadd.f32 0.0, %v7908
        %v7910 = vpop.f32.mrf.mxu0
        %v7911 = vpop.f32.mrf.mxu0
        %v7912 = vadd.f32 0.0, %v7911
        %v7913 = vpop.f32.mrf.mxu0
        %7914 = vmatprep.mubr.bf16.mxu0 0
        %7915 = vmatmul.mubr.bf16.gmra.mxu0 %v7861
        %v7916 = vpop.f32.mrf.mxu0
        %v7917 = vadd.f32 0.0, %v7916
        %v7918 = vpop.f32.mrf.mxu0
        %v7919 = vpop.f32.mrf.mxu0
        %v7920 = vadd.f32 0.0, %v7919
        %v7921 = vpop.f32.mrf.mxu0
        %7922 = vmatprep.mubr.bf16.mxu0 0
        %7923 = vmatmul.mubr.bf16.gmra.mxu0 %v7864
        %v7924 = vpop.f32.mrf.mxu0
        %v7925 = vadd.f32 0.0, %v7924
        %v7926 = vpop.f32.mrf.mxu0
        %v7927 = vpop.f32.mrf.mxu0
        %v7928 = vadd.f32 0.0, %v7927
        %v7929 = vpop.f32.mrf.mxu0
        %7930 = vdwg.mxu0
        %v7931 = vadd.f32 %v7744, %v7901
        %v7932 = vadd.f32 %v7745, %v7904
        %v7933 = vadd.f32 %v7746, %v7909
        %v7934 = vadd.f32 %v7747, %v7912
        %v7935 = vadd.f32 %v7748, %v7917
        %v7936 = vadd.f32 %v7749, %v7920
        %v7937 = vadd.f32 %v7750, %v7925
        %v7938 = vadd.f32 %v7751, %v7928
        %s7939 = scalar_lea.vmem %s12, 1
        %v7940 = vld [vmem:[%s7939] sm:$0x1]
        %v7942 = vlaneseq
        %v7943 = vshrl.u32 %v7942, 7
        %v7944 = vsub.s32 0, %v7943
        %v7945 = vrot.slane %v7940, %v7944
        %v7947 = vadd.f32 %v7931, %v7945
        %v7948 = vadd.f32 %v7932, %v7945
        %v7949 = vadd.f32 %v7933, %v7945
        %v7950 = vadd.f32 %v7934, %v7945
        %v7951 = vadd.f32 %v7935, %v7945
        %v7952 = vadd.f32 %v7936, %v7945
        %v7953 = vadd.f32 %v7937, %v7945
        %v7954 = vadd.f32 %v7938, %v7945
        %v7955 = vmax.f32 %v7947, 0.0
        %v7956 = vmax.f32 %v7948, 0.0
        %v7957 = vmax.f32 %v7949, 0.0
        %v7958 = vmax.f32 %v7950, 0.0
        %v7959 = vmax.f32 %v7951, 0.0
        %v7960 = vmax.f32 %v7952, 0.0
        %v7961 = vmax.f32 %v7953, 0.0
        %v7962 = vmax.f32 %v7954, 0.0
        %v7963 = vand.u32 2147483647, %v7947
        %v7964 = vand.u32 2147483647, %v7948
        %v7965 = vand.u32 2147483647, %v7949
        %v7966 = vand.u32 2147483647, %v7950
        %v7967 = vand.u32 2147483647, %v7951
        %v7968 = vand.u32 2147483647, %v7952
        %v7969 = vand.u32 2147483647, %v7953
        %v7970 = vand.u32 2147483647, %v7954
        %v7971 = vsub.f32 0.0, %v7963
        %v7972 = vsub.f32 0.0, %v7964
        %v7973 = vsub.f32 0.0, %v7965
        %v7974 = vsub.f32 0.0, %v7966
        %v7975 = vsub.f32 0.0, %v7967
        %v7976 = vsub.f32 0.0, %v7968
        %v7977 = vsub.f32 0.0, %v7969
        %v7978 = vsub.f32 0.0, %v7970
        %v7979 = vmul.f32 %v7971, 1.442695
        %v7980 = vpow.pop %v7979
        %v7981 = vmul.f32 %v7972, 1.442695
        %v7982 = vpow.pop %v7981
        %v7983 = vmul.f32 %v7973, 1.442695
        %v7984 = vpow.pop %v7983
        %v7985 = vmul.f32 %v7974, 1.442695
        %v7986 = vpow.pop %v7985
        %v7987 = vmul.f32 %v7975, 1.442695
        %v7988 = vpow.pop %v7987
        %v7989 = vmul.f32 %v7976, 1.442695
        %v7990 = vpow.pop %v7989
        %v7991 = vmul.f32 %v7977, 1.442695
        %v7992 = vpow.pop %v7991
        %v7993 = vmul.f32 %v7978, 1.442695
        %v7994 = vpow.pop %v7993
        %v7995 = vadd.f32 %v7980, 1.0
        %v7996 = vlog2.pop %v7995
        %v7997 = vmul.f32 %v7996, 0.6931472
        %v7998 = vmul.f32 -0.5, %v7980
        %v7999 = vadd.f32 %v7998, 1.0
        %v8000 = vmul.f32 %v7999, %v7980
        %v8001 = vand.u32 2147483647, %v7980
        %vm8002 = vcmp.lt.f32.partialorder %v8001, 0.0004427343
        %v8003 = vsel %vm8002, %v8000, %v7997
        %v8004 = vadd.f32 %v7982, 1.0
        %v8005 = vlog2.pop %v8004
        %v8006 = vmul.f32 %v8005, 0.6931472
        %v8007 = vmul.f32 -0.5, %v7982
        %v8008 = vadd.f32 %v8007, 1.0
        %v8009 = vmul.f32 %v8008, %v7982
        %v8010 = vand.u32 2147483647, %v7982
        %vm8011 = vcmp.lt.f32.partialorder %v8010, 0.0004427343
        %v8012 = vsel %vm8011, %v8009, %v8006
        %v8013 = vadd.f32 %v7984, 1.0
        %v8014 = vlog2.pop %v8013
        %v8015 = vmul.f32 %v8014, 0.6931472
        %v8016 = vmul.f32 -0.5, %v7984
        %v8017 = vadd.f32 %v8016, 1.0
        %v8018 = vmul.f32 %v8017, %v7984
        %v8019 = vand.u32 2147483647, %v7984
        %vm8020 = vcmp.lt.f32.partialorder %v8019, 0.0004427343
        %v8021 = vsel %vm8020, %v8018, %v8015
        %v8022 = vadd.f32 %v7986, 1.0
        %v8023 = vlog2.pop %v8022
        %v8024 = vmul.f32 %v8023, 0.6931472
        %v8025 = vmul.f32 -0.5, %v7986
        %v8026 = vadd.f32 %v8025, 1.0
        %v8027 = vmul.f32 %v8026, %v7986
        %v8028 = vand.u32 2147483647, %v7986
        %vm8029 = vcmp.lt.f32.partialorder %v8028, 0.0004427343
        %v8030 = vsel %vm8029, %v8027, %v8024
        %v8031 = vadd.f32 %v7988, 1.0
        %v8032 = vlog2.pop %v8031
        %v8033 = vmul.f32 %v8032, 0.6931472
        %v8034 = vmul.f32 -0.5, %v7988
        %v8035 = vadd.f32 %v8034, 1.0
        %v8036 = vmul.f32 %v8035, %v7988
        %v8037 = vand.u32 2147483647, %v7988
        %vm8038 = vcmp.lt.f32.partialorder %v8037, 0.0004427343
        %v8039 = vsel %vm8038, %v8036, %v8033
        %v8040 = vadd.f32 %v7990, 1.0
        %v8041 = vlog2.pop %v8040
        %v8042 = vmul.f32 %v8041, 0.6931472
        %v8043 = vmul.f32 -0.5, %v7990
        %v8044 = vadd.f32 %v8043, 1.0
        %v8045 = vmul.f32 %v8044, %v7990
        %v8046 = vand.u32 2147483647, %v7990
        %vm8047 = vcmp.lt.f32.partialorder %v8046, 0.0004427343
        %v8048 = vsel %vm8047, %v8045, %v8042
        %v8049 = vadd.f32 %v7992, 1.0
        %v8050 = vlog2.pop %v8049
        %v8051 = vmul.f32 %v8050, 0.6931472
        %v8052 = vmul.f32 -0.5, %v7992
        %v8053 = vadd.f32 %v8052, 1.0
        %v8054 = vmul.f32 %v8053, %v7992
        %v8055 = vand.u32 2147483647, %v7992
        %vm8056 = vcmp.lt.f32.partialorder %v8055, 0.0004427343
        %v8057 = vsel %vm8056, %v8054, %v8051
        %v8058 = vadd.f32 %v7994, 1.0
        %v8059 = vlog2.pop %v8058
        %v8060 = vmul.f32 %v8059, 0.6931472
        %v8061 = vmul.f32 -0.5, %v7994
        %v8062 = vadd.f32 %v8061, 1.0
        %v8063 = vmul.f32 %v8062, %v7994
        %v8064 = vand.u32 2147483647, %v7994
        %vm8065 = vcmp.lt.f32.partialorder %v8064, 0.0004427343
        %v8066 = vsel %vm8065, %v8063, %v8060
        %v8067 = vadd.f32 %v7955, %v8003
        %v8068 = vadd.f32 %v7956, %v8012
        %v8069 = vadd.f32 %v7957, %v8021
        %v8070 = vadd.f32 %v7958, %v8030
        %v8071 = vadd.f32 %v7959, %v8039
        %v8072 = vadd.f32 %v7960, %v8048
        %v8073 = vadd.f32 %v7961, %v8057
        %v8074 = vadd.f32 %v7962, %v8066
        %v8075 = vtanh.pop %v8067
        %v8076 = vtanh.pop %v8068
        %v8077 = vtanh.pop %v8069
        %v8078 = vtanh.pop %v8070
        %v8079 = vtanh.pop %v8071
        %v8080 = vtanh.pop %v8072
        %v8081 = vtanh.pop %v8073
        %v8082 = vtanh.pop %v8074
        %v8083 = vmul.f32 %v7947, %v8075
        %v8084 = vmul.f32 %v7948, %v8076
        %v8085 = vmul.f32 %v7949, %v8077
        %v8086 = vmul.f32 %v7950, %v8078
        %v8087 = vmul.f32 %v7951, %v8079
        %v8088 = vmul.f32 %v7952, %v8080
        %v8089 = vmul.f32 %v7953, %v8081
        %v8090 = vmul.f32 %v7954, %v8082
        %v8091 = vadd.f32 %v6002, %v8083
        %v8092 = vadd.f32 %v6003, %v8084
        %v8093 = vadd.f32 %v6004, %v8085
        %v8094 = vadd.f32 %v6005, %v8086
        %v8095 = vadd.f32 %v6006, %v8087
        %v8096 = vadd.f32 %v6007, %v8088
        %v8097 = vadd.f32 %v6008, %v8089
        %v8098 = vadd.f32 %v6009, %v8090
        %v8099 = vpack.c.bf16 %v8092, %v8091
        %v8100 = vpack.c.bf16 %v8094, %v8093
        %v8101 = vpack.c.bf16 %v8096, %v8095
        %v8102 = vpack.c.bf16 %v8098, %v8097
        %v8103 = vld [vmem:[#allocation9] sm:$0xf]
        %v8104 = vld [vmem:[#allocation9 + $0x4] sm:$0xf]
        %v8105 = vld [vmem:[#allocation9 + $0x8] sm:$0xf]
        %v8106 = vld [vmem:[#allocation9 + $0xc] sm:$0xf]
        %v8107 = vld [vmem:[#allocation9 + $0x10] sm:$0xf]
        %v8108 = vld [vmem:[#allocation9 + $0x14] sm:$0xf]
        %v8109 = vld [vmem:[#allocation9 + $0x18] sm:$0xf]
        %v8110 = vld [vmem:[#allocation9 + $0x1c] sm:$0xf]
        %v8111 = vld [vmem:[%s14] sm:$0x1]
        %v8113 = vlaneseq
        %v8114 = vshrl.u32 %v8113, 7
        %v8115 = vsub.s32 0, %v8114
        %v8116 = vrot.slane %v8111, %v8115
        %v8126 = vunpack.c.l.b16 %v8103
        %v8127 = vunpack.c.l.b16 %v8104
        %v8128 = vunpack.c.l.b16 %v8105
        %v8129 = vunpack.c.l.b16 %v8106
        %v8130 = vunpack.c.l.b16 %v8107
        %v8131 = vunpack.c.l.b16 %v8108
        %v8132 = vunpack.c.l.b16 %v8109
        %v8133 = vunpack.c.l.b16 %v8110
        %v8134 = vpack.c.b16 %v8127, %v8126
        %v8135 = vpack.c.b16 %v8129, %v8128
        %v8136 = vpack.c.b16 %v8131, %v8130
        %v8137 = vpack.c.b16 %v8133, %v8132
        %v8143 = vsel %vm1027, %v8099, 0
        %v8146 = vsel %vm1027, %v8100, 0
        %v8149 = vsel %vm1027, %v8101, 0
        %v8152 = vsel %vm1027, %v8102, 0
        %8154 = vmatprep.subr.bf16.mxu0 0
        %8155 = vmatpush1.bf16.msra.mxu0 0
        %8156 = vmatprep.subr.bf16.mxu0 0
        %8157 = vmatpush1.bf16.msra.mxu0 0
        %8158 = vmatprep.subr.bf16.mxu0 0
        %8159 = vmatpush1.bf16.msra.mxu0 0
        %8160 = vmatprep.subr.bf16.mxu0 0
        %8161 = vmatpush1.bf16.msra.mxu0 0
        %8162 = vmatprep.subr.bf16.mxu0 0
        %8163 = vmatpush1.bf16.msra.mxu0 %v8137
        %8164 = vmatprep.subr.bf16.mxu0 0
        %8165 = vmatpush1.bf16.msra.mxu0 %v8136
        %8166 = vmatprep.subr.bf16.mxu0 0
        %8167 = vmatpush1.bf16.msra.mxu0 %v8135
        %8168 = vmatprep.subr.bf16.mxu0 0
        %8169 = vmatpush1.bf16.msra.mxu0 %v8134
        %8170 = vmatprep.subr.bf16.mxu0 0
        %8171 = vmatpush2.bf16.msra.mxu0 0
        %8172 = vmatprep.subr.bf16.mxu0 0
        %8173 = vmatpush2.bf16.msra.mxu0 0
        %8174 = vmatprep.subr.bf16.mxu0 0
        %8175 = vmatpush2.bf16.msra.mxu0 0
        %8176 = vmatprep.subr.bf16.mxu0 0
        %8177 = vmatpush2.bf16.msra.mxu0 0
        %8178 = vmatprep.subr.bf16.mxu0 0
        %8179 = vmatpush2.bf16.msra.mxu0 0
        %8180 = vmatprep.subr.bf16.mxu0 0
        %8181 = vmatpush2.bf16.msra.mxu0 0
        %8182 = vmatprep.subr.bf16.mxu0 0
        %8183 = vmatpush2.bf16.msra.mxu0 0
        %8184 = vmatprep.subr.bf16.mxu0 0
        %8185 = vmatpush2.bf16.msra.mxu0 0
        %8186 = vmatprep.mubr.bf16.mxu0 0
        %8187 = vmatmul.mubr.bf16.gmra.mxu0 %v8143
        %v8188 = vpop.f32.mrf.mxu0
        %v8189 = vadd.f32 %v8116, %v8188
        %v8190 = vpop.f32.mrf.mxu0
        %v8191 = vpop.f32.mrf.mxu0
        %v8192 = vadd.f32 %v8116, %v8191
        %v8193 = vpop.f32.mrf.mxu0
        %8194 = vmatprep.mubr.bf16.mxu0 0
        %8195 = vmatmul.mubr.bf16.gmra.mxu0 %v8146
        %v8196 = vpop.f32.mrf.mxu0
        %v8197 = vadd.f32 %v8116, %v8196
        %v8198 = vpop.f32.mrf.mxu0
        %v8199 = vpop.f32.mrf.mxu0
        %v8200 = vadd.f32 %v8116, %v8199
        %v8201 = vpop.f32.mrf.mxu0
        %8202 = vmatprep.mubr.bf16.mxu0 0
        %8203 = vmatmul.mubr.bf16.gmra.mxu0 %v8149
        %v8204 = vpop.f32.mrf.mxu0
        %v8205 = vadd.f32 %v8116, %v8204
        %v8206 = vpop.f32.mrf.mxu0
        %v8207 = vpop.f32.mrf.mxu0
        %v8208 = vadd.f32 %v8116, %v8207
        %v8209 = vpop.f32.mrf.mxu0
        %8210 = vmatprep.mubr.bf16.mxu0 0
        %8211 = vmatmul.mubr.bf16.gmra.mxu0 %v8152
        %v8212 = vpop.f32.mrf.mxu0
        %v8213 = vadd.f32 %v8116, %v8212
        %v8214 = vpop.f32.mrf.mxu0
        %v8215 = vpop.f32.mrf.mxu0
        %v8216 = vadd.f32 %v8116, %v8215
        %v8217 = vpop.f32.mrf.mxu0
        %8218 = vdwg.mxu0
        %v8219 = vmax.f32 %v8189, 0.0
        %v8220 = vmax.f32 %v8192, 0.0
        %v8221 = vmax.f32 %v8197, 0.0
        %v8222 = vmax.f32 %v8200, 0.0
        %v8223 = vmax.f32 %v8205, 0.0
        %v8224 = vmax.f32 %v8208, 0.0
        %v8225 = vmax.f32 %v8213, 0.0
        %v8226 = vmax.f32 %v8216, 0.0
        %v8227 = vand.u32 2147483647, %v8189
        %v8228 = vand.u32 2147483647, %v8192
        %v8229 = vand.u32 2147483647, %v8197
        %v8230 = vand.u32 2147483647, %v8200
        %v8231 = vand.u32 2147483647, %v8205
        %v8232 = vand.u32 2147483647, %v8208
        %v8233 = vand.u32 2147483647, %v8213
        %v8234 = vand.u32 2147483647, %v8216
        %v8235 = vsub.f32 0.0, %v8227
        %v8236 = vsub.f32 0.0, %v8228
        %v8237 = vsub.f32 0.0, %v8229
        %v8238 = vsub.f32 0.0, %v8230
        %v8239 = vsub.f32 0.0, %v8231
        %v8240 = vsub.f32 0.0, %v8232
        %v8241 = vsub.f32 0.0, %v8233
        %v8242 = vsub.f32 0.0, %v8234
        %v8243 = vmul.f32 %v8235, 1.442695
        %v8244 = vpow.pop %v8243
        %v8245 = vmul.f32 %v8236, 1.442695
        %v8246 = vpow.pop %v8245
        %v8247 = vmul.f32 %v8237, 1.442695
        %v8248 = vpow.pop %v8247
        %v8249 = vmul.f32 %v8238, 1.442695
        %v8250 = vpow.pop %v8249
        %v8251 = vmul.f32 %v8239, 1.442695
        %v8252 = vpow.pop %v8251
        %v8253 = vmul.f32 %v8240, 1.442695
        %v8254 = vpow.pop %v8253
        %v8255 = vmul.f32 %v8241, 1.442695
        %v8256 = vpow.pop %v8255
        %v8257 = vmul.f32 %v8242, 1.442695
        %v8258 = vpow.pop %v8257
        %v8259 = vadd.f32 %v8244, 1.0
        %v8260 = vlog2.pop %v8259
        %v8261 = vmul.f32 %v8260, 0.6931472
        %v8262 = vmul.f32 -0.5, %v8244
        %v8263 = vadd.f32 %v8262, 1.0
        %v8264 = vmul.f32 %v8263, %v8244
        %v8265 = vand.u32 2147483647, %v8244
        %vm8266 = vcmp.lt.f32.partialorder %v8265, 0.0004427343
        %v8267 = vsel %vm8266, %v8264, %v8261
        %v8268 = vadd.f32 %v8246, 1.0
        %v8269 = vlog2.pop %v8268
        %v8270 = vmul.f32 %v8269, 0.6931472
        %v8271 = vmul.f32 -0.5, %v8246
        %v8272 = vadd.f32 %v8271, 1.0
        %v8273 = vmul.f32 %v8272, %v8246
        %v8274 = vand.u32 2147483647, %v8246
        %vm8275 = vcmp.lt.f32.partialorder %v8274, 0.0004427343
        %v8276 = vsel %vm8275, %v8273, %v8270
        %v8277 = vadd.f32 %v8248, 1.0
        %v8278 = vlog2.pop %v8277
        %v8279 = vmul.f32 %v8278, 0.6931472
        %v8280 = vmul.f32 -0.5, %v8248
        %v8281 = vadd.f32 %v8280, 1.0
        %v8282 = vmul.f32 %v8281, %v8248
        %v8283 = vand.u32 2147483647, %v8248
        %vm8284 = vcmp.lt.f32.partialorder %v8283, 0.0004427343
        %v8285 = vsel %vm8284, %v8282, %v8279
        %v8286 = vadd.f32 %v8250, 1.0
        %v8287 = vlog2.pop %v8286
        %v8288 = vmul.f32 %v8287, 0.6931472
        %v8289 = vmul.f32 -0.5, %v8250
        %v8290 = vadd.f32 %v8289, 1.0
        %v8291 = vmul.f32 %v8290, %v8250
        %v8292 = vand.u32 2147483647, %v8250
        %vm8293 = vcmp.lt.f32.partialorder %v8292, 0.0004427343
        %v8294 = vsel %vm8293, %v8291, %v8288
        %v8295 = vadd.f32 %v8252, 1.0
        %v8296 = vlog2.pop %v8295
        %v8297 = vmul.f32 %v8296, 0.6931472
        %v8298 = vmul.f32 -0.5, %v8252
        %v8299 = vadd.f32 %v8298, 1.0
        %v8300 = vmul.f32 %v8299, %v8252
        %v8301 = vand.u32 2147483647, %v8252
        %vm8302 = vcmp.lt.f32.partialorder %v8301, 0.0004427343
        %v8303 = vsel %vm8302, %v8300, %v8297
        %v8304 = vadd.f32 %v8254, 1.0
        %v8305 = vlog2.pop %v8304
        %v8306 = vmul.f32 %v8305, 0.6931472
        %v8307 = vmul.f32 -0.5, %v8254
        %v8308 = vadd.f32 %v8307, 1.0
        %v8309 = vmul.f32 %v8308, %v8254
        %v8310 = vand.u32 2147483647, %v8254
        %vm8311 = vcmp.lt.f32.partialorder %v8310, 0.0004427343
        %v8312 = vsel %vm8311, %v8309, %v8306
        %v8313 = vadd.f32 %v8256, 1.0
        %v8314 = vlog2.pop %v8313
        %v8315 = vmul.f32 %v8314, 0.6931472
        %v8316 = vmul.f32 -0.5, %v8256
        %v8317 = vadd.f32 %v8316, 1.0
        %v8318 = vmul.f32 %v8317, %v8256
        %v8319 = vand.u32 2147483647, %v8256
        %vm8320 = vcmp.lt.f32.partialorder %v8319, 0.0004427343
        %v8321 = vsel %vm8320, %v8318, %v8315
        %v8322 = vadd.f32 %v8258, 1.0
        %v8323 = vlog2.pop %v8322
        %v8324 = vmul.f32 %v8323, 0.6931472
        %v8325 = vmul.f32 -0.5, %v8258
        %v8326 = vadd.f32 %v8325, 1.0
        %v8327 = vmul.f32 %v8326, %v8258
        %v8328 = vand.u32 2147483647, %v8258
        %vm8329 = vcmp.lt.f32.partialorder %v8328, 0.0004427343
        %v8330 = vsel %vm8329, %v8327, %v8324
        %v8331 = vadd.f32 %v8219, %v8267
        %v8332 = vadd.f32 %v8220, %v8276
        %v8333 = vadd.f32 %v8221, %v8285
        %v8334 = vadd.f32 %v8222, %v8294
        %v8335 = vadd.f32 %v8223, %v8303
        %v8336 = vadd.f32 %v8224, %v8312
        %v8337 = vadd.f32 %v8225, %v8321
        %v8338 = vadd.f32 %v8226, %v8330
        %v8339 = vtanh.pop %v8331
        %v8340 = vtanh.pop %v8332
        %v8341 = vtanh.pop %v8333
        %v8342 = vtanh.pop %v8334
        %v8343 = vtanh.pop %v8335
        %v8344 = vtanh.pop %v8336
        %v8345 = vtanh.pop %v8337
        %v8346 = vtanh.pop %v8338
        %v8347 = vmul.f32 %v8189, %v8339
        %v8348 = vmul.f32 %v8192, %v8340
        %v8349 = vmul.f32 %v8197, %v8341
        %v8350 = vmul.f32 %v8200, %v8342
        %v8351 = vmul.f32 %v8205, %v8343
        %v8352 = vmul.f32 %v8208, %v8344
        %v8353 = vmul.f32 %v8213, %v8345
        %v8354 = vmul.f32 %v8216, %v8346
        %v8355 = vpack.c.bf16 %v8348, %v8347
        %v8356 = vpack.c.bf16 %v8350, %v8349
        %v8357 = vpack.c.bf16 %v8352, %v8351
        %v8358 = vpack.c.bf16 %v8354, %v8353
        %v8359 = vld [vmem:[%s15] sm:$0xf]
        %v8360 = vld [vmem:[%s15 + $0x4] sm:$0xf]
        %v8361 = vld [vmem:[%s15 + $0x8] sm:$0xf]
        %v8362 = vld [vmem:[%s15 + $0xc] sm:$0xf]
        %v8363 = vld [vmem:[%s15 + $0x10] sm:$0xf]
        %v8364 = vld [vmem:[%s15 + $0x14] sm:$0xf]
        %v8365 = vld [vmem:[%s15 + $0x18] sm:$0xf]
        %v8366 = vld [vmem:[%s15 + $0x1c] sm:$0xf]
        %v8367 = vpack.c.bf16 %v3278, %v3277
        %v8368 = vpack.c.bf16 %v3280, %v3279
        %v8369 = vpack.c.bf16 %v3282, %v3281
        %v8370 = vpack.c.bf16 %v3284, %v3283
        %s8371 = scalar_lea.vmem %s15, 32
        %v8372 = vld [vmem:[%s8371] sm:$0xf]
        %v8373 = vld [vmem:[%s8371 + $0x4] sm:$0xf]
        %v8374 = vld [vmem:[%s8371 + $0x8] sm:$0xf]
        %v8375 = vld [vmem:[%s8371 + $0xc] sm:$0xf]
        %v8376 = vld [vmem:[%s8371 + $0x10] sm:$0xf]
        %v8377 = vld [vmem:[%s8371 + $0x14] sm:$0xf]
        %v8378 = vld [vmem:[%s8371 + $0x18] sm:$0xf]
        %v8379 = vld [vmem:[%s8371 + $0x1c] sm:$0xf]
        %v8388 = vunpack.c.l.b16 %v8372
        %v8389 = vunpack.c.l.b16 %v8373
        %v8390 = vunpack.c.l.b16 %v8374
        %v8391 = vunpack.c.l.b16 %v8375
        %v8392 = vunpack.c.l.b16 %v8376
        %v8393 = vunpack.c.l.b16 %v8377
        %v8394 = vunpack.c.l.b16 %v8378
        %v8395 = vunpack.c.l.b16 %v8379
        %v8396 = vpack.c.b16 %v8389, %v8388
        %v8397 = vpack.c.b16 %v8391, %v8390
        %v8398 = vpack.c.b16 %v8393, %v8392
        %v8399 = vpack.c.b16 %v8395, %v8394
        %v8405 = vsel %vm1027, %v8367, 0
        %v8408 = vsel %vm1027, %v8368, 0
        %v8411 = vsel %vm1027, %v8369, 0
        %v8414 = vsel %vm1027, %v8370, 0
        %8416 = vmatprep.subr.bf16.mxu0 0
        %8417 = vmatpush1.bf16.msra.mxu0 0
        %8418 = vmatprep.subr.bf16.mxu0 0
        %8419 = vmatpush1.bf16.msra.mxu0 0
        %8420 = vmatprep.subr.bf16.mxu0 0
        %8421 = vmatpush1.bf16.msra.mxu0 0
        %8422 = vmatprep.subr.bf16.mxu0 0
        %8423 = vmatpush1.bf16.msra.mxu0 0
        %8424 = vmatprep.subr.bf16.mxu0 0
        %8425 = vmatpush1.bf16.msra.mxu0 %v8399
        %8426 = vmatprep.subr.bf16.mxu0 0
        %8427 = vmatpush1.bf16.msra.mxu0 %v8398
        %8428 = vmatprep.subr.bf16.mxu0 0
        %8429 = vmatpush1.bf16.msra.mxu0 %v8397
        %8430 = vmatprep.subr.bf16.mxu0 0
        %8431 = vmatpush1.bf16.msra.mxu0 %v8396
        %8432 = vmatprep.subr.bf16.mxu0 0
        %8433 = vmatpush2.bf16.msra.mxu0 0
        %8434 = vmatprep.subr.bf16.mxu0 0
        %8435 = vmatpush2.bf16.msra.mxu0 0
        %8436 = vmatprep.subr.bf16.mxu0 0
        %8437 = vmatpush2.bf16.msra.mxu0 0
        %8438 = vmatprep.subr.bf16.mxu0 0
        %8439 = vmatpush2.bf16.msra.mxu0 0
        %8440 = vmatprep.subr.bf16.mxu0 0
        %8441 = vmatpush2.bf16.msra.mxu0 0
        %8442 = vmatprep.subr.bf16.mxu0 0
        %8443 = vmatpush2.bf16.msra.mxu0 0
        %8444 = vmatprep.subr.bf16.mxu0 0
        %8445 = vmatpush2.bf16.msra.mxu0 0
        %8446 = vmatprep.subr.bf16.mxu0 0
        %8447 = vmatpush2.bf16.msra.mxu0 0
        %8448 = vmatprep.mubr.bf16.mxu0 0
        %8449 = vmatmul.mubr.bf16.gmra.mxu0 %v8405
        %v8450 = vpop.f32.mrf.mxu0
        %v8451 = vadd.f32 0.0, %v8450
        %v8452 = vpop.f32.mrf.mxu0
        %v8453 = vpop.f32.mrf.mxu0
        %v8454 = vadd.f32 0.0, %v8453
        %v8455 = vpop.f32.mrf.mxu0
        %8456 = vmatprep.mubr.bf16.mxu0 0
        %8457 = vmatmul.mubr.bf16.gmra.mxu0 %v8408
        %v8458 = vpop.f32.mrf.mxu0
        %v8459 = vadd.f32 0.0, %v8458
        %v8460 = vpop.f32.mrf.mxu0
        %v8461 = vpop.f32.mrf.mxu0
        %v8462 = vadd.f32 0.0, %v8461
        %v8463 = vpop.f32.mrf.mxu0
        %8464 = vmatprep.mubr.bf16.mxu0 0
        %8465 = vmatmul.mubr.bf16.gmra.mxu0 %v8411
        %v8466 = vpop.f32.mrf.mxu0
        %v8467 = vadd.f32 0.0, %v8466
        %v8468 = vpop.f32.mrf.mxu0
        %v8469 = vpop.f32.mrf.mxu0
        %v8470 = vadd.f32 0.0, %v8469
        %v8471 = vpop.f32.mrf.mxu0
        %8472 = vmatprep.mubr.bf16.mxu0 0
        %8473 = vmatmul.mubr.bf16.gmra.mxu0 %v8414
        %v8474 = vpop.f32.mrf.mxu0
        %v8475 = vadd.f32 0.0, %v8474
        %v8476 = vpop.f32.mrf.mxu0
        %v8477 = vpop.f32.mrf.mxu0
        %v8478 = vadd.f32 0.0, %v8477
        %v8479 = vpop.f32.mrf.mxu0
        %8480 = vdwg.mxu0
        %v8489 = vunpack.c.l.b16 %v8359
        %v8490 = vunpack.c.l.b16 %v8360
        %v8491 = vunpack.c.l.b16 %v8361
        %v8492 = vunpack.c.l.b16 %v8362
        %v8493 = vunpack.c.l.b16 %v8363
        %v8494 = vunpack.c.l.b16 %v8364
        %v8495 = vunpack.c.l.b16 %v8365
        %v8496 = vunpack.c.l.b16 %v8366
        %v8497 = vpack.c.b16 %v8490, %v8489
        %v8498 = vpack.c.b16 %v8492, %v8491
        %v8499 = vpack.c.b16 %v8494, %v8493
        %v8500 = vpack.c.b16 %v8496, %v8495
        %v8506 = vsel %vm1027, %v8355, 0
        %v8509 = vsel %vm1027, %v8356, 0
        %v8512 = vsel %vm1027, %v8357, 0
        %v8515 = vsel %vm1027, %v8358, 0
        %8517 = vmatprep.subr.bf16.mxu0 0
        %8518 = vmatpush1.bf16.msra.mxu0 0
        %8519 = vmatprep.subr.bf16.mxu0 0
        %8520 = vmatpush1.bf16.msra.mxu0 0
        %8521 = vmatprep.subr.bf16.mxu0 0
        %8522 = vmatpush1.bf16.msra.mxu0 0
        %8523 = vmatprep.subr.bf16.mxu0 0
        %8524 = vmatpush1.bf16.msra.mxu0 0
        %8525 = vmatprep.subr.bf16.mxu0 0
        %8526 = vmatpush1.bf16.msra.mxu0 %v8500
        %8527 = vmatprep.subr.bf16.mxu0 0
        %8528 = vmatpush1.bf16.msra.mxu0 %v8499
        %8529 = vmatprep.subr.bf16.mxu0 0
        %8530 = vmatpush1.bf16.msra.mxu0 %v8498
        %8531 = vmatprep.subr.bf16.mxu0 0
        %8532 = vmatpush1.bf16.msra.mxu0 %v8497
        %8533 = vmatprep.subr.bf16.mxu0 0
        %8534 = vmatpush2.bf16.msra.mxu0 0
        %8535 = vmatprep.subr.bf16.mxu0 0
        %8536 = vmatpush2.bf16.msra.mxu0 0
        %8537 = vmatprep.subr.bf16.mxu0 0
        %8538 = vmatpush2.bf16.msra.mxu0 0
        %8539 = vmatprep.subr.bf16.mxu0 0
        %8540 = vmatpush2.bf16.msra.mxu0 0
        %8541 = vmatprep.subr.bf16.mxu0 0
        %8542 = vmatpush2.bf16.msra.mxu0 0
        %8543 = vmatprep.subr.bf16.mxu0 0
        %8544 = vmatpush2.bf16.msra.mxu0 0
        %8545 = vmatprep.subr.bf16.mxu0 0
        %8546 = vmatpush2.bf16.msra.mxu0 0
        %8547 = vmatprep.subr.bf16.mxu0 0
        %8548 = vmatpush2.bf16.msra.mxu0 0
        %8549 = vmatprep.mubr.bf16.mxu0 0
        %8550 = vmatmul.mubr.bf16.gmra.mxu0 %v8506
        %v8551 = vpop.f32.mrf.mxu0
        %v8552 = vadd.f32 %v8451, %v8551
        %v8553 = vpop.f32.mrf.mxu0
        %v8554 = vpop.f32.mrf.mxu0
        %v8555 = vadd.f32 %v8454, %v8554
        %v8556 = vpop.f32.mrf.mxu0
        %8557 = vmatprep.mubr.bf16.mxu0 0
        %8558 = vmatmul.mubr.bf16.gmra.mxu0 %v8509
        %v8559 = vpop.f32.mrf.mxu0
        %v8560 = vadd.f32 %v8459, %v8559
        %v8561 = vpop.f32.mrf.mxu0
        %v8562 = vpop.f32.mrf.mxu0
        %v8563 = vadd.f32 %v8462, %v8562
        %v8564 = vpop.f32.mrf.mxu0
        %8565 = vmatprep.mubr.bf16.mxu0 0
        %8566 = vmatmul.mubr.bf16.gmra.mxu0 %v8512
        %v8567 = vpop.f32.mrf.mxu0
        %v8568 = vadd.f32 %v8467, %v8567
        %v8569 = vpop.f32.mrf.mxu0
        %v8570 = vpop.f32.mrf.mxu0
        %v8571 = vadd.f32 %v8470, %v8570
        %v8572 = vpop.f32.mrf.mxu0
        %8573 = vmatprep.mubr.bf16.mxu0 0
        %8574 = vmatmul.mubr.bf16.gmra.mxu0 %v8515
        %v8575 = vpop.f32.mrf.mxu0
        %v8576 = vadd.f32 %v8475, %v8575
        %v8577 = vpop.f32.mrf.mxu0
        %v8578 = vpop.f32.mrf.mxu0
        %v8579 = vadd.f32 %v8478, %v8578
        %v8580 = vpop.f32.mrf.mxu0
        %8581 = vdwg.mxu0
        %v8582 = vld [vmem:[%s16] sm:$0x1]
        %v8584 = vlaneseq
        %v8585 = vshrl.u32 %v8584, 7
        %v8586 = vsub.s32 0, %v8585
        %v8587 = vrot.slane %v8582, %v8586
        %v8589 = vadd.f32 %v8552, %v8587
        %v8590 = vadd.f32 %v8555, %v8587
        %v8591 = vadd.f32 %v8560, %v8587
        %v8592 = vadd.f32 %v8563, %v8587
        %v8593 = vadd.f32 %v8568, %v8587
        %v8594 = vadd.f32 %v8571, %v8587
        %v8595 = vadd.f32 %v8576, %v8587
        %v8596 = vadd.f32 %v8579, %v8587
        %v8597 = vmax.f32 %v8589, 0.0
        %v8598 = vmax.f32 %v8590, 0.0
        %v8599 = vmax.f32 %v8591, 0.0
        %v8600 = vmax.f32 %v8592, 0.0
        %v8601 = vmax.f32 %v8593, 0.0
        %v8602 = vmax.f32 %v8594, 0.0
        %v8603 = vmax.f32 %v8595, 0.0
        %v8604 = vmax.f32 %v8596, 0.0
        %v8605 = vand.u32 2147483647, %v8589
        %v8606 = vand.u32 2147483647, %v8590
        %v8607 = vand.u32 2147483647, %v8591
        %v8608 = vand.u32 2147483647, %v8592
        %v8609 = vand.u32 2147483647, %v8593
        %v8610 = vand.u32 2147483647, %v8594
        %v8611 = vand.u32 2147483647, %v8595
        %v8612 = vand.u32 2147483647, %v8596
        %v8613 = vsub.f32 0.0, %v8605
        %v8614 = vsub.f32 0.0, %v8606
        %v8615 = vsub.f32 0.0, %v8607
        %v8616 = vsub.f32 0.0, %v8608
        %v8617 = vsub.f32 0.0, %v8609
        %v8618 = vsub.f32 0.0, %v8610
        %v8619 = vsub.f32 0.0, %v8611
        %v8620 = vsub.f32 0.0, %v8612
        %v8621 = vmul.f32 %v8613, 1.442695
        %v8622 = vpow.pop %v8621
        %v8623 = vmul.f32 %v8614, 1.442695
        %v8624 = vpow.pop %v8623
        %v8625 = vmul.f32 %v8615, 1.442695
        %v8626 = vpow.pop %v8625
        %v8627 = vmul.f32 %v8616, 1.442695
        %v8628 = vpow.pop %v8627
        %v8629 = vmul.f32 %v8617, 1.442695
        %v8630 = vpow.pop %v8629
        %v8631 = vmul.f32 %v8618, 1.442695
        %v8632 = vpow.pop %v8631
        %v8633 = vmul.f32 %v8619, 1.442695
        %v8634 = vpow.pop %v8633
        %v8635 = vmul.f32 %v8620, 1.442695
        %v8636 = vpow.pop %v8635
        %v8637 = vadd.f32 %v8622, 1.0
        %v8638 = vlog2.pop %v8637
        %v8639 = vmul.f32 %v8638, 0.6931472
        %v8640 = vmul.f32 -0.5, %v8622
        %v8641 = vadd.f32 %v8640, 1.0
        %v8642 = vmul.f32 %v8641, %v8622
        %v8643 = vand.u32 2147483647, %v8622
        %vm8644 = vcmp.lt.f32.partialorder %v8643, 0.0004427343
        %v8645 = vsel %vm8644, %v8642, %v8639
        %v8646 = vadd.f32 %v8624, 1.0
        %v8647 = vlog2.pop %v8646
        %v8648 = vmul.f32 %v8647, 0.6931472
        %v8649 = vmul.f32 -0.5, %v8624
        %v8650 = vadd.f32 %v8649, 1.0
        %v8651 = vmul.f32 %v8650, %v8624
        %v8652 = vand.u32 2147483647, %v8624
        %vm8653 = vcmp.lt.f32.partialorder %v8652, 0.0004427343
        %v8654 = vsel %vm8653, %v8651, %v8648
        %v8655 = vadd.f32 %v8626, 1.0
        %v8656 = vlog2.pop %v8655
        %v8657 = vmul.f32 %v8656, 0.6931472
        %v8658 = vmul.f32 -0.5, %v8626
        %v8659 = vadd.f32 %v8658, 1.0
        %v8660 = vmul.f32 %v8659, %v8626
        %v8661 = vand.u32 2147483647, %v8626
        %vm8662 = vcmp.lt.f32.partialorder %v8661, 0.0004427343
        %v8663 = vsel %vm8662, %v8660, %v8657
        %v8664 = vadd.f32 %v8628, 1.0
        %v8665 = vlog2.pop %v8664
        %v8666 = vmul.f32 %v8665, 0.6931472
        %v8667 = vmul.f32 -0.5, %v8628
        %v8668 = vadd.f32 %v8667, 1.0
        %v8669 = vmul.f32 %v8668, %v8628
        %v8670 = vand.u32 2147483647, %v8628
        %vm8671 = vcmp.lt.f32.partialorder %v8670, 0.0004427343
        %v8672 = vsel %vm8671, %v8669, %v8666
        %v8673 = vadd.f32 %v8630, 1.0
        %v8674 = vlog2.pop %v8673
        %v8675 = vmul.f32 %v8674, 0.6931472
        %v8676 = vmul.f32 -0.5, %v8630
        %v8677 = vadd.f32 %v8676, 1.0
        %v8678 = vmul.f32 %v8677, %v8630
        %v8679 = vand.u32 2147483647, %v8630
        %vm8680 = vcmp.lt.f32.partialorder %v8679, 0.0004427343
        %v8681 = vsel %vm8680, %v8678, %v8675
        %v8682 = vadd.f32 %v8632, 1.0
        %v8683 = vlog2.pop %v8682
        %v8684 = vmul.f32 %v8683, 0.6931472
        %v8685 = vmul.f32 -0.5, %v8632
        %v8686 = vadd.f32 %v8685, 1.0
        %v8687 = vmul.f32 %v8686, %v8632
        %v8688 = vand.u32 2147483647, %v8632
        %vm8689 = vcmp.lt.f32.partialorder %v8688, 0.0004427343
        %v8690 = vsel %vm8689, %v8687, %v8684
        %v8691 = vadd.f32 %v8634, 1.0
        %v8692 = vlog2.pop %v8691
        %v8693 = vmul.f32 %v8692, 0.6931472
        %v8694 = vmul.f32 -0.5, %v8634
        %v8695 = vadd.f32 %v8694, 1.0
        %v8696 = vmul.f32 %v8695, %v8634
        %v8697 = vand.u32 2147483647, %v8634
        %vm8698 = vcmp.lt.f32.partialorder %v8697, 0.0004427343
        %v8699 = vsel %vm8698, %v8696, %v8693
        %v8700 = vadd.f32 %v8636, 1.0
        %v8701 = vlog2.pop %v8700
        %v8702 = vmul.f32 %v8701, 0.6931472
        %v8703 = vmul.f32 -0.5, %v8636
        %v8704 = vadd.f32 %v8703, 1.0
        %v8705 = vmul.f32 %v8704, %v8636
        %v8706 = vand.u32 2147483647, %v8636
        %vm8707 = vcmp.lt.f32.partialorder %v8706, 0.0004427343
        %v8708 = vsel %vm8707, %v8705, %v8702
        %v8709 = vadd.f32 %v8597, %v8645
        %v8710 = vadd.f32 %v8598, %v8654
        %v8711 = vadd.f32 %v8599, %v8663
        %v8712 = vadd.f32 %v8600, %v8672
        %v8713 = vadd.f32 %v8601, %v8681
        %v8714 = vadd.f32 %v8602, %v8690
        %v8715 = vadd.f32 %v8603, %v8699
        %v8716 = vadd.f32 %v8604, %v8708
        %v8717 = vtanh.pop %v8709
        %v8718 = vtanh.pop %v8710
        %v8719 = vtanh.pop %v8711
        %v8720 = vtanh.pop %v8712
        %v8721 = vtanh.pop %v8713
        %v8722 = vtanh.pop %v8714
        %v8723 = vtanh.pop %v8715
        %v8724 = vtanh.pop %v8716
        %v8725 = vmul.f32 %v8589, %v8717
        %v8726 = vmul.f32 %v8590, %v8718
        %v8727 = vmul.f32 %v8591, %v8719
        %v8728 = vmul.f32 %v8592, %v8720
        %v8729 = vmul.f32 %v8593, %v8721
        %v8730 = vmul.f32 %v8594, %v8722
        %v8731 = vmul.f32 %v8595, %v8723
        %v8732 = vmul.f32 %v8596, %v8724
        %v8733 = vpack.c.bf16 %v8726, %v8725
        %v8734 = vpack.c.bf16 %v8728, %v8727
        %v8735 = vpack.c.bf16 %v8730, %v8729
        %v8736 = vpack.c.bf16 %v8732, %v8731
        %v8741 = vunpack.c.l.b16 %v8733
        %v8742 = vunpack.c.h.b16 %v8733
        %v8743 = vunpack.c.l.b16 %v8734
        %v8744 = vunpack.c.h.b16 %v8734
        %v8745 = vunpack.c.l.b16 %v8735
        %v8746 = vunpack.c.h.b16 %v8735
        %v8747 = vunpack.c.l.b16 %v8736
        %v8748 = vunpack.c.h.b16 %v8736
        %v8749 = vpack.c.b16 %v8741, %v8741
        %v8750 = vpack.c.b16 %v8742, %v8742
        %v8751 = vpack.c.b16 %v8743, %v8743
        %v8752 = vpack.c.b16 %v8744, %v8744
        %v8753 = vpack.c.b16 %v8745, %v8745
        %v8754 = vpack.c.b16 %v8746, %v8746
        %v8755 = vpack.c.b16 %v8747, %v8747
        %v8756 = vpack.c.b16 %v8748, %v8748
        %8765 = vst [vmem:[%s621] sm:$0xf] %v8749
        %8766 = vst [vmem:[%s621 + $0x4] sm:$0xf] %v8750
        %8767 = vst [vmem:[%s621 + $0x8] sm:$0xf] %v8751
        %8768 = vst [vmem:[%s621 + $0xc] sm:$0xf] %v8752
        %8769 = vst [vmem:[%s621 + $0x10] sm:$0xf] %v8753
        %8770 = vst [vmem:[%s621 + $0x14] sm:$0xf] %v8754
        %8771 = vst [vmem:[%s621 + $0x18] sm:$0xf] %v8755
        %8772 = vst [vmem:[%s621 + $0x1c] sm:$0xf] %v8756
        %p8773 = scmp.lt.s32.totalorder %s31, 1
        %s8774 = scalar_select %p8773, %s31, 1
        %s8775 = smul.addr %s8774, 8
        %s8776 = smul.addr %s8775, 4
        %s8777 = scalar_lea.vmem %s17, %s8776
        // Predicated region
        $region109: #{downsample2_forward.1} parent=87 // pred_check
          %p8778 = pneg %p411
        $region110: #{downsample2_forward.1} parent=87 // pred_check_branch
          %8780 = sbr.rel (%p8778) target = $region112
        $region111: #{downsample2_forward.1} parent=87 // pred_region
          _
        $region112: #{downsample2_forward.1} parent=87 // pred_fallthru
          _
      $region88: #{downsample2_forward.1} parent=5 // pred_fallthru
        _
      %p8781 = scmp.le.s32.totalorder 2, %s26
      // Predicated region
      $region113: #{downsample2_forward.1} parent=5 // pred_check
        %p8782 = pneg %p8781
      $region114: #{downsample2_forward.1} parent=5 // pred_check_branch
        %8784 = sbr.rel (%p8782) target = $region116
      $region115: #{downsample2_forward.1} parent=5 // pred_region
        %s8785 = ssub.s32 %s26, 2
        // Predicated region
        $region117: #{downsample2_forward.1} parent=115 // pred_check
          %p8786 = pneg %p417
        $region118: #{downsample2_forward.1} parent=115 // pred_check_branch
          %8788 = sbr.rel (%p8786) target = $region120
        $region119: #{downsample2_forward.1} parent=115 // pred_region
          %p8789 = scmp.lt.s32.totalorder %s32, 1
          %s8790 = scalar_select %p8789, %s32, 1
          %s8791 = smul.addr %s8790, 8
          %s8792 = smul.addr %s8791, 4
          %s8793 = scalar_lea.vmem %s17, %s8792
        $region120: #{downsample2_forward.1} parent=115 // pred_fallthru
          _
      $region116: #{downsample2_forward.1} parent=5 // pred_fallthru
        _
    $region6: #{downsample2_forward.1} parent=1 // loop_footer
      %s30 = sadd.s32 1, %s26
    $region7: #{downsample2_forward.1} parent=1 // loop_footer_branch
      %25 = sbr.rel target = $region3
    $region8: #{downsample2_forward.1} parent=1 // loop_exit
      _
    %8794 = vsyncpa [#allocation3], 1
    %s8795 = scalar_lea.sflag [#allocation3], 1
    %8796 = vsyncpa %s8795, 1
    %8797 = vsyncpa [#allocation5], 1
    %8798 = vsyncpa [#allocation8], 1

</llo_original>
